<compile_context>
chip_gen: v6e
topology: v6e:2x2x1
jax: 0.10.0
libtpu: 0.0.40
codegen_flags: <defaults>
</compile_context>

<pallas_src>
import math
import jax
import jax.numpy as jnp
from jax import lax
from jax.experimental import pallas as pl
from jax.experimental.pallas import tpu as pltpu


def _round_up(n, m):
    return ((n + m - 1) // m) * m


# ---------------------------------------------------------------------------
# Pallas kernels
# ---------------------------------------------------------------------------

def _make_fused_gat_kernel(num_layers, hidden):
    """Fused stack of `num_layers` GATConv(heads=1, edge_dim=1) + ReLU per graph.

    Ref order: x, w_t, neg_bias, (wp, ws_row, bias, k_edge) per layer, out.
      x        : (1, Np, Fin0)  f32, zero rows for pad nodes
      w_t      : (1, Np, Np)    f32, dst-major edge weights (self loops folded in)
      neg_bias : (1, Np, Np)    f32, -1e30 on non-edges / pad entries, 0 on edges
      wp       : (Fin_l, H+1)   bf16 = [W_l, W_l @ att_dst_l^T]
      ws_row   : (1, Fin_l)     bf16 = (W_l @ att_src_l^T)^T
      bias     : (1, H)         f32
      k_edge   : (1, 1)         f32 = sum(W_edge * att_edge)
      out      : (1, Np, L*H)   f32, per-layer features streamed into lane slices
    """
    H = hidden

    def kernel(*refs):
        x_ref, wt_ref, nb_ref = refs[0:3]
        lrefs = refs[3:3 + 4 * num_layers]
        o_ref = refs[-1]

        h = x_ref[0]                                                    # (Np, Fin0) f32
        for l in range(num_layers):
            wp_ref = lrefs[4 * l + 0]
            ws_ref = lrefs[4 * l + 1]
            b_ref = lrefs[4 * l + 2]
            k_ref = lrefs[4 * l + 3]

            hb = h.astype(jnp.bfloat16)
            # node projection with att_dst fused as the last column (bf16 x bf16, f32 acc)
            hp = jnp.dot(hb, wp_ref[...], preferred_element_type=jnp.float32)   # (Np, H+1)
            hl = hp[:, :H]                                              # (Np, H)
            a_dst = hp[:, H:H + 1]                                      # (Np, 1) varies over dst j
            # a_src as a (1, Np) row: varies over src i (lane axis)
            a_src = lax.dot_general(ws_ref[...], hb, (((1,), (1,)), ((), ())),
                                    preferred_element_type=jnp.float32)         # (1, Np)

            # dst-major logits L[j, i]; per-layer edge term built in-kernel from the
            # shared w_t / neg_bias (mask bias added pre-LeakyReLU -> masked entries
            # become -2e29; identical after exp).
            logits = a_dst + a_src + (k_ref[...] * wt_ref[0] + nb_ref[0])       # (Np, Np)
            logits = jnp.maximum(logits, 0.2 * logits)                  # LeakyReLU(0.2)

            # softmax over sources i (lane axis), normalization deferred
            m = jnp.max(logits, axis=-1, keepdims=True)                 # (Np, 1)
            p = jnp.exp(logits - m)                                     # (Np, Np)
            s = jnp.sum(p, axis=-1, keepdims=True)                      # (Np, 1)

            # out[j, :] = (sum_i p[j, i] * h[i, :]) / s[j] + bias ; then ReLU
            agg = jnp.dot(p.astype(jnp.bfloat16), hl.astype(jnp.bfloat16),
                          preferred_element_type=jnp.float32)           # (Np, H)
            h = jnp.maximum(agg * pl.reciprocal(s, approx=True) + b_ref[...], 0.0)
            o_ref[0, :, l * H:(l + 1) * H] = h                          # stream, no concat

    return kernel


def _mlp_head_kernel(z_ref, w1_ref, b1_ref, w2_ref, b2_ref, o_ref):
    """lin1 -> ReLU -> (dropout: eval identity) -> lin2 -> log_softmax."""
    z = z_ref[...].astype(jnp.bfloat16)
    h = jnp.dot(z, w1_ref[...], preferred_element_type=jnp.float32) + b1_ref[...]
    h = jnp.maximum(h, 0.0)
    # TODO(synk): F.dropout(p=0.5, training=self.training) has no deterministic Pallas
    #             equivalent here; eval-mode (identity) semantics are used.
    logits = jnp.dot(h.astype(jnp.bfloat16), w2_ref[...],
                     preferred_element_type=jnp.float32) + b2_ref[...]
    m = jnp.max(logits, axis=-1, keepdims=True)
    s = logits - m
    lse = jnp.log(jnp.sum(jnp.exp(s), axis=-1, keepdims=True))
    o_ref[...] = s - lse                                                # log_softmax(dim=-1)


# ---------------------------------------------------------------------------
# Wrappers around pallas_call
# ---------------------------------------------------------------------------

def fused_gat(x, w_t, neg_bias, layer_params):
    """x: (B, Np, F0); w_t/neg_bias: (B, Np, Np);
    layer_params: list of (wp bf16 (Fin,H+1), ws_row bf16 (1,Fin), bias f32 (1,H), k f32 (1,1))."""
    B, Np, F0 = x.shape
    L = len(layer_params)
    H = layer_params[0][2].shape[1]

    in_specs = [
        pl.BlockSpec((1, Np, F0), lambda b: (b, 0, 0)),
        pl.BlockSpec((1, Np, Np), lambda b: (b, 0, 0)),
        pl.BlockSpec((1, Np, Np), lambda b: (b, 0, 0)),
    ]
    args = [x, w_t, neg_bias]
    for (wp, ws, bias, kk) in layer_params:
        fin = wp.shape[0]
        in_specs += [
            pl.BlockSpec((fin, H + 1), lambda b: (0, 0)),
            pl.BlockSpec((1, fin), lambda b: (0, 0)),
            pl.BlockSpec((1, H), lambda b: (0, 0)),
            pl.BlockSpec((1, 1), lambda b: (0, 0)),
        ]
        args += [wp, ws, bias, kk]

    return pl.pallas_call(
        _make_fused_gat_kernel(L, H),
        out_shape=jax.ShapeDtypeStruct((B, Np, L * H), jnp.float32),
        grid_spec=pltpu.PrefetchScalarGridSpec(
            num_scalar_prefetch=0,
            grid=(B,),                                   # one graph per step; both v7x TCs busy
            in_specs=in_specs,
            out_specs=pl.BlockSpec((1, Np, L * H), lambda b: (b, 0, 0)),
        ),
        compiler_params=pltpu.CompilerParams(dimension_semantics=("parallel",)),
    )(*args)


def mlp_head(z, w1, b1, w2, b2):
    B = z.shape[0]
    C = w2.shape[1]
    vmem = pltpu.MemorySpace.VMEM
    return pl.pallas_call(
        _mlp_head_kernel,
        out_shape=jax.ShapeDtypeStruct((B, C), jnp.float32),
        in_specs=[pl.BlockSpec(memory_space=vmem)] * 5,
        out_specs=pl.BlockSpec(memory_space=vmem),
    )(z, w1, b1, w2, b2)


# ---------------------------------------------------------------------------
# Glue (plain JAX): self loops with mean fill, parameter setup, full forward
# ---------------------------------------------------------------------------

def add_self_loops_dense(adj_w, adj_m):
    """GATConv: remove_self_loops then add_self_loops(fill_value='mean')."""
    B, N, _ = adj_w.shape
    eye = jnp.eye(N, dtype=jnp.float32)
    m_nd = adj_m * (1.0 - eye)
    w_nd = adj_w * m_nd
    cnt = jnp.sum(m_nd, axis=1)                              # incoming-edge count per dst
    ssum = jnp.sum(w_nd, axis=1)
    loop_w = jnp.where(cnt > 0, ssum / jnp.maximum(cnt, 1.0), 0.0)
    w_full = w_nd + eye[None] * loop_w[:, None, :]
    m_full = jnp.minimum(m_nd + eye[None], 1.0)
    return w_full, m_full


def _uniform(key, shape, bound):
    return jax.random.uniform(key, shape, jnp.float32, -bound, bound)


def init_params(key, num_features, hidden, num_layers, hidden_linear, num_classes, rois=90):
    params = {"gat_layers": []}
    dims = [num_features] + [hidden] * num_layers
    for l in range(num_layers):
        fin = dims[l]
        key, k1, k2, k3, k4, k5 = jax.random.split(key, 6)
        g = math.sqrt(6.0 / (fin + hidden))
        params["gat_layers"].append({
            "w": _uniform(k1, (fin, hidden), g),          # GATConv.lin (no bias)
            "att_src": _uniform(k2, (1, hidden), g),
            "att_dst": _uniform(k3, (1, hidden), g),
            "att_edge": _uniform(k4, (1, hidden), g),
            "w_edge": _uniform(k5, (1, hidden), g),       # lin_edge: Linear(1, hidden)
            "bias": jnp.zeros((1, hidden), jnp.float32),
        })
    in1 = rois * num_layers * hidden
    key, k1, k2, k3, k4 = jax.random.split(key, 5)
    b1 = 1.0 / math.sqrt(in1)
    b2 = 1.0 / math.sqrt(hidden_linear)
    params["w1"] = _uniform(k1, (in1, hidden_linear), b1)
    params["b1"] = _uniform(k2, (1, hidden_linear), b1)
    params["w2"] = _uniform(k3, (hidden_linear, num_classes), b2)
    params["b2"] = _uniform(k4, (1, num_classes), b2)
    # prob / prob_bias / edge_prob exist in __init__ but are unused when isExplain=False.
    return params


def preprocess_params(params, rois=90):
    """One-time weight repacking (runs eagerly, outside the jitted forward)."""
    n_pad = _round_up(rois, 128)
    layers = []
    for layer in params["gat_layers"]:
        W = layer["w"]
        wp = jnp.concatenate([W, W @ layer["att_dst"].T], axis=1).astype(jnp.bfloat16)
        ws = (W @ layer["att_src"].T).T.astype(jnp.bfloat16)
        bias = layer["bias"].astype(jnp.float32)
        # edge_attr is scalar per edge -> alpha_edge = edge_w * sum(W_edge * att_edge)
        kk = jnp.sum(layer["w_edge"] * layer["att_edge"]).reshape(1, 1).astype(jnp.float32)
        layers.append((wp, ws, bias, kk))
    H = params["gat_layers"][0]["bias"].shape[1]
    L = len(params["gat_layers"])
    LH = L * H
    HL = params["w1"].shape[1]
    # Repack lin1 weights to the node-padded layout: rows for pad nodes are zero, so
    # whatever (finite) features the kernel produces for pad nodes never contribute.
    w1r = jnp.zeros((n_pad, LH, HL), jnp.float32)
    w1r = w1r.at[:rois].set(params["w1"].reshape(rois, LH, HL))
    w1r = w1r.reshape(n_pad * LH, HL).astype(jnp.bfloat16)
    return {
        "layers": tuple(layers),
        "w1r": w1r,
        "b1": params["b1"].astype(jnp.float32),
        "w2": params["w2"].astype(jnp.bfloat16),
        "b2": params["b2"].astype(jnp.float32),
    }


@jax.jit
def sgcn_gat_forward(x, adj_w, adj_m, prepped):
    B, N, _ = adj_w.shape
    F_in = x.shape[-1]
    n_pad = _round_up(N, 128)
    pad = n_pad - N

    h = x.reshape(B, N, F_in).astype(jnp.float32)
    h = jnp.pad(h, ((0, 0), (0, pad), (0, 0)))

    w_full, m_full = add_self_loops_dense(adj_w.astype(jnp.float32),
                                          adj_m.astype(jnp.float32))
    # dst-major orientation, node-padded; mask folded in as an additive -1e30 bias.
    w_t = jnp.pad(jnp.swapaxes(w_full, 1, 2), ((0, 0), (0, pad), (0, pad)))
    m_t = jnp.pad(jnp.swapaxes(m_full, 1, 2), ((0, 0), (0, pad), (0, pad)))
    neg_bias_t = (1.0 - m_t) * jnp.float32(-1e30)

    feat = fused_gat(h, w_t, neg_bias_t, list(prepped["layers"]))      # (B, Np, L*H)
    # to_dense_batch + view(B, -1): every graph has exactly N=rois nodes, so the dense
    # batch is a pure reshape and fill_value (= x.min()-1) is never used; pad-node rows
    # are absorbed by the zero rows of the repacked w1.
    z = feat.reshape(B, -1)
    return mlp_head(z, prepped["w1r"], prepped["b1"], prepped["w2"], prepped["b2"])


if __name__ == "__main__":
    B, N = 2, 90                       # rois = 90 (hard-wired by lin1 in the module)
    num_features, hidden, num_layers = 4, 32, 2
    hidden_linear, num_classes = 64, 2

    key = jax.random.PRNGKey(0)
    kx, km, kw, kp = jax.random.split(key, 4)

    x = jax.random.normal(kx, (B * N, num_features), jnp.float32)       # data.x
    adj_m = (jax.random.uniform(km, (B, N, N)) < 0.1).astype(jnp.float32)
    adj_m = adj_m * (1.0 - jnp.eye(N)[None])                            # no raw self loops
    adj_w = jax.random.uniform(kw, (B, N, N), dtype=jnp.float32) * adj_m  # data.edge_attr

    params = init_params(kp, num_features, hidden, num_layers,
                         hidden_linear, num_classes, rois=N)
    prepped = preprocess_params(params, rois=N)

    out = sgcn_gat_forward(x, adj_w, adj_m, prepped)
    out = jax.block_until_ready(out)
    assert out.shape == (B, num_classes)
    assert bool(jnp.all(jnp.isfinite(out)))
    print("KERNEL_OK")
</pallas_src>

<mosaic_0001>
module attributes {stable_mosaic.version = 11 : i64} {
  func.func @kernel(%arg0: i32, %arg1: memref<1x128x4xf32, #tpu.memory_space<vmem>>, %arg2: memref<1x128x128xf32, #tpu.memory_space<vmem>>, %arg3: memref<1x128x128xf32, #tpu.memory_space<vmem>>, %arg4: memref<4x33xbf16, #tpu.memory_space<vmem>>, %arg5: memref<1x4xbf16, #tpu.memory_space<vmem>>, %arg6: memref<1x32xf32, #tpu.memory_space<vmem>>, %arg7: memref<1x1xf32, #tpu.memory_space<vmem>>, %arg8: memref<32x33xbf16, #tpu.memory_space<vmem>>, %arg9: memref<1x32xbf16, #tpu.memory_space<vmem>>, %arg10: memref<1x32xf32, #tpu.memory_space<vmem>>, %arg11: memref<1x1xf32, #tpu.memory_space<vmem>>, %arg12: memref<1x128x64xf32, #tpu.memory_space<vmem>>) attributes {dimension_semantics = [#tpu.dimension_semantics<parallel>], iteration_bounds = array<i64: 2>, scalar_prefetch = 0 : i64, scratch_operands = 0 : i64, tpu.core_type = #tpu.core_type<tc>, window_params = [{transform_indices = @transform_0, window_bounds = array<i64: 1, 128, 4>}, {transform_indices = @transform_1, window_bounds = array<i64: 1, 128, 128>}, {transform_indices = @transform_2, window_bounds = array<i64: 1, 128, 128>}, {pipeline_mode = #tpu.pipeline_mode<synchronous>, transform_indices = @transform_3, window_bounds = array<i64: 4, 33>}, {pipeline_mode = #tpu.pipeline_mode<synchronous>, transform_indices = @transform_4, window_bounds = array<i64: 1, 4>}, {pipeline_mode = #tpu.pipeline_mode<synchronous>, transform_indices = @transform_5, window_bounds = array<i64: 1, 32>}, {pipeline_mode = #tpu.pipeline_mode<synchronous>, transform_indices = @transform_6, window_bounds = array<i64: 1, 1>}, {pipeline_mode = #tpu.pipeline_mode<synchronous>, transform_indices = @transform_7, window_bounds = array<i64: 32, 33>}, {pipeline_mode = #tpu.pipeline_mode<synchronous>, transform_indices = @transform_8, window_bounds = array<i64: 1, 32>}, {pipeline_mode = #tpu.pipeline_mode<synchronous>, transform_indices = @transform_9, window_bounds = array<i64: 1, 32>}, {pipeline_mode = #tpu.pipeline_mode<synchronous>, transform_indices = @transform_10, window_bounds = array<i64: 1, 1>}, {transform_indices = @transform_11, window_bounds = array<i64: 1, 128, 64>}]} {
    %c0 = arith.constant 0 : index
    %c0_0 = arith.constant 0 : index
    %c0_1 = arith.constant 0 : index
    %0 = vector.load %arg1[%c0, %c0_0, %c0_1] : memref<1x128x4xf32, #tpu.memory_space<vmem>>, vector<1x128x4xf32>
    %1 = vector.shape_cast %0 : vector<1x128x4xf32> to vector<128x4xf32>
    %2 = arith.truncf %1 : vector<128x4xf32> to vector<128x4xbf16>
    %c0_2 = arith.constant 0 : index
    %c0_3 = arith.constant 0 : index
    %3 = vector.load %arg4[%c0_2, %c0_3] : memref<4x33xbf16, #tpu.memory_space<vmem>>, vector<4x33xbf16>
    %cst = arith.constant dense<0.000000e+00> : vector<128x33xf32>
    %4 = tpu.matmul %2, %3, %cst {dimension_numbers = #tpu.dot_dimension_numbers<[1], [0], [0], [1], [0, 0, 1, 1], [], []>} : vector<128x4xbf16>, vector<4x33xbf16>, vector<128x33xf32> -> vector<128x33xf32>
    %5 = vector.extract_strided_slice %4 {offsets = [0, 0], sizes = [128, 32], strides = [1, 1]} : vector<128x33xf32> to vector<128x32xf32>
    %6 = vector.extract_strided_slice %4 {offsets = [0, 32], sizes = [128, 1], strides = [1, 1]} : vector<128x33xf32> to vector<128x1xf32>
    %c0_4 = arith.constant 0 : index
    %c0_5 = arith.constant 0 : index
    %7 = vector.load %arg5[%c0_4, %c0_5] : memref<1x4xbf16, #tpu.memory_space<vmem>>, vector<1x4xbf16>
    %cst_6 = arith.constant dense<0.000000e+00> : vector<1x128xf32>
    %8 = tpu.matmul %7, %2, %cst_6 {dimension_numbers = #tpu.dot_dimension_numbers<[1], [1], [0], [0], [0, 0, 1, 0], [], []>} : vector<1x4xbf16>, vector<128x4xbf16>, vector<1x128xf32> -> vector<1x128xf32>
    %9 = vector.broadcast %6 : vector<128x1xf32> to vector<128x128xf32>
    %10 = vector.broadcast %8 : vector<1x128xf32> to vector<128x128xf32>
    %11 = arith.addf %9, %10 : vector<128x128xf32>
    %c0_7 = arith.constant 0 : index
    %c0_8 = arith.constant 0 : index
    %12 = vector.load %arg7[%c0_7, %c0_8] : memref<1x1xf32, #tpu.memory_space<vmem>>, vector<1x1xf32>
    %c0_9 = arith.constant 0 : index
    %c0_10 = arith.constant 0 : index
    %c0_11 = arith.constant 0 : index
    %13 = vector.load %arg2[%c0_9, %c0_10, %c0_11] : memref<1x128x128xf32, #tpu.memory_space<vmem>>, vector<1x128x128xf32>
    %14 = vector.shape_cast %13 : vector<1x128x128xf32> to vector<128x128xf32>
    %15 = vector.broadcast %12 : vector<1x1xf32> to vector<128x128xf32>
    %16 = arith.mulf %15, %14 : vector<128x128xf32>
    %c0_12 = arith.constant 0 : index
    %c0_13 = arith.constant 0 : index
    %c0_14 = arith.constant 0 : index
    %17 = vector.load %arg3[%c0_12, %c0_13, %c0_14] : memref<1x128x128xf32, #tpu.memory_space<vmem>>, vector<1x128x128xf32>
    %18 = vector.shape_cast %17 : vector<1x128x128xf32> to vector<128x128xf32>
    %19 = arith.addf %16, %18 : vector<128x128xf32>
    %20 = arith.addf %11, %19 : vector<128x128xf32>
    %cst_15 = arith.constant 2.000000e-01 : f32
    %21 = vector.broadcast %cst_15 : f32 to vector<128x128xf32>
    %22 = arith.mulf %21, %20 : vector<128x128xf32>
    %23 = arith.maximumf %20, %22 : vector<128x128xf32>
    %cst_16 = arith.constant dense<0xFF800000> : vector<128xf32>
    %24 = vector.multi_reduction <maximumf>, %23, %cst_16 [1] : vector<128x128xf32> to vector<128xf32>
    %25 = vector.shape_cast %24 : vector<128xf32> to vector<128x1xf32>
    %26 = vector.broadcast %25 : vector<128x1xf32> to vector<128x128xf32>
    %27 = arith.subf %23, %26 : vector<128x128xf32>
    %28 = math.exp %27 : vector<128x128xf32>
    %cst_17 = arith.constant dense<0.000000e+00> : vector<128xf32>
    %29 = vector.multi_reduction <add>, %28, %cst_17 [1] : vector<128x128xf32> to vector<128xf32>
    %30 = vector.shape_cast %29 : vector<128xf32> to vector<128x1xf32>
    %31 = arith.truncf %28 : vector<128x128xf32> to vector<128x128xbf16>
    %32 = arith.truncf %5 : vector<128x32xf32> to vector<128x32xbf16>
    %cst_18 = arith.constant dense<0.000000e+00> : vector<128x32xf32>
    %33 = tpu.matmul %31, %32, %cst_18 {dimension_numbers = #tpu.dot_dimension_numbers<[1], [0], [0], [1], [0, 0, 1, 1], [], []>} : vector<128x128xbf16>, vector<128x32xbf16>, vector<128x32xf32> -> vector<128x32xf32>
    %34 = tpu.reciprocal %30 {approx = true} : vector<128x1xf32> -> vector<128x1xf32>
    %35 = vector.broadcast %34 : vector<128x1xf32> to vector<128x32xf32>
    %36 = arith.mulf %33, %35 : vector<128x32xf32>
    %c0_19 = arith.constant 0 : index
    %c0_20 = arith.constant 0 : index
    %37 = vector.load %arg6[%c0_19, %c0_20] : memref<1x32xf32, #tpu.memory_space<vmem>>, vector<1x32xf32>
    %38 = vector.broadcast %37 : vector<1x32xf32> to vector<128x32xf32>
    %39 = arith.addf %36, %38 : vector<128x32xf32>
    %cst_21 = arith.constant 0.000000e+00 : f32
    %40 = vector.broadcast %cst_21 : f32 to vector<128x32xf32>
    %41 = arith.maximumf %39, %40 : vector<128x32xf32>
    %c0_22 = arith.constant 0 : index
    %c0_23 = arith.constant 0 : index
    %c0_24 = arith.constant 0 : index
    %42 = vector.load %arg12[%c0_22, %c0_23, %c0_24] : memref<1x128x64xf32, #tpu.memory_space<vmem>>, vector<1x128x32xf32>
    %43 = vector.shape_cast %42 : vector<1x128x32xf32> to vector<128x32xf32>
    %44 = vector.shape_cast %41 : vector<128x32xf32> to vector<1x128x32xf32>
    tpu.vector_store %arg12[%c0_22, %c0_23, %c0_24], %44 {strides = array<i32>} : memref<1x128x64xf32, #tpu.memory_space<vmem>>, vector<1x128x32xf32>,
    %45 = arith.truncf %41 : vector<128x32xf32> to vector<128x32xbf16>
    %c0_25 = arith.constant 0 : index
    %c0_26 = arith.constant 0 : index
    %46 = vector.load %arg8[%c0_25, %c0_26] : memref<32x33xbf16, #tpu.memory_space<vmem>>, vector<32x33xbf16>
    %cst_27 = arith.constant dense<0.000000e+00> : vector<128x33xf32>
    %47 = tpu.matmul %45, %46, %cst_27 {dimension_numbers = #tpu.dot_dimension_numbers<[1], [0], [0], [1], [0, 0, 1, 1], [], []>} : vector<128x32xbf16>, vector<32x33xbf16>, vector<128x33xf32> -> vector<128x33xf32>
    %48 = vector.extract_strided_slice %47 {offsets = [0, 0], sizes = [128, 32], strides = [1, 1]} : vector<128x33xf32> to vector<128x32xf32>
    %49 = vector.extract_strided_slice %47 {offsets = [0, 32], sizes = [128, 1], strides = [1, 1]} : vector<128x33xf32> to vector<128x1xf32>
    %c0_28 = arith.constant 0 : index
    %c0_29 = arith.constant 0 : index
    %50 = vector.load %arg9[%c0_28, %c0_29] : memref<1x32xbf16, #tpu.memory_space<vmem>>, vector<1x32xbf16>
    %cst_30 = arith.constant dense<0.000000e+00> : vector<1x128xf32>
    %51 = tpu.matmul %50, %45, %cst_30 {dimension_numbers = #tpu.dot_dimension_numbers<[1], [1], [0], [0], [0, 0, 1, 0], [], []>} : vector<1x32xbf16>, vector<128x32xbf16>, vector<1x128xf32> -> vector<1x128xf32>
    %52 = vector.broadcast %49 : vector<128x1xf32> to vector<128x128xf32>
    %53 = vector.broadcast %51 : vector<1x128xf32> to vector<128x128xf32>
    %54 = arith.addf %52, %53 : vector<128x128xf32>
    %c0_31 = arith.constant 0 : index
    %c0_32 = arith.constant 0 : index
    %55 = vector.load %arg11[%c0_31, %c0_32] : memref<1x1xf32, #tpu.memory_space<vmem>>, vector<1x1xf32>
    %c0_33 = arith.constant 0 : index
    %c0_34 = arith.constant 0 : index
    %c0_35 = arith.constant 0 : index
    %56 = vector.load %arg2[%c0_33, %c0_34, %c0_35] : memref<1x128x128xf32, #tpu.memory_space<vmem>>, vector<1x128x128xf32>
    %57 = vector.shape_cast %56 : vector<1x128x128xf32> to vector<128x128xf32>
    %58 = vector.broadcast %55 : vector<1x1xf32> to vector<128x128xf32>
    %59 = arith.mulf %58, %57 : vector<128x128xf32>
    %c0_36 = arith.constant 0 : index
    %c0_37 = arith.constant 0 : index
    %c0_38 = arith.constant 0 : index
    %60 = vector.load %arg3[%c0_36, %c0_37, %c0_38] : memref<1x128x128xf32, #tpu.memory_space<vmem>>, vector<1x128x128xf32>
    %61 = vector.shape_cast %60 : vector<1x128x128xf32> to vector<128x128xf32>
    %62 = arith.addf %59, %61 : vector<128x128xf32>
    %63 = arith.addf %54, %62 : vector<128x128xf32>
    %cst_39 = arith.constant 2.000000e-01 : f32
    %64 = vector.broadcast %cst_39 : f32 to vector<128x128xf32>
    %65 = arith.mulf %64, %63 : vector<128x128xf32>
    %66 = arith.maximumf %63, %65 : vector<128x128xf32>
    %cst_40 = arith.constant dense<0xFF800000> : vector<128xf32>
    %67 = vector.multi_reduction <maximumf>, %66, %cst_40 [1] : vector<128x128xf32> to vector<128xf32>
    %68 = vector.shape_cast %67 : vector<128xf32> to vector<128x1xf32>
    %69 = vector.broadcast %68 : vector<128x1xf32> to vector<128x128xf32>
    %70 = arith.subf %66, %69 : vector<128x128xf32>
    %71 = math.exp %70 : vector<128x128xf32>
    %cst_41 = arith.constant dense<0.000000e+00> : vector<128xf32>
    %72 = vector.multi_reduction <add>, %71, %cst_41 [1] : vector<128x128xf32> to vector<128xf32>
    %73 = vector.shape_cast %72 : vector<128xf32> to vector<128x1xf32>
    %74 = arith.truncf %71 : vector<128x128xf32> to vector<128x128xbf16>
    %75 = arith.truncf %48 : vector<128x32xf32> to vector<128x32xbf16>
    %cst_42 = arith.constant dense<0.000000e+00> : vector<128x32xf32>
    %76 = tpu.matmul %74, %75, %cst_42 {dimension_numbers = #tpu.dot_dimension_numbers<[1], [0], [0], [1], [0, 0, 1, 1], [], []>} : vector<128x128xbf16>, vector<128x32xbf16>, vector<128x32xf32> -> vector<128x32xf32>
    %77 = tpu.reciprocal %73 {approx = true} : vector<128x1xf32> -> vector<128x1xf32>
    %78 = vector.broadcast %77 : vector<128x1xf32> to vector<128x32xf32>
    %79 = arith.mulf %76, %78 : vector<128x32xf32>
    %c0_43 = arith.constant 0 : index
    %c0_44 = arith.constant 0 : index
    %80 = vector.load %arg10[%c0_43, %c0_44] : memref<1x32xf32, #tpu.memory_space<vmem>>, vector<1x32xf32>
    %81 = vector.broadcast %80 : vector<1x32xf32> to vector<128x32xf32>
    %82 = arith.addf %79, %81 : vector<128x32xf32>
    %cst_45 = arith.constant 0.000000e+00 : f32
    %83 = vector.broadcast %cst_45 : f32 to vector<128x32xf32>
    %84 = arith.maximumf %82, %83 : vector<128x32xf32>
    %c0_46 = arith.constant 0 : index
    %c0_47 = arith.constant 0 : index
    %c32 = arith.constant 32 : index
    %85 = vector.load %arg12[%c0_46, %c0_47, %c32] : memref<1x128x64xf32, #tpu.memory_space<vmem>>, vector<1x128x32xf32>
    %86 = vector.shape_cast %85 : vector<1x128x32xf32> to vector<128x32xf32>
    %87 = vector.shape_cast %84 : vector<128x32xf32> to vector<1x128x32xf32>
    tpu.vector_store %arg12[%c0_46, %c0_47, %c32], %87 {strides = array<i32>} : memref<1x128x64xf32, #tpu.memory_space<vmem>>, vector<1x128x32xf32>,
    return
  }
  func.func @transform_0(%arg0: i32) -> (i32, i32, i32) {
    %c0_i32 = arith.constant 0 : i32
    %c0_i32_0 = arith.constant 0 : i32
    %c0_i32_1 = arith.constant 0 : i32
    return %arg0, %c0_i32, %c0_i32_0 : i32, i32, i32
  }
  func.func @transform_1(%arg0: i32) -> (i32, i32, i32) {
    %c0_i32 = arith.constant 0 : i32
    %c0_i32_0 = arith.constant 0 : i32
    %c0_i32_1 = arith.constant 0 : i32
    return %arg0, %c0_i32, %c0_i32_0 : i32, i32, i32
  }
  func.func @transform_2(%arg0: i32) -> (i32, i32, i32) {
    %c0_i32 = arith.constant 0 : i32
    %c0_i32_0 = arith.constant 0 : i32
    %c0_i32_1 = arith.constant 0 : i32
    return %arg0, %c0_i32, %c0_i32_0 : i32, i32, i32
  }
  func.func @transform_3(%arg0: i32) -> (i32, i32) {
    %c0_i32 = arith.constant 0 : i32
    %c0_i32_0 = arith.constant 0 : i32
    %c0_i32_1 = arith.constant 0 : i32
    return %c0_i32, %c0_i32_0 : i32, i32
  }
  func.func @transform_4(%arg0: i32) -> (i32, i32) {
    %c0_i32 = arith.constant 0 : i32
    %c0_i32_0 = arith.constant 0 : i32
    %c0_i32_1 = arith.constant 0 : i32
    return %c0_i32, %c0_i32_0 : i32, i32
  }
  func.func @transform_5(%arg0: i32) -> (i32, i32) {
    %c0_i32 = arith.constant 0 : i32
    %c0_i32_0 = arith.constant 0 : i32
    %c0_i32_1 = arith.constant 0 : i32
    return %c0_i32, %c0_i32_0 : i32, i32
  }
  func.func @transform_6(%arg0: i32) -> (i32, i32) {
    %c0_i32 = arith.constant 0 : i32
    %c0_i32_0 = arith.constant 0 : i32
    %c0_i32_1 = arith.constant 0 : i32
    return %c0_i32, %c0_i32_0 : i32, i32
  }
  func.func @transform_7(%arg0: i32) -> (i32, i32) {
    %c0_i32 = arith.constant 0 : i32
    %c0_i32_0 = arith.constant 0 : i32
    %c0_i32_1 = arith.constant 0 : i32
    return %c0_i32, %c0_i32_0 : i32, i32
  }
  func.func @transform_8(%arg0: i32) -> (i32, i32) {
    %c0_i32 = arith.constant 0 : i32
    %c0_i32_0 = arith.constant 0 : i32
    %c0_i32_1 = arith.constant 0 : i32
    return %c0_i32, %c0_i32_0 : i32, i32
  }
  func.func @transform_9(%arg0: i32) -> (i32, i32) {
    %c0_i32 = arith.constant 0 : i32
    %c0_i32_0 = arith.constant 0 : i32
    %c0_i32_1 = arith.constant 0 : i32
    return %c0_i32, %c0_i32_0 : i32, i32
  }
  func.func @transform_10(%arg0: i32) -> (i32, i32) {
    %c0_i32 = arith.constant 0 : i32
    %c0_i32_0 = arith.constant 0 : i32
    %c0_i32_1 = arith.constant 0 : i32
    return %c0_i32, %c0_i32_0 : i32, i32
  }
  func.func @transform_11(%arg0: i32) -> (i32, i32, i32) {
    %c0_i32 = arith.constant 0 : i32
    %c0_i32_0 = arith.constant 0 : i32
    %c0_i32_1 = arith.constant 0 : i32
    return %arg0, %c0_i32, %c0_i32_0 : i32, i32, i32
  }
}

module attributes {stable_mosaic.version = 11 : i64} {
  func.func @_mlp_head_kernel(%arg0: memref<2x8192xf32, #tpu.memory_space<vmem>>, %arg1: memref<8192x64xbf16, #tpu.memory_space<vmem>>, %arg2: memref<1x64xf32, #tpu.memory_space<vmem>>, %arg3: memref<64x2xbf16, #tpu.memory_space<vmem>>, %arg4: memref<1x2xf32, #tpu.memory_space<vmem>>, %arg5: memref<2x2xf32, #tpu.memory_space<vmem>>) attributes {dimension_semantics = [], scalar_prefetch = 0 : i64, scratch_operands = 0 : i64, tpu.core_type = #tpu.core_type<tc>} {
    %c0 = arith.constant 0 : index
    %c0_0 = arith.constant 0 : index
    %0 = vector.load %arg0[%c0, %c0_0] : memref<2x8192xf32, #tpu.memory_space<vmem>>, vector<2x8192xf32>
    %1 = arith.truncf %0 : vector<2x8192xf32> to vector<2x8192xbf16>
    %c0_1 = arith.constant 0 : index
    %c0_2 = arith.constant 0 : index
    %2 = vector.load %arg1[%c0_1, %c0_2] : memref<8192x64xbf16, #tpu.memory_space<vmem>>, vector<8192x64xbf16>
    %cst = arith.constant dense<0.000000e+00> : vector<2x64xf32>
    %3 = tpu.matmul %1, %2, %cst {dimension_numbers = #tpu.dot_dimension_numbers<[1], [0], [0], [1], [0, 0, 1, 1], [], []>} : vector<2x8192xbf16>, vector<8192x64xbf16>, vector<2x64xf32> -> vector<2x64xf32>
    %c0_3 = arith.constant 0 : index
    %c0_4 = arith.constant 0 : index
    %4 = vector.load %arg2[%c0_3, %c0_4] : memref<1x64xf32, #tpu.memory_space<vmem>>, vector<1x64xf32>
    %5 = vector.broadcast %4 : vector<1x64xf32> to vector<2x64xf32>
    %6 = arith.addf %3, %5 : vector<2x64xf32>
    %cst_5 = arith.constant 0.000000e+00 : f32
    %7 = vector.broadcast %cst_5 : f32 to vector<2x64xf32>
    %8 = arith.maximumf %6, %7 : vector<2x64xf32>
    %9 = arith.truncf %8 : vector<2x64xf32> to vector<2x64xbf16>
    %c0_6 = arith.constant 0 : index
    %c0_7 = arith.constant 0 : index
    %10 = vector.load %arg3[%c0_6, %c0_7] : memref<64x2xbf16, #tpu.memory_space<vmem>>, vector<64x2xbf16>
    %cst_8 = arith.constant dense<0.000000e+00> : vector<2x2xf32>
    %11 = tpu.matmul %9, %10, %cst_8 {dimension_numbers = #tpu.dot_dimension_numbers<[1], [0], [0], [1], [0, 0, 1, 1], [], []>} : vector<2x64xbf16>, vector<64x2xbf16>, vector<2x2xf32> -> vector<2x2xf32>
    %c0_9 = arith.constant 0 : index
    %c0_10 = arith.constant 0 : index
    %12 = vector.load %arg4[%c0_9, %c0_10] : memref<1x2xf32, #tpu.memory_space<vmem>>, vector<1x2xf32>
    %13 = vector.broadcast %12 : vector<1x2xf32> to vector<2x2xf32>
    %14 = arith.addf %11, %13 : vector<2x2xf32>
    %cst_11 = arith.constant dense<0xFF800000> : vector<2xf32>
    %15 = vector.multi_reduction <maximumf>, %14, %cst_11 [1] : vector<2x2xf32> to vector<2xf32>
    %16 = vector.shape_cast %15 : vector<2xf32> to vector<2x1xf32>
    %17 = vector.broadcast %16 : vector<2x1xf32> to vector<2x2xf32>
    %18 = arith.subf %14, %17 : vector<2x2xf32>
    %19 = math.exp %18 : vector<2x2xf32>
    %cst_12 = arith.constant dense<0.000000e+00> : vector<2xf32>
    %20 = vector.multi_reduction <add>, %19, %cst_12 [1] : vector<2x2xf32> to vector<2xf32>
    %21 = vector.shape_cast %20 : vector<2xf32> to vector<2x1xf32>
    %22 = math.log %21 : vector<2x1xf32>
    %23 = vector.broadcast %22 : vector<2x1xf32> to vector<2x2xf32>
    %24 = arith.subf %18, %23 : vector<2x2xf32>
    %c0_13 = arith.constant 0 : index
    %c0_14 = arith.constant 0 : index
    %25 = vector.load %arg5[%c0_13, %c0_14] : memref<2x2xf32, #tpu.memory_space<vmem>>, vector<2x2xf32>
    tpu.vector_store %arg5[%c0_13, %c0_14], %24 {strides = array<i32>} : memref<2x2xf32, #tpu.memory_space<vmem>>, vector<2x2xf32>,
    return
  }
}

</mosaic_0001>

<llo_original>
// kernel: sgcn_gat_forward.2
$region0: #{sgcn_gat_forward.2}
  #allocation0 [shape = 'u32[]', space=smem, size = 0x4, offset = 0x4, fixed_abs, tag = 'smem constant byte address 0x4 - core index']
  #allocation1 [shape = 'u32[144,128]{1,0:T(1,128)}', space=vmem, size = 0x12000, scoped, tag = 'internal scratch']
  #allocation2 [shape = 'f32[1,1]{1,0:T(1,128)S(1)}', space=vmem, size = 0x200, scoped, tag = 'scoped memory for sgcn_gat_forward.2']
  #allocation3 [shape = 'f32[1,1]{1,0:T(1,128)S(1)}', space=vmem, size = 0x200, scoped, tag = 'scoped memory for sgcn_gat_forward.2']
  %s0 = inlined_call_operand.vmem [shape: f32[2,128,4], index: 0, kind: input, shape index: {}]
  %s1 = inlined_call_operand.vmem [shape: f32[2,128,128], index: 1, kind: input, shape index: {}]
  %s2 = inlined_call_operand.vmem [shape: f32[2,128,128], index: 2, kind: input, shape index: {}]
  %s3 = inlined_call_operand.hbm [shape: bf16[4,33], index: 3, kind: input, shape index: {}]
  %s4 = inlined_call_operand.hbm [shape: bf16[1,4], index: 4, kind: input, shape index: {}]
  %s5 = inlined_call_operand.hbm [shape: f32[1,32], index: 5, kind: input, shape index: {}]
  %s6 = inlined_call_operand.<no memory space> [shape: f32[1,1], index: 6, kind: input, shape index: {}]
  %s7 = inlined_call_operand.hbm [shape: bf16[32,33], index: 7, kind: input, shape index: {}]
  %s8 = inlined_call_operand.hbm [shape: bf16[1,32], index: 8, kind: input, shape index: {}]
  %s9 = inlined_call_operand.hbm [shape: f32[1,32], index: 9, kind: input, shape index: {}]
  %s10 = inlined_call_operand.<no memory space> [shape: f32[1,1], index: 10, kind: input, shape index: {}]
  %s11 = inlined_call_operand.vmem [shape: f32[2,128,64], index: 11, kind: output, shape index: {}]
  %s12 = sld [smem:[#allocation0]]
  $region101: #{sgcn_gat_forward.2} parent=0
    _
  %s14 = ssub.s32 1, %s12
  %s15 = scalar_select 0, %s14, %s12
  %v16 = vstv %s6
  %17 = vst [vmem:[#allocation2] sm:$0x1] %v16
  %v18 = vstv %s10
  %19 = vst [vmem:[#allocation3] sm:$0x1] %v18
  $region1: #{sgcn_gat_forward.2} parent=0
    #allocation4 [shape = 'u8[1024]{0}', space=vmem, size = 0x400, scoped, tag = 'input window, operand 3, single buffered']
    #allocation5 [shape = 's32[2]{0}', space=sflag, size = 0x8, scoped, tag = 'scoped memory for sgcn_gat_forward.2']
    #allocation6 [shape = 'u8[512]{0}', space=vmem, size = 0x400, scoped, tag = 'input window, operand 4, single buffered']
    #allocation7 [shape = 's32[1]{0}', space=sflag, size = 0x4, scoped, tag = 'scoped memory for sgcn_gat_forward.2']
    #allocation8 [shape = 'u8[512]{0}', space=vmem, size = 0x400, scoped, tag = 'input window, operand 5, single buffered']
    #allocation9 [shape = 'u8[8192]{0}', space=vmem, size = 0x2000, scoped, tag = 'input window, operand 7, single buffered']
    #allocation10 [shape = 's32[1]{0}', space=sflag, size = 0x4, scoped, tag = 'scoped memory for sgcn_gat_forward.2']
    #allocation11 [shape = 'u8[512]{0}', space=vmem, size = 0x400, scoped, tag = 'input window, operand 8, single buffered']
    #allocation12 [shape = 'u8[512]{0}', space=vmem, size = 0x400, scoped, tag = 'input window, operand 9, single buffered']
    #allocation13 [shape = 's32[1]{0}', space=sflag, size = 0x4, scoped, tag = 'scoped memory for sgcn_gat_forward.2']
    %20 = vsyncpa [#allocation5], 0
    %21 = vsyncpa [#allocation7], 0
    %22 = vsyncpa [#allocation10], 0
    %23 = vsyncpa [#allocation13], 0
    loop: start=0, step=1, limit=4
    $region2: #{sgcn_gat_forward.2} parent=1 // loop_pre_header
      _
    $region3: #{sgcn_gat_forward.2} parent=1 // loop_header
      %s25 = sphi 0, %s29
      %p26 = scmp.ge.s32.totalorder %s25, 4
      %s35 = sphi 0, %s37
      %s38 = sphi 0, %s35
      %s39 = sphi 0, %s38
      %s55 = sphi 0, %s39
      %s61 = sphi 0, %s63
      %s64 = sphi 0, %s61
      %s65 = sphi 0, %s64
      %s81 = sphi 0, %s65
      %s87 = sphi 0, %s89
      %s90 = sphi 0, %s87
      %s91 = sphi 0, %s90
      %s107 = sphi 0, %s91
      %s111 = sphi 0, %s111
      %s113 = sphi 0, %s111
      %s114 = sphi 0, %s113
      %s128 = sphi 0, %s114
      %s132 = sphi 0, %s132
      %s134 = sphi 0, %s132
      %s135 = sphi 0, %s134
      %s149 = sphi 0, %s135
      %s153 = sphi 0, %s153
      %s155 = sphi 0, %s153
      %s156 = sphi 0, %s155
      %s170 = sphi 0, %s156
      %s174 = sphi 0, %s174
      %s176 = sphi 0, %s174
      %s177 = sphi 0, %s176
      %s191 = sphi 0, %s177
      %s195 = sphi 0, %s195
      %s197 = sphi 0, %s195
      %s198 = sphi 0, %s197
      %s212 = sphi 0, %s198
      %s216 = sphi 0, %s216
      %s218 = sphi 0, %s216
      %s219 = sphi 0, %s218
      %s233 = sphi 0, %s219
      %s237 = sphi 0, %s237
      %s239 = sphi 0, %s237
      %s240 = sphi 0, %s239
      %s254 = sphi 0, %s240
      %s258 = sphi 0, %s258
      %s260 = sphi 0, %s258
      %s261 = sphi 0, %s260
      %s275 = sphi 0, %s261
      %s281 = sphi 0, %s283
      %s284 = sphi 0, %s281
      %s285 = sphi 0, %s284
      %s301 = sphi 0, %s285
    $region4: #{sgcn_gat_forward.2} parent=1 // loop_header_branch
      %28 = sbr.rel (%p26) target = $region8
    $region5: #{sgcn_gat_forward.2} parent=1 // loop_body
      %s30 = ssub.s32 %s25, 1
      %s31 = ssub.s32 %s25, 2
      %s32 = sadd.s32 %s25, 1
      %s33 = ssub.s32 %s25, %s32
      %p34 = scmp.eq.s32.totalorder %s33, 0
      %s36 = sadd.s32 %s35, 1
      %s37 = scalar_select %p34, %s35, %s36
      %p40 = pneg %p34
      %p41 = scmp.eq.s32.totalorder %s25, 1
      %p42 = por %p40, %p41
      %p43 = scmp.ne.s32.totalorder %s35, %s38
      %p44 = scmp.eq.s32.totalorder %s25, 0
      %p45 = por %p43, %p44
      %p46 = scmp.ne.s32.totalorder %s35, %s38
      %p47 = scmp.eq.s32.totalorder %s30, 1
      %p48 = por %p46, %p47
      %p49 = scmp.ne.s32.totalorder %s38, %s39
      %p50 = scmp.eq.s32.totalorder %s30, 0
      %p51 = por %p49, %p50
      %p52 = scmp.ne.s32.totalorder %s38, %s39
      %p53 = scmp.eq.s32.totalorder %s31, 1
      %p54 = por %p52, %p53
      %p56 = scmp.ne.s32.totalorder %s39, %s55
      %p57 = scmp.eq.s32.totalorder %s31, 0
      %p58 = por %p56, %p57
      %s59 = ssub.s32 %s25, %s32
      %p60 = scmp.eq.s32.totalorder %s59, 0
      %s62 = sadd.s32 %s61, 1
      %s63 = scalar_select %p60, %s61, %s62
      %p66 = pneg %p60
      %p67 = scmp.eq.s32.totalorder %s25, 1
      %p68 = por %p66, %p67
      %p69 = scmp.ne.s32.totalorder %s61, %s64
      %p70 = scmp.eq.s32.totalorder %s25, 0
      %p71 = por %p69, %p70
      %p72 = scmp.ne.s32.totalorder %s61, %s64
      %p73 = scmp.eq.s32.totalorder %s30, 1
      %p74 = por %p72, %p73
      %p75 = scmp.ne.s32.totalorder %s64, %s65
      %p76 = scmp.eq.s32.totalorder %s30, 0
      %p77 = por %p75, %p76
      %p78 = scmp.ne.s32.totalorder %s64, %s65
      %p79 = scmp.eq.s32.totalorder %s31, 1
      %p80 = por %p78, %p79
      %p82 = scmp.ne.s32.totalorder %s65, %s81
      %p83 = scmp.eq.s32.totalorder %s31, 0
      %p84 = por %p82, %p83
      %s85 = ssub.s32 %s25, %s32
      %p86 = scmp.eq.s32.totalorder %s85, 0
      %s88 = sadd.s32 %s87, 1
      %s89 = scalar_select %p86, %s87, %s88
      %p92 = pneg %p86
      %p93 = scmp.eq.s32.totalorder %s25, 1
      %p94 = por %p92, %p93
      %p95 = scmp.ne.s32.totalorder %s87, %s90
      %p96 = scmp.eq.s32.totalorder %s25, 0
      %p97 = por %p95, %p96
      %p98 = scmp.ne.s32.totalorder %s87, %s90
      %p99 = scmp.eq.s32.totalorder %s30, 1
      %p100 = por %p98, %p99
      %p101 = scmp.ne.s32.totalorder %s90, %s91
      %p102 = scmp.eq.s32.totalorder %s30, 0
      %p103 = por %p101, %p102
      %p104 = scmp.ne.s32.totalorder %s90, %s91
      %p105 = scmp.eq.s32.totalorder %s31, 1
      %p106 = por %p104, %p105
      %p108 = scmp.ne.s32.totalorder %s91, %s107
      %p109 = scmp.eq.s32.totalorder %s31, 0
      %p110 = por %p108, %p109
      %s112 = sadd.s32 %s111, 1
      %p115 = scmp.eq.s32.totalorder %s25, 1
      %p116 = scmp.ne.s32.totalorder %s111, %s113
      %p117 = scmp.eq.s32.totalorder %s25, 0
      %p118 = por %p116, %p117
      %p119 = scmp.ne.s32.totalorder %s111, %s113
      %p120 = scmp.eq.s32.totalorder %s30, 1
      %p121 = por %p119, %p120
      %p122 = scmp.ne.s32.totalorder %s113, %s114
      %p123 = scmp.eq.s32.totalorder %s30, 0
      %p124 = por %p122, %p123
      %p125 = scmp.ne.s32.totalorder %s113, %s114
      %p126 = scmp.eq.s32.totalorder %s31, 1
      %p127 = por %p125, %p126
      %p129 = scmp.ne.s32.totalorder %s114, %s128
      %p130 = scmp.eq.s32.totalorder %s31, 0
      %p131 = por %p129, %p130
      %s133 = sadd.s32 %s132, 1
      %p136 = scmp.eq.s32.totalorder %s25, 1
      %p137 = scmp.ne.s32.totalorder %s132, %s134
      %p138 = scmp.eq.s32.totalorder %s25, 0
      %p139 = por %p137, %p138
      %p140 = scmp.ne.s32.totalorder %s132, %s134
      %p141 = scmp.eq.s32.totalorder %s30, 1
      %p142 = por %p140, %p141
      %p143 = scmp.ne.s32.totalorder %s134, %s135
      %p144 = scmp.eq.s32.totalorder %s30, 0
      %p145 = por %p143, %p144
      %p146 = scmp.ne.s32.totalorder %s134, %s135
      %p147 = scmp.eq.s32.totalorder %s31, 1
      %p148 = por %p146, %p147
      %p150 = scmp.ne.s32.totalorder %s135, %s149
      %p151 = scmp.eq.s32.totalorder %s31, 0
      %p152 = por %p150, %p151
      %s154 = sadd.s32 %s153, 1
      %p157 = scmp.eq.s32.totalorder %s25, 1
      %p158 = scmp.ne.s32.totalorder %s153, %s155
      %p159 = scmp.eq.s32.totalorder %s25, 0
      %p160 = por %p158, %p159
      %p161 = scmp.ne.s32.totalorder %s153, %s155
      %p162 = scmp.eq.s32.totalorder %s30, 1
      %p163 = por %p161, %p162
      %p164 = scmp.ne.s32.totalorder %s155, %s156
      %p165 = scmp.eq.s32.totalorder %s30, 0
      %p166 = por %p164, %p165
      %p167 = scmp.ne.s32.totalorder %s155, %s156
      %p168 = scmp.eq.s32.totalorder %s31, 1
      %p169 = por %p167, %p168
      %p171 = scmp.ne.s32.totalorder %s156, %s170
      %p172 = scmp.eq.s32.totalorder %s31, 0
      %p173 = por %p171, %p172
      %s175 = sadd.s32 %s174, 1
      %p178 = scmp.eq.s32.totalorder %s25, 1
      %p179 = scmp.ne.s32.totalorder %s174, %s176
      %p180 = scmp.eq.s32.totalorder %s25, 0
      %p181 = por %p179, %p180
      %p182 = scmp.ne.s32.totalorder %s174, %s176
      %p183 = scmp.eq.s32.totalorder %s30, 1
      %p184 = por %p182, %p183
      %p185 = scmp.ne.s32.totalorder %s176, %s177
      %p186 = scmp.eq.s32.totalorder %s30, 0
      %p187 = por %p185, %p186
      %p188 = scmp.ne.s32.totalorder %s176, %s177
      %p189 = scmp.eq.s32.totalorder %s31, 1
      %p190 = por %p188, %p189
      %p192 = scmp.ne.s32.totalorder %s177, %s191
      %p193 = scmp.eq.s32.totalorder %s31, 0
      %p194 = por %p192, %p193
      %s196 = sadd.s32 %s195, 1
      %p199 = scmp.eq.s32.totalorder %s25, 1
      %p200 = scmp.ne.s32.totalorder %s195, %s197
      %p201 = scmp.eq.s32.totalorder %s25, 0
      %p202 = por %p200, %p201
      %p203 = scmp.ne.s32.totalorder %s195, %s197
      %p204 = scmp.eq.s32.totalorder %s30, 1
      %p205 = por %p203, %p204
      %p206 = scmp.ne.s32.totalorder %s197, %s198
      %p207 = scmp.eq.s32.totalorder %s30, 0
      %p208 = por %p206, %p207
      %p209 = scmp.ne.s32.totalorder %s197, %s198
      %p210 = scmp.eq.s32.totalorder %s31, 1
      %p211 = por %p209, %p210
      %p213 = scmp.ne.s32.totalorder %s198, %s212
      %p214 = scmp.eq.s32.totalorder %s31, 0
      %p215 = por %p213, %p214
      %s217 = sadd.s32 %s216, 1
      %p220 = scmp.eq.s32.totalorder %s25, 1
      %p221 = scmp.ne.s32.totalorder %s216, %s218
      %p222 = scmp.eq.s32.totalorder %s25, 0
      %p223 = por %p221, %p222
      %p224 = scmp.ne.s32.totalorder %s216, %s218
      %p225 = scmp.eq.s32.totalorder %s30, 1
      %p226 = por %p224, %p225
      %p227 = scmp.ne.s32.totalorder %s218, %s219
      %p228 = scmp.eq.s32.totalorder %s30, 0
      %p229 = por %p227, %p228
      %p230 = scmp.ne.s32.totalorder %s218, %s219
      %p231 = scmp.eq.s32.totalorder %s31, 1
      %p232 = por %p230, %p231
      %p234 = scmp.ne.s32.totalorder %s219, %s233
      %p235 = scmp.eq.s32.totalorder %s31, 0
      %p236 = por %p234, %p235
      %s238 = sadd.s32 %s237, 1
      %p241 = scmp.eq.s32.totalorder %s25, 1
      %p242 = scmp.ne.s32.totalorder %s237, %s239
      %p243 = scmp.eq.s32.totalorder %s25, 0
      %p244 = por %p242, %p243
      %p245 = scmp.ne.s32.totalorder %s237, %s239
      %p246 = scmp.eq.s32.totalorder %s30, 1
      %p247 = por %p245, %p246
      %p248 = scmp.ne.s32.totalorder %s239, %s240
      %p249 = scmp.eq.s32.totalorder %s30, 0
      %p250 = por %p248, %p249
      %p251 = scmp.ne.s32.totalorder %s239, %s240
      %p252 = scmp.eq.s32.totalorder %s31, 1
      %p253 = por %p251, %p252
      %p255 = scmp.ne.s32.totalorder %s240, %s254
      %p256 = scmp.eq.s32.totalorder %s31, 0
      %p257 = por %p255, %p256
      %s259 = sadd.s32 %s258, 1
      %p262 = scmp.eq.s32.totalorder %s25, 1
      %p263 = scmp.ne.s32.totalorder %s258, %s260
      %p264 = scmp.eq.s32.totalorder %s25, 0
      %p265 = por %p263, %p264
      %p266 = scmp.ne.s32.totalorder %s258, %s260
      %p267 = scmp.eq.s32.totalorder %s30, 1
      %p268 = por %p266, %p267
      %p269 = scmp.ne.s32.totalorder %s260, %s261
      %p270 = scmp.eq.s32.totalorder %s30, 0
      %p271 = por %p269, %p270
      %p272 = scmp.ne.s32.totalorder %s260, %s261
      %p273 = scmp.eq.s32.totalorder %s31, 1
      %p274 = por %p272, %p273
      %p276 = scmp.ne.s32.totalorder %s261, %s275
      %p277 = scmp.eq.s32.totalorder %s31, 0
      %p278 = por %p276, %p277
      %s279 = ssub.s32 %s25, %s32
      %p280 = scmp.eq.s32.totalorder %s279, 0
      %s282 = sadd.s32 %s281, 1
      %s283 = scalar_select %p280, %s281, %s282
      %p286 = pneg %p280
      %p287 = scmp.eq.s32.totalorder %s25, 1
      %p288 = por %p286, %p287
      %p289 = scmp.ne.s32.totalorder %s281, %s284
      %p290 = scmp.eq.s32.totalorder %s25, 0
      %p291 = por %p289, %p290
      %p292 = scmp.ne.s32.totalorder %s281, %s284
      %p293 = scmp.eq.s32.totalorder %s30, 1
      %p294 = por %p292, %p293
      %p295 = scmp.ne.s32.totalorder %s284, %s285
      %p296 = scmp.eq.s32.totalorder %s30, 0
      %p297 = por %p295, %p296
      %p298 = scmp.ne.s32.totalorder %s284, %s285
      %p299 = scmp.eq.s32.totalorder %s31, 1
      %p300 = por %p298, %p299
      %p302 = scmp.ne.s32.totalorder %s285, %s301
      %p303 = scmp.eq.s32.totalorder %s31, 0
      %p304 = por %p302, %p303
      %p305 = scmp.le.s32.totalorder 1, %s25
      %p306 = scmp.lt.s32.totalorder %s25, 3
      %p307 = pnand %p305, %p306
      %p308 = pneg %p307
      // Predicated region
      $region9: #{sgcn_gat_forward.2} parent=5 // pred_check
        _
      $region10: #{sgcn_gat_forward.2} parent=5 // pred_check_branch
        %310 = sbr.rel (%p307) target = $region12
      $region11: #{sgcn_gat_forward.2} parent=5 // pred_region
        %s311 = ssub.s32 %s25, 1
        // Predicated region
        $region13: #{sgcn_gat_forward.2} parent=11 // pred_check
          %p312 = pneg %p124
        $region14: #{sgcn_gat_forward.2} parent=11 // pred_check_branch
          %314 = sbr.rel (%p312) target = $region16
        $region15: #{sgcn_gat_forward.2} parent=11 // pred_region
          %s316 = ssub.s32 32, 32
          %317 = vsyncadd [#allocation5], %s316
          %s319 = sshll.u32 [#allocation4], 4
          %s320 = int_to_ptr.vmem [resolvable:$true] %s319
          %322 = dma.hbm_to_vmem [thread:$0]  %s3, 32, %s320, [#allocation5]
        $region16: #{sgcn_gat_forward.2} parent=11 // pred_fallthru
          _
        // Predicated region
        $region17: #{sgcn_gat_forward.2} parent=11 // pred_check
          %p323 = pneg %p145
        $region18: #{sgcn_gat_forward.2} parent=11 // pred_check_branch
          %325 = sbr.rel (%p323) target = $region20
        $region19: #{sgcn_gat_forward.2} parent=11 // pred_region
          %s327 = ssub.s32 16, 16
          %328 = vsyncadd [#allocation7], %s327
          %s330 = sshll.u32 [#allocation6], 4
          %s331 = int_to_ptr.vmem [resolvable:$true] %s330
          %333 = dma.hbm_to_vmem [thread:$0]  %s4, 16, %s331, [#allocation7]
        $region20: #{sgcn_gat_forward.2} parent=11 // pred_fallthru
          _
        // Predicated region
        $region21: #{sgcn_gat_forward.2} parent=11 // pred_check
          %p334 = pneg %p166
        $region22: #{sgcn_gat_forward.2} parent=11 // pred_check_branch
          %336 = sbr.rel (%p334) target = $region24
        $region23: #{sgcn_gat_forward.2} parent=11 // pred_region
          %s338 = ssub.s32 16, 16
          %339 = vsyncadd [#allocation7], %s338
          %s341 = sshll.u32 [#allocation8], 4
          %s342 = int_to_ptr.vmem [resolvable:$true] %s341
          %344 = dma.hbm_to_vmem [thread:$0]  %s5, 16, %s342, [#allocation7]
        $region24: #{sgcn_gat_forward.2} parent=11 // pred_fallthru
          _
        // Predicated region
        $region25: #{sgcn_gat_forward.2} parent=11 // pred_check
          %p345 = pneg %p187
        $region26: #{sgcn_gat_forward.2} parent=11 // pred_check_branch
          %347 = sbr.rel (%p345) target = $region28
        $region27: #{sgcn_gat_forward.2} parent=11 // pred_region
          _
        $region28: #{sgcn_gat_forward.2} parent=11 // pred_fallthru
          _
        // Predicated region
        $region29: #{sgcn_gat_forward.2} parent=11 // pred_check
          %p348 = pneg %p208
        $region30: #{sgcn_gat_forward.2} parent=11 // pred_check_branch
          %350 = sbr.rel (%p348) target = $region32
        $region31: #{sgcn_gat_forward.2} parent=11 // pred_region
          %s352 = ssub.s32 256, 256
          %353 = vsyncadd [#allocation10], %s352
          %s354 = sshll.u32 [#allocation9], 4
          %s355 = int_to_ptr.vmem [resolvable:$true] %s354
          %360 = dma.hbm_to_vmem [thread:$0]  %s7, 256, %s355, [#allocation10], 64, 64, 4
        $region32: #{sgcn_gat_forward.2} parent=11 // pred_fallthru
          _
        // Predicated region
        $region33: #{sgcn_gat_forward.2} parent=11 // pred_check
          %p361 = pneg %p229
        $region34: #{sgcn_gat_forward.2} parent=11 // pred_check_branch
          %363 = sbr.rel (%p361) target = $region36
        $region35: #{sgcn_gat_forward.2} parent=11 // pred_region
          %s365 = ssub.s32 16, 16
          %366 = vsyncadd [#allocation10], %s365
          %s368 = sshll.u32 [#allocation11], 4
          %s369 = int_to_ptr.vmem [resolvable:$true] %s368
          %371 = dma.hbm_to_vmem [thread:$0]  %s8, 16, %s369, [#allocation10]
        $region36: #{sgcn_gat_forward.2} parent=11 // pred_fallthru
          _
        // Predicated region
        $region37: #{sgcn_gat_forward.2} parent=11 // pred_check
          %p372 = pneg %p250
        $region38: #{sgcn_gat_forward.2} parent=11 // pred_check_branch
          %374 = sbr.rel (%p372) target = $region40
        $region39: #{sgcn_gat_forward.2} parent=11 // pred_region
          %s376 = ssub.s32 16, 16
          %377 = vsyncadd [#allocation13], %s376
          %s379 = sshll.u32 [#allocation12], 4
          %s380 = int_to_ptr.vmem [resolvable:$true] %s379
          %382 = dma.hbm_to_vmem [thread:$0]  %s9, 16, %s380, [#allocation13]
        $region40: #{sgcn_gat_forward.2} parent=11 // pred_fallthru
          _
        // Predicated region
        $region41: #{sgcn_gat_forward.2} parent=11 // pred_check
          %p383 = pneg %p271
        $region42: #{sgcn_gat_forward.2} parent=11 // pred_check_branch
          %385 = sbr.rel (%p383) target = $region44
        $region43: #{sgcn_gat_forward.2} parent=11 // pred_region
          _
        $region44: #{sgcn_gat_forward.2} parent=11 // pred_fallthru
          _
      $region12: #{sgcn_gat_forward.2} parent=5 // pred_fallthru
        _
      %p386 = scmp.lt.s32.totalorder %s25, 2
      // Predicated region
      $region45: #{sgcn_gat_forward.2} parent=5 // pred_check
        %p387 = pneg %p386
      $region46: #{sgcn_gat_forward.2} parent=5 // pred_check_branch
        %389 = sbr.rel (%p387) target = $region48
      $region47: #{sgcn_gat_forward.2} parent=5 // pred_region
        // Predicated region
        $region49: #{sgcn_gat_forward.2} parent=47 // pred_check
          %p390 = pneg %p45
        $region50: #{sgcn_gat_forward.2} parent=47 // pred_check_branch
          %392 = sbr.rel (%p390) target = $region52
        $region51: #{sgcn_gat_forward.2} parent=47 // pred_region
          %p393 = scmp.lt.s32.totalorder %s25, 1
          %s394 = scalar_select %p393, %s25, 1
          %s395 = smul.addr %s394, 16
          %s396 = smul.addr %s395, 8
          %s397 = scalar_lea.vmem %s0, %s396
        $region52: #{sgcn_gat_forward.2} parent=47 // pred_fallthru
          _
        // Predicated region
        $region53: #{sgcn_gat_forward.2} parent=47 // pred_check
          %p398 = pneg %p71
        $region54: #{sgcn_gat_forward.2} parent=47 // pred_check_branch
          %400 = sbr.rel (%p398) target = $region56
        $region55: #{sgcn_gat_forward.2} parent=47 // pred_region
          %p401 = scmp.lt.s32.totalorder %s25, 1
          %s402 = scalar_select %p401, %s25, 1
          %s403 = smul.addr %s402, 16
          %s404 = smul.addr %s403, 8
          %s405 = scalar_lea.vmem %s1, %s404
        $region56: #{sgcn_gat_forward.2} parent=47 // pred_fallthru
          _
        // Predicated region
        $region57: #{sgcn_gat_forward.2} parent=47 // pred_check
          %p406 = pneg %p97
        $region58: #{sgcn_gat_forward.2} parent=47 // pred_check_branch
          %408 = sbr.rel (%p406) target = $region60
        $region59: #{sgcn_gat_forward.2} parent=47 // pred_region
          %p409 = scmp.lt.s32.totalorder %s25, 1
          %s410 = scalar_select %p409, %s25, 1
          %s411 = smul.addr %s410, 16
          %s412 = smul.addr %s411, 8
          %s413 = scalar_lea.vmem %s2, %s412
        $region60: #{sgcn_gat_forward.2} parent=47 // pred_fallthru
          _
      $region48: #{sgcn_gat_forward.2} parent=5 // pred_fallthru
        _
      %p414 = scmp.le.s32.totalorder 1, %s25
      %p415 = scmp.lt.s32.totalorder %s25, 3
      %p416 = pnand %p414, %p415
      %p417 = pneg %p416
      // Predicated region
      $region61: #{sgcn_gat_forward.2} parent=5 // pred_check
        _
      $region62: #{sgcn_gat_forward.2} parent=5 // pred_check_branch
        %419 = sbr.rel (%p416) target = $region64
      $region63: #{sgcn_gat_forward.2} parent=5 // pred_region
        %s420 = ssub.s32 %s25, 1
        // Predicated region
        $region65: #{sgcn_gat_forward.2} parent=63 // pred_check
          %p421 = pneg %p124
        $region66: #{sgcn_gat_forward.2} parent=63 // pred_check_branch
          %423 = sbr.rel (%p421) target = $region68
        $region67: #{sgcn_gat_forward.2} parent=63 // pred_region
          %424 = dma.done [#allocation5], 32
        $region68: #{sgcn_gat_forward.2} parent=63 // pred_fallthru
          _
        // Predicated region
        $region69: #{sgcn_gat_forward.2} parent=63 // pred_check
          %p425 = pneg %p145
        $region70: #{sgcn_gat_forward.2} parent=63 // pred_check_branch
          %427 = sbr.rel (%p425) target = $region72
        $region71: #{sgcn_gat_forward.2} parent=63 // pred_region
          %428 = dma.done [#allocation7], 16
        $region72: #{sgcn_gat_forward.2} parent=63 // pred_fallthru
          _
        // Predicated region
        $region73: #{sgcn_gat_forward.2} parent=63 // pred_check
          %p429 = pneg %p166
        $region74: #{sgcn_gat_forward.2} parent=63 // pred_check_branch
          %431 = sbr.rel (%p429) target = $region76
        $region75: #{sgcn_gat_forward.2} parent=63 // pred_region
          %432 = dma.done [#allocation7], 16
        $region76: #{sgcn_gat_forward.2} parent=63 // pred_fallthru
          _
        // Predicated region
        $region77: #{sgcn_gat_forward.2} parent=63 // pred_check
          %p433 = pneg %p208
        $region78: #{sgcn_gat_forward.2} parent=63 // pred_check_branch
          %435 = sbr.rel (%p433) target = $region80
        $region79: #{sgcn_gat_forward.2} parent=63 // pred_region
          %436 = dma.done [#allocation10], 256
        $region80: #{sgcn_gat_forward.2} parent=63 // pred_fallthru
          _
        // Predicated region
        $region81: #{sgcn_gat_forward.2} parent=63 // pred_check
          %p437 = pneg %p229
        $region82: #{sgcn_gat_forward.2} parent=63 // pred_check_branch
          %439 = sbr.rel (%p437) target = $region84
        $region83: #{sgcn_gat_forward.2} parent=63 // pred_region
          %440 = dma.done [#allocation10], 16
        $region84: #{sgcn_gat_forward.2} parent=63 // pred_fallthru
          _
        // Predicated region
        $region85: #{sgcn_gat_forward.2} parent=63 // pred_check
          %p441 = pneg %p250
        $region86: #{sgcn_gat_forward.2} parent=63 // pred_check_branch
          %443 = sbr.rel (%p441) target = $region88
        $region87: #{sgcn_gat_forward.2} parent=63 // pred_region
          %444 = dma.done [#allocation13], 16
        $region88: #{sgcn_gat_forward.2} parent=63 // pred_fallthru
          _
        %p445 = scmp.lt.s32.totalorder %s30, 1
        %s446 = scalar_select %p445, %s30, 1
        %s447 = smul.addr %s446, 16
        %s448 = smul.addr %s447, 8
        %s449 = scalar_lea.vmem %s0, %s448
        %p450 = pneg %p51
        %p451 = pneg %p48
        %p452 = scmp.lt.s32.totalorder %s30, 1
        %s453 = scalar_select %p452, %s30, 1
        %s454 = smul.addr %s453, 16
        %s455 = smul.addr %s454, 8
        %s456 = scalar_lea.vmem %s1, %s455
        %p457 = pneg %p77
        %p458 = pneg %p74
        %p459 = scmp.lt.s32.totalorder %s30, 1
        %s460 = scalar_select %p459, %s30, 1
        %s461 = smul.addr %s460, 16
        %s462 = smul.addr %s461, 8
        %s463 = scalar_lea.vmem %s2, %s462
        %p464 = pneg %p103
        %p465 = pneg %p100
        %p466 = pneg %p124
        %p467 = pneg %p121
        %p468 = pneg %p145
        %p469 = pneg %p142
        %p470 = pneg %p166
        %p471 = pneg %p163
        %p472 = pneg %p187
        %p473 = pneg %p184
        %p474 = pneg %p208
        %p475 = pneg %p205
        %p476 = pneg %p229
        %p477 = pneg %p226
        %p478 = pneg %p250
        %p479 = pneg %p247
        %p480 = pneg %p271
        %p481 = pneg %p268
        %p482 = pneg %p297
        %p483 = pneg %p294
        %p484 = scmp.lt.s32.totalorder %s30, 1
        %s485 = scalar_select %p484, %s30, 1
        %s486 = smul.addr %s485, 16
        %s487 = smul.addr %s486, 8
        %s488 = scalar_lea.vmem %s11, %s487
        %p489 = scmp.lt.s32.totalorder %s30, 1
        %s490 = scalar_select %p489, %s30, 1
        %s491 = smul.addr %s490, 16
        %s492 = smul.addr %s491, 8
        %s493 = scalar_lea.vmem %s0, %s492
        %p494 = scmp.lt.s32.totalorder %s30, 1
        %s495 = scalar_select %p494, %s30, 1
        %s496 = smul.addr %s495, 16
        %s497 = smul.addr %s496, 8
        %s498 = scalar_lea.vmem %s1, %s497
        %p499 = scmp.lt.s32.totalorder %s30, 1
        %s500 = scalar_select %p499, %s30, 1
        %s501 = smul.addr %s500, 16
        %s502 = smul.addr %s501, 8
        %s503 = scalar_lea.vmem %s2, %s502
        %p504 = scmp.lt.s32.totalorder %s30, 1
        %s505 = scalar_select %p504, %s30, 1
        %s506 = smul.addr %s505, 16
        %s507 = smul.addr %s506, 8
        %s508 = scalar_lea.vmem %s11, %s507
        %v510 = vld [vmem:[%s493] sm:$0xff]
        %v511 = vld [vmem:[%s493 + $0x8] sm:$0xff]
        %v512 = vld [vmem:[%s493 + $0x10] sm:$0xff]
        %v513 = vld [vmem:[%s493 + $0x18] sm:$0xff]
        %v514 = vld [vmem:[%s493 + $0x20] sm:$0xff]
        %v515 = vld [vmem:[%s493 + $0x28] sm:$0xff]
        %v516 = vld [vmem:[%s493 + $0x30] sm:$0xff]
        %v517 = vld [vmem:[%s493 + $0x38] sm:$0xff]
        %v518 = vld [vmem:[%s493 + $0x40] sm:$0xff]
        %v519 = vld [vmem:[%s493 + $0x48] sm:$0xff]
        %v520 = vld [vmem:[%s493 + $0x50] sm:$0xff]
        %v521 = vld [vmem:[%s493 + $0x58] sm:$0xff]
        %v522 = vld [vmem:[%s493 + $0x60] sm:$0xff]
        %v523 = vld [vmem:[%s493 + $0x68] sm:$0xff]
        %v524 = vld [vmem:[%s493 + $0x70] sm:$0xff]
        %v525 = vld [vmem:[%s493 + $0x78] sm:$0xff]
        %v526 = vpack.c.bf16 %v511, %v510
        %v527 = vpack.c.bf16 %v513, %v512
        %v528 = vpack.c.bf16 %v515, %v514
        %v529 = vpack.c.bf16 %v517, %v516
        %v530 = vpack.c.bf16 %v519, %v518
        %v531 = vpack.c.bf16 %v521, %v520
        %v532 = vpack.c.bf16 %v523, %v522
        %v533 = vpack.c.bf16 %v525, %v524
        %v534 = vld [vmem:[#allocation4] sm:$0x3]
        %vm535 = vcmask 31744
        %v537 = vsel %vm535, %v526, 0
        %v540 = vsel %vm535, %v527, 0
        %v543 = vsel %vm535, %v528, 0
        %v546 = vsel %vm535, %v529, 0
        %v549 = vsel %vm535, %v530, 0
        %v552 = vsel %vm535, %v531, 0
        %v555 = vsel %vm535, %v532, 0
        %v558 = vsel %vm535, %v533, 0
        %vm560 = vcmask 1041408
        %v562 = vsel %vm560, %v534, 0
        %564 = vmatprep.subr.bf16.mxu0 0
        %565 = vmatpush1.bf16.msra.mxu0 0
        %566 = vmatprep.subr.bf16.mxu0 0
        %567 = vmatpush1.bf16.msra.mxu0 0
        %568 = vmatprep.subr.bf16.mxu0 0
        %569 = vmatpush1.bf16.msra.mxu0 0
        %570 = vmatprep.subr.bf16.mxu0 0
        %571 = vmatpush1.bf16.msra.mxu0 0
        %572 = vmatprep.subr.bf16.mxu0 0
        %573 = vmatpush1.bf16.msra.mxu0 0
        %574 = vmatprep.subr.bf16.mxu0 0
        %575 = vmatpush1.bf16.msra.mxu0 0
        %576 = vmatprep.subr.bf16.mxu0 0
        %577 = vmatpush1.bf16.msra.mxu0 0
        %578 = vmatprep.subr.bf16.mxu0 0
        %579 = vmatpush1.bf16.msra.mxu0 %v562
        %580 = vmatprep.subr.bf16.mxu0 0
        %581 = vmatpush2.bf16.msra.mxu0 0
        %582 = vmatprep.subr.bf16.mxu0 0
        %583 = vmatpush2.bf16.msra.mxu0 0
        %584 = vmatprep.subr.bf16.mxu0 0
        %585 = vmatpush2.bf16.msra.mxu0 0
        %586 = vmatprep.subr.bf16.mxu0 0
        %587 = vmatpush2.bf16.msra.mxu0 0
        %588 = vmatprep.subr.bf16.mxu0 0
        %589 = vmatpush2.bf16.msra.mxu0 0
        %590 = vmatprep.subr.bf16.mxu0 0
        %591 = vmatpush2.bf16.msra.mxu0 0
        %592 = vmatprep.subr.bf16.mxu0 0
        %593 = vmatpush2.bf16.msra.mxu0 0
        %594 = vmatprep.subr.bf16.mxu0 0
        %595 = vmatpush2.bf16.msra.mxu0 0
        %596 = vmatprep.mubr.bf16.mxu0 0
        %597 = vmatmul.mubr.bf16.gmra.mxu0 %v537
        %v598 = vpop.f32.mrf.mxu0
        %v599 = vadd.f32 0.0, %v598
        %v600 = vpop.f32.mrf.mxu0
        %v601 = vpop.f32.mrf.mxu0
        %v602 = vadd.f32 0.0, %v601
        %v603 = vpop.f32.mrf.mxu0
        %604 = vmatprep.mubr.bf16.mxu0 0
        %605 = vmatmul.mubr.bf16.gmra.mxu0 %v540
        %v606 = vpop.f32.mrf.mxu0
        %v607 = vadd.f32 0.0, %v606
        %v608 = vpop.f32.mrf.mxu0
        %v609 = vpop.f32.mrf.mxu0
        %v610 = vadd.f32 0.0, %v609
        %v611 = vpop.f32.mrf.mxu0
        %612 = vmatprep.mubr.bf16.mxu0 0
        %613 = vmatmul.mubr.bf16.gmra.mxu0 %v543
        %v614 = vpop.f32.mrf.mxu0
        %v615 = vadd.f32 0.0, %v614
        %v616 = vpop.f32.mrf.mxu0
        %v617 = vpop.f32.mrf.mxu0
        %v618 = vadd.f32 0.0, %v617
        %v619 = vpop.f32.mrf.mxu0
        %620 = vmatprep.mubr.bf16.mxu0 0
        %621 = vmatmul.mubr.bf16.gmra.mxu0 %v546
        %v622 = vpop.f32.mrf.mxu0
        %v623 = vadd.f32 0.0, %v622
        %v624 = vpop.f32.mrf.mxu0
        %v625 = vpop.f32.mrf.mxu0
        %v626 = vadd.f32 0.0, %v625
        %v627 = vpop.f32.mrf.mxu0
        %628 = vmatprep.mubr.bf16.mxu0 0
        %629 = vmatmul.mubr.bf16.gmra.mxu0 %v549
        %v630 = vpop.f32.mrf.mxu0
        %v631 = vadd.f32 0.0, %v630
        %v632 = vpop.f32.mrf.mxu0
        %v633 = vpop.f32.mrf.mxu0
        %v634 = vadd.f32 0.0, %v633
        %v635 = vpop.f32.mrf.mxu0
        %636 = vmatprep.mubr.bf16.mxu0 0
        %637 = vmatmul.mubr.bf16.gmra.mxu0 %v552
        %v638 = vpop.f32.mrf.mxu0
        %v639 = vadd.f32 0.0, %v638
        %v640 = vpop.f32.mrf.mxu0
        %v641 = vpop.f32.mrf.mxu0
        %v642 = vadd.f32 0.0, %v641
        %v643 = vpop.f32.mrf.mxu0
        %644 = vmatprep.mubr.bf16.mxu0 0
        %645 = vmatmul.mubr.bf16.gmra.mxu0 %v555
        %v646 = vpop.f32.mrf.mxu0
        %v647 = vadd.f32 0.0, %v646
        %v648 = vpop.f32.mrf.mxu0
        %v649 = vpop.f32.mrf.mxu0
        %v650 = vadd.f32 0.0, %v649
        %v651 = vpop.f32.mrf.mxu0
        %652 = vmatprep.mubr.bf16.mxu0 0
        %653 = vmatmul.mubr.bf16.gmra.mxu0 %v558
        %v654 = vpop.f32.mrf.mxu0
        %v655 = vadd.f32 0.0, %v654
        %v656 = vpop.f32.mrf.mxu0
        %v657 = vpop.f32.mrf.mxu0
        %v658 = vadd.f32 0.0, %v657
        %v659 = vpop.f32.mrf.mxu0
        %660 = vdwg.mxu0
        %v661 = vld [vmem:[#allocation6] sm:$0x1]
        %v663 = vsel %vm535, %v661, 0
        %665 = vmatprep.subr.bf16.mxu0 0
        %666 = vmatpush1.bf16.xpose.msra.mxu0 %v558
        %667 = vmatprep.subr.bf16.mxu0 0
        %668 = vmatpush1.bf16.xpose.msra.mxu0 %v555
        %669 = vmatprep.subr.bf16.mxu0 0
        %670 = vmatpush1.bf16.xpose.msra.mxu0 %v552
        %671 = vmatprep.subr.bf16.mxu0 0
        %672 = vmatpush1.bf16.xpose.msra.mxu0 %v549
        %673 = vmatprep.subr.bf16.mxu0 0
        %674 = vmatpush1.bf16.xpose.msra.mxu0 %v546
        %675 = vmatprep.subr.bf16.mxu0 0
        %676 = vmatpush1.bf16.xpose.msra.mxu0 %v543
        %677 = vmatprep.subr.bf16.mxu0 0
        %678 = vmatpush1.bf16.xpose.msra.mxu0 %v540
        %679 = vmatprep.subr.bf16.mxu0 0
        %680 = vmatpush1.bf16.xpose.msra.mxu0 %v537
        %681 = vmatprep.subr.bf16.mxu0 0
        %682 = vmatpush2.bf16.xpose.msra.mxu0 0
        %683 = vmatprep.subr.bf16.mxu0 0
        %684 = vmatpush2.bf16.xpose.msra.mxu0 0
        %685 = vmatprep.subr.bf16.mxu0 0
        %686 = vmatpush2.bf16.xpose.msra.mxu0 0
        %687 = vmatprep.subr.bf16.mxu0 0
        %688 = vmatpush2.bf16.xpose.msra.mxu0 0
        %689 = vmatprep.subr.bf16.mxu0 0
        %690 = vmatpush2.bf16.xpose.msra.mxu0 0
        %691 = vmatprep.subr.bf16.mxu0 0
        %692 = vmatpush2.bf16.xpose.msra.mxu0 0
        %693 = vmatprep.subr.bf16.mxu0 0
        %694 = vmatpush2.bf16.xpose.msra.mxu0 0
        %695 = vmatprep.subr.bf16.mxu0 0
        %696 = vmatpush2.bf16.xpose.msra.mxu0 0
        %697 = vmatprep.mubr.bf16.mxu0 0
        %698 = vmatmul.mubr.bf16.gmra.mxu0 %v663
        %v699 = vpop.f32.mrf.mxu0
        %v700 = vadd.f32 0.0, %v699
        %v701 = vpop.f32.mrf.mxu0
        %v702 = vpop.f32.mrf.mxu0
        %v703 = vpop.f32.mrf.mxu0
        %704 = vdwg.mxu0
        %706 = vset.pattern.permute.xlu0 32
        %707 = vperm.xlu0 %706, %v599
        %v708 = vpop.permute.xlu0 %707
        %711 = vset.pattern.permute.xlu0 32
        %712 = vperm.xlu0 %711, %v602
        %v713 = vpop.permute.xlu0 %712
        %716 = vset.pattern.permute.xlu0 32
        %717 = vperm.xlu0 %716, %v607
        %v718 = vpop.permute.xlu0 %717
        %721 = vset.pattern.permute.xlu0 32
        %722 = vperm.xlu0 %721, %v610
        %v723 = vpop.permute.xlu0 %722
        %726 = vset.pattern.permute.xlu0 32
        %727 = vperm.xlu0 %726, %v615
        %v728 = vpop.permute.xlu0 %727
        %731 = vset.pattern.permute.xlu0 32
        %732 = vperm.xlu0 %731, %v618
        %v733 = vpop.permute.xlu0 %732
        %736 = vset.pattern.permute.xlu0 32
        %737 = vperm.xlu0 %736, %v623
        %v738 = vpop.permute.xlu0 %737
        %741 = vset.pattern.permute.xlu0 32
        %742 = vperm.xlu0 %741, %v626
        %v743 = vpop.permute.xlu0 %742
        %746 = vset.pattern.permute.xlu0 32
        %747 = vperm.xlu0 %746, %v631
        %v748 = vpop.permute.xlu0 %747
        %751 = vset.pattern.permute.xlu0 32
        %752 = vperm.xlu0 %751, %v634
        %v753 = vpop.permute.xlu0 %752
        %756 = vset.pattern.permute.xlu0 32
        %757 = vperm.xlu0 %756, %v639
        %v758 = vpop.permute.xlu0 %757
        %761 = vset.pattern.permute.xlu0 32
        %762 = vperm.xlu0 %761, %v642
        %v763 = vpop.permute.xlu0 %762
        %766 = vset.pattern.permute.xlu0 32
        %767 = vperm.xlu0 %766, %v647
        %v768 = vpop.permute.xlu0 %767
        %771 = vset.pattern.permute.xlu0 32
        %772 = vperm.xlu0 %771, %v650
        %v773 = vpop.permute.xlu0 %772
        %776 = vset.pattern.permute.xlu0 32
        %777 = vperm.xlu0 %776, %v655
        %v778 = vpop.permute.xlu0 %777
        %781 = vset.pattern.permute.xlu0 32
        %782 = vperm.xlu0 %781, %v658
        %v783 = vpop.permute.xlu0 %782
        %v785 = vlaneseq
        %v786 = vshrl.u32 %v785, 7
        %v787 = vsub.s32 0, %v786
        %v788 = vrot.slane %v700, %v787
        %v789 = vadd.f32 %v708, %v788
        %v790 = vadd.f32 %v713, %v788
        %v791 = vadd.f32 %v718, %v788
        %v792 = vadd.f32 %v723, %v788
        %v793 = vadd.f32 %v728, %v788
        %v794 = vadd.f32 %v733, %v788
        %v795 = vadd.f32 %v738, %v788
        %v796 = vadd.f32 %v743, %v788
        %v797 = vadd.f32 %v748, %v788
        %v798 = vadd.f32 %v753, %v788
        %v799 = vadd.f32 %v758, %v788
        %v800 = vadd.f32 %v763, %v788
        %v801 = vadd.f32 %v768, %v788
        %v802 = vadd.f32 %v773, %v788
        %v803 = vadd.f32 %v778, %v788
        %v804 = vadd.f32 %v783, %v788
        %v805 = vld [vmem:[#allocation2] sm:$0x1]
        %v806 = vld [vmem:[%s498] sm:$0xff]
        %v807 = vld [vmem:[%s498 + $0x8] sm:$0xff]
        %v808 = vld [vmem:[%s498 + $0x10] sm:$0xff]
        %v809 = vld [vmem:[%s498 + $0x18] sm:$0xff]
        %v810 = vld [vmem:[%s498 + $0x20] sm:$0xff]
        %v811 = vld [vmem:[%s498 + $0x28] sm:$0xff]
        %v812 = vld [vmem:[%s498 + $0x30] sm:$0xff]
        %v813 = vld [vmem:[%s498 + $0x38] sm:$0xff]
        %v814 = vld [vmem:[%s498 + $0x40] sm:$0xff]
        %v815 = vld [vmem:[%s498 + $0x48] sm:$0xff]
        %v816 = vld [vmem:[%s498 + $0x50] sm:$0xff]
        %v817 = vld [vmem:[%s498 + $0x58] sm:$0xff]
        %v818 = vld [vmem:[%s498 + $0x60] sm:$0xff]
        %v819 = vld [vmem:[%s498 + $0x68] sm:$0xff]
        %v820 = vld [vmem:[%s498 + $0x70] sm:$0xff]
        %v821 = vld [vmem:[%s498 + $0x78] sm:$0xff]
        %v823 = vlaneseq
        %v824 = vshrl.u32 %v823, 7
        %v825 = vsub.s32 0, %v824
        %v826 = vrot.slane %v805, %v825
        %827 = vset.pattern.permute.xlu0 0
        %828 = vperm.xlu0 %827, %v826
        %v829 = vpop.permute.xlu0 %828
        %v831 = vmul.f32 %v829, %v806
        %v832 = vmul.f32 %v829, %v807
        %v833 = vmul.f32 %v829, %v808
        %v834 = vmul.f32 %v829, %v809
        %v835 = vmul.f32 %v829, %v810
        %v836 = vmul.f32 %v829, %v811
        %v837 = vmul.f32 %v829, %v812
        %v838 = vmul.f32 %v829, %v813
        %v839 = vmul.f32 %v829, %v814
        %v840 = vmul.f32 %v829, %v815
        %v841 = vmul.f32 %v829, %v816
        %v842 = vmul.f32 %v829, %v817
        %v843 = vmul.f32 %v829, %v818
        %v844 = vmul.f32 %v829, %v819
        %v845 = vmul.f32 %v829, %v820
        %v846 = vmul.f32 %v829, %v821
        %v847 = vld [vmem:[%s503] sm:$0xff]
        %v848 = vld [vmem:[%s503 + $0x8] sm:$0xff]
        %v849 = vld [vmem:[%s503 + $0x10] sm:$0xff]
        %v850 = vld [vmem:[%s503 + $0x18] sm:$0xff]
        %v851 = vld [vmem:[%s503 + $0x20] sm:$0xff]
        %v852 = vld [vmem:[%s503 + $0x28] sm:$0xff]
        %v853 = vld [vmem:[%s503 + $0x30] sm:$0xff]
        %v854 = vld [vmem:[%s503 + $0x38] sm:$0xff]
        %v855 = vld [vmem:[%s503 + $0x40] sm:$0xff]
        %v856 = vld [vmem:[%s503 + $0x48] sm:$0xff]
        %v857 = vld [vmem:[%s503 + $0x50] sm:$0xff]
        %v858 = vld [vmem:[%s503 + $0x58] sm:$0xff]
        %v859 = vld [vmem:[%s503 + $0x60] sm:$0xff]
        %v860 = vld [vmem:[%s503 + $0x68] sm:$0xff]
        %v861 = vld [vmem:[%s503 + $0x70] sm:$0xff]
        %v862 = vld [vmem:[%s503 + $0x78] sm:$0xff]
        %v863 = vadd.f32 %v831, %v847
        %v864 = vadd.f32 %v832, %v848
        %v865 = vadd.f32 %v833, %v849
        %v866 = vadd.f32 %v834, %v850
        %v867 = vadd.f32 %v835, %v851
        %v868 = vadd.f32 %v836, %v852
        %v869 = vadd.f32 %v837, %v853
        %v870 = vadd.f32 %v838, %v854
        %v871 = vadd.f32 %v839, %v855
        %v872 = vadd.f32 %v840, %v856
        %v873 = vadd.f32 %v841, %v857
        %v874 = vadd.f32 %v842, %v858
        %v875 = vadd.f32 %v843, %v859
        %v876 = vadd.f32 %v844, %v860
        %v877 = vadd.f32 %v845, %v861
        %v878 = vadd.f32 %v846, %v862
        %v879 = vadd.f32 %v789, %v863
        %v880 = vadd.f32 %v790, %v864
        %v881 = vadd.f32 %v791, %v865
        %v882 = vadd.f32 %v792, %v866
        %v883 = vadd.f32 %v793, %v867
        %v884 = vadd.f32 %v794, %v868
        %v885 = vadd.f32 %v795, %v869
        %v886 = vadd.f32 %v796, %v870
        %v887 = vadd.f32 %v797, %v871
        %v888 = vadd.f32 %v798, %v872
        %v889 = vadd.f32 %v799, %v873
        %v890 = vadd.f32 %v800, %v874
        %v891 = vadd.f32 %v801, %v875
        %v892 = vadd.f32 %v802, %v876
        %v893 = vadd.f32 %v803, %v877
        %v894 = vadd.f32 %v804, %v878
        %v895 = vmul.f32 %v879, 0.2
        %v896 = vmul.f32 %v880, 0.2
        %v897 = vmul.f32 %v881, 0.2
        %v898 = vmul.f32 %v882, 0.2
        %v899 = vmul.f32 %v883, 0.2
        %v900 = vmul.f32 %v884, 0.2
        %v901 = vmul.f32 %v885, 0.2
        %v902 = vmul.f32 %v886, 0.2
        %v903 = vmul.f32 %v887, 0.2
        %v904 = vmul.f32 %v888, 0.2
        %v905 = vmul.f32 %v889, 0.2
        %v906 = vmul.f32 %v890, 0.2
        %v907 = vmul.f32 %v891, 0.2
        %v908 = vmul.f32 %v892, 0.2
        %v909 = vmul.f32 %v893, 0.2
        %v910 = vmul.f32 %v894, 0.2
        %v911 = vmax.f32 %v879, %v895
        %v912 = vmax.f32 %v880, %v896
        %v913 = vmax.f32 %v881, %v897
        %v914 = vmax.f32 %v882, %v898
        %v915 = vmax.f32 %v883, %v899
        %v916 = vmax.f32 %v884, %v900
        %v917 = vmax.f32 %v885, %v901
        %v918 = vmax.f32 %v886, %v902
        %v919 = vmax.f32 %v887, %v903
        %v920 = vmax.f32 %v888, %v904
        %v921 = vmax.f32 %v889, %v905
        %v922 = vmax.f32 %v890, %v906
        %v923 = vmax.f32 %v891, %v907
        %v924 = vmax.f32 %v892, %v908
        %v925 = vmax.f32 %v893, %v909
        %v926 = vmax.f32 %v894, %v910
        %927 = vmax.xlane.f32.xlu0 %v911
        %v928 = vpop.xlane.xlu0 %927
        %929 = vmax.xlane.f32.xlu0 %v912
        %v930 = vpop.xlane.xlu0 %929
        %931 = vmax.xlane.f32.xlu0 %v913
        %v932 = vpop.xlane.xlu0 %931
        %933 = vmax.xlane.f32.xlu0 %v914
        %v934 = vpop.xlane.xlu0 %933
        %935 = vmax.xlane.f32.xlu0 %v915
        %v936 = vpop.xlane.xlu0 %935
        %937 = vmax.xlane.f32.xlu0 %v916
        %v938 = vpop.xlane.xlu0 %937
        %939 = vmax.xlane.f32.xlu0 %v917
        %v940 = vpop.xlane.xlu0 %939
        %941 = vmax.xlane.f32.xlu0 %v918
        %v942 = vpop.xlane.xlu0 %941
        %943 = vmax.xlane.f32.xlu0 %v919
        %v944 = vpop.xlane.xlu0 %943
        %945 = vmax.xlane.f32.xlu0 %v920
        %v946 = vpop.xlane.xlu0 %945
        %947 = vmax.xlane.f32.xlu0 %v921
        %v948 = vpop.xlane.xlu0 %947
        %949 = vmax.xlane.f32.xlu0 %v922
        %v950 = vpop.xlane.xlu0 %949
        %951 = vmax.xlane.f32.xlu0 %v923
        %v952 = vpop.xlane.xlu0 %951
        %953 = vmax.xlane.f32.xlu0 %v924
        %v954 = vpop.xlane.xlu0 %953
        %955 = vmax.xlane.f32.xlu0 %v925
        %v956 = vpop.xlane.xlu0 %955
        %957 = vmax.xlane.f32.xlu0 %v926
        %v958 = vpop.xlane.xlu0 %957
        %v959 = vsub.f32 %v911, %v928
        %v960 = vsub.f32 %v912, %v930
        %v961 = vsub.f32 %v913, %v932
        %v962 = vsub.f32 %v914, %v934
        %v963 = vsub.f32 %v915, %v936
        %v964 = vsub.f32 %v916, %v938
        %v965 = vsub.f32 %v917, %v940
        %v966 = vsub.f32 %v918, %v942
        %v967 = vsub.f32 %v919, %v944
        %v968 = vsub.f32 %v920, %v946
        %v969 = vsub.f32 %v921, %v948
        %v970 = vsub.f32 %v922, %v950
        %v971 = vsub.f32 %v923, %v952
        %v972 = vsub.f32 %v924, %v954
        %v973 = vsub.f32 %v925, %v956
        %v974 = vsub.f32 %v926, %v958
        %v975 = vmul.f32 %v959, 1.442695
        %v976 = vpow.pop %v975
        %v977 = vmul.f32 %v960, 1.442695
        %v978 = vpow.pop %v977
        %v979 = vmul.f32 %v961, 1.442695
        %v980 = vpow.pop %v979
        %v981 = vmul.f32 %v962, 1.442695
        %v982 = vpow.pop %v981
        %v983 = vmul.f32 %v963, 1.442695
        %v984 = vpow.pop %v983
        %v985 = vmul.f32 %v964, 1.442695
        %v986 = vpow.pop %v985
        %v987 = vmul.f32 %v965, 1.442695
        %v988 = vpow.pop %v987
        %v989 = vmul.f32 %v966, 1.442695
        %v990 = vpow.pop %v989
        %v991 = vmul.f32 %v967, 1.442695
        %v992 = vpow.pop %v991
        %v993 = vmul.f32 %v968, 1.442695
        %v994 = vpow.pop %v993
        %v995 = vmul.f32 %v969, 1.442695
        %v996 = vpow.pop %v995
        %v997 = vmul.f32 %v970, 1.442695
        %v998 = vpow.pop %v997
        %v999 = vmul.f32 %v971, 1.442695
        %v1000 = vpow.pop %v999
        %v1001 = vmul.f32 %v972, 1.442695
        %v1002 = vpow.pop %v1001
        %v1003 = vmul.f32 %v973, 1.442695
        %v1004 = vpow.pop %v1003
        %v1005 = vmul.f32 %v974, 1.442695
        %v1006 = vpow.pop %v1005
        %1007 = vadd.xlane.f32.xlu0 %v976
        %v1008 = vpop.xlane.xlu0 %1007
        %1009 = vadd.xlane.f32.xlu0 %v978
        %v1010 = vpop.xlane.xlu0 %1009
        %1011 = vadd.xlane.f32.xlu0 %v980
        %v1012 = vpop.xlane.xlu0 %1011
        %1013 = vadd.xlane.f32.xlu0 %v982
        %v1014 = vpop.xlane.xlu0 %1013
        %1015 = vadd.xlane.f32.xlu0 %v984
        %v1016 = vpop.xlane.xlu0 %1015
        %1017 = vadd.xlane.f32.xlu0 %v986
        %v1018 = vpop.xlane.xlu0 %1017
        %1019 = vadd.xlane.f32.xlu0 %v988
        %v1020 = vpop.xlane.xlu0 %1019
        %1021 = vadd.xlane.f32.xlu0 %v990
        %v1022 = vpop.xlane.xlu0 %1021
        %1023 = vadd.xlane.f32.xlu0 %v992
        %v1024 = vpop.xlane.xlu0 %1023
        %1025 = vadd.xlane.f32.xlu0 %v994
        %v1026 = vpop.xlane.xlu0 %1025
        %1027 = vadd.xlane.f32.xlu0 %v996
        %v1028 = vpop.xlane.xlu0 %1027
        %1029 = vadd.xlane.f32.xlu0 %v998
        %v1030 = vpop.xlane.xlu0 %1029
        %1031 = vadd.xlane.f32.xlu0 %v1000
        %v1032 = vpop.xlane.xlu0 %1031
        %1033 = vadd.xlane.f32.xlu0 %v1002
        %v1034 = vpop.xlane.xlu0 %1033
        %1035 = vadd.xlane.f32.xlu0 %v1004
        %v1036 = vpop.xlane.xlu0 %1035
        %1037 = vadd.xlane.f32.xlu0 %v1006
        %v1038 = vpop.xlane.xlu0 %1037
        %v1039 = vpack.c.bf16 %v978, %v976
        %v1040 = vpack.c.bf16 %v982, %v980
        %v1041 = vpack.c.bf16 %v986, %v984
        %v1042 = vpack.c.bf16 %v990, %v988
        %v1043 = vpack.c.bf16 %v994, %v992
        %v1044 = vpack.c.bf16 %v998, %v996
        %v1045 = vpack.c.bf16 %v1002, %v1000
        %v1046 = vpack.c.bf16 %v1006, %v1004
        %v1047 = vpack.c.bf16 %v602, %v599
        %v1048 = vpack.c.bf16 %v610, %v607
        %v1049 = vpack.c.bf16 %v618, %v615
        %v1050 = vpack.c.bf16 %v626, %v623
        %v1051 = vpack.c.bf16 %v634, %v631
        %v1052 = vpack.c.bf16 %v642, %v639
        %v1053 = vpack.c.bf16 %v650, %v647
        %v1054 = vpack.c.bf16 %v658, %v655
        %1055 = vmatprep.subr.bf16.mxu0 0
        %1056 = vmatpush1.bf16.msra.mxu0 %v1054
        %1057 = vmatprep.subr.bf16.mxu0 0
        %1058 = vmatpush1.bf16.msra.mxu0 %v1053
        %1059 = vmatprep.subr.bf16.mxu0 0
        %1060 = vmatpush1.bf16.msra.mxu0 %v1052
        %1061 = vmatprep.subr.bf16.mxu0 0
        %1062 = vmatpush1.bf16.msra.mxu0 %v1051
        %1063 = vmatprep.subr.bf16.mxu0 0
        %1064 = vmatpush1.bf16.msra.mxu0 %v1050
        %1065 = vmatprep.subr.bf16.mxu0 0
        %1066 = vmatpush1.bf16.msra.mxu0 %v1049
        %1067 = vmatprep.subr.bf16.mxu0 0
        %1068 = vmatpush1.bf16.msra.mxu0 %v1048
        %1069 = vmatprep.subr.bf16.mxu0 0
        %1070 = vmatpush1.bf16.msra.mxu0 %v1047
        %1071 = vmatprep.subr.bf16.mxu0 0
        %1072 = vmatpush2.bf16.msra.mxu0 0
        %1073 = vmatprep.subr.bf16.mxu0 0
        %1074 = vmatpush2.bf16.msra.mxu0 0
        %1075 = vmatprep.subr.bf16.mxu0 0
        %1076 = vmatpush2.bf16.msra.mxu0 0
        %1077 = vmatprep.subr.bf16.mxu0 0
        %1078 = vmatpush2.bf16.msra.mxu0 0
        %1079 = vmatprep.subr.bf16.mxu0 0
        %1080 = vmatpush2.bf16.msra.mxu0 0
        %1081 = vmatprep.subr.bf16.mxu0 0
        %1082 = vmatpush2.bf16.msra.mxu0 0
        %1083 = vmatprep.subr.bf16.mxu0 0
        %1084 = vmatpush2.bf16.msra.mxu0 0
        %1085 = vmatprep.subr.bf16.mxu0 0
        %1086 = vmatpush2.bf16.msra.mxu0 0
        %1087 = vmatprep.mubr.bf16.mxu0 0
        %1088 = vmatmul.mubr.bf16.gmra.mxu0 %v1039
        %v1089 = vpop.f32.mrf.mxu0
        %v1090 = vadd.f32 0.0, %v1089
        %v1091 = vpop.f32.mrf.mxu0
        %v1092 = vpop.f32.mrf.mxu0
        %v1093 = vadd.f32 0.0, %v1092
        %v1094 = vpop.f32.mrf.mxu0
        %1095 = vmatprep.mubr.bf16.mxu0 0
        %1096 = vmatmul.mubr.bf16.gmra.mxu0 %v1040
        %v1097 = vpop.f32.mrf.mxu0
        %v1098 = vadd.f32 0.0, %v1097
        %v1099 = vpop.f32.mrf.mxu0
        %v1100 = vpop.f32.mrf.mxu0
        %v1101 = vadd.f32 0.0, %v1100
        %v1102 = vpop.f32.mrf.mxu0
        %1103 = vmatprep.mubr.bf16.mxu0 0
        %1104 = vmatmul.mubr.bf16.gmra.mxu0 %v1041
        %v1105 = vpop.f32.mrf.mxu0
        %v1106 = vadd.f32 0.0, %v1105
        %v1107 = vpop.f32.mrf.mxu0
        %v1108 = vpop.f32.mrf.mxu0
        %v1109 = vadd.f32 0.0, %v1108
        %v1110 = vpop.f32.mrf.mxu0
        %1111 = vmatprep.mubr.bf16.mxu0 0
        %1112 = vmatmul.mubr.bf16.gmra.mxu0 %v1042
        %v1113 = vpop.f32.mrf.mxu0
        %v1114 = vadd.f32 0.0, %v1113
        %v1115 = vpop.f32.mrf.mxu0
        %v1116 = vpop.f32.mrf.mxu0
        %v1117 = vadd.f32 0.0, %v1116
        %v1118 = vpop.f32.mrf.mxu0
        %1119 = vmatprep.mubr.bf16.mxu0 0
        %1120 = vmatmul.mubr.bf16.gmra.mxu0 %v1043
        %v1121 = vpop.f32.mrf.mxu0
        %v1122 = vadd.f32 0.0, %v1121
        %v1123 = vpop.f32.mrf.mxu0
        %v1124 = vpop.f32.mrf.mxu0
        %v1125 = vadd.f32 0.0, %v1124
        %v1126 = vpop.f32.mrf.mxu0
        %1127 = vmatprep.mubr.bf16.mxu0 0
        %1128 = vmatmul.mubr.bf16.gmra.mxu0 %v1044
        %v1129 = vpop.f32.mrf.mxu0
        %v1130 = vadd.f32 0.0, %v1129
        %v1131 = vpop.f32.mrf.mxu0
        %v1132 = vpop.f32.mrf.mxu0
        %v1133 = vadd.f32 0.0, %v1132
        %v1134 = vpop.f32.mrf.mxu0
        %1135 = vmatprep.mubr.bf16.mxu0 0
        %1136 = vmatmul.mubr.bf16.gmra.mxu0 %v1045
        %v1137 = vpop.f32.mrf.mxu0
        %v1138 = vadd.f32 0.0, %v1137
        %v1139 = vpop.f32.mrf.mxu0
        %v1140 = vpop.f32.mrf.mxu0
        %v1141 = vadd.f32 0.0, %v1140
        %v1142 = vpop.f32.mrf.mxu0
        %1143 = vmatprep.mubr.bf16.mxu0 0
        %1144 = vmatmul.mubr.bf16.gmra.mxu0 %v1046
        %v1145 = vpop.f32.mrf.mxu0
        %v1146 = vadd.f32 0.0, %v1145
        %v1147 = vpop.f32.mrf.mxu0
        %v1148 = vpop.f32.mrf.mxu0
        %v1149 = vadd.f32 0.0, %v1148
        %v1150 = vpop.f32.mrf.mxu0
        %1151 = vdwg.mxu0
        %v1152 = vrcp.pop %v1008
        %v1153 = vrcp.pop %v1010
        %v1154 = vrcp.pop %v1012
        %v1155 = vrcp.pop %v1014
        %v1156 = vrcp.pop %v1016
        %v1157 = vrcp.pop %v1018
        %v1158 = vrcp.pop %v1020
        %v1159 = vrcp.pop %v1022
        %v1160 = vrcp.pop %v1024
        %v1161 = vrcp.pop %v1026
        %v1162 = vrcp.pop %v1028
        %v1163 = vrcp.pop %v1030
        %v1164 = vrcp.pop %v1032
        %v1165 = vrcp.pop %v1034
        %v1166 = vrcp.pop %v1036
        %v1167 = vrcp.pop %v1038
        %v1168 = vmul.f32 %v1090, %v1152
        %v1169 = vmul.f32 %v1093, %v1153
        %v1170 = vmul.f32 %v1098, %v1154
        %v1171 = vmul.f32 %v1101, %v1155
        %v1172 = vmul.f32 %v1106, %v1156
        %v1173 = vmul.f32 %v1109, %v1157
        %v1174 = vmul.f32 %v1114, %v1158
        %v1175 = vmul.f32 %v1117, %v1159
        %v1176 = vmul.f32 %v1122, %v1160
        %v1177 = vmul.f32 %v1125, %v1161
        %v1178 = vmul.f32 %v1130, %v1162
        %v1179 = vmul.f32 %v1133, %v1163
        %v1180 = vmul.f32 %v1138, %v1164
        %v1181 = vmul.f32 %v1141, %v1165
        %v1182 = vmul.f32 %v1146, %v1166
        %v1183 = vmul.f32 %v1149, %v1167
        %v1184 = vld [vmem:[#allocation8] sm:$0x1]
        %v1186 = vlaneseq
        %v1187 = vshrl.u32 %v1186, 7
        %v1188 = vsub.s32 0, %v1187
        %v1189 = vrot.slane %v1184, %v1188
        %v1191 = vadd.f32 %v1168, %v1189
        %v1192 = vadd.f32 %v1169, %v1189
        %v1193 = vadd.f32 %v1170, %v1189
        %v1194 = vadd.f32 %v1171, %v1189
        %v1195 = vadd.f32 %v1172, %v1189
        %v1196 = vadd.f32 %v1173, %v1189
        %v1197 = vadd.f32 %v1174, %v1189
        %v1198 = vadd.f32 %v1175, %v1189
        %v1199 = vadd.f32 %v1176, %v1189
        %v1200 = vadd.f32 %v1177, %v1189
        %v1201 = vadd.f32 %v1178, %v1189
        %v1202 = vadd.f32 %v1179, %v1189
        %v1203 = vadd.f32 %v1180, %v1189
        %v1204 = vadd.f32 %v1181, %v1189
        %v1205 = vadd.f32 %v1182, %v1189
        %v1206 = vadd.f32 %v1183, %v1189
        %v1207 = vmax.f32 %v1191, 0.0
        %v1208 = vmax.f32 %v1192, 0.0
        %v1209 = vmax.f32 %v1193, 0.0
        %v1210 = vmax.f32 %v1194, 0.0
        %v1211 = vmax.f32 %v1195, 0.0
        %v1212 = vmax.f32 %v1196, 0.0
        %v1213 = vmax.f32 %v1197, 0.0
        %v1214 = vmax.f32 %v1198, 0.0
        %v1215 = vmax.f32 %v1199, 0.0
        %v1216 = vmax.f32 %v1200, 0.0
        %v1217 = vmax.f32 %v1201, 0.0
        %v1218 = vmax.f32 %v1202, 0.0
        %v1219 = vmax.f32 %v1203, 0.0
        %v1220 = vmax.f32 %v1204, 0.0
        %v1221 = vmax.f32 %v1205, 0.0
        %v1222 = vmax.f32 %v1206, 0.0
        %vm1223 = vcmask 261120
        %1224 = vst.msk [vmem:[%s508] sm:$0xff] %vm1223, %v1207
        %1225 = vst.msk [vmem:[%s508 + $0x8] sm:$0xff] %vm1223, %v1208
        %1226 = vst.msk [vmem:[%s508 + $0x10] sm:$0xff] %vm1223, %v1209
        %1227 = vst.msk [vmem:[%s508 + $0x18] sm:$0xff] %vm1223, %v1210
        %1228 = vst.msk [vmem:[%s508 + $0x20] sm:$0xff] %vm1223, %v1211
        %1229 = vst.msk [vmem:[%s508 + $0x28] sm:$0xff] %vm1223, %v1212
        %1230 = vst.msk [vmem:[%s508 + $0x30] sm:$0xff] %vm1223, %v1213
        %1231 = vst.msk [vmem:[%s508 + $0x38] sm:$0xff] %vm1223, %v1214
        %1232 = vst.msk [vmem:[%s508 + $0x40] sm:$0xff] %vm1223, %v1215
        %1233 = vst.msk [vmem:[%s508 + $0x48] sm:$0xff] %vm1223, %v1216
        %1234 = vst.msk [vmem:[%s508 + $0x50] sm:$0xff] %vm1223, %v1217
        %1235 = vst.msk [vmem:[%s508 + $0x58] sm:$0xff] %vm1223, %v1218
        %1236 = vst.msk [vmem:[%s508 + $0x60] sm:$0xff] %vm1223, %v1219
        %1237 = vst.msk [vmem:[%s508 + $0x68] sm:$0xff] %vm1223, %v1220
        %1238 = vst.msk [vmem:[%s508 + $0x70] sm:$0xff] %vm1223, %v1221
        %1239 = vst.msk [vmem:[%s508 + $0x78] sm:$0xff] %vm1223, %v1222
        %v1240 = vpack.c.bf16 %v1208, %v1207
        %v1241 = vpack.c.bf16 %v1210, %v1209
        %v1242 = vpack.c.bf16 %v1212, %v1211
        %v1243 = vpack.c.bf16 %v1214, %v1213
        %v1244 = vpack.c.bf16 %v1216, %v1215
        %v1245 = vpack.c.bf16 %v1218, %v1217
        %v1246 = vpack.c.bf16 %v1220, %v1219
        %v1247 = vpack.c.bf16 %v1222, %v1221
        %v1248 = vld [vmem:[#allocation9] sm:$0xf]
        %v1249 = vld [vmem:[#allocation9 + $0x4] sm:$0xf]
        %v1250 = vld [vmem:[#allocation9 + $0x8] sm:$0xf]
        %v1251 = vld [vmem:[#allocation9 + $0xc] sm:$0xf]
        %v1256 = vunpack.c.l.b16 %v1248
        %v1257 = vunpack.c.l.b16 %v1249
        %v1258 = vunpack.c.l.b16 %v1250
        %v1259 = vunpack.c.l.b16 %v1251
        %v1260 = vpack.c.b16 %v1257, %v1256
        %v1261 = vpack.c.b16 %v1259, %v1258
        %v1265 = vsel %vm1223, %v1240, 0
        %v1268 = vsel %vm1223, %v1241, 0
        %v1271 = vsel %vm1223, %v1242, 0
        %v1274 = vsel %vm1223, %v1243, 0
        %v1277 = vsel %vm1223, %v1244, 0
        %v1280 = vsel %vm1223, %v1245, 0
        %v1283 = vsel %vm1223, %v1246, 0
        %v1286 = vsel %vm1223, %v1247, 0
        %1288 = vmatprep.subr.bf16.mxu0 0
        %1289 = vmatpush1.bf16.msra.mxu0 0
        %1290 = vmatprep.subr.bf16.mxu0 0
        %1291 = vmatpush1.bf16.msra.mxu0 0
        %1292 = vmatprep.subr.bf16.mxu0 0
        %1293 = vmatpush1.bf16.msra.mxu0 0
        %1294 = vmatprep.subr.bf16.mxu0 0
        %1295 = vmatpush1.bf16.msra.mxu0 0
        %1296 = vmatprep.subr.bf16.mxu0 0
        %1297 = vmatpush1.bf16.msra.mxu0 0
        %1298 = vmatprep.subr.bf16.mxu0 0
        %1299 = vmatpush1.bf16.msra.mxu0 0
        %1300 = vmatprep.subr.bf16.mxu0 0
        %1301 = vmatpush1.bf16.msra.mxu0 %v1261
        %1302 = vmatprep.subr.bf16.mxu0 0
        %1303 = vmatpush1.bf16.msra.mxu0 %v1260
        %1304 = vmatprep.subr.bf16.mxu0 0
        %1305 = vmatpush2.bf16.msra.mxu0 0
        %1306 = vmatprep.subr.bf16.mxu0 0
        %1307 = vmatpush2.bf16.msra.mxu0 0
        %1308 = vmatprep.subr.bf16.mxu0 0
        %1309 = vmatpush2.bf16.msra.mxu0 0
        %1310 = vmatprep.subr.bf16.mxu0 0
        %1311 = vmatpush2.bf16.msra.mxu0 0
        %1312 = vmatprep.subr.bf16.mxu0 0
        %1313 = vmatpush2.bf16.msra.mxu0 0
        %1314 = vmatprep.subr.bf16.mxu0 0
        %1315 = vmatpush2.bf16.msra.mxu0 0
        %1316 = vmatprep.subr.bf16.mxu0 0
        %1317 = vmatpush2.bf16.msra.mxu0 0
        %1318 = vmatprep.subr.bf16.mxu0 0
        %1319 = vmatpush2.bf16.msra.mxu0 0
        %1320 = vmatprep.mubr.bf16.mxu0 0
        %1321 = vmatmul.mubr.bf16.gmra.mxu0 %v1265
        %v1322 = vpop.f32.mrf.mxu0
        %v1323 = vadd.f32 0.0, %v1322
        %v1324 = vpop.f32.mrf.mxu0
        %v1325 = vpop.f32.mrf.mxu0
        %v1326 = vadd.f32 0.0, %v1325
        %v1327 = vpop.f32.mrf.mxu0
        %1328 = vmatprep.mubr.bf16.mxu0 0
        %1329 = vmatmul.mubr.bf16.gmra.mxu0 %v1268
        %v1330 = vpop.f32.mrf.mxu0
        %v1331 = vadd.f32 0.0, %v1330
        %v1332 = vpop.f32.mrf.mxu0
        %v1333 = vpop.f32.mrf.mxu0
        %v1334 = vadd.f32 0.0, %v1333
        %v1335 = vpop.f32.mrf.mxu0
        %1336 = vmatprep.mubr.bf16.mxu0 0
        %1337 = vmatmul.mubr.bf16.gmra.mxu0 %v1271
        %v1338 = vpop.f32.mrf.mxu0
        %v1339 = vadd.f32 0.0, %v1338
        %v1340 = vpop.f32.mrf.mxu0
        %v1341 = vpop.f32.mrf.mxu0
        %v1342 = vadd.f32 0.0, %v1341
        %v1343 = vpop.f32.mrf.mxu0
        %1344 = vmatprep.mubr.bf16.mxu0 0
        %1345 = vmatmul.mubr.bf16.gmra.mxu0 %v1274
        %v1346 = vpop.f32.mrf.mxu0
        %v1347 = vadd.f32 0.0, %v1346
        %v1348 = vpop.f32.mrf.mxu0
        %v1349 = vpop.f32.mrf.mxu0
        %v1350 = vadd.f32 0.0, %v1349
        %v1351 = vpop.f32.mrf.mxu0
        %1352 = vmatprep.mubr.bf16.mxu0 0
        %1353 = vmatmul.mubr.bf16.gmra.mxu0 %v1277
        %v1354 = vpop.f32.mrf.mxu0
        %v1355 = vadd.f32 0.0, %v1354
        %v1356 = vpop.f32.mrf.mxu0
        %v1357 = vpop.f32.mrf.mxu0
        %v1358 = vadd.f32 0.0, %v1357
        %v1359 = vpop.f32.mrf.mxu0
        %1360 = vmatprep.mubr.bf16.mxu0 0
        %1361 = vmatmul.mubr.bf16.gmra.mxu0 %v1280
        %v1362 = vpop.f32.mrf.mxu0
        %v1363 = vadd.f32 0.0, %v1362
        %v1364 = vpop.f32.mrf.mxu0
        %v1365 = vpop.f32.mrf.mxu0
        %v1366 = vadd.f32 0.0, %v1365
        %v1367 = vpop.f32.mrf.mxu0
        %1368 = vmatprep.mubr.bf16.mxu0 0
        %1369 = vmatmul.mubr.bf16.gmra.mxu0 %v1283
        %v1370 = vpop.f32.mrf.mxu0
        %v1371 = vadd.f32 0.0, %v1370
        %v1372 = vpop.f32.mrf.mxu0
        %v1373 = vpop.f32.mrf.mxu0
        %v1374 = vadd.f32 0.0, %v1373
        %v1375 = vpop.f32.mrf.mxu0
        %1376 = vmatprep.mubr.bf16.mxu0 0
        %1377 = vmatmul.mubr.bf16.gmra.mxu0 %v1286
        %v1378 = vpop.f32.mrf.mxu0
        %v1379 = vadd.f32 0.0, %v1378
        %v1380 = vpop.f32.mrf.mxu0
        %v1381 = vpop.f32.mrf.mxu0
        %v1382 = vadd.f32 0.0, %v1381
        %v1383 = vpop.f32.mrf.mxu0
        %1384 = vdwg.mxu0
        %v1385 = vld [vmem:[#allocation11] sm:$0x1]
        %v1387 = vsel %vm1223, %v1385, 0
        %1389 = vmatprep.subr.bf16.mxu0 0
        %1390 = vmatpush1.bf16.xpose.msra.mxu0 %v1286
        %1391 = vmatprep.subr.bf16.mxu0 0
        %1392 = vmatpush1.bf16.xpose.msra.mxu0 %v1283
        %1393 = vmatprep.subr.bf16.mxu0 0
        %1394 = vmatpush1.bf16.xpose.msra.mxu0 %v1280
        %1395 = vmatprep.subr.bf16.mxu0 0
        %1396 = vmatpush1.bf16.xpose.msra.mxu0 %v1277
        %1397 = vmatprep.subr.bf16.mxu0 0
        %1398 = vmatpush1.bf16.xpose.msra.mxu0 %v1274
        %1399 = vmatprep.subr.bf16.mxu0 0
        %1400 = vmatpush1.bf16.xpose.msra.mxu0 %v1271
        %1401 = vmatprep.subr.bf16.mxu0 0
        %1402 = vmatpush1.bf16.xpose.msra.mxu0 %v1268
        %1403 = vmatprep.subr.bf16.mxu0 0
        %1404 = vmatpush1.bf16.xpose.msra.mxu0 %v1265
        %1405 = vmatprep.subr.bf16.mxu0 0
        %1406 = vmatpush2.bf16.xpose.msra.mxu0 0
        %1407 = vmatprep.subr.bf16.mxu0 0
        %1408 = vmatpush2.bf16.xpose.msra.mxu0 0
        %1409 = vmatprep.subr.bf16.mxu0 0
        %1410 = vmatpush2.bf16.xpose.msra.mxu0 0
        %1411 = vmatprep.subr.bf16.mxu0 0
        %1412 = vmatpush2.bf16.xpose.msra.mxu0 0
        %1413 = vmatprep.subr.bf16.mxu0 0
        %1414 = vmatpush2.bf16.xpose.msra.mxu0 0
        %1415 = vmatprep.subr.bf16.mxu0 0
        %1416 = vmatpush2.bf16.xpose.msra.mxu0 0
        %1417 = vmatprep.subr.bf16.mxu0 0
        %1418 = vmatpush2.bf16.xpose.msra.mxu0 0
        %1419 = vmatprep.subr.bf16.mxu0 0
        %1420 = vmatpush2.bf16.xpose.msra.mxu0 0
        %1421 = vmatprep.mubr.bf16.mxu0 0
        %1422 = vmatmul.mubr.bf16.gmra.mxu0 %v1387
        %v1423 = vpop.f32.mrf.mxu0
        %v1424 = vadd.f32 0.0, %v1423
        %v1425 = vpop.f32.mrf.mxu0
        %v1426 = vpop.f32.mrf.mxu0
        %v1427 = vpop.f32.mrf.mxu0
        %1428 = vdwg.mxu0
        %1430 = vset.pattern.permute.xlu0 32
        %1431 = vperm.xlu0 %1430, %v1323
        %v1432 = vpop.permute.xlu0 %1431
        %1435 = vset.pattern.permute.xlu0 32
        %1436 = vperm.xlu0 %1435, %v1326
        %v1437 = vpop.permute.xlu0 %1436
        %1440 = vset.pattern.permute.xlu0 32
        %1441 = vperm.xlu0 %1440, %v1331
        %v1442 = vpop.permute.xlu0 %1441
        %1445 = vset.pattern.permute.xlu0 32
        %1446 = vperm.xlu0 %1445, %v1334
        %v1447 = vpop.permute.xlu0 %1446
        %1450 = vset.pattern.permute.xlu0 32
        %1451 = vperm.xlu0 %1450, %v1339
        %v1452 = vpop.permute.xlu0 %1451
        %1455 = vset.pattern.permute.xlu0 32
        %1456 = vperm.xlu0 %1455, %v1342
        %v1457 = vpop.permute.xlu0 %1456
        %1460 = vset.pattern.permute.xlu0 32
        %1461 = vperm.xlu0 %1460, %v1347
        %v1462 = vpop.permute.xlu0 %1461
        %1465 = vset.pattern.permute.xlu0 32
        %1466 = vperm.xlu0 %1465, %v1350
        %v1467 = vpop.permute.xlu0 %1466
        %1470 = vset.pattern.permute.xlu0 32
        %1471 = vperm.xlu0 %1470, %v1355
        %v1472 = vpop.permute.xlu0 %1471
        %1475 = vset.pattern.permute.xlu0 32
        %1476 = vperm.xlu0 %1475, %v1358
        %v1477 = vpop.permute.xlu0 %1476
        %1480 = vset.pattern.permute.xlu0 32
        %1481 = vperm.xlu0 %1480, %v1363
        %v1482 = vpop.permute.xlu0 %1481
        %1485 = vset.pattern.permute.xlu0 32
        %1486 = vperm.xlu0 %1485, %v1366
        %v1487 = vpop.permute.xlu0 %1486
        %1490 = vset.pattern.permute.xlu0 32
        %1491 = vperm.xlu0 %1490, %v1371
        %v1492 = vpop.permute.xlu0 %1491
        %1495 = vset.pattern.permute.xlu0 32
        %1496 = vperm.xlu0 %1495, %v1374
        %v1497 = vpop.permute.xlu0 %1496
        %1500 = vset.pattern.permute.xlu0 32
        %1501 = vperm.xlu0 %1500, %v1379
        %v1502 = vpop.permute.xlu0 %1501
        %1505 = vset.pattern.permute.xlu0 32
        %1506 = vperm.xlu0 %1505, %v1382
        %v1507 = vpop.permute.xlu0 %1506
        %v1509 = vlaneseq
        %v1510 = vshrl.u32 %v1509, 7
        %v1511 = vsub.s32 0, %v1510
        %v1512 = vrot.slane %v1424, %v1511
        %v1513 = vadd.f32 %v1432, %v1512
        %v1514 = vadd.f32 %v1437, %v1512
        %v1515 = vadd.f32 %v1442, %v1512
        %v1516 = vadd.f32 %v1447, %v1512
        %v1517 = vadd.f32 %v1452, %v1512
        %v1518 = vadd.f32 %v1457, %v1512
        %v1519 = vadd.f32 %v1462, %v1512
        %v1520 = vadd.f32 %v1467, %v1512
        %v1521 = vadd.f32 %v1472, %v1512
        %v1522 = vadd.f32 %v1477, %v1512
        %v1523 = vadd.f32 %v1482, %v1512
        %v1524 = vadd.f32 %v1487, %v1512
        %v1525 = vadd.f32 %v1492, %v1512
        %v1526 = vadd.f32 %v1497, %v1512
        %v1527 = vadd.f32 %v1502, %v1512
        %v1528 = vadd.f32 %v1507, %v1512
        %v1529 = vld [vmem:[#allocation3] sm:$0x1]
        %v1530 = vld [vmem:[%s498] sm:$0xff]
        %v1531 = vld [vmem:[%s498 + $0x8] sm:$0xff]
        %v1532 = vld [vmem:[%s498 + $0x10] sm:$0xff]
        %v1533 = vld [vmem:[%s498 + $0x18] sm:$0xff]
        %v1534 = vld [vmem:[%s498 + $0x20] sm:$0xff]
        %v1535 = vld [vmem:[%s498 + $0x28] sm:$0xff]
        %v1536 = vld [vmem:[%s498 + $0x30] sm:$0xff]
        %v1537 = vld [vmem:[%s498 + $0x38] sm:$0xff]
        %v1538 = vld [vmem:[%s498 + $0x40] sm:$0xff]
        %v1539 = vld [vmem:[%s498 + $0x48] sm:$0xff]
        %v1540 = vld [vmem:[%s498 + $0x50] sm:$0xff]
        %v1541 = vld [vmem:[%s498 + $0x58] sm:$0xff]
        %v1542 = vld [vmem:[%s498 + $0x60] sm:$0xff]
        %v1543 = vld [vmem:[%s498 + $0x68] sm:$0xff]
        %v1544 = vld [vmem:[%s498 + $0x70] sm:$0xff]
        %v1545 = vld [vmem:[%s498 + $0x78] sm:$0xff]
        %v1547 = vlaneseq
        %v1548 = vshrl.u32 %v1547, 7
        %v1549 = vsub.s32 0, %v1548
        %v1550 = vrot.slane %v1529, %v1549
        %1551 = vset.pattern.permute.xlu0 0
        %1552 = vperm.xlu0 %1551, %v1550
        %v1553 = vpop.permute.xlu0 %1552
        %v1555 = vmul.f32 %v1553, %v1530
        %v1556 = vmul.f32 %v1553, %v1531
        %v1557 = vmul.f32 %v1553, %v1532
        %v1558 = vmul.f32 %v1553, %v1533
        %v1559 = vmul.f32 %v1553, %v1534
        %v1560 = vmul.f32 %v1553, %v1535
        %v1561 = vmul.f32 %v1553, %v1536
        %v1562 = vmul.f32 %v1553, %v1537
        %v1563 = vmul.f32 %v1553, %v1538
        %v1564 = vmul.f32 %v1553, %v1539
        %v1565 = vmul.f32 %v1553, %v1540
        %v1566 = vmul.f32 %v1553, %v1541
        %v1567 = vmul.f32 %v1553, %v1542
        %v1568 = vmul.f32 %v1553, %v1543
        %v1569 = vmul.f32 %v1553, %v1544
        %v1570 = vmul.f32 %v1553, %v1545
        %v1571 = vld [vmem:[%s503] sm:$0xff]
        %v1572 = vld [vmem:[%s503 + $0x8] sm:$0xff]
        %v1573 = vld [vmem:[%s503 + $0x10] sm:$0xff]
        %v1574 = vld [vmem:[%s503 + $0x18] sm:$0xff]
        %v1575 = vld [vmem:[%s503 + $0x20] sm:$0xff]
        %v1576 = vld [vmem:[%s503 + $0x28] sm:$0xff]
        %v1577 = vld [vmem:[%s503 + $0x30] sm:$0xff]
        %v1578 = vld [vmem:[%s503 + $0x38] sm:$0xff]
        %v1579 = vld [vmem:[%s503 + $0x40] sm:$0xff]
        %v1580 = vld [vmem:[%s503 + $0x48] sm:$0xff]
        %v1581 = vld [vmem:[%s503 + $0x50] sm:$0xff]
        %v1582 = vld [vmem:[%s503 + $0x58] sm:$0xff]
        %v1583 = vld [vmem:[%s503 + $0x60] sm:$0xff]
        %v1584 = vld [vmem:[%s503 + $0x68] sm:$0xff]
        %v1585 = vld [vmem:[%s503 + $0x70] sm:$0xff]
        %v1586 = vld [vmem:[%s503 + $0x78] sm:$0xff]
        %v1587 = vadd.f32 %v1555, %v1571
        %v1588 = vadd.f32 %v1556, %v1572
        %v1589 = vadd.f32 %v1557, %v1573
        %v1590 = vadd.f32 %v1558, %v1574
        %v1591 = vadd.f32 %v1559, %v1575
        %v1592 = vadd.f32 %v1560, %v1576
        %v1593 = vadd.f32 %v1561, %v1577
        %v1594 = vadd.f32 %v1562, %v1578
        %v1595 = vadd.f32 %v1563, %v1579
        %v1596 = vadd.f32 %v1564, %v1580
        %v1597 = vadd.f32 %v1565, %v1581
        %v1598 = vadd.f32 %v1566, %v1582
        %v1599 = vadd.f32 %v1567, %v1583
        %v1600 = vadd.f32 %v1568, %v1584
        %v1601 = vadd.f32 %v1569, %v1585
        %v1602 = vadd.f32 %v1570, %v1586
        %v1603 = vadd.f32 %v1513, %v1587
        %v1604 = vadd.f32 %v1514, %v1588
        %v1605 = vadd.f32 %v1515, %v1589
        %v1606 = vadd.f32 %v1516, %v1590
        %v1607 = vadd.f32 %v1517, %v1591
        %v1608 = vadd.f32 %v1518, %v1592
        %v1609 = vadd.f32 %v1519, %v1593
        %v1610 = vadd.f32 %v1520, %v1594
        %v1611 = vadd.f32 %v1521, %v1595
        %v1612 = vadd.f32 %v1522, %v1596
        %v1613 = vadd.f32 %v1523, %v1597
        %v1614 = vadd.f32 %v1524, %v1598
        %v1615 = vadd.f32 %v1525, %v1599
        %v1616 = vadd.f32 %v1526, %v1600
        %v1617 = vadd.f32 %v1527, %v1601
        %v1618 = vadd.f32 %v1528, %v1602
        %v1619 = vmul.f32 %v1603, 0.2
        %v1620 = vmul.f32 %v1604, 0.2
        %v1621 = vmul.f32 %v1605, 0.2
        %v1622 = vmul.f32 %v1606, 0.2
        %v1623 = vmul.f32 %v1607, 0.2
        %v1624 = vmul.f32 %v1608, 0.2
        %v1625 = vmul.f32 %v1609, 0.2
        %v1626 = vmul.f32 %v1610, 0.2
        %v1627 = vmul.f32 %v1611, 0.2
        %v1628 = vmul.f32 %v1612, 0.2
        %v1629 = vmul.f32 %v1613, 0.2
        %v1630 = vmul.f32 %v1614, 0.2
        %v1631 = vmul.f32 %v1615, 0.2
        %v1632 = vmul.f32 %v1616, 0.2
        %v1633 = vmul.f32 %v1617, 0.2
        %v1634 = vmul.f32 %v1618, 0.2
        %v1635 = vmax.f32 %v1603, %v1619
        %v1636 = vmax.f32 %v1604, %v1620
        %v1637 = vmax.f32 %v1605, %v1621
        %v1638 = vmax.f32 %v1606, %v1622
        %v1639 = vmax.f32 %v1607, %v1623
        %v1640 = vmax.f32 %v1608, %v1624
        %v1641 = vmax.f32 %v1609, %v1625
        %v1642 = vmax.f32 %v1610, %v1626
        %v1643 = vmax.f32 %v1611, %v1627
        %v1644 = vmax.f32 %v1612, %v1628
        %v1645 = vmax.f32 %v1613, %v1629
        %v1646 = vmax.f32 %v1614, %v1630
        %v1647 = vmax.f32 %v1615, %v1631
        %v1648 = vmax.f32 %v1616, %v1632
        %v1649 = vmax.f32 %v1617, %v1633
        %v1650 = vmax.f32 %v1618, %v1634
        %1651 = vmax.xlane.f32.xlu0 %v1635
        %v1652 = vpop.xlane.xlu0 %1651
        %1653 = vmax.xlane.f32.xlu0 %v1636
        %v1654 = vpop.xlane.xlu0 %1653
        %1655 = vmax.xlane.f32.xlu0 %v1637
        %v1656 = vpop.xlane.xlu0 %1655
        %1657 = vmax.xlane.f32.xlu0 %v1638
        %v1658 = vpop.xlane.xlu0 %1657
        %1659 = vmax.xlane.f32.xlu0 %v1639
        %v1660 = vpop.xlane.xlu0 %1659
        %1661 = vmax.xlane.f32.xlu0 %v1640
        %v1662 = vpop.xlane.xlu0 %1661
        %1663 = vmax.xlane.f32.xlu0 %v1641
        %v1664 = vpop.xlane.xlu0 %1663
        %1665 = vmax.xlane.f32.xlu0 %v1642
        %v1666 = vpop.xlane.xlu0 %1665
        %1667 = vmax.xlane.f32.xlu0 %v1643
        %v1668 = vpop.xlane.xlu0 %1667
        %1669 = vmax.xlane.f32.xlu0 %v1644
        %v1670 = vpop.xlane.xlu0 %1669
        %1671 = vmax.xlane.f32.xlu0 %v1645
        %v1672 = vpop.xlane.xlu0 %1671
        %1673 = vmax.xlane.f32.xlu0 %v1646
        %v1674 = vpop.xlane.xlu0 %1673
        %1675 = vmax.xlane.f32.xlu0 %v1647
        %v1676 = vpop.xlane.xlu0 %1675
        %1677 = vmax.xlane.f32.xlu0 %v1648
        %v1678 = vpop.xlane.xlu0 %1677
        %1679 = vmax.xlane.f32.xlu0 %v1649
        %v1680 = vpop.xlane.xlu0 %1679
        %1681 = vmax.xlane.f32.xlu0 %v1650
        %v1682 = vpop.xlane.xlu0 %1681
        %v1683 = vsub.f32 %v1635, %v1652
        %v1684 = vsub.f32 %v1636, %v1654
        %v1685 = vsub.f32 %v1637, %v1656
        %v1686 = vsub.f32 %v1638, %v1658
        %v1687 = vsub.f32 %v1639, %v1660
        %v1688 = vsub.f32 %v1640, %v1662
        %v1689 = vsub.f32 %v1641, %v1664
        %v1690 = vsub.f32 %v1642, %v1666
        %v1691 = vsub.f32 %v1643, %v1668
        %v1692 = vsub.f32 %v1644, %v1670
        %v1693 = vsub.f32 %v1645, %v1672
        %v1694 = vsub.f32 %v1646, %v1674
        %v1695 = vsub.f32 %v1647, %v1676
        %v1696 = vsub.f32 %v1648, %v1678
        %v1697 = vsub.f32 %v1649, %v1680
        %v1698 = vsub.f32 %v1650, %v1682
        %v1699 = vmul.f32 %v1683, 1.442695
        %v1700 = vpow.pop %v1699
        %v1701 = vmul.f32 %v1684, 1.442695
        %v1702 = vpow.pop %v1701
        %v1703 = vmul.f32 %v1685, 1.442695
        %v1704 = vpow.pop %v1703
        %v1705 = vmul.f32 %v1686, 1.442695
        %v1706 = vpow.pop %v1705
        %v1707 = vmul.f32 %v1687, 1.442695
        %v1708 = vpow.pop %v1707
        %v1709 = vmul.f32 %v1688, 1.442695
        %v1710 = vpow.pop %v1709
        %v1711 = vmul.f32 %v1689, 1.442695
        %v1712 = vpow.pop %v1711
        %v1713 = vmul.f32 %v1690, 1.442695
        %v1714 = vpow.pop %v1713
        %v1715 = vmul.f32 %v1691, 1.442695
        %v1716 = vpow.pop %v1715
        %v1717 = vmul.f32 %v1692, 1.442695
        %v1718 = vpow.pop %v1717
        %v1719 = vmul.f32 %v1693, 1.442695
        %v1720 = vpow.pop %v1719
        %v1721 = vmul.f32 %v1694, 1.442695
        %v1722 = vpow.pop %v1721
        %v1723 = vmul.f32 %v1695, 1.442695
        %v1724 = vpow.pop %v1723
        %v1725 = vmul.f32 %v1696, 1.442695
        %v1726 = vpow.pop %v1725
        %v1727 = vmul.f32 %v1697, 1.442695
        %v1728 = vpow.pop %v1727
        %v1729 = vmul.f32 %v1698, 1.442695
        %v1730 = vpow.pop %v1729
        %1731 = vadd.xlane.f32.xlu0 %v1700
        %v1732 = vpop.xlane.xlu0 %1731
        %1733 = vadd.xlane.f32.xlu0 %v1702
        %v1734 = vpop.xlane.xlu0 %1733
        %1735 = vadd.xlane.f32.xlu0 %v1704
        %v1736 = vpop.xlane.xlu0 %1735
        %1737 = vadd.xlane.f32.xlu0 %v1706
        %v1738 = vpop.xlane.xlu0 %1737
        %1739 = vadd.xlane.f32.xlu0 %v1708
        %v1740 = vpop.xlane.xlu0 %1739
        %1741 = vadd.xlane.f32.xlu0 %v1710
        %v1742 = vpop.xlane.xlu0 %1741
        %1743 = vadd.xlane.f32.xlu0 %v1712
        %v1744 = vpop.xlane.xlu0 %1743
        %1745 = vadd.xlane.f32.xlu0 %v1714
        %v1746 = vpop.xlane.xlu0 %1745
        %1747 = vadd.xlane.f32.xlu0 %v1716
        %v1748 = vpop.xlane.xlu0 %1747
        %1749 = vadd.xlane.f32.xlu0 %v1718
        %v1750 = vpop.xlane.xlu0 %1749
        %1751 = vadd.xlane.f32.xlu0 %v1720
        %v1752 = vpop.xlane.xlu0 %1751
        %1753 = vadd.xlane.f32.xlu0 %v1722
        %v1754 = vpop.xlane.xlu0 %1753
        %1755 = vadd.xlane.f32.xlu0 %v1724
        %v1756 = vpop.xlane.xlu0 %1755
        %1757 = vadd.xlane.f32.xlu0 %v1726
        %v1758 = vpop.xlane.xlu0 %1757
        %1759 = vadd.xlane.f32.xlu0 %v1728
        %v1760 = vpop.xlane.xlu0 %1759
        %1761 = vadd.xlane.f32.xlu0 %v1730
        %v1762 = vpop.xlane.xlu0 %1761
        %v1763 = vpack.c.bf16 %v1702, %v1700
        %v1764 = vpack.c.bf16 %v1706, %v1704
        %v1765 = vpack.c.bf16 %v1710, %v1708
        %v1766 = vpack.c.bf16 %v1714, %v1712
        %v1767 = vpack.c.bf16 %v1718, %v1716
        %v1768 = vpack.c.bf16 %v1722, %v1720
        %v1769 = vpack.c.bf16 %v1726, %v1724
        %v1770 = vpack.c.bf16 %v1730, %v1728
        %v1771 = vpack.c.bf16 %v1326, %v1323
        %v1772 = vpack.c.bf16 %v1334, %v1331
        %v1773 = vpack.c.bf16 %v1342, %v1339
        %v1774 = vpack.c.bf16 %v1350, %v1347
        %v1775 = vpack.c.bf16 %v1358, %v1355
        %v1776 = vpack.c.bf16 %v1366, %v1363
        %v1777 = vpack.c.bf16 %v1374, %v1371
        %v1778 = vpack.c.bf16 %v1382, %v1379
        %1779 = vmatprep.subr.bf16.mxu0 0
        %1780 = vmatpush1.bf16.msra.mxu0 %v1778
        %1781 = vmatprep.subr.bf16.mxu0 0
        %1782 = vmatpush1.bf16.msra.mxu0 %v1777
        %1783 = vmatprep.subr.bf16.mxu0 0
        %1784 = vmatpush1.bf16.msra.mxu0 %v1776
        %1785 = vmatprep.subr.bf16.mxu0 0
        %1786 = vmatpush1.bf16.msra.mxu0 %v1775
        %1787 = vmatprep.subr.bf16.mxu0 0
        %1788 = vmatpush1.bf16.msra.mxu0 %v1774
        %1789 = vmatprep.subr.bf16.mxu0 0
        %1790 = vmatpush1.bf16.msra.mxu0 %v1773
        %1791 = vmatprep.subr.bf16.mxu0 0
        %1792 = vmatpush1.bf16.msra.mxu0 %v1772
        %1793 = vmatprep.subr.bf16.mxu0 0
        %1794 = vmatpush1.bf16.msra.mxu0 %v1771
        %1795 = vmatprep.subr.bf16.mxu0 0
        %1796 = vmatpush2.bf16.msra.mxu0 0
        %1797 = vmatprep.subr.bf16.mxu0 0
        %1798 = vmatpush2.bf16.msra.mxu0 0
        %1799 = vmatprep.subr.bf16.mxu0 0
        %1800 = vmatpush2.bf16.msra.mxu0 0
        %1801 = vmatprep.subr.bf16.mxu0 0
        %1802 = vmatpush2.bf16.msra.mxu0 0
        %1803 = vmatprep.subr.bf16.mxu0 0
        %1804 = vmatpush2.bf16.msra.mxu0 0
        %1805 = vmatprep.subr.bf16.mxu0 0
        %1806 = vmatpush2.bf16.msra.mxu0 0
        %1807 = vmatprep.subr.bf16.mxu0 0
        %1808 = vmatpush2.bf16.msra.mxu0 0
        %1809 = vmatprep.subr.bf16.mxu0 0
        %1810 = vmatpush2.bf16.msra.mxu0 0
        %1811 = vmatprep.mubr.bf16.mxu0 0
        %1812 = vmatmul.mubr.bf16.gmra.mxu0 %v1763
        %v1813 = vpop.f32.mrf.mxu0
        %v1814 = vadd.f32 0.0, %v1813
        %v1815 = vpop.f32.mrf.mxu0
        %v1816 = vpop.f32.mrf.mxu0
        %v1817 = vadd.f32 0.0, %v1816
        %v1818 = vpop.f32.mrf.mxu0
        %1819 = vmatprep.mubr.bf16.mxu0 0
        %1820 = vmatmul.mubr.bf16.gmra.mxu0 %v1764
        %v1821 = vpop.f32.mrf.mxu0
        %v1822 = vadd.f32 0.0, %v1821
        %v1823 = vpop.f32.mrf.mxu0
        %v1824 = vpop.f32.mrf.mxu0
        %v1825 = vadd.f32 0.0, %v1824
        %v1826 = vpop.f32.mrf.mxu0
        %1827 = vmatprep.mubr.bf16.mxu0 0
        %1828 = vmatmul.mubr.bf16.gmra.mxu0 %v1765
        %v1829 = vpop.f32.mrf.mxu0
        %v1830 = vadd.f32 0.0, %v1829
        %v1831 = vpop.f32.mrf.mxu0
        %v1832 = vpop.f32.mrf.mxu0
        %v1833 = vadd.f32 0.0, %v1832
        %v1834 = vpop.f32.mrf.mxu0
        %1835 = vmatprep.mubr.bf16.mxu0 0
        %1836 = vmatmul.mubr.bf16.gmra.mxu0 %v1766
        %v1837 = vpop.f32.mrf.mxu0
        %v1838 = vadd.f32 0.0, %v1837
        %v1839 = vpop.f32.mrf.mxu0
        %v1840 = vpop.f32.mrf.mxu0
        %v1841 = vadd.f32 0.0, %v1840
        %v1842 = vpop.f32.mrf.mxu0
        %1843 = vmatprep.mubr.bf16.mxu0 0
        %1844 = vmatmul.mubr.bf16.gmra.mxu0 %v1767
        %v1845 = vpop.f32.mrf.mxu0
        %v1846 = vadd.f32 0.0, %v1845
        %v1847 = vpop.f32.mrf.mxu0
        %v1848 = vpop.f32.mrf.mxu0
        %v1849 = vadd.f32 0.0, %v1848
        %v1850 = vpop.f32.mrf.mxu0
        %1851 = vmatprep.mubr.bf16.mxu0 0
        %1852 = vmatmul.mubr.bf16.gmra.mxu0 %v1768
        %v1853 = vpop.f32.mrf.mxu0
        %v1854 = vadd.f32 0.0, %v1853
        %v1855 = vpop.f32.mrf.mxu0
        %v1856 = vpop.f32.mrf.mxu0
        %v1857 = vadd.f32 0.0, %v1856
        %v1858 = vpop.f32.mrf.mxu0
        %1859 = vmatprep.mubr.bf16.mxu0 0
        %1860 = vmatmul.mubr.bf16.gmra.mxu0 %v1769
        %v1861 = vpop.f32.mrf.mxu0
        %v1862 = vadd.f32 0.0, %v1861
        %v1863 = vpop.f32.mrf.mxu0
        %v1864 = vpop.f32.mrf.mxu0
        %v1865 = vadd.f32 0.0, %v1864
        %v1866 = vpop.f32.mrf.mxu0
        %1867 = vmatprep.mubr.bf16.mxu0 0
        %1868 = vmatmul.mubr.bf16.gmra.mxu0 %v1770
        %v1869 = vpop.f32.mrf.mxu0
        %v1870 = vadd.f32 0.0, %v1869
        %v1871 = vpop.f32.mrf.mxu0
        %v1872 = vpop.f32.mrf.mxu0
        %v1873 = vadd.f32 0.0, %v1872
        %v1874 = vpop.f32.mrf.mxu0
        %1875 = vdwg.mxu0
        %v1876 = vrcp.pop %v1732
        %v1877 = vrcp.pop %v1734
        %v1878 = vrcp.pop %v1736
        %v1879 = vrcp.pop %v1738
        %v1880 = vrcp.pop %v1740
        %v1881 = vrcp.pop %v1742
        %v1882 = vrcp.pop %v1744
        %v1883 = vrcp.pop %v1746
        %v1884 = vrcp.pop %v1748
        %v1885 = vrcp.pop %v1750
        %v1886 = vrcp.pop %v1752
        %v1887 = vrcp.pop %v1754
        %v1888 = vrcp.pop %v1756
        %v1889 = vrcp.pop %v1758
        %v1890 = vrcp.pop %v1760
        %v1891 = vrcp.pop %v1762
        %v1892 = vmul.f32 %v1814, %v1876
        %v1893 = vmul.f32 %v1817, %v1877
        %v1894 = vmul.f32 %v1822, %v1878
        %v1895 = vmul.f32 %v1825, %v1879
        %v1896 = vmul.f32 %v1830, %v1880
        %v1897 = vmul.f32 %v1833, %v1881
        %v1898 = vmul.f32 %v1838, %v1882
        %v1899 = vmul.f32 %v1841, %v1883
        %v1900 = vmul.f32 %v1846, %v1884
        %v1901 = vmul.f32 %v1849, %v1885
        %v1902 = vmul.f32 %v1854, %v1886
        %v1903 = vmul.f32 %v1857, %v1887
        %v1904 = vmul.f32 %v1862, %v1888
        %v1905 = vmul.f32 %v1865, %v1889
        %v1906 = vmul.f32 %v1870, %v1890
        %v1907 = vmul.f32 %v1873, %v1891
        %v1908 = vld [vmem:[#allocation12] sm:$0x1]
        %v1910 = vlaneseq
        %v1911 = vshrl.u32 %v1910, 7
        %v1912 = vsub.s32 0, %v1911
        %v1913 = vrot.slane %v1908, %v1912
        %v1915 = vadd.f32 %v1892, %v1913
        %v1916 = vadd.f32 %v1893, %v1913
        %v1917 = vadd.f32 %v1894, %v1913
        %v1918 = vadd.f32 %v1895, %v1913
        %v1919 = vadd.f32 %v1896, %v1913
        %v1920 = vadd.f32 %v1897, %v1913
        %v1921 = vadd.f32 %v1898, %v1913
        %v1922 = vadd.f32 %v1899, %v1913
        %v1923 = vadd.f32 %v1900, %v1913
        %v1924 = vadd.f32 %v1901, %v1913
        %v1925 = vadd.f32 %v1902, %v1913
        %v1926 = vadd.f32 %v1903, %v1913
        %v1927 = vadd.f32 %v1904, %v1913
        %v1928 = vadd.f32 %v1905, %v1913
        %v1929 = vadd.f32 %v1906, %v1913
        %v1930 = vadd.f32 %v1907, %v1913
        %v1931 = vmax.f32 %v1915, 0.0
        %v1932 = vmax.f32 %v1916, 0.0
        %v1933 = vmax.f32 %v1917, 0.0
        %v1934 = vmax.f32 %v1918, 0.0
        %v1935 = vmax.f32 %v1919, 0.0
        %v1936 = vmax.f32 %v1920, 0.0
        %v1937 = vmax.f32 %v1921, 0.0
        %v1938 = vmax.f32 %v1922, 0.0
        %v1939 = vmax.f32 %v1923, 0.0
        %v1940 = vmax.f32 %v1924, 0.0
        %v1941 = vmax.f32 %v1925, 0.0
        %v1942 = vmax.f32 %v1926, 0.0
        %v1943 = vmax.f32 %v1927, 0.0
        %v1944 = vmax.f32 %v1928, 0.0
        %v1945 = vmax.f32 %v1929, 0.0
        %v1946 = vmax.f32 %v1930, 0.0
        %1963 = vrot.lane.b32.xlu0 %v1931, 32
        %v1964 = vpop.permute.xlu0 %1963
        %1965 = vrot.lane.b32.xlu0 %v1932, 32
        %v1966 = vpop.permute.xlu0 %1965
        %1967 = vrot.lane.b32.xlu0 %v1933, 32
        %v1968 = vpop.permute.xlu0 %1967
        %1969 = vrot.lane.b32.xlu0 %v1934, 32
        %v1970 = vpop.permute.xlu0 %1969
        %1971 = vrot.lane.b32.xlu0 %v1935, 32
        %v1972 = vpop.permute.xlu0 %1971
        %1973 = vrot.lane.b32.xlu0 %v1936, 32
        %v1974 = vpop.permute.xlu0 %1973
        %1975 = vrot.lane.b32.xlu0 %v1937, 32
        %v1976 = vpop.permute.xlu0 %1975
        %1977 = vrot.lane.b32.xlu0 %v1938, 32
        %v1978 = vpop.permute.xlu0 %1977
        %1979 = vrot.lane.b32.xlu0 %v1939, 32
        %v1980 = vpop.permute.xlu0 %1979
        %1981 = vrot.lane.b32.xlu0 %v1940, 32
        %v1982 = vpop.permute.xlu0 %1981
        %1983 = vrot.lane.b32.xlu0 %v1941, 32
        %v1984 = vpop.permute.xlu0 %1983
        %1985 = vrot.lane.b32.xlu0 %v1942, 32
        %v1986 = vpop.permute.xlu0 %1985
        %1987 = vrot.lane.b32.xlu0 %v1943, 32
        %v1988 = vpop.permute.xlu0 %1987
        %1989 = vrot.lane.b32.xlu0 %v1944, 32
        %v1990 = vpop.permute.xlu0 %1989
        %1991 = vrot.lane.b32.xlu0 %v1945, 32
        %v1992 = vpop.permute.xlu0 %1991
        %1993 = vrot.lane.b32.xlu0 %v1946, 32
        %v1994 = vpop.permute.xlu0 %1993
        %vm2011 = vcmask 523520
        %2012 = vst.msk [vmem:[%s508] sm:$0xff] %vm2011, %v1964
        %2013 = vst.msk [vmem:[%s508 + $0x8] sm:$0xff] %vm2011, %v1966
        %2014 = vst.msk [vmem:[%s508 + $0x10] sm:$0xff] %vm2011, %v1968
        %2015 = vst.msk [vmem:[%s508 + $0x18] sm:$0xff] %vm2011, %v1970
        %2016 = vst.msk [vmem:[%s508 + $0x20] sm:$0xff] %vm2011, %v1972
        %2017 = vst.msk [vmem:[%s508 + $0x28] sm:$0xff] %vm2011, %v1974
        %2018 = vst.msk [vmem:[%s508 + $0x30] sm:$0xff] %vm2011, %v1976
        %2019 = vst.msk [vmem:[%s508 + $0x38] sm:$0xff] %vm2011, %v1978
        %2020 = vst.msk [vmem:[%s508 + $0x40] sm:$0xff] %vm2011, %v1980
        %2021 = vst.msk [vmem:[%s508 + $0x48] sm:$0xff] %vm2011, %v1982
        %2022 = vst.msk [vmem:[%s508 + $0x50] sm:$0xff] %vm2011, %v1984
        %2023 = vst.msk [vmem:[%s508 + $0x58] sm:$0xff] %vm2011, %v1986
        %2024 = vst.msk [vmem:[%s508 + $0x60] sm:$0xff] %vm2011, %v1988
        %2025 = vst.msk [vmem:[%s508 + $0x68] sm:$0xff] %vm2011, %v1990
        %2026 = vst.msk [vmem:[%s508 + $0x70] sm:$0xff] %vm2011, %v1992
        %2027 = vst.msk [vmem:[%s508 + $0x78] sm:$0xff] %vm2011, %v1994
        %p2028 = scmp.lt.s32.totalorder %s30, 1
        %s2029 = scalar_select %p2028, %s30, 1
        %s2030 = smul.addr %s2029, 16
        %s2031 = smul.addr %s2030, 8
        %s2032 = scalar_lea.vmem %s11, %s2031
        // Predicated region
        $region89: #{sgcn_gat_forward.2} parent=63 // pred_check
          %p2033 = pneg %p294
        $region90: #{sgcn_gat_forward.2} parent=63 // pred_check_branch
          %2035 = sbr.rel (%p2033) target = $region92
        $region91: #{sgcn_gat_forward.2} parent=63 // pred_region
          _
        $region92: #{sgcn_gat_forward.2} parent=63 // pred_fallthru
          _
      $region64: #{sgcn_gat_forward.2} parent=5 // pred_fallthru
        _
      %p2036 = scmp.le.s32.totalorder 2, %s25
      // Predicated region
      $region93: #{sgcn_gat_forward.2} parent=5 // pred_check
        %p2037 = pneg %p2036
      $region94: #{sgcn_gat_forward.2} parent=5 // pred_check_branch
        %2039 = sbr.rel (%p2037) target = $region96
      $region95: #{sgcn_gat_forward.2} parent=5 // pred_region
        %s2040 = ssub.s32 %s25, 2
        // Predicated region
        $region97: #{sgcn_gat_forward.2} parent=95 // pred_check
          %p2041 = pneg %p300
        $region98: #{sgcn_gat_forward.2} parent=95 // pred_check_branch
          %2043 = sbr.rel (%p2041) target = $region100
        $region99: #{sgcn_gat_forward.2} parent=95 // pred_region
          %p2044 = scmp.lt.s32.totalorder %s31, 1
          %s2045 = scalar_select %p2044, %s31, 1
          %s2046 = smul.addr %s2045, 16
          %s2047 = smul.addr %s2046, 8
          %s2048 = scalar_lea.vmem %s11, %s2047
        $region100: #{sgcn_gat_forward.2} parent=95 // pred_fallthru
          _
      $region96: #{sgcn_gat_forward.2} parent=5 // pred_fallthru
        _
    $region6: #{sgcn_gat_forward.2} parent=1 // loop_footer
      %s29 = sadd.s32 1, %s25
    $region7: #{sgcn_gat_forward.2} parent=1 // loop_footer_branch
      %24 = sbr.rel target = $region3
    $region8: #{sgcn_gat_forward.2} parent=1 // loop_exit
      _
    %2049 = vsyncpa [#allocation5], 1
    %s2050 = scalar_lea.sflag [#allocation5], 1
    %2051 = vsyncpa %s2050, 1
    %2052 = vsyncpa [#allocation7], 1
    %2053 = vsyncpa [#allocation10], 1
    %2054 = vsyncpa [#allocation13], 1

// kernel: sgcn_gat_forward.3
$region0: #{sgcn_gat_forward.3}
  #allocation0 [shape = 'u32[]', space=smem, size = 0x4, offset = 0x4, fixed_abs, tag = 'smem constant byte address 0x4 - core index']
  #allocation1 [shape = 'u32[144,128]{1,0:T(1,128)}', space=vmem, size = 0x12000, scoped, tag = 'internal scratch']
  %s0 = inlined_call_operand.vmem [shape: f32[2,8192], index: 0, kind: input, shape index: {}]
  %s1 = inlined_call_operand.vmem [shape: bf16[8192,64], index: 1, kind: input, shape index: {}]
  %s2 = inlined_call_operand.vmem [shape: f32[1,64], index: 2, kind: input, shape index: {}]
  %s3 = inlined_call_operand.vmem [shape: bf16[64,2], index: 3, kind: input, shape index: {}]
  %s4 = inlined_call_operand.vmem [shape: f32[1,2], index: 4, kind: input, shape index: {}]
  %s5 = inlined_call_operand.hbm [shape: f32[2,2], index: 5, kind: output, shape index: {}]
  %s6 = sld [smem:[#allocation0]]
  $region30: #{sgcn_gat_forward.3} parent=0
    _
  %s8 = ssub.s32 1, %s6
  %s9 = scalar_select 0, %s8, %s6
  $region1: #{sgcn_gat_forward.3} parent=0
    #allocation2 [shape = 'u8[1024]{0}', space=vmem, size = 0x400, scoped, tag = 'output window, operand 0, single buffered']
    #allocation3 [shape = 's32[1]{0}', space=sflag, size = 0x4, scoped, tag = 'scoped memory for sgcn_gat_forward.3']
    %10 = vsyncpa [#allocation3], 0
    // Predicated region
    $region2: #{sgcn_gat_forward.3} parent=1 // pred_check
      _
    $region3: #{sgcn_gat_forward.3} parent=1 // pred_check_branch
      %12 = sbr.rel (0) target = $region5
    $region4: #{sgcn_gat_forward.3} parent=1 // pred_region
      _
    $region5: #{sgcn_gat_forward.3} parent=1 // pred_fallthru
      _
    // Predicated region
    $region6: #{sgcn_gat_forward.3} parent=1 // pred_check
      _
    $region7: #{sgcn_gat_forward.3} parent=1 // pred_check_branch
      %14 = sbr.rel (0) target = $region9
    $region8: #{sgcn_gat_forward.3} parent=1 // pred_region
      _
    $region9: #{sgcn_gat_forward.3} parent=1 // pred_fallthru
      _
    // Predicated region
    $region10: #{sgcn_gat_forward.3} parent=1 // pred_check
      _
    $region11: #{sgcn_gat_forward.3} parent=1 // pred_check_branch
      %16 = sbr.rel (0) target = $region13
    $region12: #{sgcn_gat_forward.3} parent=1 // pred_region
      _
    $region13: #{sgcn_gat_forward.3} parent=1 // pred_fallthru
      _
    // Predicated region
    $region14: #{sgcn_gat_forward.3} parent=1 // pred_check
      _
    $region15: #{sgcn_gat_forward.3} parent=1 // pred_check_branch
      %18 = sbr.rel (0) target = $region17
    $region16: #{sgcn_gat_forward.3} parent=1 // pred_region
      _
    $region17: #{sgcn_gat_forward.3} parent=1 // pred_fallthru
      _
    // Predicated region
    $region18: #{sgcn_gat_forward.3} parent=1 // pred_check
      _
    $region19: #{sgcn_gat_forward.3} parent=1 // pred_check_branch
      %20 = sbr.rel (0) target = $region21
    $region20: #{sgcn_gat_forward.3} parent=1 // pred_region
      _
    $region21: #{sgcn_gat_forward.3} parent=1 // pred_fallthru
      _
    %v22 = vld [vmem:[%s0] sm:$0xff]
    %v23 = vld [vmem:[%s0 + $0x8] sm:$0xff]
    %v24 = vld [vmem:[%s0 + $0x10] sm:$0xff]
    %v25 = vld [vmem:[%s0 + $0x18] sm:$0xff]
    %v26 = vld [vmem:[%s0 + $0x20] sm:$0xff]
    %v27 = vld [vmem:[%s0 + $0x28] sm:$0xff]
    %v28 = vld [vmem:[%s0 + $0x30] sm:$0xff]
    %v29 = vld [vmem:[%s0 + $0x38] sm:$0xff]
    %v30 = vld [vmem:[%s0 + $0x40] sm:$0xff]
    %v31 = vld [vmem:[%s0 + $0x48] sm:$0xff]
    %v32 = vld [vmem:[%s0 + $0x50] sm:$0xff]
    %v33 = vld [vmem:[%s0 + $0x58] sm:$0xff]
    %v34 = vld [vmem:[%s0 + $0x60] sm:$0xff]
    %v35 = vld [vmem:[%s0 + $0x68] sm:$0xff]
    %v36 = vld [vmem:[%s0 + $0x70] sm:$0xff]
    %v37 = vld [vmem:[%s0 + $0x78] sm:$0xff]
    %v54 = vcombine.high %v22, %v22
    %v56 = vunpack.c.l.s4 1983009808
    %v57 = vunpack.c.0.s8 %v56
    %v58 = vlaneseq
    %v59 = vshrl.u32 %v58, 7
    %v60 = vsub.s32 %v57, %v59
    %v61 = vrot.slane %v22, %v60
    %v63 = vunpack.c.l.s4 1983009808
    %v64 = vunpack.c.0.s8 %v63
    %v65 = vlaneseq
    %v66 = vshrl.u32 %v65, 7
    %v67 = vsub.s32 %v64, %v66
    %v68 = vrot.slane %v54, %v67
    %v69 = vcombine.high %v61, %v61
    %v70 = vcombine.high %v68, %v68
    %v71 = vcombine.high %v23, %v23
    %v73 = vunpack.c.l.s4 1983009808
    %v74 = vunpack.c.0.s8 %v73
    %v75 = vlaneseq
    %v76 = vshrl.u32 %v75, 7
    %v77 = vsub.s32 %v74, %v76
    %v78 = vrot.slane %v23, %v77
    %v80 = vunpack.c.l.s4 1983009808
    %v81 = vunpack.c.0.s8 %v80
    %v82 = vlaneseq
    %v83 = vshrl.u32 %v82, 7
    %v84 = vsub.s32 %v81, %v83
    %v85 = vrot.slane %v71, %v84
    %v86 = vcombine.high %v78, %v78
    %v87 = vcombine.high %v85, %v85
    %v88 = vcombine.high %v24, %v24
    %v90 = vunpack.c.l.s4 1983009808
    %v91 = vunpack.c.0.s8 %v90
    %v92 = vlaneseq
    %v93 = vshrl.u32 %v92, 7
    %v94 = vsub.s32 %v91, %v93
    %v95 = vrot.slane %v24, %v94
    %v97 = vunpack.c.l.s4 1983009808
    %v98 = vunpack.c.0.s8 %v97
    %v99 = vlaneseq
    %v100 = vshrl.u32 %v99, 7
    %v101 = vsub.s32 %v98, %v100
    %v102 = vrot.slane %v88, %v101
    %v103 = vcombine.high %v95, %v95
    %v104 = vcombine.high %v102, %v102
    %v105 = vcombine.high %v25, %v25
    %v107 = vunpack.c.l.s4 1983009808
    %v108 = vunpack.c.0.s8 %v107
    %v109 = vlaneseq
    %v110 = vshrl.u32 %v109, 7
    %v111 = vsub.s32 %v108, %v110
    %v112 = vrot.slane %v25, %v111
    %v114 = vunpack.c.l.s4 1983009808
    %v115 = vunpack.c.0.s8 %v114
    %v116 = vlaneseq
    %v117 = vshrl.u32 %v116, 7
    %v118 = vsub.s32 %v115, %v117
    %v119 = vrot.slane %v105, %v118
    %v120 = vcombine.high %v112, %v112
    %v121 = vcombine.high %v119, %v119
    %v122 = vcombine.high %v26, %v26
    %v124 = vunpack.c.l.s4 1983009808
    %v125 = vunpack.c.0.s8 %v124
    %v126 = vlaneseq
    %v127 = vshrl.u32 %v126, 7
    %v128 = vsub.s32 %v125, %v127
    %v129 = vrot.slane %v26, %v128
    %v131 = vunpack.c.l.s4 1983009808
    %v132 = vunpack.c.0.s8 %v131
    %v133 = vlaneseq
    %v134 = vshrl.u32 %v133, 7
    %v135 = vsub.s32 %v132, %v134
    %v136 = vrot.slane %v122, %v135
    %v137 = vcombine.high %v129, %v129
    %v138 = vcombine.high %v136, %v136
    %v139 = vcombine.high %v27, %v27
    %v141 = vunpack.c.l.s4 1983009808
    %v142 = vunpack.c.0.s8 %v141
    %v143 = vlaneseq
    %v144 = vshrl.u32 %v143, 7
    %v145 = vsub.s32 %v142, %v144
    %v146 = vrot.slane %v27, %v145
    %v148 = vunpack.c.l.s4 1983009808
    %v149 = vunpack.c.0.s8 %v148
    %v150 = vlaneseq
    %v151 = vshrl.u32 %v150, 7
    %v152 = vsub.s32 %v149, %v151
    %v153 = vrot.slane %v139, %v152
    %v154 = vcombine.high %v146, %v146
    %v155 = vcombine.high %v153, %v153
    %v156 = vcombine.high %v28, %v28
    %v158 = vunpack.c.l.s4 1983009808
    %v159 = vunpack.c.0.s8 %v158
    %v160 = vlaneseq
    %v161 = vshrl.u32 %v160, 7
    %v162 = vsub.s32 %v159, %v161
    %v163 = vrot.slane %v28, %v162
    %v165 = vunpack.c.l.s4 1983009808
    %v166 = vunpack.c.0.s8 %v165
    %v167 = vlaneseq
    %v168 = vshrl.u32 %v167, 7
    %v169 = vsub.s32 %v166, %v168
    %v170 = vrot.slane %v156, %v169
    %v171 = vcombine.high %v163, %v163
    %v172 = vcombine.high %v170, %v170
    %v173 = vcombine.high %v29, %v29
    %v175 = vunpack.c.l.s4 1983009808
    %v176 = vunpack.c.0.s8 %v175
    %v177 = vlaneseq
    %v178 = vshrl.u32 %v177, 7
    %v179 = vsub.s32 %v176, %v178
    %v180 = vrot.slane %v29, %v179
    %v182 = vunpack.c.l.s4 1983009808
    %v183 = vunpack.c.0.s8 %v182
    %v184 = vlaneseq
    %v185 = vshrl.u32 %v184, 7
    %v186 = vsub.s32 %v183, %v185
    %v187 = vrot.slane %v173, %v186
    %v188 = vcombine.high %v180, %v180
    %v189 = vcombine.high %v187, %v187
    %v190 = vcombine.high %v30, %v30
    %v192 = vunpack.c.l.s4 1983009808
    %v193 = vunpack.c.0.s8 %v192
    %v194 = vlaneseq
    %v195 = vshrl.u32 %v194, 7
    %v196 = vsub.s32 %v193, %v195
    %v197 = vrot.slane %v30, %v196
    %v199 = vunpack.c.l.s4 1983009808
    %v200 = vunpack.c.0.s8 %v199
    %v201 = vlaneseq
    %v202 = vshrl.u32 %v201, 7
    %v203 = vsub.s32 %v200, %v202
    %v204 = vrot.slane %v190, %v203
    %v205 = vcombine.high %v197, %v197
    %v206 = vcombine.high %v204, %v204
    %v207 = vcombine.high %v31, %v31
    %v209 = vunpack.c.l.s4 1983009808
    %v210 = vunpack.c.0.s8 %v209
    %v211 = vlaneseq
    %v212 = vshrl.u32 %v211, 7
    %v213 = vsub.s32 %v210, %v212
    %v214 = vrot.slane %v31, %v213
    %v216 = vunpack.c.l.s4 1983009808
    %v217 = vunpack.c.0.s8 %v216
    %v218 = vlaneseq
    %v219 = vshrl.u32 %v218, 7
    %v220 = vsub.s32 %v217, %v219
    %v221 = vrot.slane %v207, %v220
    %v222 = vcombine.high %v214, %v214
    %v223 = vcombine.high %v221, %v221
    %v224 = vcombine.high %v32, %v32
    %v226 = vunpack.c.l.s4 1983009808
    %v227 = vunpack.c.0.s8 %v226
    %v228 = vlaneseq
    %v229 = vshrl.u32 %v228, 7
    %v230 = vsub.s32 %v227, %v229
    %v231 = vrot.slane %v32, %v230
    %v233 = vunpack.c.l.s4 1983009808
    %v234 = vunpack.c.0.s8 %v233
    %v235 = vlaneseq
    %v236 = vshrl.u32 %v235, 7
    %v237 = vsub.s32 %v234, %v236
    %v238 = vrot.slane %v224, %v237
    %v239 = vcombine.high %v231, %v231
    %v240 = vcombine.high %v238, %v238
    %v241 = vcombine.high %v33, %v33
    %v243 = vunpack.c.l.s4 1983009808
    %v244 = vunpack.c.0.s8 %v243
    %v245 = vlaneseq
    %v246 = vshrl.u32 %v245, 7
    %v247 = vsub.s32 %v244, %v246
    %v248 = vrot.slane %v33, %v247
    %v250 = vunpack.c.l.s4 1983009808
    %v251 = vunpack.c.0.s8 %v250
    %v252 = vlaneseq
    %v253 = vshrl.u32 %v252, 7
    %v254 = vsub.s32 %v251, %v253
    %v255 = vrot.slane %v241, %v254
    %v256 = vcombine.high %v248, %v248
    %v257 = vcombine.high %v255, %v255
    %v258 = vcombine.high %v34, %v34
    %v260 = vunpack.c.l.s4 1983009808
    %v261 = vunpack.c.0.s8 %v260
    %v262 = vlaneseq
    %v263 = vshrl.u32 %v262, 7
    %v264 = vsub.s32 %v261, %v263
    %v265 = vrot.slane %v34, %v264
    %v267 = vunpack.c.l.s4 1983009808
    %v268 = vunpack.c.0.s8 %v267
    %v269 = vlaneseq
    %v270 = vshrl.u32 %v269, 7
    %v271 = vsub.s32 %v268, %v270
    %v272 = vrot.slane %v258, %v271
    %v273 = vcombine.high %v265, %v265
    %v274 = vcombine.high %v272, %v272
    %v275 = vcombine.high %v35, %v35
    %v277 = vunpack.c.l.s4 1983009808
    %v278 = vunpack.c.0.s8 %v277
    %v279 = vlaneseq
    %v280 = vshrl.u32 %v279, 7
    %v281 = vsub.s32 %v278, %v280
    %v282 = vrot.slane %v35, %v281
    %v284 = vunpack.c.l.s4 1983009808
    %v285 = vunpack.c.0.s8 %v284
    %v286 = vlaneseq
    %v287 = vshrl.u32 %v286, 7
    %v288 = vsub.s32 %v285, %v287
    %v289 = vrot.slane %v275, %v288
    %v290 = vcombine.high %v282, %v282
    %v291 = vcombine.high %v289, %v289
    %v292 = vcombine.high %v36, %v36
    %v294 = vunpack.c.l.s4 1983009808
    %v295 = vunpack.c.0.s8 %v294
    %v296 = vlaneseq
    %v297 = vshrl.u32 %v296, 7
    %v298 = vsub.s32 %v295, %v297
    %v299 = vrot.slane %v36, %v298
    %v301 = vunpack.c.l.s4 1983009808
    %v302 = vunpack.c.0.s8 %v301
    %v303 = vlaneseq
    %v304 = vshrl.u32 %v303, 7
    %v305 = vsub.s32 %v302, %v304
    %v306 = vrot.slane %v292, %v305
    %v307 = vcombine.high %v299, %v299
    %v308 = vcombine.high %v306, %v306
    %v309 = vcombine.high %v37, %v37
    %v311 = vunpack.c.l.s4 1983009808
    %v312 = vunpack.c.0.s8 %v311
    %v313 = vlaneseq
    %v314 = vshrl.u32 %v313, 7
    %v315 = vsub.s32 %v312, %v314
    %v316 = vrot.slane %v37, %v315
    %v318 = vunpack.c.l.s4 1983009808
    %v319 = vunpack.c.0.s8 %v318
    %v320 = vlaneseq
    %v321 = vshrl.u32 %v320, 7
    %v322 = vsub.s32 %v319, %v321
    %v323 = vrot.slane %v309, %v322
    %v324 = vcombine.high %v316, %v316
    %v325 = vcombine.high %v323, %v323
    %v390 = vpack.c.bf16 %v61, %v61
    %v391 = vpack.c.bf16 %v69, %v69
    %v392 = vpack.c.bf16 %v68, %v68
    %v393 = vpack.c.bf16 %v70, %v70
    %v394 = vpack.c.bf16 %v78, %v78
    %v395 = vpack.c.bf16 %v86, %v86
    %v396 = vpack.c.bf16 %v85, %v85
    %v397 = vpack.c.bf16 %v87, %v87
    %v398 = vpack.c.bf16 %v95, %v95
    %v399 = vpack.c.bf16 %v103, %v103
    %v400 = vpack.c.bf16 %v102, %v102
    %v401 = vpack.c.bf16 %v104, %v104
    %v402 = vpack.c.bf16 %v112, %v112
    %v403 = vpack.c.bf16 %v120, %v120
    %v404 = vpack.c.bf16 %v119, %v119
    %v405 = vpack.c.bf16 %v121, %v121
    %v406 = vpack.c.bf16 %v129, %v129
    %v407 = vpack.c.bf16 %v137, %v137
    %v408 = vpack.c.bf16 %v136, %v136
    %v409 = vpack.c.bf16 %v138, %v138
    %v410 = vpack.c.bf16 %v146, %v146
    %v411 = vpack.c.bf16 %v154, %v154
    %v412 = vpack.c.bf16 %v153, %v153
    %v413 = vpack.c.bf16 %v155, %v155
    %v414 = vpack.c.bf16 %v163, %v163
    %v415 = vpack.c.bf16 %v171, %v171
    %v416 = vpack.c.bf16 %v170, %v170
    %v417 = vpack.c.bf16 %v172, %v172
    %v418 = vpack.c.bf16 %v180, %v180
    %v419 = vpack.c.bf16 %v188, %v188
    %v420 = vpack.c.bf16 %v187, %v187
    %v421 = vpack.c.bf16 %v189, %v189
    %v422 = vpack.c.bf16 %v197, %v197
    %v423 = vpack.c.bf16 %v205, %v205
    %v424 = vpack.c.bf16 %v204, %v204
    %v425 = vpack.c.bf16 %v206, %v206
    %v426 = vpack.c.bf16 %v214, %v214
    %v427 = vpack.c.bf16 %v222, %v222
    %v428 = vpack.c.bf16 %v221, %v221
    %v429 = vpack.c.bf16 %v223, %v223
    %v430 = vpack.c.bf16 %v231, %v231
    %v431 = vpack.c.bf16 %v239, %v239
    %v432 = vpack.c.bf16 %v238, %v238
    %v433 = vpack.c.bf16 %v240, %v240
    %v434 = vpack.c.bf16 %v248, %v248
    %v435 = vpack.c.bf16 %v256, %v256
    %v436 = vpack.c.bf16 %v255, %v255
    %v437 = vpack.c.bf16 %v257, %v257
    %v438 = vpack.c.bf16 %v265, %v265
    %v439 = vpack.c.bf16 %v273, %v273
    %v440 = vpack.c.bf16 %v272, %v272
    %v441 = vpack.c.bf16 %v274, %v274
    %v442 = vpack.c.bf16 %v282, %v282
    %v443 = vpack.c.bf16 %v290, %v290
    %v444 = vpack.c.bf16 %v289, %v289
    %v445 = vpack.c.bf16 %v291, %v291
    %v446 = vpack.c.bf16 %v299, %v299
    %v447 = vpack.c.bf16 %v307, %v307
    %v448 = vpack.c.bf16 %v306, %v306
    %v449 = vpack.c.bf16 %v308, %v308
    %v450 = vpack.c.bf16 %v316, %v316
    %v451 = vpack.c.bf16 %v324, %v324
    %v452 = vpack.c.bf16 %v323, %v323
    %v453 = vpack.c.bf16 %v325, %v325
    %v454 = vld [vmem:[%s1] sm:$0xf]
    %v455 = vld [vmem:[%s1 + $0x4] sm:$0xf]
    %v456 = vld [vmem:[%s1 + $0x8] sm:$0xf]
    %v457 = vld [vmem:[%s1 + $0xc] sm:$0xf]
    %v458 = vld [vmem:[%s1 + $0x10] sm:$0xf]
    %v459 = vld [vmem:[%s1 + $0x14] sm:$0xf]
    %v460 = vld [vmem:[%s1 + $0x18] sm:$0xf]
    %v461 = vld [vmem:[%s1 + $0x1c] sm:$0xf]
    %v462 = vld [vmem:[%s1 + $0x20] sm:$0xf]
    %v463 = vld [vmem:[%s1 + $0x24] sm:$0xf]
    %v464 = vld [vmem:[%s1 + $0x28] sm:$0xf]
    %v465 = vld [vmem:[%s1 + $0x2c] sm:$0xf]
    %v466 = vld [vmem:[%s1 + $0x30] sm:$0xf]
    %v467 = vld [vmem:[%s1 + $0x34] sm:$0xf]
    %v468 = vld [vmem:[%s1 + $0x38] sm:$0xf]
    %v469 = vld [vmem:[%s1 + $0x3c] sm:$0xf]
    %v470 = vld [vmem:[%s1 + $0x40] sm:$0xf]
    %v471 = vld [vmem:[%s1 + $0x44] sm:$0xf]
    %v472 = vld [vmem:[%s1 + $0x48] sm:$0xf]
    %v473 = vld [vmem:[%s1 + $0x4c] sm:$0xf]
    %v474 = vld [vmem:[%s1 + $0x50] sm:$0xf]
    %v475 = vld [vmem:[%s1 + $0x54] sm:$0xf]
    %v476 = vld [vmem:[%s1 + $0x58] sm:$0xf]
    %v477 = vld [vmem:[%s1 + $0x5c] sm:$0xf]
    %v478 = vld [vmem:[%s1 + $0x60] sm:$0xf]
    %v479 = vld [vmem:[%s1 + $0x64] sm:$0xf]
    %v480 = vld [vmem:[%s1 + $0x68] sm:$0xf]
    %v481 = vld [vmem:[%s1 + $0x6c] sm:$0xf]
    %v482 = vld [vmem:[%s1 + $0x70] sm:$0xf]
    %v483 = vld [vmem:[%s1 + $0x74] sm:$0xf]
    %v484 = vld [vmem:[%s1 + $0x78] sm:$0xf]
    %v485 = vld [vmem:[%s1 + $0x7c] sm:$0xf]
    %v486 = vld [vmem:[%s1 + $0x80] sm:$0xf]
    %v487 = vld [vmem:[%s1 + $0x84] sm:$0xf]
    %v488 = vld [vmem:[%s1 + $0x88] sm:$0xf]
    %v489 = vld [vmem:[%s1 + $0x8c] sm:$0xf]
    %v490 = vld [vmem:[%s1 + $0x90] sm:$0xf]
    %v491 = vld [vmem:[%s1 + $0x94] sm:$0xf]
    %v492 = vld [vmem:[%s1 + $0x98] sm:$0xf]
    %v493 = vld [vmem:[%s1 + $0x9c] sm:$0xf]
    %v494 = vld [vmem:[%s1 + $0xa0] sm:$0xf]
    %v495 = vld [vmem:[%s1 + $0xa4] sm:$0xf]
    %v496 = vld [vmem:[%s1 + $0xa8] sm:$0xf]
    %v497 = vld [vmem:[%s1 + $0xac] sm:$0xf]
    %v498 = vld [vmem:[%s1 + $0xb0] sm:$0xf]
    %v499 = vld [vmem:[%s1 + $0xb4] sm:$0xf]
    %v500 = vld [vmem:[%s1 + $0xb8] sm:$0xf]
    %v501 = vld [vmem:[%s1 + $0xbc] sm:$0xf]
    %v502 = vld [vmem:[%s1 + $0xc0] sm:$0xf]
    %v503 = vld [vmem:[%s1 + $0xc4] sm:$0xf]
    %v504 = vld [vmem:[%s1 + $0xc8] sm:$0xf]
    %v505 = vld [vmem:[%s1 + $0xcc] sm:$0xf]
    %v506 = vld [vmem:[%s1 + $0xd0] sm:$0xf]
    %v507 = vld [vmem:[%s1 + $0xd4] sm:$0xf]
    %v508 = vld [vmem:[%s1 + $0xd8] sm:$0xf]
    %v509 = vld [vmem:[%s1 + $0xdc] sm:$0xf]
    %v510 = vld [vmem:[%s1 + $0xe0] sm:$0xf]
    %v511 = vld [vmem:[%s1 + $0xe4] sm:$0xf]
    %v512 = vld [vmem:[%s1 + $0xe8] sm:$0xf]
    %v513 = vld [vmem:[%s1 + $0xec] sm:$0xf]
    %v514 = vld [vmem:[%s1 + $0xf0] sm:$0xf]
    %v515 = vld [vmem:[%s1 + $0xf4] sm:$0xf]
    %v516 = vld [vmem:[%s1 + $0xf8] sm:$0xf]
    %v517 = vld [vmem:[%s1 + $0xfc] sm:$0xf]
    %v518 = vld [vmem:[%s1 + $0x100] sm:$0xf]
    %v519 = vld [vmem:[%s1 + $0x104] sm:$0xf]
    %v520 = vld [vmem:[%s1 + $0x108] sm:$0xf]
    %v521 = vld [vmem:[%s1 + $0x10c] sm:$0xf]
    %v522 = vld [vmem:[%s1 + $0x110] sm:$0xf]
    %v523 = vld [vmem:[%s1 + $0x114] sm:$0xf]
    %v524 = vld [vmem:[%s1 + $0x118] sm:$0xf]
    %v525 = vld [vmem:[%s1 + $0x11c] sm:$0xf]
    %v526 = vld [vmem:[%s1 + $0x120] sm:$0xf]
    %v527 = vld [vmem:[%s1 + $0x124] sm:$0xf]
    %v528 = vld [vmem:[%s1 + $0x128] sm:$0xf]
    %v529 = vld [vmem:[%s1 + $0x12c] sm:$0xf]
    %v530 = vld [vmem:[%s1 + $0x130] sm:$0xf]
    %v531 = vld [vmem:[%s1 + $0x134] sm:$0xf]
    %v532 = vld [vmem:[%s1 + $0x138] sm:$0xf]
    %v533 = vld [vmem:[%s1 + $0x13c] sm:$0xf]
    %v534 = vld [vmem:[%s1 + $0x140] sm:$0xf]
    %v535 = vld [vmem:[%s1 + $0x144] sm:$0xf]
    %v536 = vld [vmem:[%s1 + $0x148] sm:$0xf]
    %v537 = vld [vmem:[%s1 + $0x14c] sm:$0xf]
    %v538 = vld [vmem:[%s1 + $0x150] sm:$0xf]
    %v539 = vld [vmem:[%s1 + $0x154] sm:$0xf]
    %v540 = vld [vmem:[%s1 + $0x158] sm:$0xf]
    %v541 = vld [vmem:[%s1 + $0x15c] sm:$0xf]
    %v542 = vld [vmem:[%s1 + $0x160] sm:$0xf]
    %v543 = vld [vmem:[%s1 + $0x164] sm:$0xf]
    %v544 = vld [vmem:[%s1 + $0x168] sm:$0xf]
    %v545 = vld [vmem:[%s1 + $0x16c] sm:$0xf]
    %v546 = vld [vmem:[%s1 + $0x170] sm:$0xf]
    %v547 = vld [vmem:[%s1 + $0x174] sm:$0xf]
    %v548 = vld [vmem:[%s1 + $0x178] sm:$0xf]
    %v549 = vld [vmem:[%s1 + $0x17c] sm:$0xf]
    %v550 = vld [vmem:[%s1 + $0x180] sm:$0xf]
    %v551 = vld [vmem:[%s1 + $0x184] sm:$0xf]
    %v552 = vld [vmem:[%s1 + $0x188] sm:$0xf]
    %v553 = vld [vmem:[%s1 + $0x18c] sm:$0xf]
    %v554 = vld [vmem:[%s1 + $0x190] sm:$0xf]
    %v555 = vld [vmem:[%s1 + $0x194] sm:$0xf]
    %v556 = vld [vmem:[%s1 + $0x198] sm:$0xf]
    %v557 = vld [vmem:[%s1 + $0x19c] sm:$0xf]
    %v558 = vld [vmem:[%s1 + $0x1a0] sm:$0xf]
    %v559 = vld [vmem:[%s1 + $0x1a4] sm:$0xf]
    %v560 = vld [vmem:[%s1 + $0x1a8] sm:$0xf]
    %v561 = vld [vmem:[%s1 + $0x1ac] sm:$0xf]
    %v562 = vld [vmem:[%s1 + $0x1b0] sm:$0xf]
    %v563 = vld [vmem:[%s1 + $0x1b4] sm:$0xf]
    %v564 = vld [vmem:[%s1 + $0x1b8] sm:$0xf]
    %v565 = vld [vmem:[%s1 + $0x1bc] sm:$0xf]
    %v566 = vld [vmem:[%s1 + $0x1c0] sm:$0xf]
    %v567 = vld [vmem:[%s1 + $0x1c4] sm:$0xf]
    %v568 = vld [vmem:[%s1 + $0x1c8] sm:$0xf]
    %v569 = vld [vmem:[%s1 + $0x1cc] sm:$0xf]
    %v570 = vld [vmem:[%s1 + $0x1d0] sm:$0xf]
    %v571 = vld [vmem:[%s1 + $0x1d4] sm:$0xf]
    %v572 = vld [vmem:[%s1 + $0x1d8] sm:$0xf]
    %v573 = vld [vmem:[%s1 + $0x1dc] sm:$0xf]
    %v574 = vld [vmem:[%s1 + $0x1e0] sm:$0xf]
    %v575 = vld [vmem:[%s1 + $0x1e4] sm:$0xf]
    %v576 = vld [vmem:[%s1 + $0x1e8] sm:$0xf]
    %v577 = vld [vmem:[%s1 + $0x1ec] sm:$0xf]
    %v578 = vld [vmem:[%s1 + $0x1f0] sm:$0xf]
    %v579 = vld [vmem:[%s1 + $0x1f4] sm:$0xf]
    %v580 = vld [vmem:[%s1 + $0x1f8] sm:$0xf]
    %v581 = vld [vmem:[%s1 + $0x1fc] sm:$0xf]
    %v582 = vld [vmem:[%s1 + $0x200] sm:$0xf]
    %v583 = vld [vmem:[%s1 + $0x204] sm:$0xf]
    %v584 = vld [vmem:[%s1 + $0x208] sm:$0xf]
    %v585 = vld [vmem:[%s1 + $0x20c] sm:$0xf]
    %v586 = vld [vmem:[%s1 + $0x210] sm:$0xf]
    %v587 = vld [vmem:[%s1 + $0x214] sm:$0xf]
    %v588 = vld [vmem:[%s1 + $0x218] sm:$0xf]
    %v589 = vld [vmem:[%s1 + $0x21c] sm:$0xf]
    %v590 = vld [vmem:[%s1 + $0x220] sm:$0xf]
    %v591 = vld [vmem:[%s1 + $0x224] sm:$0xf]
    %v592 = vld [vmem:[%s1 + $0x228] sm:$0xf]
    %v593 = vld [vmem:[%s1 + $0x22c] sm:$0xf]
    %v594 = vld [vmem:[%s1 + $0x230] sm:$0xf]
    %v595 = vld [vmem:[%s1 + $0x234] sm:$0xf]
    %v596 = vld [vmem:[%s1 + $0x238] sm:$0xf]
    %v597 = vld [vmem:[%s1 + $0x23c] sm:$0xf]
    %v598 = vld [vmem:[%s1 + $0x240] sm:$0xf]
    %v599 = vld [vmem:[%s1 + $0x244] sm:$0xf]
    %v600 = vld [vmem:[%s1 + $0x248] sm:$0xf]
    %v601 = vld [vmem:[%s1 + $0x24c] sm:$0xf]
    %v602 = vld [vmem:[%s1 + $0x250] sm:$0xf]
    %v603 = vld [vmem:[%s1 + $0x254] sm:$0xf]
    %v604 = vld [vmem:[%s1 + $0x258] sm:$0xf]
    %v605 = vld [vmem:[%s1 + $0x25c] sm:$0xf]
    %v606 = vld [vmem:[%s1 + $0x260] sm:$0xf]
    %v607 = vld [vmem:[%s1 + $0x264] sm:$0xf]
    %v608 = vld [vmem:[%s1 + $0x268] sm:$0xf]
    %v609 = vld [vmem:[%s1 + $0x26c] sm:$0xf]
    %v610 = vld [vmem:[%s1 + $0x270] sm:$0xf]
    %v611 = vld [vmem:[%s1 + $0x274] sm:$0xf]
    %v612 = vld [vmem:[%s1 + $0x278] sm:$0xf]
    %v613 = vld [vmem:[%s1 + $0x27c] sm:$0xf]
    %v614 = vld [vmem:[%s1 + $0x280] sm:$0xf]
    %v615 = vld [vmem:[%s1 + $0x284] sm:$0xf]
    %v616 = vld [vmem:[%s1 + $0x288] sm:$0xf]
    %v617 = vld [vmem:[%s1 + $0x28c] sm:$0xf]
    %v618 = vld [vmem:[%s1 + $0x290] sm:$0xf]
    %v619 = vld [vmem:[%s1 + $0x294] sm:$0xf]
    %v620 = vld [vmem:[%s1 + $0x298] sm:$0xf]
    %v621 = vld [vmem:[%s1 + $0x29c] sm:$0xf]
    %v622 = vld [vmem:[%s1 + $0x2a0] sm:$0xf]
    %v623 = vld [vmem:[%s1 + $0x2a4] sm:$0xf]
    %v624 = vld [vmem:[%s1 + $0x2a8] sm:$0xf]
    %v625 = vld [vmem:[%s1 + $0x2ac] sm:$0xf]
    %v626 = vld [vmem:[%s1 + $0x2b0] sm:$0xf]
    %v627 = vld [vmem:[%s1 + $0x2b4] sm:$0xf]
    %v628 = vld [vmem:[%s1 + $0x2b8] sm:$0xf]
    %v629 = vld [vmem:[%s1 + $0x2bc] sm:$0xf]
    %v630 = vld [vmem:[%s1 + $0x2c0] sm:$0xf]
    %v631 = vld [vmem:[%s1 + $0x2c4] sm:$0xf]
    %v632 = vld [vmem:[%s1 + $0x2c8] sm:$0xf]
    %v633 = vld [vmem:[%s1 + $0x2cc] sm:$0xf]
    %v634 = vld [vmem:[%s1 + $0x2d0] sm:$0xf]
    %v635 = vld [vmem:[%s1 + $0x2d4] sm:$0xf]
    %v636 = vld [vmem:[%s1 + $0x2d8] sm:$0xf]
    %v637 = vld [vmem:[%s1 + $0x2dc] sm:$0xf]
    %v638 = vld [vmem:[%s1 + $0x2e0] sm:$0xf]
    %v639 = vld [vmem:[%s1 + $0x2e4] sm:$0xf]
    %v640 = vld [vmem:[%s1 + $0x2e8] sm:$0xf]
    %v641 = vld [vmem:[%s1 + $0x2ec] sm:$0xf]
    %v642 = vld [vmem:[%s1 + $0x2f0] sm:$0xf]
    %v643 = vld [vmem:[%s1 + $0x2f4] sm:$0xf]
    %v644 = vld [vmem:[%s1 + $0x2f8] sm:$0xf]
    %v645 = vld [vmem:[%s1 + $0x2fc] sm:$0xf]
    %v646 = vld [vmem:[%s1 + $0x300] sm:$0xf]
    %v647 = vld [vmem:[%s1 + $0x304] sm:$0xf]
    %v648 = vld [vmem:[%s1 + $0x308] sm:$0xf]
    %v649 = vld [vmem:[%s1 + $0x30c] sm:$0xf]
    %v650 = vld [vmem:[%s1 + $0x310] sm:$0xf]
    %v651 = vld [vmem:[%s1 + $0x314] sm:$0xf]
    %v652 = vld [vmem:[%s1 + $0x318] sm:$0xf]
    %v653 = vld [vmem:[%s1 + $0x31c] sm:$0xf]
    %v654 = vld [vmem:[%s1 + $0x320] sm:$0xf]
    %v655 = vld [vmem:[%s1 + $0x324] sm:$0xf]
    %v656 = vld [vmem:[%s1 + $0x328] sm:$0xf]
    %v657 = vld [vmem:[%s1 + $0x32c] sm:$0xf]
    %v658 = vld [vmem:[%s1 + $0x330] sm:$0xf]
    %v659 = vld [vmem:[%s1 + $0x334] sm:$0xf]
    %v660 = vld [vmem:[%s1 + $0x338] sm:$0xf]
    %v661 = vld [vmem:[%s1 + $0x33c] sm:$0xf]
    %v662 = vld [vmem:[%s1 + $0x340] sm:$0xf]
    %v663 = vld [vmem:[%s1 + $0x344] sm:$0xf]
    %v664 = vld [vmem:[%s1 + $0x348] sm:$0xf]
    %v665 = vld [vmem:[%s1 + $0x34c] sm:$0xf]
    %v666 = vld [vmem:[%s1 + $0x350] sm:$0xf]
    %v667 = vld [vmem:[%s1 + $0x354] sm:$0xf]
    %v668 = vld [vmem:[%s1 + $0x358] sm:$0xf]
    %v669 = vld [vmem:[%s1 + $0x35c] sm:$0xf]
    %v670 = vld [vmem:[%s1 + $0x360] sm:$0xf]
    %v671 = vld [vmem:[%s1 + $0x364] sm:$0xf]
    %v672 = vld [vmem:[%s1 + $0x368] sm:$0xf]
    %v673 = vld [vmem:[%s1 + $0x36c] sm:$0xf]
    %v674 = vld [vmem:[%s1 + $0x370] sm:$0xf]
    %v675 = vld [vmem:[%s1 + $0x374] sm:$0xf]
    %v676 = vld [vmem:[%s1 + $0x378] sm:$0xf]
    %v677 = vld [vmem:[%s1 + $0x37c] sm:$0xf]
    %v678 = vld [vmem:[%s1 + $0x380] sm:$0xf]
    %v679 = vld [vmem:[%s1 + $0x384] sm:$0xf]
    %v680 = vld [vmem:[%s1 + $0x388] sm:$0xf]
    %v681 = vld [vmem:[%s1 + $0x38c] sm:$0xf]
    %v682 = vld [vmem:[%s1 + $0x390] sm:$0xf]
    %v683 = vld [vmem:[%s1 + $0x394] sm:$0xf]
    %v684 = vld [vmem:[%s1 + $0x398] sm:$0xf]
    %v685 = vld [vmem:[%s1 + $0x39c] sm:$0xf]
    %v686 = vld [vmem:[%s1 + $0x3a0] sm:$0xf]
    %v687 = vld [vmem:[%s1 + $0x3a4] sm:$0xf]
    %v688 = vld [vmem:[%s1 + $0x3a8] sm:$0xf]
    %v689 = vld [vmem:[%s1 + $0x3ac] sm:$0xf]
    %v690 = vld [vmem:[%s1 + $0x3b0] sm:$0xf]
    %v691 = vld [vmem:[%s1 + $0x3b4] sm:$0xf]
    %v692 = vld [vmem:[%s1 + $0x3b8] sm:$0xf]
    %v693 = vld [vmem:[%s1 + $0x3bc] sm:$0xf]
    %v694 = vld [vmem:[%s1 + $0x3c0] sm:$0xf]
    %v695 = vld [vmem:[%s1 + $0x3c4] sm:$0xf]
    %v696 = vld [vmem:[%s1 + $0x3c8] sm:$0xf]
    %v697 = vld [vmem:[%s1 + $0x3cc] sm:$0xf]
    %v698 = vld [vmem:[%s1 + $0x3d0] sm:$0xf]
    %v699 = vld [vmem:[%s1 + $0x3d4] sm:$0xf]
    %v700 = vld [vmem:[%s1 + $0x3d8] sm:$0xf]
    %v701 = vld [vmem:[%s1 + $0x3dc] sm:$0xf]
    %v702 = vld [vmem:[%s1 + $0x3e0] sm:$0xf]
    %v703 = vld [vmem:[%s1 + $0x3e4] sm:$0xf]
    %v704 = vld [vmem:[%s1 + $0x3e8] sm:$0xf]
    %v705 = vld [vmem:[%s1 + $0x3ec] sm:$0xf]
    %v706 = vld [vmem:[%s1 + $0x3f0] sm:$0xf]
    %v707 = vld [vmem:[%s1 + $0x3f4] sm:$0xf]
    %v708 = vld [vmem:[%s1 + $0x3f8] sm:$0xf]
    %v709 = vld [vmem:[%s1 + $0x3fc] sm:$0xf]
    %v710 = vld [vmem:[%s1 + $0x400] sm:$0xf]
    %v711 = vld [vmem:[%s1 + $0x404] sm:$0xf]
    %v712 = vld [vmem:[%s1 + $0x408] sm:$0xf]
    %v713 = vld [vmem:[%s1 + $0x40c] sm:$0xf]
    %v714 = vld [vmem:[%s1 + $0x410] sm:$0xf]
    %v715 = vld [vmem:[%s1 + $0x414] sm:$0xf]
    %v716 = vld [vmem:[%s1 + $0x418] sm:$0xf]
    %v717 = vld [vmem:[%s1 + $0x41c] sm:$0xf]
    %v718 = vld [vmem:[%s1 + $0x420] sm:$0xf]
    %v719 = vld [vmem:[%s1 + $0x424] sm:$0xf]
    %v720 = vld [vmem:[%s1 + $0x428] sm:$0xf]
    %v721 = vld [vmem:[%s1 + $0x42c] sm:$0xf]
    %v722 = vld [vmem:[%s1 + $0x430] sm:$0xf]
    %v723 = vld [vmem:[%s1 + $0x434] sm:$0xf]
    %v724 = vld [vmem:[%s1 + $0x438] sm:$0xf]
    %v725 = vld [vmem:[%s1 + $0x43c] sm:$0xf]
    %v726 = vld [vmem:[%s1 + $0x440] sm:$0xf]
    %v727 = vld [vmem:[%s1 + $0x444] sm:$0xf]
    %v728 = vld [vmem:[%s1 + $0x448] sm:$0xf]
    %v729 = vld [vmem:[%s1 + $0x44c] sm:$0xf]
    %v730 = vld [vmem:[%s1 + $0x450] sm:$0xf]
    %v731 = vld [vmem:[%s1 + $0x454] sm:$0xf]
    %v732 = vld [vmem:[%s1 + $0x458] sm:$0xf]
    %v733 = vld [vmem:[%s1 + $0x45c] sm:$0xf]
    %v734 = vld [vmem:[%s1 + $0x460] sm:$0xf]
    %v735 = vld [vmem:[%s1 + $0x464] sm:$0xf]
    %v736 = vld [vmem:[%s1 + $0x468] sm:$0xf]
    %v737 = vld [vmem:[%s1 + $0x46c] sm:$0xf]
    %v738 = vld [vmem:[%s1 + $0x470] sm:$0xf]
    %v739 = vld [vmem:[%s1 + $0x474] sm:$0xf]
    %v740 = vld [vmem:[%s1 + $0x478] sm:$0xf]
    %v741 = vld [vmem:[%s1 + $0x47c] sm:$0xf]
    %v742 = vld [vmem:[%s1 + $0x480] sm:$0xf]
    %v743 = vld [vmem:[%s1 + $0x484] sm:$0xf]
    %v744 = vld [vmem:[%s1 + $0x488] sm:$0xf]
    %v745 = vld [vmem:[%s1 + $0x48c] sm:$0xf]
    %v746 = vld [vmem:[%s1 + $0x490] sm:$0xf]
    %v747 = vld [vmem:[%s1 + $0x494] sm:$0xf]
    %v748 = vld [vmem:[%s1 + $0x498] sm:$0xf]
    %v749 = vld [vmem:[%s1 + $0x49c] sm:$0xf]
    %v750 = vld [vmem:[%s1 + $0x4a0] sm:$0xf]
    %v751 = vld [vmem:[%s1 + $0x4a4] sm:$0xf]
    %v752 = vld [vmem:[%s1 + $0x4a8] sm:$0xf]
    %v753 = vld [vmem:[%s1 + $0x4ac] sm:$0xf]
    %v754 = vld [vmem:[%s1 + $0x4b0] sm:$0xf]
    %v755 = vld [vmem:[%s1 + $0x4b4] sm:$0xf]
    %v756 = vld [vmem:[%s1 + $0x4b8] sm:$0xf]
    %v757 = vld [vmem:[%s1 + $0x4bc] sm:$0xf]
    %v758 = vld [vmem:[%s1 + $0x4c0] sm:$0xf]
    %v759 = vld [vmem:[%s1 + $0x4c4] sm:$0xf]
    %v760 = vld [vmem:[%s1 + $0x4c8] sm:$0xf]
    %v761 = vld [vmem:[%s1 + $0x4cc] sm:$0xf]
    %v762 = vld [vmem:[%s1 + $0x4d0] sm:$0xf]
    %v763 = vld [vmem:[%s1 + $0x4d4] sm:$0xf]
    %v764 = vld [vmem:[%s1 + $0x4d8] sm:$0xf]
    %v765 = vld [vmem:[%s1 + $0x4dc] sm:$0xf]
    %v766 = vld [vmem:[%s1 + $0x4e0] sm:$0xf]
    %v767 = vld [vmem:[%s1 + $0x4e4] sm:$0xf]
    %v768 = vld [vmem:[%s1 + $0x4e8] sm:$0xf]
    %v769 = vld [vmem:[%s1 + $0x4ec] sm:$0xf]
    %v770 = vld [vmem:[%s1 + $0x4f0] sm:$0xf]
    %v771 = vld [vmem:[%s1 + $0x4f4] sm:$0xf]
    %v772 = vld [vmem:[%s1 + $0x4f8] sm:$0xf]
    %v773 = vld [vmem:[%s1 + $0x4fc] sm:$0xf]
    %v774 = vld [vmem:[%s1 + $0x500] sm:$0xf]
    %v775 = vld [vmem:[%s1 + $0x504] sm:$0xf]
    %v776 = vld [vmem:[%s1 + $0x508] sm:$0xf]
    %v777 = vld [vmem:[%s1 + $0x50c] sm:$0xf]
    %v778 = vld [vmem:[%s1 + $0x510] sm:$0xf]
    %v779 = vld [vmem:[%s1 + $0x514] sm:$0xf]
    %v780 = vld [vmem:[%s1 + $0x518] sm:$0xf]
    %v781 = vld [vmem:[%s1 + $0x51c] sm:$0xf]
    %v782 = vld [vmem:[%s1 + $0x520] sm:$0xf]
    %v783 = vld [vmem:[%s1 + $0x524] sm:$0xf]
    %v784 = vld [vmem:[%s1 + $0x528] sm:$0xf]
    %v785 = vld [vmem:[%s1 + $0x52c] sm:$0xf]
    %v786 = vld [vmem:[%s1 + $0x530] sm:$0xf]
    %v787 = vld [vmem:[%s1 + $0x534] sm:$0xf]
    %v788 = vld [vmem:[%s1 + $0x538] sm:$0xf]
    %v789 = vld [vmem:[%s1 + $0x53c] sm:$0xf]
    %v790 = vld [vmem:[%s1 + $0x540] sm:$0xf]
    %v791 = vld [vmem:[%s1 + $0x544] sm:$0xf]
    %v792 = vld [vmem:[%s1 + $0x548] sm:$0xf]
    %v793 = vld [vmem:[%s1 + $0x54c] sm:$0xf]
    %v794 = vld [vmem:[%s1 + $0x550] sm:$0xf]
    %v795 = vld [vmem:[%s1 + $0x554] sm:$0xf]
    %v796 = vld [vmem:[%s1 + $0x558] sm:$0xf]
    %v797 = vld [vmem:[%s1 + $0x55c] sm:$0xf]
    %v798 = vld [vmem:[%s1 + $0x560] sm:$0xf]
    %v799 = vld [vmem:[%s1 + $0x564] sm:$0xf]
    %v800 = vld [vmem:[%s1 + $0x568] sm:$0xf]
    %v801 = vld [vmem:[%s1 + $0x56c] sm:$0xf]
    %v802 = vld [vmem:[%s1 + $0x570] sm:$0xf]
    %v803 = vld [vmem:[%s1 + $0x574] sm:$0xf]
    %v804 = vld [vmem:[%s1 + $0x578] sm:$0xf]
    %v805 = vld [vmem:[%s1 + $0x57c] sm:$0xf]
    %v806 = vld [vmem:[%s1 + $0x580] sm:$0xf]
    %v807 = vld [vmem:[%s1 + $0x584] sm:$0xf]
    %v808 = vld [vmem:[%s1 + $0x588] sm:$0xf]
    %v809 = vld [vmem:[%s1 + $0x58c] sm:$0xf]
    %v810 = vld [vmem:[%s1 + $0x590] sm:$0xf]
    %v811 = vld [vmem:[%s1 + $0x594] sm:$0xf]
    %v812 = vld [vmem:[%s1 + $0x598] sm:$0xf]
    %v813 = vld [vmem:[%s1 + $0x59c] sm:$0xf]
    %v814 = vld [vmem:[%s1 + $0x5a0] sm:$0xf]
    %v815 = vld [vmem:[%s1 + $0x5a4] sm:$0xf]
    %v816 = vld [vmem:[%s1 + $0x5a8] sm:$0xf]
    %v817 = vld [vmem:[%s1 + $0x5ac] sm:$0xf]
    %v818 = vld [vmem:[%s1 + $0x5b0] sm:$0xf]
    %v819 = vld [vmem:[%s1 + $0x5b4] sm:$0xf]
    %v820 = vld [vmem:[%s1 + $0x5b8] sm:$0xf]
    %v821 = vld [vmem:[%s1 + $0x5bc] sm:$0xf]
    %v822 = vld [vmem:[%s1 + $0x5c0] sm:$0xf]
    %v823 = vld [vmem:[%s1 + $0x5c4] sm:$0xf]
    %v824 = vld [vmem:[%s1 + $0x5c8] sm:$0xf]
    %v825 = vld [vmem:[%s1 + $0x5cc] sm:$0xf]
    %v826 = vld [vmem:[%s1 + $0x5d0] sm:$0xf]
    %v827 = vld [vmem:[%s1 + $0x5d4] sm:$0xf]
    %v828 = vld [vmem:[%s1 + $0x5d8] sm:$0xf]
    %v829 = vld [vmem:[%s1 + $0x5dc] sm:$0xf]
    %v830 = vld [vmem:[%s1 + $0x5e0] sm:$0xf]
    %v831 = vld [vmem:[%s1 + $0x5e4] sm:$0xf]
    %v832 = vld [vmem:[%s1 + $0x5e8] sm:$0xf]
    %v833 = vld [vmem:[%s1 + $0x5ec] sm:$0xf]
    %v834 = vld [vmem:[%s1 + $0x5f0] sm:$0xf]
    %v835 = vld [vmem:[%s1 + $0x5f4] sm:$0xf]
    %v836 = vld [vmem:[%s1 + $0x5f8] sm:$0xf]
    %v837 = vld [vmem:[%s1 + $0x5fc] sm:$0xf]
    %v838 = vld [vmem:[%s1 + $0x600] sm:$0xf]
    %v839 = vld [vmem:[%s1 + $0x604] sm:$0xf]
    %v840 = vld [vmem:[%s1 + $0x608] sm:$0xf]
    %v841 = vld [vmem:[%s1 + $0x60c] sm:$0xf]
    %v842 = vld [vmem:[%s1 + $0x610] sm:$0xf]
    %v843 = vld [vmem:[%s1 + $0x614] sm:$0xf]
    %v844 = vld [vmem:[%s1 + $0x618] sm:$0xf]
    %v845 = vld [vmem:[%s1 + $0x61c] sm:$0xf]
    %v846 = vld [vmem:[%s1 + $0x620] sm:$0xf]
    %v847 = vld [vmem:[%s1 + $0x624] sm:$0xf]
    %v848 = vld [vmem:[%s1 + $0x628] sm:$0xf]
    %v849 = vld [vmem:[%s1 + $0x62c] sm:$0xf]
    %v850 = vld [vmem:[%s1 + $0x630] sm:$0xf]
    %v851 = vld [vmem:[%s1 + $0x634] sm:$0xf]
    %v852 = vld [vmem:[%s1 + $0x638] sm:$0xf]
    %v853 = vld [vmem:[%s1 + $0x63c] sm:$0xf]
    %v854 = vld [vmem:[%s1 + $0x640] sm:$0xf]
    %v855 = vld [vmem:[%s1 + $0x644] sm:$0xf]
    %v856 = vld [vmem:[%s1 + $0x648] sm:$0xf]
    %v857 = vld [vmem:[%s1 + $0x64c] sm:$0xf]
    %v858 = vld [vmem:[%s1 + $0x650] sm:$0xf]
    %v859 = vld [vmem:[%s1 + $0x654] sm:$0xf]
    %v860 = vld [vmem:[%s1 + $0x658] sm:$0xf]
    %v861 = vld [vmem:[%s1 + $0x65c] sm:$0xf]
    %v862 = vld [vmem:[%s1 + $0x660] sm:$0xf]
    %v863 = vld [vmem:[%s1 + $0x664] sm:$0xf]
    %v864 = vld [vmem:[%s1 + $0x668] sm:$0xf]
    %v865 = vld [vmem:[%s1 + $0x66c] sm:$0xf]
    %v866 = vld [vmem:[%s1 + $0x670] sm:$0xf]
    %v867 = vld [vmem:[%s1 + $0x674] sm:$0xf]
    %v868 = vld [vmem:[%s1 + $0x678] sm:$0xf]
    %v869 = vld [vmem:[%s1 + $0x67c] sm:$0xf]
    %v870 = vld [vmem:[%s1 + $0x680] sm:$0xf]
    %v871 = vld [vmem:[%s1 + $0x684] sm:$0xf]
    %v872 = vld [vmem:[%s1 + $0x688] sm:$0xf]
    %v873 = vld [vmem:[%s1 + $0x68c] sm:$0xf]
    %v874 = vld [vmem:[%s1 + $0x690] sm:$0xf]
    %v875 = vld [vmem:[%s1 + $0x694] sm:$0xf]
    %v876 = vld [vmem:[%s1 + $0x698] sm:$0xf]
    %v877 = vld [vmem:[%s1 + $0x69c] sm:$0xf]
    %v878 = vld [vmem:[%s1 + $0x6a0] sm:$0xf]
    %v879 = vld [vmem:[%s1 + $0x6a4] sm:$0xf]
    %v880 = vld [vmem:[%s1 + $0x6a8] sm:$0xf]
    %v881 = vld [vmem:[%s1 + $0x6ac] sm:$0xf]
    %v882 = vld [vmem:[%s1 + $0x6b0] sm:$0xf]
    %v883 = vld [vmem:[%s1 + $0x6b4] sm:$0xf]
    %v884 = vld [vmem:[%s1 + $0x6b8] sm:$0xf]
    %v885 = vld [vmem:[%s1 + $0x6bc] sm:$0xf]
    %v886 = vld [vmem:[%s1 + $0x6c0] sm:$0xf]
    %v887 = vld [vmem:[%s1 + $0x6c4] sm:$0xf]
    %v888 = vld [vmem:[%s1 + $0x6c8] sm:$0xf]
    %v889 = vld [vmem:[%s1 + $0x6cc] sm:$0xf]
    %v890 = vld [vmem:[%s1 + $0x6d0] sm:$0xf]
    %v891 = vld [vmem:[%s1 + $0x6d4] sm:$0xf]
    %v892 = vld [vmem:[%s1 + $0x6d8] sm:$0xf]
    %v893 = vld [vmem:[%s1 + $0x6dc] sm:$0xf]
    %v894 = vld [vmem:[%s1 + $0x6e0] sm:$0xf]
    %v895 = vld [vmem:[%s1 + $0x6e4] sm:$0xf]
    %v896 = vld [vmem:[%s1 + $0x6e8] sm:$0xf]
    %v897 = vld [vmem:[%s1 + $0x6ec] sm:$0xf]
    %v898 = vld [vmem:[%s1 + $0x6f0] sm:$0xf]
    %v899 = vld [vmem:[%s1 + $0x6f4] sm:$0xf]
    %v900 = vld [vmem:[%s1 + $0x6f8] sm:$0xf]
    %v901 = vld [vmem:[%s1 + $0x6fc] sm:$0xf]
    %v902 = vld [vmem:[%s1 + $0x700] sm:$0xf]
    %v903 = vld [vmem:[%s1 + $0x704] sm:$0xf]
    %v904 = vld [vmem:[%s1 + $0x708] sm:$0xf]
    %v905 = vld [vmem:[%s1 + $0x70c] sm:$0xf]
    %v906 = vld [vmem:[%s1 + $0x710] sm:$0xf]
    %v907 = vld [vmem:[%s1 + $0x714] sm:$0xf]
    %v908 = vld [vmem:[%s1 + $0x718] sm:$0xf]
    %v909 = vld [vmem:[%s1 + $0x71c] sm:$0xf]
    %v910 = vld [vmem:[%s1 + $0x720] sm:$0xf]
    %v911 = vld [vmem:[%s1 + $0x724] sm:$0xf]
    %v912 = vld [vmem:[%s1 + $0x728] sm:$0xf]
    %v913 = vld [vmem:[%s1 + $0x72c] sm:$0xf]
    %v914 = vld [vmem:[%s1 + $0x730] sm:$0xf]
    %v915 = vld [vmem:[%s1 + $0x734] sm:$0xf]
    %v916 = vld [vmem:[%s1 + $0x738] sm:$0xf]
    %v917 = vld [vmem:[%s1 + $0x73c] sm:$0xf]
    %v918 = vld [vmem:[%s1 + $0x740] sm:$0xf]
    %v919 = vld [vmem:[%s1 + $0x744] sm:$0xf]
    %v920 = vld [vmem:[%s1 + $0x748] sm:$0xf]
    %v921 = vld [vmem:[%s1 + $0x74c] sm:$0xf]
    %v922 = vld [vmem:[%s1 + $0x750] sm:$0xf]
    %v923 = vld [vmem:[%s1 + $0x754] sm:$0xf]
    %v924 = vld [vmem:[%s1 + $0x758] sm:$0xf]
    %v925 = vld [vmem:[%s1 + $0x75c] sm:$0xf]
    %v926 = vld [vmem:[%s1 + $0x760] sm:$0xf]
    %v927 = vld [vmem:[%s1 + $0x764] sm:$0xf]
    %v928 = vld [vmem:[%s1 + $0x768] sm:$0xf]
    %v929 = vld [vmem:[%s1 + $0x76c] sm:$0xf]
    %v930 = vld [vmem:[%s1 + $0x770] sm:$0xf]
    %v931 = vld [vmem:[%s1 + $0x774] sm:$0xf]
    %v932 = vld [vmem:[%s1 + $0x778] sm:$0xf]
    %v933 = vld [vmem:[%s1 + $0x77c] sm:$0xf]
    %v934 = vld [vmem:[%s1 + $0x780] sm:$0xf]
    %v935 = vld [vmem:[%s1 + $0x784] sm:$0xf]
    %v936 = vld [vmem:[%s1 + $0x788] sm:$0xf]
    %v937 = vld [vmem:[%s1 + $0x78c] sm:$0xf]
    %v938 = vld [vmem:[%s1 + $0x790] sm:$0xf]
    %v939 = vld [vmem:[%s1 + $0x794] sm:$0xf]
    %v940 = vld [vmem:[%s1 + $0x798] sm:$0xf]
    %v941 = vld [vmem:[%s1 + $0x79c] sm:$0xf]
    %v942 = vld [vmem:[%s1 + $0x7a0] sm:$0xf]
    %v943 = vld [vmem:[%s1 + $0x7a4] sm:$0xf]
    %v944 = vld [vmem:[%s1 + $0x7a8] sm:$0xf]
    %v945 = vld [vmem:[%s1 + $0x7ac] sm:$0xf]
    %v946 = vld [vmem:[%s1 + $0x7b0] sm:$0xf]
    %v947 = vld [vmem:[%s1 + $0x7b4] sm:$0xf]
    %v948 = vld [vmem:[%s1 + $0x7b8] sm:$0xf]
    %v949 = vld [vmem:[%s1 + $0x7bc] sm:$0xf]
    %v950 = vld [vmem:[%s1 + $0x7c0] sm:$0xf]
    %v951 = vld [vmem:[%s1 + $0x7c4] sm:$0xf]
    %v952 = vld [vmem:[%s1 + $0x7c8] sm:$0xf]
    %v953 = vld [vmem:[%s1 + $0x7cc] sm:$0xf]
    %v954 = vld [vmem:[%s1 + $0x7d0] sm:$0xf]
    %v955 = vld [vmem:[%s1 + $0x7d4] sm:$0xf]
    %v956 = vld [vmem:[%s1 + $0x7d8] sm:$0xf]
    %v957 = vld [vmem:[%s1 + $0x7dc] sm:$0xf]
    %v958 = vld [vmem:[%s1 + $0x7e0] sm:$0xf]
    %v959 = vld [vmem:[%s1 + $0x7e4] sm:$0xf]
    %v960 = vld [vmem:[%s1 + $0x7e8] sm:$0xf]
    %v961 = vld [vmem:[%s1 + $0x7ec] sm:$0xf]
    %v962 = vld [vmem:[%s1 + $0x7f0] sm:$0xf]
    %v963 = vld [vmem:[%s1 + $0x7f4] sm:$0xf]
    %v964 = vld [vmem:[%s1 + $0x7f8] sm:$0xf]
    %v965 = vld [vmem:[%s1 + $0x7fc] sm:$0xf]
    %v966 = vld [vmem:[%s1 + $0x800] sm:$0xf]
    %v967 = vld [vmem:[%s1 + $0x804] sm:$0xf]
    %v968 = vld [vmem:[%s1 + $0x808] sm:$0xf]
    %v969 = vld [vmem:[%s1 + $0x80c] sm:$0xf]
    %v970 = vld [vmem:[%s1 + $0x810] sm:$0xf]
    %v971 = vld [vmem:[%s1 + $0x814] sm:$0xf]
    %v972 = vld [vmem:[%s1 + $0x818] sm:$0xf]
    %v973 = vld [vmem:[%s1 + $0x81c] sm:$0xf]
    %v974 = vld [vmem:[%s1 + $0x820] sm:$0xf]
    %v975 = vld [vmem:[%s1 + $0x824] sm:$0xf]
    %v976 = vld [vmem:[%s1 + $0x828] sm:$0xf]
    %v977 = vld [vmem:[%s1 + $0x82c] sm:$0xf]
    %v978 = vld [vmem:[%s1 + $0x830] sm:$0xf]
    %v979 = vld [vmem:[%s1 + $0x834] sm:$0xf]
    %v980 = vld [vmem:[%s1 + $0x838] sm:$0xf]
    %v981 = vld [vmem:[%s1 + $0x83c] sm:$0xf]
    %v982 = vld [vmem:[%s1 + $0x840] sm:$0xf]
    %v983 = vld [vmem:[%s1 + $0x844] sm:$0xf]
    %v984 = vld [vmem:[%s1 + $0x848] sm:$0xf]
    %v985 = vld [vmem:[%s1 + $0x84c] sm:$0xf]
    %v986 = vld [vmem:[%s1 + $0x850] sm:$0xf]
    %v987 = vld [vmem:[%s1 + $0x854] sm:$0xf]
    %v988 = vld [vmem:[%s1 + $0x858] sm:$0xf]
    %v989 = vld [vmem:[%s1 + $0x85c] sm:$0xf]
    %v990 = vld [vmem:[%s1 + $0x860] sm:$0xf]
    %v991 = vld [vmem:[%s1 + $0x864] sm:$0xf]
    %v992 = vld [vmem:[%s1 + $0x868] sm:$0xf]
    %v993 = vld [vmem:[%s1 + $0x86c] sm:$0xf]
    %v994 = vld [vmem:[%s1 + $0x870] sm:$0xf]
    %v995 = vld [vmem:[%s1 + $0x874] sm:$0xf]
    %v996 = vld [vmem:[%s1 + $0x878] sm:$0xf]
    %v997 = vld [vmem:[%s1 + $0x87c] sm:$0xf]
    %v998 = vld [vmem:[%s1 + $0x880] sm:$0xf]
    %v999 = vld [vmem:[%s1 + $0x884] sm:$0xf]
    %v1000 = vld [vmem:[%s1 + $0x888] sm:$0xf]
    %v1001 = vld [vmem:[%s1 + $0x88c] sm:$0xf]
    %v1002 = vld [vmem:[%s1 + $0x890] sm:$0xf]
    %v1003 = vld [vmem:[%s1 + $0x894] sm:$0xf]
    %v1004 = vld [vmem:[%s1 + $0x898] sm:$0xf]
    %v1005 = vld [vmem:[%s1 + $0x89c] sm:$0xf]
    %v1006 = vld [vmem:[%s1 + $0x8a0] sm:$0xf]
    %v1007 = vld [vmem:[%s1 + $0x8a4] sm:$0xf]
    %v1008 = vld [vmem:[%s1 + $0x8a8] sm:$0xf]
    %v1009 = vld [vmem:[%s1 + $0x8ac] sm:$0xf]
    %v1010 = vld [vmem:[%s1 + $0x8b0] sm:$0xf]
    %v1011 = vld [vmem:[%s1 + $0x8b4] sm:$0xf]
    %v1012 = vld [vmem:[%s1 + $0x8b8] sm:$0xf]
    %v1013 = vld [vmem:[%s1 + $0x8bc] sm:$0xf]
    %v1014 = vld [vmem:[%s1 + $0x8c0] sm:$0xf]
    %v1015 = vld [vmem:[%s1 + $0x8c4] sm:$0xf]
    %v1016 = vld [vmem:[%s1 + $0x8c8] sm:$0xf]
    %v1017 = vld [vmem:[%s1 + $0x8cc] sm:$0xf]
    %v1018 = vld [vmem:[%s1 + $0x8d0] sm:$0xf]
    %v1019 = vld [vmem:[%s1 + $0x8d4] sm:$0xf]
    %v1020 = vld [vmem:[%s1 + $0x8d8] sm:$0xf]
    %v1021 = vld [vmem:[%s1 + $0x8dc] sm:$0xf]
    %v1022 = vld [vmem:[%s1 + $0x8e0] sm:$0xf]
    %v1023 = vld [vmem:[%s1 + $0x8e4] sm:$0xf]
    %v1024 = vld [vmem:[%s1 + $0x8e8] sm:$0xf]
    %v1025 = vld [vmem:[%s1 + $0x8ec] sm:$0xf]
    %v1026 = vld [vmem:[%s1 + $0x8f0] sm:$0xf]
    %v1027 = vld [vmem:[%s1 + $0x8f4] sm:$0xf]
    %v1028 = vld [vmem:[%s1 + $0x8f8] sm:$0xf]
    %v1029 = vld [vmem:[%s1 + $0x8fc] sm:$0xf]
    %v1030 = vld [vmem:[%s1 + $0x900] sm:$0xf]
    %v1031 = vld [vmem:[%s1 + $0x904] sm:$0xf]
    %v1032 = vld [vmem:[%s1 + $0x908] sm:$0xf]
    %v1033 = vld [vmem:[%s1 + $0x90c] sm:$0xf]
    %v1034 = vld [vmem:[%s1 + $0x910] sm:$0xf]
    %v1035 = vld [vmem:[%s1 + $0x914] sm:$0xf]
    %v1036 = vld [vmem:[%s1 + $0x918] sm:$0xf]
    %v1037 = vld [vmem:[%s1 + $0x91c] sm:$0xf]
    %v1038 = vld [vmem:[%s1 + $0x920] sm:$0xf]
    %v1039 = vld [vmem:[%s1 + $0x924] sm:$0xf]
    %v1040 = vld [vmem:[%s1 + $0x928] sm:$0xf]
    %v1041 = vld [vmem:[%s1 + $0x92c] sm:$0xf]
    %v1042 = vld [vmem:[%s1 + $0x930] sm:$0xf]
    %v1043 = vld [vmem:[%s1 + $0x934] sm:$0xf]
    %v1044 = vld [vmem:[%s1 + $0x938] sm:$0xf]
    %v1045 = vld [vmem:[%s1 + $0x93c] sm:$0xf]
    %v1046 = vld [vmem:[%s1 + $0x940] sm:$0xf]
    %v1047 = vld [vmem:[%s1 + $0x944] sm:$0xf]
    %v1048 = vld [vmem:[%s1 + $0x948] sm:$0xf]
    %v1049 = vld [vmem:[%s1 + $0x94c] sm:$0xf]
    %v1050 = vld [vmem:[%s1 + $0x950] sm:$0xf]
    %v1051 = vld [vmem:[%s1 + $0x954] sm:$0xf]
    %v1052 = vld [vmem:[%s1 + $0x958] sm:$0xf]
    %v1053 = vld [vmem:[%s1 + $0x95c] sm:$0xf]
    %v1054 = vld [vmem:[%s1 + $0x960] sm:$0xf]
    %v1055 = vld [vmem:[%s1 + $0x964] sm:$0xf]
    %v1056 = vld [vmem:[%s1 + $0x968] sm:$0xf]
    %v1057 = vld [vmem:[%s1 + $0x96c] sm:$0xf]
    %v1058 = vld [vmem:[%s1 + $0x970] sm:$0xf]
    %v1059 = vld [vmem:[%s1 + $0x974] sm:$0xf]
    %v1060 = vld [vmem:[%s1 + $0x978] sm:$0xf]
    %v1061 = vld [vmem:[%s1 + $0x97c] sm:$0xf]
    %v1062 = vld [vmem:[%s1 + $0x980] sm:$0xf]
    %v1063 = vld [vmem:[%s1 + $0x984] sm:$0xf]
    %v1064 = vld [vmem:[%s1 + $0x988] sm:$0xf]
    %v1065 = vld [vmem:[%s1 + $0x98c] sm:$0xf]
    %v1066 = vld [vmem:[%s1 + $0x990] sm:$0xf]
    %v1067 = vld [vmem:[%s1 + $0x994] sm:$0xf]
    %v1068 = vld [vmem:[%s1 + $0x998] sm:$0xf]
    %v1069 = vld [vmem:[%s1 + $0x99c] sm:$0xf]
    %v1070 = vld [vmem:[%s1 + $0x9a0] sm:$0xf]
    %v1071 = vld [vmem:[%s1 + $0x9a4] sm:$0xf]
    %v1072 = vld [vmem:[%s1 + $0x9a8] sm:$0xf]
    %v1073 = vld [vmem:[%s1 + $0x9ac] sm:$0xf]
    %v1074 = vld [vmem:[%s1 + $0x9b0] sm:$0xf]
    %v1075 = vld [vmem:[%s1 + $0x9b4] sm:$0xf]
    %v1076 = vld [vmem:[%s1 + $0x9b8] sm:$0xf]
    %v1077 = vld [vmem:[%s1 + $0x9bc] sm:$0xf]
    %v1078 = vld [vmem:[%s1 + $0x9c0] sm:$0xf]
    %v1079 = vld [vmem:[%s1 + $0x9c4] sm:$0xf]
    %v1080 = vld [vmem:[%s1 + $0x9c8] sm:$0xf]
    %v1081 = vld [vmem:[%s1 + $0x9cc] sm:$0xf]
    %v1082 = vld [vmem:[%s1 + $0x9d0] sm:$0xf]
    %v1083 = vld [vmem:[%s1 + $0x9d4] sm:$0xf]
    %v1084 = vld [vmem:[%s1 + $0x9d8] sm:$0xf]
    %v1085 = vld [vmem:[%s1 + $0x9dc] sm:$0xf]
    %v1086 = vld [vmem:[%s1 + $0x9e0] sm:$0xf]
    %v1087 = vld [vmem:[%s1 + $0x9e4] sm:$0xf]
    %v1088 = vld [vmem:[%s1 + $0x9e8] sm:$0xf]
    %v1089 = vld [vmem:[%s1 + $0x9ec] sm:$0xf]
    %v1090 = vld [vmem:[%s1 + $0x9f0] sm:$0xf]
    %v1091 = vld [vmem:[%s1 + $0x9f4] sm:$0xf]
    %v1092 = vld [vmem:[%s1 + $0x9f8] sm:$0xf]
    %v1093 = vld [vmem:[%s1 + $0x9fc] sm:$0xf]
    %v1094 = vld [vmem:[%s1 + $0xa00] sm:$0xf]
    %v1095 = vld [vmem:[%s1 + $0xa04] sm:$0xf]
    %v1096 = vld [vmem:[%s1 + $0xa08] sm:$0xf]
    %v1097 = vld [vmem:[%s1 + $0xa0c] sm:$0xf]
    %v1098 = vld [vmem:[%s1 + $0xa10] sm:$0xf]
    %v1099 = vld [vmem:[%s1 + $0xa14] sm:$0xf]
    %v1100 = vld [vmem:[%s1 + $0xa18] sm:$0xf]
    %v1101 = vld [vmem:[%s1 + $0xa1c] sm:$0xf]
    %v1102 = vld [vmem:[%s1 + $0xa20] sm:$0xf]
    %v1103 = vld [vmem:[%s1 + $0xa24] sm:$0xf]
    %v1104 = vld [vmem:[%s1 + $0xa28] sm:$0xf]
    %v1105 = vld [vmem:[%s1 + $0xa2c] sm:$0xf]
    %v1106 = vld [vmem:[%s1 + $0xa30] sm:$0xf]
    %v1107 = vld [vmem:[%s1 + $0xa34] sm:$0xf]
    %v1108 = vld [vmem:[%s1 + $0xa38] sm:$0xf]
    %v1109 = vld [vmem:[%s1 + $0xa3c] sm:$0xf]
    %v1110 = vld [vmem:[%s1 + $0xa40] sm:$0xf]
    %v1111 = vld [vmem:[%s1 + $0xa44] sm:$0xf]
    %v1112 = vld [vmem:[%s1 + $0xa48] sm:$0xf]
    %v1113 = vld [vmem:[%s1 + $0xa4c] sm:$0xf]
    %v1114 = vld [vmem:[%s1 + $0xa50] sm:$0xf]
    %v1115 = vld [vmem:[%s1 + $0xa54] sm:$0xf]
    %v1116 = vld [vmem:[%s1 + $0xa58] sm:$0xf]
    %v1117 = vld [vmem:[%s1 + $0xa5c] sm:$0xf]
    %v1118 = vld [vmem:[%s1 + $0xa60] sm:$0xf]
    %v1119 = vld [vmem:[%s1 + $0xa64] sm:$0xf]
    %v1120 = vld [vmem:[%s1 + $0xa68] sm:$0xf]
    %v1121 = vld [vmem:[%s1 + $0xa6c] sm:$0xf]
    %v1122 = vld [vmem:[%s1 + $0xa70] sm:$0xf]
    %v1123 = vld [vmem:[%s1 + $0xa74] sm:$0xf]
    %v1124 = vld [vmem:[%s1 + $0xa78] sm:$0xf]
    %v1125 = vld [vmem:[%s1 + $0xa7c] sm:$0xf]
    %v1126 = vld [vmem:[%s1 + $0xa80] sm:$0xf]
    %v1127 = vld [vmem:[%s1 + $0xa84] sm:$0xf]
    %v1128 = vld [vmem:[%s1 + $0xa88] sm:$0xf]
    %v1129 = vld [vmem:[%s1 + $0xa8c] sm:$0xf]
    %v1130 = vld [vmem:[%s1 + $0xa90] sm:$0xf]
    %v1131 = vld [vmem:[%s1 + $0xa94] sm:$0xf]
    %v1132 = vld [vmem:[%s1 + $0xa98] sm:$0xf]
    %v1133 = vld [vmem:[%s1 + $0xa9c] sm:$0xf]
    %v1134 = vld [vmem:[%s1 + $0xaa0] sm:$0xf]
    %v1135 = vld [vmem:[%s1 + $0xaa4] sm:$0xf]
    %v1136 = vld [vmem:[%s1 + $0xaa8] sm:$0xf]
    %v1137 = vld [vmem:[%s1 + $0xaac] sm:$0xf]
    %v1138 = vld [vmem:[%s1 + $0xab0] sm:$0xf]
    %v1139 = vld [vmem:[%s1 + $0xab4] sm:$0xf]
    %v1140 = vld [vmem:[%s1 + $0xab8] sm:$0xf]
    %v1141 = vld [vmem:[%s1 + $0xabc] sm:$0xf]
    %v1142 = vld [vmem:[%s1 + $0xac0] sm:$0xf]
    %v1143 = vld [vmem:[%s1 + $0xac4] sm:$0xf]
    %v1144 = vld [vmem:[%s1 + $0xac8] sm:$0xf]
    %v1145 = vld [vmem:[%s1 + $0xacc] sm:$0xf]
    %v1146 = vld [vmem:[%s1 + $0xad0] sm:$0xf]
    %v1147 = vld [vmem:[%s1 + $0xad4] sm:$0xf]
    %v1148 = vld [vmem:[%s1 + $0xad8] sm:$0xf]
    %v1149 = vld [vmem:[%s1 + $0xadc] sm:$0xf]
    %v1150 = vld [vmem:[%s1 + $0xae0] sm:$0xf]
    %v1151 = vld [vmem:[%s1 + $0xae4] sm:$0xf]
    %v1152 = vld [vmem:[%s1 + $0xae8] sm:$0xf]
    %v1153 = vld [vmem:[%s1 + $0xaec] sm:$0xf]
    %v1154 = vld [vmem:[%s1 + $0xaf0] sm:$0xf]
    %v1155 = vld [vmem:[%s1 + $0xaf4] sm:$0xf]
    %v1156 = vld [vmem:[%s1 + $0xaf8] sm:$0xf]
    %v1157 = vld [vmem:[%s1 + $0xafc] sm:$0xf]
    %v1158 = vld [vmem:[%s1 + $0xb00] sm:$0xf]
    %v1159 = vld [vmem:[%s1 + $0xb04] sm:$0xf]
    %v1160 = vld [vmem:[%s1 + $0xb08] sm:$0xf]
    %v1161 = vld [vmem:[%s1 + $0xb0c] sm:$0xf]
    %v1162 = vld [vmem:[%s1 + $0xb10] sm:$0xf]
    %v1163 = vld [vmem:[%s1 + $0xb14] sm:$0xf]
    %v1164 = vld [vmem:[%s1 + $0xb18] sm:$0xf]
    %v1165 = vld [vmem:[%s1 + $0xb1c] sm:$0xf]
    %v1166 = vld [vmem:[%s1 + $0xb20] sm:$0xf]
    %v1167 = vld [vmem:[%s1 + $0xb24] sm:$0xf]
    %v1168 = vld [vmem:[%s1 + $0xb28] sm:$0xf]
    %v1169 = vld [vmem:[%s1 + $0xb2c] sm:$0xf]
    %v1170 = vld [vmem:[%s1 + $0xb30] sm:$0xf]
    %v1171 = vld [vmem:[%s1 + $0xb34] sm:$0xf]
    %v1172 = vld [vmem:[%s1 + $0xb38] sm:$0xf]
    %v1173 = vld [vmem:[%s1 + $0xb3c] sm:$0xf]
    %v1174 = vld [vmem:[%s1 + $0xb40] sm:$0xf]
    %v1175 = vld [vmem:[%s1 + $0xb44] sm:$0xf]
    %v1176 = vld [vmem:[%s1 + $0xb48] sm:$0xf]
    %v1177 = vld [vmem:[%s1 + $0xb4c] sm:$0xf]
    %v1178 = vld [vmem:[%s1 + $0xb50] sm:$0xf]
    %v1179 = vld [vmem:[%s1 + $0xb54] sm:$0xf]
    %v1180 = vld [vmem:[%s1 + $0xb58] sm:$0xf]
    %v1181 = vld [vmem:[%s1 + $0xb5c] sm:$0xf]
    %v1182 = vld [vmem:[%s1 + $0xb60] sm:$0xf]
    %v1183 = vld [vmem:[%s1 + $0xb64] sm:$0xf]
    %v1184 = vld [vmem:[%s1 + $0xb68] sm:$0xf]
    %v1185 = vld [vmem:[%s1 + $0xb6c] sm:$0xf]
    %v1186 = vld [vmem:[%s1 + $0xb70] sm:$0xf]
    %v1187 = vld [vmem:[%s1 + $0xb74] sm:$0xf]
    %v1188 = vld [vmem:[%s1 + $0xb78] sm:$0xf]
    %v1189 = vld [vmem:[%s1 + $0xb7c] sm:$0xf]
    %v1190 = vld [vmem:[%s1 + $0xb80] sm:$0xf]
    %v1191 = vld [vmem:[%s1 + $0xb84] sm:$0xf]
    %v1192 = vld [vmem:[%s1 + $0xb88] sm:$0xf]
    %v1193 = vld [vmem:[%s1 + $0xb8c] sm:$0xf]
    %v1194 = vld [vmem:[%s1 + $0xb90] sm:$0xf]
    %v1195 = vld [vmem:[%s1 + $0xb94] sm:$0xf]
    %v1196 = vld [vmem:[%s1 + $0xb98] sm:$0xf]
    %v1197 = vld [vmem:[%s1 + $0xb9c] sm:$0xf]
    %v1198 = vld [vmem:[%s1 + $0xba0] sm:$0xf]
    %v1199 = vld [vmem:[%s1 + $0xba4] sm:$0xf]
    %v1200 = vld [vmem:[%s1 + $0xba8] sm:$0xf]
    %v1201 = vld [vmem:[%s1 + $0xbac] sm:$0xf]
    %v1202 = vld [vmem:[%s1 + $0xbb0] sm:$0xf]
    %v1203 = vld [vmem:[%s1 + $0xbb4] sm:$0xf]
    %v1204 = vld [vmem:[%s1 + $0xbb8] sm:$0xf]
    %v1205 = vld [vmem:[%s1 + $0xbbc] sm:$0xf]
    %v1206 = vld [vmem:[%s1 + $0xbc0] sm:$0xf]
    %v1207 = vld [vmem:[%s1 + $0xbc4] sm:$0xf]
    %v1208 = vld [vmem:[%s1 + $0xbc8] sm:$0xf]
    %v1209 = vld [vmem:[%s1 + $0xbcc] sm:$0xf]
    %v1210 = vld [vmem:[%s1 + $0xbd0] sm:$0xf]
    %v1211 = vld [vmem:[%s1 + $0xbd4] sm:$0xf]
    %v1212 = vld [vmem:[%s1 + $0xbd8] sm:$0xf]
    %v1213 = vld [vmem:[%s1 + $0xbdc] sm:$0xf]
    %v1214 = vld [vmem:[%s1 + $0xbe0] sm:$0xf]
    %v1215 = vld [vmem:[%s1 + $0xbe4] sm:$0xf]
    %v1216 = vld [vmem:[%s1 + $0xbe8] sm:$0xf]
    %v1217 = vld [vmem:[%s1 + $0xbec] sm:$0xf]
    %v1218 = vld [vmem:[%s1 + $0xbf0] sm:$0xf]
    %v1219 = vld [vmem:[%s1 + $0xbf4] sm:$0xf]
    %v1220 = vld [vmem:[%s1 + $0xbf8] sm:$0xf]
    %v1221 = vld [vmem:[%s1 + $0xbfc] sm:$0xf]
    %v1222 = vld [vmem:[%s1 + $0xc00] sm:$0xf]
    %v1223 = vld [vmem:[%s1 + $0xc04] sm:$0xf]
    %v1224 = vld [vmem:[%s1 + $0xc08] sm:$0xf]
    %v1225 = vld [vmem:[%s1 + $0xc0c] sm:$0xf]
    %v1226 = vld [vmem:[%s1 + $0xc10] sm:$0xf]
    %v1227 = vld [vmem:[%s1 + $0xc14] sm:$0xf]
    %v1228 = vld [vmem:[%s1 + $0xc18] sm:$0xf]
    %v1229 = vld [vmem:[%s1 + $0xc1c] sm:$0xf]
    %v1230 = vld [vmem:[%s1 + $0xc20] sm:$0xf]
    %v1231 = vld [vmem:[%s1 + $0xc24] sm:$0xf]
    %v1232 = vld [vmem:[%s1 + $0xc28] sm:$0xf]
    %v1233 = vld [vmem:[%s1 + $0xc2c] sm:$0xf]
    %v1234 = vld [vmem:[%s1 + $0xc30] sm:$0xf]
    %v1235 = vld [vmem:[%s1 + $0xc34] sm:$0xf]
    %v1236 = vld [vmem:[%s1 + $0xc38] sm:$0xf]
    %v1237 = vld [vmem:[%s1 + $0xc3c] sm:$0xf]
    %v1238 = vld [vmem:[%s1 + $0xc40] sm:$0xf]
    %v1239 = vld [vmem:[%s1 + $0xc44] sm:$0xf]
    %v1240 = vld [vmem:[%s1 + $0xc48] sm:$0xf]
    %v1241 = vld [vmem:[%s1 + $0xc4c] sm:$0xf]
    %v1242 = vld [vmem:[%s1 + $0xc50] sm:$0xf]
    %v1243 = vld [vmem:[%s1 + $0xc54] sm:$0xf]
    %v1244 = vld [vmem:[%s1 + $0xc58] sm:$0xf]
    %v1245 = vld [vmem:[%s1 + $0xc5c] sm:$0xf]
    %v1246 = vld [vmem:[%s1 + $0xc60] sm:$0xf]
    %v1247 = vld [vmem:[%s1 + $0xc64] sm:$0xf]
    %v1248 = vld [vmem:[%s1 + $0xc68] sm:$0xf]
    %v1249 = vld [vmem:[%s1 + $0xc6c] sm:$0xf]
    %v1250 = vld [vmem:[%s1 + $0xc70] sm:$0xf]
    %v1251 = vld [vmem:[%s1 + $0xc74] sm:$0xf]
    %v1252 = vld [vmem:[%s1 + $0xc78] sm:$0xf]
    %v1253 = vld [vmem:[%s1 + $0xc7c] sm:$0xf]
    %v1254 = vld [vmem:[%s1 + $0xc80] sm:$0xf]
    %v1255 = vld [vmem:[%s1 + $0xc84] sm:$0xf]
    %v1256 = vld [vmem:[%s1 + $0xc88] sm:$0xf]
    %v1257 = vld [vmem:[%s1 + $0xc8c] sm:$0xf]
    %v1258 = vld [vmem:[%s1 + $0xc90] sm:$0xf]
    %v1259 = vld [vmem:[%s1 + $0xc94] sm:$0xf]
    %v1260 = vld [vmem:[%s1 + $0xc98] sm:$0xf]
    %v1261 = vld [vmem:[%s1 + $0xc9c] sm:$0xf]
    %v1262 = vld [vmem:[%s1 + $0xca0] sm:$0xf]
    %v1263 = vld [vmem:[%s1 + $0xca4] sm:$0xf]
    %v1264 = vld [vmem:[%s1 + $0xca8] sm:$0xf]
    %v1265 = vld [vmem:[%s1 + $0xcac] sm:$0xf]
    %v1266 = vld [vmem:[%s1 + $0xcb0] sm:$0xf]
    %v1267 = vld [vmem:[%s1 + $0xcb4] sm:$0xf]
    %v1268 = vld [vmem:[%s1 + $0xcb8] sm:$0xf]
    %v1269 = vld [vmem:[%s1 + $0xcbc] sm:$0xf]
    %v1270 = vld [vmem:[%s1 + $0xcc0] sm:$0xf]
    %v1271 = vld [vmem:[%s1 + $0xcc4] sm:$0xf]
    %v1272 = vld [vmem:[%s1 + $0xcc8] sm:$0xf]
    %v1273 = vld [vmem:[%s1 + $0xccc] sm:$0xf]
    %v1274 = vld [vmem:[%s1 + $0xcd0] sm:$0xf]
    %v1275 = vld [vmem:[%s1 + $0xcd4] sm:$0xf]
    %v1276 = vld [vmem:[%s1 + $0xcd8] sm:$0xf]
    %v1277 = vld [vmem:[%s1 + $0xcdc] sm:$0xf]
    %v1278 = vld [vmem:[%s1 + $0xce0] sm:$0xf]
    %v1279 = vld [vmem:[%s1 + $0xce4] sm:$0xf]
    %v1280 = vld [vmem:[%s1 + $0xce8] sm:$0xf]
    %v1281 = vld [vmem:[%s1 + $0xcec] sm:$0xf]
    %v1282 = vld [vmem:[%s1 + $0xcf0] sm:$0xf]
    %v1283 = vld [vmem:[%s1 + $0xcf4] sm:$0xf]
    %v1284 = vld [vmem:[%s1 + $0xcf8] sm:$0xf]
    %v1285 = vld [vmem:[%s1 + $0xcfc] sm:$0xf]
    %v1286 = vld [vmem:[%s1 + $0xd00] sm:$0xf]
    %v1287 = vld [vmem:[%s1 + $0xd04] sm:$0xf]
    %v1288 = vld [vmem:[%s1 + $0xd08] sm:$0xf]
    %v1289 = vld [vmem:[%s1 + $0xd0c] sm:$0xf]
    %v1290 = vld [vmem:[%s1 + $0xd10] sm:$0xf]
    %v1291 = vld [vmem:[%s1 + $0xd14] sm:$0xf]
    %v1292 = vld [vmem:[%s1 + $0xd18] sm:$0xf]
    %v1293 = vld [vmem:[%s1 + $0xd1c] sm:$0xf]
    %v1294 = vld [vmem:[%s1 + $0xd20] sm:$0xf]
    %v1295 = vld [vmem:[%s1 + $0xd24] sm:$0xf]
    %v1296 = vld [vmem:[%s1 + $0xd28] sm:$0xf]
    %v1297 = vld [vmem:[%s1 + $0xd2c] sm:$0xf]
    %v1298 = vld [vmem:[%s1 + $0xd30] sm:$0xf]
    %v1299 = vld [vmem:[%s1 + $0xd34] sm:$0xf]
    %v1300 = vld [vmem:[%s1 + $0xd38] sm:$0xf]
    %v1301 = vld [vmem:[%s1 + $0xd3c] sm:$0xf]
    %v1302 = vld [vmem:[%s1 + $0xd40] sm:$0xf]
    %v1303 = vld [vmem:[%s1 + $0xd44] sm:$0xf]
    %v1304 = vld [vmem:[%s1 + $0xd48] sm:$0xf]
    %v1305 = vld [vmem:[%s1 + $0xd4c] sm:$0xf]
    %v1306 = vld [vmem:[%s1 + $0xd50] sm:$0xf]
    %v1307 = vld [vmem:[%s1 + $0xd54] sm:$0xf]
    %v1308 = vld [vmem:[%s1 + $0xd58] sm:$0xf]
    %v1309 = vld [vmem:[%s1 + $0xd5c] sm:$0xf]
    %v1310 = vld [vmem:[%s1 + $0xd60] sm:$0xf]
    %v1311 = vld [vmem:[%s1 + $0xd64] sm:$0xf]
    %v1312 = vld [vmem:[%s1 + $0xd68] sm:$0xf]
    %v1313 = vld [vmem:[%s1 + $0xd6c] sm:$0xf]
    %v1314 = vld [vmem:[%s1 + $0xd70] sm:$0xf]
    %v1315 = vld [vmem:[%s1 + $0xd74] sm:$0xf]
    %v1316 = vld [vmem:[%s1 + $0xd78] sm:$0xf]
    %v1317 = vld [vmem:[%s1 + $0xd7c] sm:$0xf]
    %v1318 = vld [vmem:[%s1 + $0xd80] sm:$0xf]
    %v1319 = vld [vmem:[%s1 + $0xd84] sm:$0xf]
    %v1320 = vld [vmem:[%s1 + $0xd88] sm:$0xf]
    %v1321 = vld [vmem:[%s1 + $0xd8c] sm:$0xf]
    %v1322 = vld [vmem:[%s1 + $0xd90] sm:$0xf]
    %v1323 = vld [vmem:[%s1 + $0xd94] sm:$0xf]
    %v1324 = vld [vmem:[%s1 + $0xd98] sm:$0xf]
    %v1325 = vld [vmem:[%s1 + $0xd9c] sm:$0xf]
    %v1326 = vld [vmem:[%s1 + $0xda0] sm:$0xf]
    %v1327 = vld [vmem:[%s1 + $0xda4] sm:$0xf]
    %v1328 = vld [vmem:[%s1 + $0xda8] sm:$0xf]
    %v1329 = vld [vmem:[%s1 + $0xdac] sm:$0xf]
    %v1330 = vld [vmem:[%s1 + $0xdb0] sm:$0xf]
    %v1331 = vld [vmem:[%s1 + $0xdb4] sm:$0xf]
    %v1332 = vld [vmem:[%s1 + $0xdb8] sm:$0xf]
    %v1333 = vld [vmem:[%s1 + $0xdbc] sm:$0xf]
    %v1334 = vld [vmem:[%s1 + $0xdc0] sm:$0xf]
    %v1335 = vld [vmem:[%s1 + $0xdc4] sm:$0xf]
    %v1336 = vld [vmem:[%s1 + $0xdc8] sm:$0xf]
    %v1337 = vld [vmem:[%s1 + $0xdcc] sm:$0xf]
    %v1338 = vld [vmem:[%s1 + $0xdd0] sm:$0xf]
    %v1339 = vld [vmem:[%s1 + $0xdd4] sm:$0xf]
    %v1340 = vld [vmem:[%s1 + $0xdd8] sm:$0xf]
    %v1341 = vld [vmem:[%s1 + $0xddc] sm:$0xf]
    %v1342 = vld [vmem:[%s1 + $0xde0] sm:$0xf]
    %v1343 = vld [vmem:[%s1 + $0xde4] sm:$0xf]
    %v1344 = vld [vmem:[%s1 + $0xde8] sm:$0xf]
    %v1345 = vld [vmem:[%s1 + $0xdec] sm:$0xf]
    %v1346 = vld [vmem:[%s1 + $0xdf0] sm:$0xf]
    %v1347 = vld [vmem:[%s1 + $0xdf4] sm:$0xf]
    %v1348 = vld [vmem:[%s1 + $0xdf8] sm:$0xf]
    %v1349 = vld [vmem:[%s1 + $0xdfc] sm:$0xf]
    %v1350 = vld [vmem:[%s1 + $0xe00] sm:$0xf]
    %v1351 = vld [vmem:[%s1 + $0xe04] sm:$0xf]
    %v1352 = vld [vmem:[%s1 + $0xe08] sm:$0xf]
    %v1353 = vld [vmem:[%s1 + $0xe0c] sm:$0xf]
    %v1354 = vld [vmem:[%s1 + $0xe10] sm:$0xf]
    %v1355 = vld [vmem:[%s1 + $0xe14] sm:$0xf]
    %v1356 = vld [vmem:[%s1 + $0xe18] sm:$0xf]
    %v1357 = vld [vmem:[%s1 + $0xe1c] sm:$0xf]
    %v1358 = vld [vmem:[%s1 + $0xe20] sm:$0xf]
    %v1359 = vld [vmem:[%s1 + $0xe24] sm:$0xf]
    %v1360 = vld [vmem:[%s1 + $0xe28] sm:$0xf]
    %v1361 = vld [vmem:[%s1 + $0xe2c] sm:$0xf]
    %v1362 = vld [vmem:[%s1 + $0xe30] sm:$0xf]
    %v1363 = vld [vmem:[%s1 + $0xe34] sm:$0xf]
    %v1364 = vld [vmem:[%s1 + $0xe38] sm:$0xf]
    %v1365 = vld [vmem:[%s1 + $0xe3c] sm:$0xf]
    %v1366 = vld [vmem:[%s1 + $0xe40] sm:$0xf]
    %v1367 = vld [vmem:[%s1 + $0xe44] sm:$0xf]
    %v1368 = vld [vmem:[%s1 + $0xe48] sm:$0xf]
    %v1369 = vld [vmem:[%s1 + $0xe4c] sm:$0xf]
    %v1370 = vld [vmem:[%s1 + $0xe50] sm:$0xf]
    %v1371 = vld [vmem:[%s1 + $0xe54] sm:$0xf]
    %v1372 = vld [vmem:[%s1 + $0xe58] sm:$0xf]
    %v1373 = vld [vmem:[%s1 + $0xe5c] sm:$0xf]
    %v1374 = vld [vmem:[%s1 + $0xe60] sm:$0xf]
    %v1375 = vld [vmem:[%s1 + $0xe64] sm:$0xf]
    %v1376 = vld [vmem:[%s1 + $0xe68] sm:$0xf]
    %v1377 = vld [vmem:[%s1 + $0xe6c] sm:$0xf]
    %v1378 = vld [vmem:[%s1 + $0xe70] sm:$0xf]
    %v1379 = vld [vmem:[%s1 + $0xe74] sm:$0xf]
    %v1380 = vld [vmem:[%s1 + $0xe78] sm:$0xf]
    %v1381 = vld [vmem:[%s1 + $0xe7c] sm:$0xf]
    %v1382 = vld [vmem:[%s1 + $0xe80] sm:$0xf]
    %v1383 = vld [vmem:[%s1 + $0xe84] sm:$0xf]
    %v1384 = vld [vmem:[%s1 + $0xe88] sm:$0xf]
    %v1385 = vld [vmem:[%s1 + $0xe8c] sm:$0xf]
    %v1386 = vld [vmem:[%s1 + $0xe90] sm:$0xf]
    %v1387 = vld [vmem:[%s1 + $0xe94] sm:$0xf]
    %v1388 = vld [vmem:[%s1 + $0xe98] sm:$0xf]
    %v1389 = vld [vmem:[%s1 + $0xe9c] sm:$0xf]
    %v1390 = vld [vmem:[%s1 + $0xea0] sm:$0xf]
    %v1391 = vld [vmem:[%s1 + $0xea4] sm:$0xf]
    %v1392 = vld [vmem:[%s1 + $0xea8] sm:$0xf]
    %v1393 = vld [vmem:[%s1 + $0xeac] sm:$0xf]
    %v1394 = vld [vmem:[%s1 + $0xeb0] sm:$0xf]
    %v1395 = vld [vmem:[%s1 + $0xeb4] sm:$0xf]
    %v1396 = vld [vmem:[%s1 + $0xeb8] sm:$0xf]
    %v1397 = vld [vmem:[%s1 + $0xebc] sm:$0xf]
    %v1398 = vld [vmem:[%s1 + $0xec0] sm:$0xf]
    %v1399 = vld [vmem:[%s1 + $0xec4] sm:$0xf]
    %v1400 = vld [vmem:[%s1 + $0xec8] sm:$0xf]
    %v1401 = vld [vmem:[%s1 + $0xecc] sm:$0xf]
    %v1402 = vld [vmem:[%s1 + $0xed0] sm:$0xf]
    %v1403 = vld [vmem:[%s1 + $0xed4] sm:$0xf]
    %v1404 = vld [vmem:[%s1 + $0xed8] sm:$0xf]
    %v1405 = vld [vmem:[%s1 + $0xedc] sm:$0xf]
    %v1406 = vld [vmem:[%s1 + $0xee0] sm:$0xf]
    %v1407 = vld [vmem:[%s1 + $0xee4] sm:$0xf]
    %v1408 = vld [vmem:[%s1 + $0xee8] sm:$0xf]
    %v1409 = vld [vmem:[%s1 + $0xeec] sm:$0xf]
    %v1410 = vld [vmem:[%s1 + $0xef0] sm:$0xf]
    %v1411 = vld [vmem:[%s1 + $0xef4] sm:$0xf]
    %v1412 = vld [vmem:[%s1 + $0xef8] sm:$0xf]
    %v1413 = vld [vmem:[%s1 + $0xefc] sm:$0xf]
    %v1414 = vld [vmem:[%s1 + $0xf00] sm:$0xf]
    %v1415 = vld [vmem:[%s1 + $0xf04] sm:$0xf]
    %v1416 = vld [vmem:[%s1 + $0xf08] sm:$0xf]
    %v1417 = vld [vmem:[%s1 + $0xf0c] sm:$0xf]
    %v1418 = vld [vmem:[%s1 + $0xf10] sm:$0xf]
    %v1419 = vld [vmem:[%s1 + $0xf14] sm:$0xf]
    %v1420 = vld [vmem:[%s1 + $0xf18] sm:$0xf]
    %v1421 = vld [vmem:[%s1 + $0xf1c] sm:$0xf]
    %v1422 = vld [vmem:[%s1 + $0xf20] sm:$0xf]
    %v1423 = vld [vmem:[%s1 + $0xf24] sm:$0xf]
    %v1424 = vld [vmem:[%s1 + $0xf28] sm:$0xf]
    %v1425 = vld [vmem:[%s1 + $0xf2c] sm:$0xf]
    %v1426 = vld [vmem:[%s1 + $0xf30] sm:$0xf]
    %v1427 = vld [vmem:[%s1 + $0xf34] sm:$0xf]
    %v1428 = vld [vmem:[%s1 + $0xf38] sm:$0xf]
    %v1429 = vld [vmem:[%s1 + $0xf3c] sm:$0xf]
    %v1430 = vld [vmem:[%s1 + $0xf40] sm:$0xf]
    %v1431 = vld [vmem:[%s1 + $0xf44] sm:$0xf]
    %v1432 = vld [vmem:[%s1 + $0xf48] sm:$0xf]
    %v1433 = vld [vmem:[%s1 + $0xf4c] sm:$0xf]
    %v1434 = vld [vmem:[%s1 + $0xf50] sm:$0xf]
    %v1435 = vld [vmem:[%s1 + $0xf54] sm:$0xf]
    %v1436 = vld [vmem:[%s1 + $0xf58] sm:$0xf]
    %v1437 = vld [vmem:[%s1 + $0xf5c] sm:$0xf]
    %v1438 = vld [vmem:[%s1 + $0xf60] sm:$0xf]
    %v1439 = vld [vmem:[%s1 + $0xf64] sm:$0xf]
    %v1440 = vld [vmem:[%s1 + $0xf68] sm:$0xf]
    %v1441 = vld [vmem:[%s1 + $0xf6c] sm:$0xf]
    %v1442 = vld [vmem:[%s1 + $0xf70] sm:$0xf]
    %v1443 = vld [vmem:[%s1 + $0xf74] sm:$0xf]
    %v1444 = vld [vmem:[%s1 + $0xf78] sm:$0xf]
    %v1445 = vld [vmem:[%s1 + $0xf7c] sm:$0xf]
    %v1446 = vld [vmem:[%s1 + $0xf80] sm:$0xf]
    %v1447 = vld [vmem:[%s1 + $0xf84] sm:$0xf]
    %v1448 = vld [vmem:[%s1 + $0xf88] sm:$0xf]
    %v1449 = vld [vmem:[%s1 + $0xf8c] sm:$0xf]
    %v1450 = vld [vmem:[%s1 + $0xf90] sm:$0xf]
    %v1451 = vld [vmem:[%s1 + $0xf94] sm:$0xf]
    %v1452 = vld [vmem:[%s1 + $0xf98] sm:$0xf]
    %v1453 = vld [vmem:[%s1 + $0xf9c] sm:$0xf]
    %v1454 = vld [vmem:[%s1 + $0xfa0] sm:$0xf]
    %v1455 = vld [vmem:[%s1 + $0xfa4] sm:$0xf]
    %v1456 = vld [vmem:[%s1 + $0xfa8] sm:$0xf]
    %v1457 = vld [vmem:[%s1 + $0xfac] sm:$0xf]
    %v1458 = vld [vmem:[%s1 + $0xfb0] sm:$0xf]
    %v1459 = vld [vmem:[%s1 + $0xfb4] sm:$0xf]
    %v1460 = vld [vmem:[%s1 + $0xfb8] sm:$0xf]
    %v1461 = vld [vmem:[%s1 + $0xfbc] sm:$0xf]
    %v1462 = vld [vmem:[%s1 + $0xfc0] sm:$0xf]
    %v1463 = vld [vmem:[%s1 + $0xfc4] sm:$0xf]
    %v1464 = vld [vmem:[%s1 + $0xfc8] sm:$0xf]
    %v1465 = vld [vmem:[%s1 + $0xfcc] sm:$0xf]
    %v1466 = vld [vmem:[%s1 + $0xfd0] sm:$0xf]
    %v1467 = vld [vmem:[%s1 + $0xfd4] sm:$0xf]
    %v1468 = vld [vmem:[%s1 + $0xfd8] sm:$0xf]
    %v1469 = vld [vmem:[%s1 + $0xfdc] sm:$0xf]
    %v1470 = vld [vmem:[%s1 + $0xfe0] sm:$0xf]
    %v1471 = vld [vmem:[%s1 + $0xfe4] sm:$0xf]
    %v1472 = vld [vmem:[%s1 + $0xfe8] sm:$0xf]
    %v1473 = vld [vmem:[%s1 + $0xfec] sm:$0xf]
    %v1474 = vld [vmem:[%s1 + $0xff0] sm:$0xf]
    %v1475 = vld [vmem:[%s1 + $0xff4] sm:$0xf]
    %v1476 = vld [vmem:[%s1 + $0xff8] sm:$0xf]
    %v1477 = vld [vmem:[%s1 + $0xffc] sm:$0xf]
    %v1478 = vld [vmem:[%s2] sm:$0x1]
    %v1480 = vlaneseq
    %v1481 = vshrl.u32 %v1480, 7
    %v1482 = vsub.s32 0, %v1481
    %v1483 = vrot.slane %v1478, %v1482
    %v2509 = vunpack.c.l.b16 %v454
    %v2510 = vunpack.c.l.b16 %v455
    %v2511 = vunpack.c.l.b16 %v456
    %v2512 = vunpack.c.l.b16 %v457
    %v2513 = vunpack.c.l.b16 %v458
    %v2514 = vunpack.c.l.b16 %v459
    %v2515 = vunpack.c.l.b16 %v460
    %v2516 = vunpack.c.l.b16 %v461
    %v2517 = vunpack.c.l.b16 %v462
    %v2518 = vunpack.c.l.b16 %v463
    %v2519 = vunpack.c.l.b16 %v464
    %v2520 = vunpack.c.l.b16 %v465
    %v2521 = vunpack.c.l.b16 %v466
    %v2522 = vunpack.c.l.b16 %v467
    %v2523 = vunpack.c.l.b16 %v468
    %v2524 = vunpack.c.l.b16 %v469
    %v2525 = vunpack.c.l.b16 %v470
    %v2526 = vunpack.c.l.b16 %v471
    %v2527 = vunpack.c.l.b16 %v472
    %v2528 = vunpack.c.l.b16 %v473
    %v2529 = vunpack.c.l.b16 %v474
    %v2530 = vunpack.c.l.b16 %v475
    %v2531 = vunpack.c.l.b16 %v476
    %v2532 = vunpack.c.l.b16 %v477
    %v2533 = vunpack.c.l.b16 %v478
    %v2534 = vunpack.c.l.b16 %v479
    %v2535 = vunpack.c.l.b16 %v480
    %v2536 = vunpack.c.l.b16 %v481
    %v2537 = vunpack.c.l.b16 %v482
    %v2538 = vunpack.c.l.b16 %v483
    %v2539 = vunpack.c.l.b16 %v484
    %v2540 = vunpack.c.l.b16 %v485
    %v2541 = vunpack.c.l.b16 %v486
    %v2542 = vunpack.c.l.b16 %v487
    %v2543 = vunpack.c.l.b16 %v488
    %v2544 = vunpack.c.l.b16 %v489
    %v2545 = vunpack.c.l.b16 %v490
    %v2546 = vunpack.c.l.b16 %v491
    %v2547 = vunpack.c.l.b16 %v492
    %v2548 = vunpack.c.l.b16 %v493
    %v2549 = vunpack.c.l.b16 %v494
    %v2550 = vunpack.c.l.b16 %v495
    %v2551 = vunpack.c.l.b16 %v496
    %v2552 = vunpack.c.l.b16 %v497
    %v2553 = vunpack.c.l.b16 %v498
    %v2554 = vunpack.c.l.b16 %v499
    %v2555 = vunpack.c.l.b16 %v500
    %v2556 = vunpack.c.l.b16 %v501
    %v2557 = vunpack.c.l.b16 %v502
    %v2558 = vunpack.c.l.b16 %v503
    %v2559 = vunpack.c.l.b16 %v504
    %v2560 = vunpack.c.l.b16 %v505
    %v2561 = vunpack.c.l.b16 %v506
    %v2562 = vunpack.c.l.b16 %v507
    %v2563 = vunpack.c.l.b16 %v508
    %v2564 = vunpack.c.l.b16 %v509
    %v2565 = vunpack.c.l.b16 %v510
    %v2566 = vunpack.c.l.b16 %v511
    %v2567 = vunpack.c.l.b16 %v512
    %v2568 = vunpack.c.l.b16 %v513
    %v2569 = vunpack.c.l.b16 %v514
    %v2570 = vunpack.c.l.b16 %v515
    %v2571 = vunpack.c.l.b16 %v516
    %v2572 = vunpack.c.l.b16 %v517
    %v2573 = vunpack.c.l.b16 %v518
    %v2574 = vunpack.c.l.b16 %v519
    %v2575 = vunpack.c.l.b16 %v520
    %v2576 = vunpack.c.l.b16 %v521
    %v2577 = vunpack.c.l.b16 %v522
    %v2578 = vunpack.c.l.b16 %v523
    %v2579 = vunpack.c.l.b16 %v524
    %v2580 = vunpack.c.l.b16 %v525
    %v2581 = vunpack.c.l.b16 %v526
    %v2582 = vunpack.c.l.b16 %v527
    %v2583 = vunpack.c.l.b16 %v528
    %v2584 = vunpack.c.l.b16 %v529
    %v2585 = vunpack.c.l.b16 %v530
    %v2586 = vunpack.c.l.b16 %v531
    %v2587 = vunpack.c.l.b16 %v532
    %v2588 = vunpack.c.l.b16 %v533
    %v2589 = vunpack.c.l.b16 %v534
    %v2590 = vunpack.c.l.b16 %v535
    %v2591 = vunpack.c.l.b16 %v536
    %v2592 = vunpack.c.l.b16 %v537
    %v2593 = vunpack.c.l.b16 %v538
    %v2594 = vunpack.c.l.b16 %v539
    %v2595 = vunpack.c.l.b16 %v540
    %v2596 = vunpack.c.l.b16 %v541
    %v2597 = vunpack.c.l.b16 %v542
    %v2598 = vunpack.c.l.b16 %v543
    %v2599 = vunpack.c.l.b16 %v544
    %v2600 = vunpack.c.l.b16 %v545
    %v2601 = vunpack.c.l.b16 %v546
    %v2602 = vunpack.c.l.b16 %v547
    %v2603 = vunpack.c.l.b16 %v548
    %v2604 = vunpack.c.l.b16 %v549
    %v2605 = vunpack.c.l.b16 %v550
    %v2606 = vunpack.c.l.b16 %v551
    %v2607 = vunpack.c.l.b16 %v552
    %v2608 = vunpack.c.l.b16 %v553
    %v2609 = vunpack.c.l.b16 %v554
    %v2610 = vunpack.c.l.b16 %v555
    %v2611 = vunpack.c.l.b16 %v556
    %v2612 = vunpack.c.l.b16 %v557
    %v2613 = vunpack.c.l.b16 %v558
    %v2614 = vunpack.c.l.b16 %v559
    %v2615 = vunpack.c.l.b16 %v560
    %v2616 = vunpack.c.l.b16 %v561
    %v2617 = vunpack.c.l.b16 %v562
    %v2618 = vunpack.c.l.b16 %v563
    %v2619 = vunpack.c.l.b16 %v564
    %v2620 = vunpack.c.l.b16 %v565
    %v2621 = vunpack.c.l.b16 %v566
    %v2622 = vunpack.c.l.b16 %v567
    %v2623 = vunpack.c.l.b16 %v568
    %v2624 = vunpack.c.l.b16 %v569
    %v2625 = vunpack.c.l.b16 %v570
    %v2626 = vunpack.c.l.b16 %v571
    %v2627 = vunpack.c.l.b16 %v572
    %v2628 = vunpack.c.l.b16 %v573
    %v2629 = vunpack.c.l.b16 %v574
    %v2630 = vunpack.c.l.b16 %v575
    %v2631 = vunpack.c.l.b16 %v576
    %v2632 = vunpack.c.l.b16 %v577
    %v2633 = vunpack.c.l.b16 %v578
    %v2634 = vunpack.c.l.b16 %v579
    %v2635 = vunpack.c.l.b16 %v580
    %v2636 = vunpack.c.l.b16 %v581
    %v2637 = vunpack.c.l.b16 %v582
    %v2638 = vunpack.c.l.b16 %v583
    %v2639 = vunpack.c.l.b16 %v584
    %v2640 = vunpack.c.l.b16 %v585
    %v2641 = vunpack.c.l.b16 %v586
    %v2642 = vunpack.c.l.b16 %v587
    %v2643 = vunpack.c.l.b16 %v588
    %v2644 = vunpack.c.l.b16 %v589
    %v2645 = vunpack.c.l.b16 %v590
    %v2646 = vunpack.c.l.b16 %v591
    %v2647 = vunpack.c.l.b16 %v592
    %v2648 = vunpack.c.l.b16 %v593
    %v2649 = vunpack.c.l.b16 %v594
    %v2650 = vunpack.c.l.b16 %v595
    %v2651 = vunpack.c.l.b16 %v596
    %v2652 = vunpack.c.l.b16 %v597
    %v2653 = vunpack.c.l.b16 %v598
    %v2654 = vunpack.c.l.b16 %v599
    %v2655 = vunpack.c.l.b16 %v600
    %v2656 = vunpack.c.l.b16 %v601
    %v2657 = vunpack.c.l.b16 %v602
    %v2658 = vunpack.c.l.b16 %v603
    %v2659 = vunpack.c.l.b16 %v604
    %v2660 = vunpack.c.l.b16 %v605
    %v2661 = vunpack.c.l.b16 %v606
    %v2662 = vunpack.c.l.b16 %v607
    %v2663 = vunpack.c.l.b16 %v608
    %v2664 = vunpack.c.l.b16 %v609
    %v2665 = vunpack.c.l.b16 %v610
    %v2666 = vunpack.c.l.b16 %v611
    %v2667 = vunpack.c.l.b16 %v612
    %v2668 = vunpack.c.l.b16 %v613
    %v2669 = vunpack.c.l.b16 %v614
    %v2670 = vunpack.c.l.b16 %v615
    %v2671 = vunpack.c.l.b16 %v616
    %v2672 = vunpack.c.l.b16 %v617
    %v2673 = vunpack.c.l.b16 %v618
    %v2674 = vunpack.c.l.b16 %v619
    %v2675 = vunpack.c.l.b16 %v620
    %v2676 = vunpack.c.l.b16 %v621
    %v2677 = vunpack.c.l.b16 %v622
    %v2678 = vunpack.c.l.b16 %v623
    %v2679 = vunpack.c.l.b16 %v624
    %v2680 = vunpack.c.l.b16 %v625
    %v2681 = vunpack.c.l.b16 %v626
    %v2682 = vunpack.c.l.b16 %v627
    %v2683 = vunpack.c.l.b16 %v628
    %v2684 = vunpack.c.l.b16 %v629
    %v2685 = vunpack.c.l.b16 %v630
    %v2686 = vunpack.c.l.b16 %v631
    %v2687 = vunpack.c.l.b16 %v632
    %v2688 = vunpack.c.l.b16 %v633
    %v2689 = vunpack.c.l.b16 %v634
    %v2690 = vunpack.c.l.b16 %v635
    %v2691 = vunpack.c.l.b16 %v636
    %v2692 = vunpack.c.l.b16 %v637
    %v2693 = vunpack.c.l.b16 %v638
    %v2694 = vunpack.c.l.b16 %v639
    %v2695 = vunpack.c.l.b16 %v640
    %v2696 = vunpack.c.l.b16 %v641
    %v2697 = vunpack.c.l.b16 %v642
    %v2698 = vunpack.c.l.b16 %v643
    %v2699 = vunpack.c.l.b16 %v644
    %v2700 = vunpack.c.l.b16 %v645
    %v2701 = vunpack.c.l.b16 %v646
    %v2702 = vunpack.c.l.b16 %v647
    %v2703 = vunpack.c.l.b16 %v648
    %v2704 = vunpack.c.l.b16 %v649
    %v2705 = vunpack.c.l.b16 %v650
    %v2706 = vunpack.c.l.b16 %v651
    %v2707 = vunpack.c.l.b16 %v652
    %v2708 = vunpack.c.l.b16 %v653
    %v2709 = vunpack.c.l.b16 %v654
    %v2710 = vunpack.c.l.b16 %v655
    %v2711 = vunpack.c.l.b16 %v656
    %v2712 = vunpack.c.l.b16 %v657
    %v2713 = vunpack.c.l.b16 %v658
    %v2714 = vunpack.c.l.b16 %v659
    %v2715 = vunpack.c.l.b16 %v660
    %v2716 = vunpack.c.l.b16 %v661
    %v2717 = vunpack.c.l.b16 %v662
    %v2718 = vunpack.c.l.b16 %v663
    %v2719 = vunpack.c.l.b16 %v664
    %v2720 = vunpack.c.l.b16 %v665
    %v2721 = vunpack.c.l.b16 %v666
    %v2722 = vunpack.c.l.b16 %v667
    %v2723 = vunpack.c.l.b16 %v668
    %v2724 = vunpack.c.l.b16 %v669
    %v2725 = vunpack.c.l.b16 %v670
    %v2726 = vunpack.c.l.b16 %v671
    %v2727 = vunpack.c.l.b16 %v672
    %v2728 = vunpack.c.l.b16 %v673
    %v2729 = vunpack.c.l.b16 %v674
    %v2730 = vunpack.c.l.b16 %v675
    %v2731 = vunpack.c.l.b16 %v676
    %v2732 = vunpack.c.l.b16 %v677
    %v2733 = vunpack.c.l.b16 %v678
    %v2734 = vunpack.c.l.b16 %v679
    %v2735 = vunpack.c.l.b16 %v680
    %v2736 = vunpack.c.l.b16 %v681
    %v2737 = vunpack.c.l.b16 %v682
    %v2738 = vunpack.c.l.b16 %v683
    %v2739 = vunpack.c.l.b16 %v684
    %v2740 = vunpack.c.l.b16 %v685
    %v2741 = vunpack.c.l.b16 %v686
    %v2742 = vunpack.c.l.b16 %v687
    %v2743 = vunpack.c.l.b16 %v688
    %v2744 = vunpack.c.l.b16 %v689
    %v2745 = vunpack.c.l.b16 %v690
    %v2746 = vunpack.c.l.b16 %v691
    %v2747 = vunpack.c.l.b16 %v692
    %v2748 = vunpack.c.l.b16 %v693
    %v2749 = vunpack.c.l.b16 %v694
    %v2750 = vunpack.c.l.b16 %v695
    %v2751 = vunpack.c.l.b16 %v696
    %v2752 = vunpack.c.l.b16 %v697
    %v2753 = vunpack.c.l.b16 %v698
    %v2754 = vunpack.c.l.b16 %v699
    %v2755 = vunpack.c.l.b16 %v700
    %v2756 = vunpack.c.l.b16 %v701
    %v2757 = vunpack.c.l.b16 %v702
    %v2758 = vunpack.c.l.b16 %v703
    %v2759 = vunpack.c.l.b16 %v704
    %v2760 = vunpack.c.l.b16 %v705
    %v2761 = vunpack.c.l.b16 %v706
    %v2762 = vunpack.c.l.b16 %v707
    %v2763 = vunpack.c.l.b16 %v708
    %v2764 = vunpack.c.l.b16 %v709
    %v2765 = vunpack.c.l.b16 %v710
    %v2766 = vunpack.c.l.b16 %v711
    %v2767 = vunpack.c.l.b16 %v712
    %v2768 = vunpack.c.l.b16 %v713
    %v2769 = vunpack.c.l.b16 %v714
    %v2770 = vunpack.c.l.b16 %v715
    %v2771 = vunpack.c.l.b16 %v716
    %v2772 = vunpack.c.l.b16 %v717
    %v2773 = vunpack.c.l.b16 %v718
    %v2774 = vunpack.c.l.b16 %v719
    %v2775 = vunpack.c.l.b16 %v720
    %v2776 = vunpack.c.l.b16 %v721
    %v2777 = vunpack.c.l.b16 %v722
    %v2778 = vunpack.c.l.b16 %v723
    %v2779 = vunpack.c.l.b16 %v724
    %v2780 = vunpack.c.l.b16 %v725
    %v2781 = vunpack.c.l.b16 %v726
    %v2782 = vunpack.c.l.b16 %v727
    %v2783 = vunpack.c.l.b16 %v728
    %v2784 = vunpack.c.l.b16 %v729
    %v2785 = vunpack.c.l.b16 %v730
    %v2786 = vunpack.c.l.b16 %v731
    %v2787 = vunpack.c.l.b16 %v732
    %v2788 = vunpack.c.l.b16 %v733
    %v2789 = vunpack.c.l.b16 %v734
    %v2790 = vunpack.c.l.b16 %v735
    %v2791 = vunpack.c.l.b16 %v736
    %v2792 = vunpack.c.l.b16 %v737
    %v2793 = vunpack.c.l.b16 %v738
    %v2794 = vunpack.c.l.b16 %v739
    %v2795 = vunpack.c.l.b16 %v740
    %v2796 = vunpack.c.l.b16 %v741
    %v2797 = vunpack.c.l.b16 %v742
    %v2798 = vunpack.c.l.b16 %v743
    %v2799 = vunpack.c.l.b16 %v744
    %v2800 = vunpack.c.l.b16 %v745
    %v2801 = vunpack.c.l.b16 %v746
    %v2802 = vunpack.c.l.b16 %v747
    %v2803 = vunpack.c.l.b16 %v748
    %v2804 = vunpack.c.l.b16 %v749
    %v2805 = vunpack.c.l.b16 %v750
    %v2806 = vunpack.c.l.b16 %v751
    %v2807 = vunpack.c.l.b16 %v752
    %v2808 = vunpack.c.l.b16 %v753
    %v2809 = vunpack.c.l.b16 %v754
    %v2810 = vunpack.c.l.b16 %v755
    %v2811 = vunpack.c.l.b16 %v756
    %v2812 = vunpack.c.l.b16 %v757
    %v2813 = vunpack.c.l.b16 %v758
    %v2814 = vunpack.c.l.b16 %v759
    %v2815 = vunpack.c.l.b16 %v760
    %v2816 = vunpack.c.l.b16 %v761
    %v2817 = vunpack.c.l.b16 %v762
    %v2818 = vunpack.c.l.b16 %v763
    %v2819 = vunpack.c.l.b16 %v764
    %v2820 = vunpack.c.l.b16 %v765
    %v2821 = vunpack.c.l.b16 %v766
    %v2822 = vunpack.c.l.b16 %v767
    %v2823 = vunpack.c.l.b16 %v768
    %v2824 = vunpack.c.l.b16 %v769
    %v2825 = vunpack.c.l.b16 %v770
    %v2826 = vunpack.c.l.b16 %v771
    %v2827 = vunpack.c.l.b16 %v772
    %v2828 = vunpack.c.l.b16 %v773
    %v2829 = vunpack.c.l.b16 %v774
    %v2830 = vunpack.c.l.b16 %v775
    %v2831 = vunpack.c.l.b16 %v776
    %v2832 = vunpack.c.l.b16 %v777
    %v2833 = vunpack.c.l.b16 %v778
    %v2834 = vunpack.c.l.b16 %v779
    %v2835 = vunpack.c.l.b16 %v780
    %v2836 = vunpack.c.l.b16 %v781
    %v2837 = vunpack.c.l.b16 %v782
    %v2838 = vunpack.c.l.b16 %v783
    %v2839 = vunpack.c.l.b16 %v784
    %v2840 = vunpack.c.l.b16 %v785
    %v2841 = vunpack.c.l.b16 %v786
    %v2842 = vunpack.c.l.b16 %v787
    %v2843 = vunpack.c.l.b16 %v788
    %v2844 = vunpack.c.l.b16 %v789
    %v2845 = vunpack.c.l.b16 %v790
    %v2846 = vunpack.c.l.b16 %v791
    %v2847 = vunpack.c.l.b16 %v792
    %v2848 = vunpack.c.l.b16 %v793
    %v2849 = vunpack.c.l.b16 %v794
    %v2850 = vunpack.c.l.b16 %v795
    %v2851 = vunpack.c.l.b16 %v796
    %v2852 = vunpack.c.l.b16 %v797
    %v2853 = vunpack.c.l.b16 %v798
    %v2854 = vunpack.c.l.b16 %v799
    %v2855 = vunpack.c.l.b16 %v800
    %v2856 = vunpack.c.l.b16 %v801
    %v2857 = vunpack.c.l.b16 %v802
    %v2858 = vunpack.c.l.b16 %v803
    %v2859 = vunpack.c.l.b16 %v804
    %v2860 = vunpack.c.l.b16 %v805
    %v2861 = vunpack.c.l.b16 %v806
    %v2862 = vunpack.c.l.b16 %v807
    %v2863 = vunpack.c.l.b16 %v808
    %v2864 = vunpack.c.l.b16 %v809
    %v2865 = vunpack.c.l.b16 %v810
    %v2866 = vunpack.c.l.b16 %v811
    %v2867 = vunpack.c.l.b16 %v812
    %v2868 = vunpack.c.l.b16 %v813
    %v2869 = vunpack.c.l.b16 %v814
    %v2870 = vunpack.c.l.b16 %v815
    %v2871 = vunpack.c.l.b16 %v816
    %v2872 = vunpack.c.l.b16 %v817
    %v2873 = vunpack.c.l.b16 %v818
    %v2874 = vunpack.c.l.b16 %v819
    %v2875 = vunpack.c.l.b16 %v820
    %v2876 = vunpack.c.l.b16 %v821
    %v2877 = vunpack.c.l.b16 %v822
    %v2878 = vunpack.c.l.b16 %v823
    %v2879 = vunpack.c.l.b16 %v824
    %v2880 = vunpack.c.l.b16 %v825
    %v2881 = vunpack.c.l.b16 %v826
    %v2882 = vunpack.c.l.b16 %v827
    %v2883 = vunpack.c.l.b16 %v828
    %v2884 = vunpack.c.l.b16 %v829
    %v2885 = vunpack.c.l.b16 %v830
    %v2886 = vunpack.c.l.b16 %v831
    %v2887 = vunpack.c.l.b16 %v832
    %v2888 = vunpack.c.l.b16 %v833
    %v2889 = vunpack.c.l.b16 %v834
    %v2890 = vunpack.c.l.b16 %v835
    %v2891 = vunpack.c.l.b16 %v836
    %v2892 = vunpack.c.l.b16 %v837
    %v2893 = vunpack.c.l.b16 %v838
    %v2894 = vunpack.c.l.b16 %v839
    %v2895 = vunpack.c.l.b16 %v840
    %v2896 = vunpack.c.l.b16 %v841
    %v2897 = vunpack.c.l.b16 %v842
    %v2898 = vunpack.c.l.b16 %v843
    %v2899 = vunpack.c.l.b16 %v844
    %v2900 = vunpack.c.l.b16 %v845
    %v2901 = vunpack.c.l.b16 %v846
    %v2902 = vunpack.c.l.b16 %v847
    %v2903 = vunpack.c.l.b16 %v848
    %v2904 = vunpack.c.l.b16 %v849
    %v2905 = vunpack.c.l.b16 %v850
    %v2906 = vunpack.c.l.b16 %v851
    %v2907 = vunpack.c.l.b16 %v852
    %v2908 = vunpack.c.l.b16 %v853
    %v2909 = vunpack.c.l.b16 %v854
    %v2910 = vunpack.c.l.b16 %v855
    %v2911 = vunpack.c.l.b16 %v856
    %v2912 = vunpack.c.l.b16 %v857
    %v2913 = vunpack.c.l.b16 %v858
    %v2914 = vunpack.c.l.b16 %v859
    %v2915 = vunpack.c.l.b16 %v860
    %v2916 = vunpack.c.l.b16 %v861
    %v2917 = vunpack.c.l.b16 %v862
    %v2918 = vunpack.c.l.b16 %v863
    %v2919 = vunpack.c.l.b16 %v864
    %v2920 = vunpack.c.l.b16 %v865
    %v2921 = vunpack.c.l.b16 %v866
    %v2922 = vunpack.c.l.b16 %v867
    %v2923 = vunpack.c.l.b16 %v868
    %v2924 = vunpack.c.l.b16 %v869
    %v2925 = vunpack.c.l.b16 %v870
    %v2926 = vunpack.c.l.b16 %v871
    %v2927 = vunpack.c.l.b16 %v872
    %v2928 = vunpack.c.l.b16 %v873
    %v2929 = vunpack.c.l.b16 %v874
    %v2930 = vunpack.c.l.b16 %v875
    %v2931 = vunpack.c.l.b16 %v876
    %v2932 = vunpack.c.l.b16 %v877
    %v2933 = vunpack.c.l.b16 %v878
    %v2934 = vunpack.c.l.b16 %v879
    %v2935 = vunpack.c.l.b16 %v880
    %v2936 = vunpack.c.l.b16 %v881
    %v2937 = vunpack.c.l.b16 %v882
    %v2938 = vunpack.c.l.b16 %v883
    %v2939 = vunpack.c.l.b16 %v884
    %v2940 = vunpack.c.l.b16 %v885
    %v2941 = vunpack.c.l.b16 %v886
    %v2942 = vunpack.c.l.b16 %v887
    %v2943 = vunpack.c.l.b16 %v888
    %v2944 = vunpack.c.l.b16 %v889
    %v2945 = vunpack.c.l.b16 %v890
    %v2946 = vunpack.c.l.b16 %v891
    %v2947 = vunpack.c.l.b16 %v892
    %v2948 = vunpack.c.l.b16 %v893
    %v2949 = vunpack.c.l.b16 %v894
    %v2950 = vunpack.c.l.b16 %v895
    %v2951 = vunpack.c.l.b16 %v896
    %v2952 = vunpack.c.l.b16 %v897
    %v2953 = vunpack.c.l.b16 %v898
    %v2954 = vunpack.c.l.b16 %v899
    %v2955 = vunpack.c.l.b16 %v900
    %v2956 = vunpack.c.l.b16 %v901
    %v2957 = vunpack.c.l.b16 %v902
    %v2958 = vunpack.c.l.b16 %v903
    %v2959 = vunpack.c.l.b16 %v904
    %v2960 = vunpack.c.l.b16 %v905
    %v2961 = vunpack.c.l.b16 %v906
    %v2962 = vunpack.c.l.b16 %v907
    %v2963 = vunpack.c.l.b16 %v908
    %v2964 = vunpack.c.l.b16 %v909
    %v2965 = vunpack.c.l.b16 %v910
    %v2966 = vunpack.c.l.b16 %v911
    %v2967 = vunpack.c.l.b16 %v912
    %v2968 = vunpack.c.l.b16 %v913
    %v2969 = vunpack.c.l.b16 %v914
    %v2970 = vunpack.c.l.b16 %v915
    %v2971 = vunpack.c.l.b16 %v916
    %v2972 = vunpack.c.l.b16 %v917
    %v2973 = vunpack.c.l.b16 %v918
    %v2974 = vunpack.c.l.b16 %v919
    %v2975 = vunpack.c.l.b16 %v920
    %v2976 = vunpack.c.l.b16 %v921
    %v2977 = vunpack.c.l.b16 %v922
    %v2978 = vunpack.c.l.b16 %v923
    %v2979 = vunpack.c.l.b16 %v924
    %v2980 = vunpack.c.l.b16 %v925
    %v2981 = vunpack.c.l.b16 %v926
    %v2982 = vunpack.c.l.b16 %v927
    %v2983 = vunpack.c.l.b16 %v928
    %v2984 = vunpack.c.l.b16 %v929
    %v2985 = vunpack.c.l.b16 %v930
    %v2986 = vunpack.c.l.b16 %v931
    %v2987 = vunpack.c.l.b16 %v932
    %v2988 = vunpack.c.l.b16 %v933
    %v2989 = vunpack.c.l.b16 %v934
    %v2990 = vunpack.c.l.b16 %v935
    %v2991 = vunpack.c.l.b16 %v936
    %v2992 = vunpack.c.l.b16 %v937
    %v2993 = vunpack.c.l.b16 %v938
    %v2994 = vunpack.c.l.b16 %v939
    %v2995 = vunpack.c.l.b16 %v940
    %v2996 = vunpack.c.l.b16 %v941
    %v2997 = vunpack.c.l.b16 %v942
    %v2998 = vunpack.c.l.b16 %v943
    %v2999 = vunpack.c.l.b16 %v944
    %v3000 = vunpack.c.l.b16 %v945
    %v3001 = vunpack.c.l.b16 %v946
    %v3002 = vunpack.c.l.b16 %v947
    %v3003 = vunpack.c.l.b16 %v948
    %v3004 = vunpack.c.l.b16 %v949
    %v3005 = vunpack.c.l.b16 %v950
    %v3006 = vunpack.c.l.b16 %v951
    %v3007 = vunpack.c.l.b16 %v952
    %v3008 = vunpack.c.l.b16 %v953
    %v3009 = vunpack.c.l.b16 %v954
    %v3010 = vunpack.c.l.b16 %v955
    %v3011 = vunpack.c.l.b16 %v956
    %v3012 = vunpack.c.l.b16 %v957
    %v3013 = vunpack.c.l.b16 %v958
    %v3014 = vunpack.c.l.b16 %v959
    %v3015 = vunpack.c.l.b16 %v960
    %v3016 = vunpack.c.l.b16 %v961
    %v3017 = vunpack.c.l.b16 %v962
    %v3018 = vunpack.c.l.b16 %v963
    %v3019 = vunpack.c.l.b16 %v964
    %v3020 = vunpack.c.l.b16 %v965
    %v3021 = vunpack.c.l.b16 %v966
    %v3022 = vunpack.c.l.b16 %v967
    %v3023 = vunpack.c.l.b16 %v968
    %v3024 = vunpack.c.l.b16 %v969
    %v3025 = vunpack.c.l.b16 %v970
    %v3026 = vunpack.c.l.b16 %v971
    %v3027 = vunpack.c.l.b16 %v972
    %v3028 = vunpack.c.l.b16 %v973
    %v3029 = vunpack.c.l.b16 %v974
    %v3030 = vunpack.c.l.b16 %v975
    %v3031 = vunpack.c.l.b16 %v976
    %v3032 = vunpack.c.l.b16 %v977
    %v3033 = vunpack.c.l.b16 %v978
    %v3034 = vunpack.c.l.b16 %v979
    %v3035 = vunpack.c.l.b16 %v980
    %v3036 = vunpack.c.l.b16 %v981
    %v3037 = vunpack.c.l.b16 %v982
    %v3038 = vunpack.c.l.b16 %v983
    %v3039 = vunpack.c.l.b16 %v984
    %v3040 = vunpack.c.l.b16 %v985
    %v3041 = vunpack.c.l.b16 %v986
    %v3042 = vunpack.c.l.b16 %v987
    %v3043 = vunpack.c.l.b16 %v988
    %v3044 = vunpack.c.l.b16 %v989
    %v3045 = vunpack.c.l.b16 %v990
    %v3046 = vunpack.c.l.b16 %v991
    %v3047 = vunpack.c.l.b16 %v992
    %v3048 = vunpack.c.l.b16 %v993
    %v3049 = vunpack.c.l.b16 %v994
    %v3050 = vunpack.c.l.b16 %v995
    %v3051 = vunpack.c.l.b16 %v996
    %v3052 = vunpack.c.l.b16 %v997
    %v3053 = vunpack.c.l.b16 %v998
    %v3054 = vunpack.c.l.b16 %v999
    %v3055 = vunpack.c.l.b16 %v1000
    %v3056 = vunpack.c.l.b16 %v1001
    %v3057 = vunpack.c.l.b16 %v1002
    %v3058 = vunpack.c.l.b16 %v1003
    %v3059 = vunpack.c.l.b16 %v1004
    %v3060 = vunpack.c.l.b16 %v1005
    %v3061 = vunpack.c.l.b16 %v1006
    %v3062 = vunpack.c.l.b16 %v1007
    %v3063 = vunpack.c.l.b16 %v1008
    %v3064 = vunpack.c.l.b16 %v1009
    %v3065 = vunpack.c.l.b16 %v1010
    %v3066 = vunpack.c.l.b16 %v1011
    %v3067 = vunpack.c.l.b16 %v1012
    %v3068 = vunpack.c.l.b16 %v1013
    %v3069 = vunpack.c.l.b16 %v1014
    %v3070 = vunpack.c.l.b16 %v1015
    %v3071 = vunpack.c.l.b16 %v1016
    %v3072 = vunpack.c.l.b16 %v1017
    %v3073 = vunpack.c.l.b16 %v1018
    %v3074 = vunpack.c.l.b16 %v1019
    %v3075 = vunpack.c.l.b16 %v1020
    %v3076 = vunpack.c.l.b16 %v1021
    %v3077 = vunpack.c.l.b16 %v1022
    %v3078 = vunpack.c.l.b16 %v1023
    %v3079 = vunpack.c.l.b16 %v1024
    %v3080 = vunpack.c.l.b16 %v1025
    %v3081 = vunpack.c.l.b16 %v1026
    %v3082 = vunpack.c.l.b16 %v1027
    %v3083 = vunpack.c.l.b16 %v1028
    %v3084 = vunpack.c.l.b16 %v1029
    %v3085 = vunpack.c.l.b16 %v1030
    %v3086 = vunpack.c.l.b16 %v1031
    %v3087 = vunpack.c.l.b16 %v1032
    %v3088 = vunpack.c.l.b16 %v1033
    %v3089 = vunpack.c.l.b16 %v1034
    %v3090 = vunpack.c.l.b16 %v1035
    %v3091 = vunpack.c.l.b16 %v1036
    %v3092 = vunpack.c.l.b16 %v1037
    %v3093 = vunpack.c.l.b16 %v1038
    %v3094 = vunpack.c.l.b16 %v1039
    %v3095 = vunpack.c.l.b16 %v1040
    %v3096 = vunpack.c.l.b16 %v1041
    %v3097 = vunpack.c.l.b16 %v1042
    %v3098 = vunpack.c.l.b16 %v1043
    %v3099 = vunpack.c.l.b16 %v1044
    %v3100 = vunpack.c.l.b16 %v1045
    %v3101 = vunpack.c.l.b16 %v1046
    %v3102 = vunpack.c.l.b16 %v1047
    %v3103 = vunpack.c.l.b16 %v1048
    %v3104 = vunpack.c.l.b16 %v1049
    %v3105 = vunpack.c.l.b16 %v1050
    %v3106 = vunpack.c.l.b16 %v1051
    %v3107 = vunpack.c.l.b16 %v1052
    %v3108 = vunpack.c.l.b16 %v1053
    %v3109 = vunpack.c.l.b16 %v1054
    %v3110 = vunpack.c.l.b16 %v1055
    %v3111 = vunpack.c.l.b16 %v1056
    %v3112 = vunpack.c.l.b16 %v1057
    %v3113 = vunpack.c.l.b16 %v1058
    %v3114 = vunpack.c.l.b16 %v1059
    %v3115 = vunpack.c.l.b16 %v1060
    %v3116 = vunpack.c.l.b16 %v1061
    %v3117 = vunpack.c.l.b16 %v1062
    %v3118 = vunpack.c.l.b16 %v1063
    %v3119 = vunpack.c.l.b16 %v1064
    %v3120 = vunpack.c.l.b16 %v1065
    %v3121 = vunpack.c.l.b16 %v1066
    %v3122 = vunpack.c.l.b16 %v1067
    %v3123 = vunpack.c.l.b16 %v1068
    %v3124 = vunpack.c.l.b16 %v1069
    %v3125 = vunpack.c.l.b16 %v1070
    %v3126 = vunpack.c.l.b16 %v1071
    %v3127 = vunpack.c.l.b16 %v1072
    %v3128 = vunpack.c.l.b16 %v1073
    %v3129 = vunpack.c.l.b16 %v1074
    %v3130 = vunpack.c.l.b16 %v1075
    %v3131 = vunpack.c.l.b16 %v1076
    %v3132 = vunpack.c.l.b16 %v1077
    %v3133 = vunpack.c.l.b16 %v1078
    %v3134 = vunpack.c.l.b16 %v1079
    %v3135 = vunpack.c.l.b16 %v1080
    %v3136 = vunpack.c.l.b16 %v1081
    %v3137 = vunpack.c.l.b16 %v1082
    %v3138 = vunpack.c.l.b16 %v1083
    %v3139 = vunpack.c.l.b16 %v1084
    %v3140 = vunpack.c.l.b16 %v1085
    %v3141 = vunpack.c.l.b16 %v1086
    %v3142 = vunpack.c.l.b16 %v1087
    %v3143 = vunpack.c.l.b16 %v1088
    %v3144 = vunpack.c.l.b16 %v1089
    %v3145 = vunpack.c.l.b16 %v1090
    %v3146 = vunpack.c.l.b16 %v1091
    %v3147 = vunpack.c.l.b16 %v1092
    %v3148 = vunpack.c.l.b16 %v1093
    %v3149 = vunpack.c.l.b16 %v1094
    %v3150 = vunpack.c.l.b16 %v1095
    %v3151 = vunpack.c.l.b16 %v1096
    %v3152 = vunpack.c.l.b16 %v1097
    %v3153 = vunpack.c.l.b16 %v1098
    %v3154 = vunpack.c.l.b16 %v1099
    %v3155 = vunpack.c.l.b16 %v1100
    %v3156 = vunpack.c.l.b16 %v1101
    %v3157 = vunpack.c.l.b16 %v1102
    %v3158 = vunpack.c.l.b16 %v1103
    %v3159 = vunpack.c.l.b16 %v1104
    %v3160 = vunpack.c.l.b16 %v1105
    %v3161 = vunpack.c.l.b16 %v1106
    %v3162 = vunpack.c.l.b16 %v1107
    %v3163 = vunpack.c.l.b16 %v1108
    %v3164 = vunpack.c.l.b16 %v1109
    %v3165 = vunpack.c.l.b16 %v1110
    %v3166 = vunpack.c.l.b16 %v1111
    %v3167 = vunpack.c.l.b16 %v1112
    %v3168 = vunpack.c.l.b16 %v1113
    %v3169 = vunpack.c.l.b16 %v1114
    %v3170 = vunpack.c.l.b16 %v1115
    %v3171 = vunpack.c.l.b16 %v1116
    %v3172 = vunpack.c.l.b16 %v1117
    %v3173 = vunpack.c.l.b16 %v1118
    %v3174 = vunpack.c.l.b16 %v1119
    %v3175 = vunpack.c.l.b16 %v1120
    %v3176 = vunpack.c.l.b16 %v1121
    %v3177 = vunpack.c.l.b16 %v1122
    %v3178 = vunpack.c.l.b16 %v1123
    %v3179 = vunpack.c.l.b16 %v1124
    %v3180 = vunpack.c.l.b16 %v1125
    %v3181 = vunpack.c.l.b16 %v1126
    %v3182 = vunpack.c.l.b16 %v1127
    %v3183 = vunpack.c.l.b16 %v1128
    %v3184 = vunpack.c.l.b16 %v1129
    %v3185 = vunpack.c.l.b16 %v1130
    %v3186 = vunpack.c.l.b16 %v1131
    %v3187 = vunpack.c.l.b16 %v1132
    %v3188 = vunpack.c.l.b16 %v1133
    %v3189 = vunpack.c.l.b16 %v1134
    %v3190 = vunpack.c.l.b16 %v1135
    %v3191 = vunpack.c.l.b16 %v1136
    %v3192 = vunpack.c.l.b16 %v1137
    %v3193 = vunpack.c.l.b16 %v1138
    %v3194 = vunpack.c.l.b16 %v1139
    %v3195 = vunpack.c.l.b16 %v1140
    %v3196 = vunpack.c.l.b16 %v1141
    %v3197 = vunpack.c.l.b16 %v1142
    %v3198 = vunpack.c.l.b16 %v1143
    %v3199 = vunpack.c.l.b16 %v1144
    %v3200 = vunpack.c.l.b16 %v1145
    %v3201 = vunpack.c.l.b16 %v1146
    %v3202 = vunpack.c.l.b16 %v1147
    %v3203 = vunpack.c.l.b16 %v1148
    %v3204 = vunpack.c.l.b16 %v1149
    %v3205 = vunpack.c.l.b16 %v1150
    %v3206 = vunpack.c.l.b16 %v1151
    %v3207 = vunpack.c.l.b16 %v1152
    %v3208 = vunpack.c.l.b16 %v1153
    %v3209 = vunpack.c.l.b16 %v1154
    %v3210 = vunpack.c.l.b16 %v1155
    %v3211 = vunpack.c.l.b16 %v1156
    %v3212 = vunpack.c.l.b16 %v1157
    %v3213 = vunpack.c.l.b16 %v1158
    %v3214 = vunpack.c.l.b16 %v1159
    %v3215 = vunpack.c.l.b16 %v1160
    %v3216 = vunpack.c.l.b16 %v1161
    %v3217 = vunpack.c.l.b16 %v1162
    %v3218 = vunpack.c.l.b16 %v1163
    %v3219 = vunpack.c.l.b16 %v1164
    %v3220 = vunpack.c.l.b16 %v1165
    %v3221 = vunpack.c.l.b16 %v1166
    %v3222 = vunpack.c.l.b16 %v1167
    %v3223 = vunpack.c.l.b16 %v1168
    %v3224 = vunpack.c.l.b16 %v1169
    %v3225 = vunpack.c.l.b16 %v1170
    %v3226 = vunpack.c.l.b16 %v1171
    %v3227 = vunpack.c.l.b16 %v1172
    %v3228 = vunpack.c.l.b16 %v1173
    %v3229 = vunpack.c.l.b16 %v1174
    %v3230 = vunpack.c.l.b16 %v1175
    %v3231 = vunpack.c.l.b16 %v1176
    %v3232 = vunpack.c.l.b16 %v1177
    %v3233 = vunpack.c.l.b16 %v1178
    %v3234 = vunpack.c.l.b16 %v1179
    %v3235 = vunpack.c.l.b16 %v1180
    %v3236 = vunpack.c.l.b16 %v1181
    %v3237 = vunpack.c.l.b16 %v1182
    %v3238 = vunpack.c.l.b16 %v1183
    %v3239 = vunpack.c.l.b16 %v1184
    %v3240 = vunpack.c.l.b16 %v1185
    %v3241 = vunpack.c.l.b16 %v1186
    %v3242 = vunpack.c.l.b16 %v1187
    %v3243 = vunpack.c.l.b16 %v1188
    %v3244 = vunpack.c.l.b16 %v1189
    %v3245 = vunpack.c.l.b16 %v1190
    %v3246 = vunpack.c.l.b16 %v1191
    %v3247 = vunpack.c.l.b16 %v1192
    %v3248 = vunpack.c.l.b16 %v1193
    %v3249 = vunpack.c.l.b16 %v1194
    %v3250 = vunpack.c.l.b16 %v1195
    %v3251 = vunpack.c.l.b16 %v1196
    %v3252 = vunpack.c.l.b16 %v1197
    %v3253 = vunpack.c.l.b16 %v1198
    %v3254 = vunpack.c.l.b16 %v1199
    %v3255 = vunpack.c.l.b16 %v1200
    %v3256 = vunpack.c.l.b16 %v1201
    %v3257 = vunpack.c.l.b16 %v1202
    %v3258 = vunpack.c.l.b16 %v1203
    %v3259 = vunpack.c.l.b16 %v1204
    %v3260 = vunpack.c.l.b16 %v1205
    %v3261 = vunpack.c.l.b16 %v1206
    %v3262 = vunpack.c.l.b16 %v1207
    %v3263 = vunpack.c.l.b16 %v1208
    %v3264 = vunpack.c.l.b16 %v1209
    %v3265 = vunpack.c.l.b16 %v1210
    %v3266 = vunpack.c.l.b16 %v1211
    %v3267 = vunpack.c.l.b16 %v1212
    %v3268 = vunpack.c.l.b16 %v1213
    %v3269 = vunpack.c.l.b16 %v1214
    %v3270 = vunpack.c.l.b16 %v1215
    %v3271 = vunpack.c.l.b16 %v1216
    %v3272 = vunpack.c.l.b16 %v1217
    %v3273 = vunpack.c.l.b16 %v1218
    %v3274 = vunpack.c.l.b16 %v1219
    %v3275 = vunpack.c.l.b16 %v1220
    %v3276 = vunpack.c.l.b16 %v1221
    %v3277 = vunpack.c.l.b16 %v1222
    %v3278 = vunpack.c.l.b16 %v1223
    %v3279 = vunpack.c.l.b16 %v1224
    %v3280 = vunpack.c.l.b16 %v1225
    %v3281 = vunpack.c.l.b16 %v1226
    %v3282 = vunpack.c.l.b16 %v1227
    %v3283 = vunpack.c.l.b16 %v1228
    %v3284 = vunpack.c.l.b16 %v1229
    %v3285 = vunpack.c.l.b16 %v1230
    %v3286 = vunpack.c.l.b16 %v1231
    %v3287 = vunpack.c.l.b16 %v1232
    %v3288 = vunpack.c.l.b16 %v1233
    %v3289 = vunpack.c.l.b16 %v1234
    %v3290 = vunpack.c.l.b16 %v1235
    %v3291 = vunpack.c.l.b16 %v1236
    %v3292 = vunpack.c.l.b16 %v1237
    %v3293 = vunpack.c.l.b16 %v1238
    %v3294 = vunpack.c.l.b16 %v1239
    %v3295 = vunpack.c.l.b16 %v1240
    %v3296 = vunpack.c.l.b16 %v1241
    %v3297 = vunpack.c.l.b16 %v1242
    %v3298 = vunpack.c.l.b16 %v1243
    %v3299 = vunpack.c.l.b16 %v1244
    %v3300 = vunpack.c.l.b16 %v1245
    %v3301 = vunpack.c.l.b16 %v1246
    %v3302 = vunpack.c.l.b16 %v1247
    %v3303 = vunpack.c.l.b16 %v1248
    %v3304 = vunpack.c.l.b16 %v1249
    %v3305 = vunpack.c.l.b16 %v1250
    %v3306 = vunpack.c.l.b16 %v1251
    %v3307 = vunpack.c.l.b16 %v1252
    %v3308 = vunpack.c.l.b16 %v1253
    %v3309 = vunpack.c.l.b16 %v1254
    %v3310 = vunpack.c.l.b16 %v1255
    %v3311 = vunpack.c.l.b16 %v1256
    %v3312 = vunpack.c.l.b16 %v1257
    %v3313 = vunpack.c.l.b16 %v1258
    %v3314 = vunpack.c.l.b16 %v1259
    %v3315 = vunpack.c.l.b16 %v1260
    %v3316 = vunpack.c.l.b16 %v1261
    %v3317 = vunpack.c.l.b16 %v1262
    %v3318 = vunpack.c.l.b16 %v1263
    %v3319 = vunpack.c.l.b16 %v1264
    %v3320 = vunpack.c.l.b16 %v1265
    %v3321 = vunpack.c.l.b16 %v1266
    %v3322 = vunpack.c.l.b16 %v1267
    %v3323 = vunpack.c.l.b16 %v1268
    %v3324 = vunpack.c.l.b16 %v1269
    %v3325 = vunpack.c.l.b16 %v1270
    %v3326 = vunpack.c.l.b16 %v1271
    %v3327 = vunpack.c.l.b16 %v1272
    %v3328 = vunpack.c.l.b16 %v1273
    %v3329 = vunpack.c.l.b16 %v1274
    %v3330 = vunpack.c.l.b16 %v1275
    %v3331 = vunpack.c.l.b16 %v1276
    %v3332 = vunpack.c.l.b16 %v1277
    %v3333 = vunpack.c.l.b16 %v1278
    %v3334 = vunpack.c.l.b16 %v1279
    %v3335 = vunpack.c.l.b16 %v1280
    %v3336 = vunpack.c.l.b16 %v1281
    %v3337 = vunpack.c.l.b16 %v1282
    %v3338 = vunpack.c.l.b16 %v1283
    %v3339 = vunpack.c.l.b16 %v1284
    %v3340 = vunpack.c.l.b16 %v1285
    %v3341 = vunpack.c.l.b16 %v1286
    %v3342 = vunpack.c.l.b16 %v1287
    %v3343 = vunpack.c.l.b16 %v1288
    %v3344 = vunpack.c.l.b16 %v1289
    %v3345 = vunpack.c.l.b16 %v1290
    %v3346 = vunpack.c.l.b16 %v1291
    %v3347 = vunpack.c.l.b16 %v1292
    %v3348 = vunpack.c.l.b16 %v1293
    %v3349 = vunpack.c.l.b16 %v1294
    %v3350 = vunpack.c.l.b16 %v1295
    %v3351 = vunpack.c.l.b16 %v1296
    %v3352 = vunpack.c.l.b16 %v1297
    %v3353 = vunpack.c.l.b16 %v1298
    %v3354 = vunpack.c.l.b16 %v1299
    %v3355 = vunpack.c.l.b16 %v1300
    %v3356 = vunpack.c.l.b16 %v1301
    %v3357 = vunpack.c.l.b16 %v1302
    %v3358 = vunpack.c.l.b16 %v1303
    %v3359 = vunpack.c.l.b16 %v1304
    %v3360 = vunpack.c.l.b16 %v1305
    %v3361 = vunpack.c.l.b16 %v1306
    %v3362 = vunpack.c.l.b16 %v1307
    %v3363 = vunpack.c.l.b16 %v1308
    %v3364 = vunpack.c.l.b16 %v1309
    %v3365 = vunpack.c.l.b16 %v1310
    %v3366 = vunpack.c.l.b16 %v1311
    %v3367 = vunpack.c.l.b16 %v1312
    %v3368 = vunpack.c.l.b16 %v1313
    %v3369 = vunpack.c.l.b16 %v1314
    %v3370 = vunpack.c.l.b16 %v1315
    %v3371 = vunpack.c.l.b16 %v1316
    %v3372 = vunpack.c.l.b16 %v1317
    %v3373 = vunpack.c.l.b16 %v1318
    %v3374 = vunpack.c.l.b16 %v1319
    %v3375 = vunpack.c.l.b16 %v1320
    %v3376 = vunpack.c.l.b16 %v1321
    %v3377 = vunpack.c.l.b16 %v1322
    %v3378 = vunpack.c.l.b16 %v1323
    %v3379 = vunpack.c.l.b16 %v1324
    %v3380 = vunpack.c.l.b16 %v1325
    %v3381 = vunpack.c.l.b16 %v1326
    %v3382 = vunpack.c.l.b16 %v1327
    %v3383 = vunpack.c.l.b16 %v1328
    %v3384 = vunpack.c.l.b16 %v1329
    %v3385 = vunpack.c.l.b16 %v1330
    %v3386 = vunpack.c.l.b16 %v1331
    %v3387 = vunpack.c.l.b16 %v1332
    %v3388 = vunpack.c.l.b16 %v1333
    %v3389 = vunpack.c.l.b16 %v1334
    %v3390 = vunpack.c.l.b16 %v1335
    %v3391 = vunpack.c.l.b16 %v1336
    %v3392 = vunpack.c.l.b16 %v1337
    %v3393 = vunpack.c.l.b16 %v1338
    %v3394 = vunpack.c.l.b16 %v1339
    %v3395 = vunpack.c.l.b16 %v1340
    %v3396 = vunpack.c.l.b16 %v1341
    %v3397 = vunpack.c.l.b16 %v1342
    %v3398 = vunpack.c.l.b16 %v1343
    %v3399 = vunpack.c.l.b16 %v1344
    %v3400 = vunpack.c.l.b16 %v1345
    %v3401 = vunpack.c.l.b16 %v1346
    %v3402 = vunpack.c.l.b16 %v1347
    %v3403 = vunpack.c.l.b16 %v1348
    %v3404 = vunpack.c.l.b16 %v1349
    %v3405 = vunpack.c.l.b16 %v1350
    %v3406 = vunpack.c.l.b16 %v1351
    %v3407 = vunpack.c.l.b16 %v1352
    %v3408 = vunpack.c.l.b16 %v1353
    %v3409 = vunpack.c.l.b16 %v1354
    %v3410 = vunpack.c.l.b16 %v1355
    %v3411 = vunpack.c.l.b16 %v1356
    %v3412 = vunpack.c.l.b16 %v1357
    %v3413 = vunpack.c.l.b16 %v1358
    %v3414 = vunpack.c.l.b16 %v1359
    %v3415 = vunpack.c.l.b16 %v1360
    %v3416 = vunpack.c.l.b16 %v1361
    %v3417 = vunpack.c.l.b16 %v1362
    %v3418 = vunpack.c.l.b16 %v1363
    %v3419 = vunpack.c.l.b16 %v1364
    %v3420 = vunpack.c.l.b16 %v1365
    %v3421 = vunpack.c.l.b16 %v1366
    %v3422 = vunpack.c.l.b16 %v1367
    %v3423 = vunpack.c.l.b16 %v1368
    %v3424 = vunpack.c.l.b16 %v1369
    %v3425 = vunpack.c.l.b16 %v1370
    %v3426 = vunpack.c.l.b16 %v1371
    %v3427 = vunpack.c.l.b16 %v1372
    %v3428 = vunpack.c.l.b16 %v1373
    %v3429 = vunpack.c.l.b16 %v1374
    %v3430 = vunpack.c.l.b16 %v1375
    %v3431 = vunpack.c.l.b16 %v1376
    %v3432 = vunpack.c.l.b16 %v1377
    %v3433 = vunpack.c.l.b16 %v1378
    %v3434 = vunpack.c.l.b16 %v1379
    %v3435 = vunpack.c.l.b16 %v1380
    %v3436 = vunpack.c.l.b16 %v1381
    %v3437 = vunpack.c.l.b16 %v1382
    %v3438 = vunpack.c.l.b16 %v1383
    %v3439 = vunpack.c.l.b16 %v1384
    %v3440 = vunpack.c.l.b16 %v1385
    %v3441 = vunpack.c.l.b16 %v1386
    %v3442 = vunpack.c.l.b16 %v1387
    %v3443 = vunpack.c.l.b16 %v1388
    %v3444 = vunpack.c.l.b16 %v1389
    %v3445 = vunpack.c.l.b16 %v1390
    %v3446 = vunpack.c.l.b16 %v1391
    %v3447 = vunpack.c.l.b16 %v1392
    %v3448 = vunpack.c.l.b16 %v1393
    %v3449 = vunpack.c.l.b16 %v1394
    %v3450 = vunpack.c.l.b16 %v1395
    %v3451 = vunpack.c.l.b16 %v1396
    %v3452 = vunpack.c.l.b16 %v1397
    %v3453 = vunpack.c.l.b16 %v1398
    %v3454 = vunpack.c.l.b16 %v1399
    %v3455 = vunpack.c.l.b16 %v1400
    %v3456 = vunpack.c.l.b16 %v1401
    %v3457 = vunpack.c.l.b16 %v1402
    %v3458 = vunpack.c.l.b16 %v1403
    %v3459 = vunpack.c.l.b16 %v1404
    %v3460 = vunpack.c.l.b16 %v1405
    %v3461 = vunpack.c.l.b16 %v1406
    %v3462 = vunpack.c.l.b16 %v1407
    %v3463 = vunpack.c.l.b16 %v1408
    %v3464 = vunpack.c.l.b16 %v1409
    %v3465 = vunpack.c.l.b16 %v1410
    %v3466 = vunpack.c.l.b16 %v1411
    %v3467 = vunpack.c.l.b16 %v1412
    %v3468 = vunpack.c.l.b16 %v1413
    %v3469 = vunpack.c.l.b16 %v1414
    %v3470 = vunpack.c.l.b16 %v1415
    %v3471 = vunpack.c.l.b16 %v1416
    %v3472 = vunpack.c.l.b16 %v1417
    %v3473 = vunpack.c.l.b16 %v1418
    %v3474 = vunpack.c.l.b16 %v1419
    %v3475 = vunpack.c.l.b16 %v1420
    %v3476 = vunpack.c.l.b16 %v1421
    %v3477 = vunpack.c.l.b16 %v1422
    %v3478 = vunpack.c.l.b16 %v1423
    %v3479 = vunpack.c.l.b16 %v1424
    %v3480 = vunpack.c.l.b16 %v1425
    %v3481 = vunpack.c.l.b16 %v1426
    %v3482 = vunpack.c.l.b16 %v1427
    %v3483 = vunpack.c.l.b16 %v1428
    %v3484 = vunpack.c.l.b16 %v1429
    %v3485 = vunpack.c.l.b16 %v1430
    %v3486 = vunpack.c.l.b16 %v1431
    %v3487 = vunpack.c.l.b16 %v1432
    %v3488 = vunpack.c.l.b16 %v1433
    %v3489 = vunpack.c.l.b16 %v1434
    %v3490 = vunpack.c.l.b16 %v1435
    %v3491 = vunpack.c.l.b16 %v1436
    %v3492 = vunpack.c.l.b16 %v1437
    %v3493 = vunpack.c.l.b16 %v1438
    %v3494 = vunpack.c.l.b16 %v1439
    %v3495 = vunpack.c.l.b16 %v1440
    %v3496 = vunpack.c.l.b16 %v1441
    %v3497 = vunpack.c.l.b16 %v1442
    %v3498 = vunpack.c.l.b16 %v1443
    %v3499 = vunpack.c.l.b16 %v1444
    %v3500 = vunpack.c.l.b16 %v1445
    %v3501 = vunpack.c.l.b16 %v1446
    %v3502 = vunpack.c.l.b16 %v1447
    %v3503 = vunpack.c.l.b16 %v1448
    %v3504 = vunpack.c.l.b16 %v1449
    %v3505 = vunpack.c.l.b16 %v1450
    %v3506 = vunpack.c.l.b16 %v1451
    %v3507 = vunpack.c.l.b16 %v1452
    %v3508 = vunpack.c.l.b16 %v1453
    %v3509 = vunpack.c.l.b16 %v1454
    %v3510 = vunpack.c.l.b16 %v1455
    %v3511 = vunpack.c.l.b16 %v1456
    %v3512 = vunpack.c.l.b16 %v1457
    %v3513 = vunpack.c.l.b16 %v1458
    %v3514 = vunpack.c.l.b16 %v1459
    %v3515 = vunpack.c.l.b16 %v1460
    %v3516 = vunpack.c.l.b16 %v1461
    %v3517 = vunpack.c.l.b16 %v1462
    %v3518 = vunpack.c.l.b16 %v1463
    %v3519 = vunpack.c.l.b16 %v1464
    %v3520 = vunpack.c.l.b16 %v1465
    %v3521 = vunpack.c.l.b16 %v1466
    %v3522 = vunpack.c.l.b16 %v1467
    %v3523 = vunpack.c.l.b16 %v1468
    %v3524 = vunpack.c.l.b16 %v1469
    %v3525 = vunpack.c.l.b16 %v1470
    %v3526 = vunpack.c.l.b16 %v1471
    %v3527 = vunpack.c.l.b16 %v1472
    %v3528 = vunpack.c.l.b16 %v1473
    %v3529 = vunpack.c.l.b16 %v1474
    %v3530 = vunpack.c.l.b16 %v1475
    %v3531 = vunpack.c.l.b16 %v1476
    %v3532 = vunpack.c.l.b16 %v1477
    %v3533 = vpack.c.b16 %v2510, %v2509
    %v3534 = vpack.c.b16 %v2512, %v2511
    %v3535 = vpack.c.b16 %v2514, %v2513
    %v3536 = vpack.c.b16 %v2516, %v2515
    %v3537 = vpack.c.b16 %v2518, %v2517
    %v3538 = vpack.c.b16 %v2520, %v2519
    %v3539 = vpack.c.b16 %v2522, %v2521
    %v3540 = vpack.c.b16 %v2524, %v2523
    %v3541 = vpack.c.b16 %v2526, %v2525
    %v3542 = vpack.c.b16 %v2528, %v2527
    %v3543 = vpack.c.b16 %v2530, %v2529
    %v3544 = vpack.c.b16 %v2532, %v2531
    %v3545 = vpack.c.b16 %v2534, %v2533
    %v3546 = vpack.c.b16 %v2536, %v2535
    %v3547 = vpack.c.b16 %v2538, %v2537
    %v3548 = vpack.c.b16 %v2540, %v2539
    %v3549 = vpack.c.b16 %v2542, %v2541
    %v3550 = vpack.c.b16 %v2544, %v2543
    %v3551 = vpack.c.b16 %v2546, %v2545
    %v3552 = vpack.c.b16 %v2548, %v2547
    %v3553 = vpack.c.b16 %v2550, %v2549
    %v3554 = vpack.c.b16 %v2552, %v2551
    %v3555 = vpack.c.b16 %v2554, %v2553
    %v3556 = vpack.c.b16 %v2556, %v2555
    %v3557 = vpack.c.b16 %v2558, %v2557
    %v3558 = vpack.c.b16 %v2560, %v2559
    %v3559 = vpack.c.b16 %v2562, %v2561
    %v3560 = vpack.c.b16 %v2564, %v2563
    %v3561 = vpack.c.b16 %v2566, %v2565
    %v3562 = vpack.c.b16 %v2568, %v2567
    %v3563 = vpack.c.b16 %v2570, %v2569
    %v3564 = vpack.c.b16 %v2572, %v2571
    %v3565 = vpack.c.b16 %v2574, %v2573
    %v3566 = vpack.c.b16 %v2576, %v2575
    %v3567 = vpack.c.b16 %v2578, %v2577
    %v3568 = vpack.c.b16 %v2580, %v2579
    %v3569 = vpack.c.b16 %v2582, %v2581
    %v3570 = vpack.c.b16 %v2584, %v2583
    %v3571 = vpack.c.b16 %v2586, %v2585
    %v3572 = vpack.c.b16 %v2588, %v2587
    %v3573 = vpack.c.b16 %v2590, %v2589
    %v3574 = vpack.c.b16 %v2592, %v2591
    %v3575 = vpack.c.b16 %v2594, %v2593
    %v3576 = vpack.c.b16 %v2596, %v2595
    %v3577 = vpack.c.b16 %v2598, %v2597
    %v3578 = vpack.c.b16 %v2600, %v2599
    %v3579 = vpack.c.b16 %v2602, %v2601
    %v3580 = vpack.c.b16 %v2604, %v2603
    %v3581 = vpack.c.b16 %v2606, %v2605
    %v3582 = vpack.c.b16 %v2608, %v2607
    %v3583 = vpack.c.b16 %v2610, %v2609
    %v3584 = vpack.c.b16 %v2612, %v2611
    %v3585 = vpack.c.b16 %v2614, %v2613
    %v3586 = vpack.c.b16 %v2616, %v2615
    %v3587 = vpack.c.b16 %v2618, %v2617
    %v3588 = vpack.c.b16 %v2620, %v2619
    %v3589 = vpack.c.b16 %v2622, %v2621
    %v3590 = vpack.c.b16 %v2624, %v2623
    %v3591 = vpack.c.b16 %v2626, %v2625
    %v3592 = vpack.c.b16 %v2628, %v2627
    %v3593 = vpack.c.b16 %v2630, %v2629
    %v3594 = vpack.c.b16 %v2632, %v2631
    %v3595 = vpack.c.b16 %v2634, %v2633
    %v3596 = vpack.c.b16 %v2636, %v2635
    %v3597 = vpack.c.b16 %v2638, %v2637
    %v3598 = vpack.c.b16 %v2640, %v2639
    %v3599 = vpack.c.b16 %v2642, %v2641
    %v3600 = vpack.c.b16 %v2644, %v2643
    %v3601 = vpack.c.b16 %v2646, %v2645
    %v3602 = vpack.c.b16 %v2648, %v2647
    %v3603 = vpack.c.b16 %v2650, %v2649
    %v3604 = vpack.c.b16 %v2652, %v2651
    %v3605 = vpack.c.b16 %v2654, %v2653
    %v3606 = vpack.c.b16 %v2656, %v2655
    %v3607 = vpack.c.b16 %v2658, %v2657
    %v3608 = vpack.c.b16 %v2660, %v2659
    %v3609 = vpack.c.b16 %v2662, %v2661
    %v3610 = vpack.c.b16 %v2664, %v2663
    %v3611 = vpack.c.b16 %v2666, %v2665
    %v3612 = vpack.c.b16 %v2668, %v2667
    %v3613 = vpack.c.b16 %v2670, %v2669
    %v3614 = vpack.c.b16 %v2672, %v2671
    %v3615 = vpack.c.b16 %v2674, %v2673
    %v3616 = vpack.c.b16 %v2676, %v2675
    %v3617 = vpack.c.b16 %v2678, %v2677
    %v3618 = vpack.c.b16 %v2680, %v2679
    %v3619 = vpack.c.b16 %v2682, %v2681
    %v3620 = vpack.c.b16 %v2684, %v2683
    %v3621 = vpack.c.b16 %v2686, %v2685
    %v3622 = vpack.c.b16 %v2688, %v2687
    %v3623 = vpack.c.b16 %v2690, %v2689
    %v3624 = vpack.c.b16 %v2692, %v2691
    %v3625 = vpack.c.b16 %v2694, %v2693
    %v3626 = vpack.c.b16 %v2696, %v2695
    %v3627 = vpack.c.b16 %v2698, %v2697
    %v3628 = vpack.c.b16 %v2700, %v2699
    %v3629 = vpack.c.b16 %v2702, %v2701
    %v3630 = vpack.c.b16 %v2704, %v2703
    %v3631 = vpack.c.b16 %v2706, %v2705
    %v3632 = vpack.c.b16 %v2708, %v2707
    %v3633 = vpack.c.b16 %v2710, %v2709
    %v3634 = vpack.c.b16 %v2712, %v2711
    %v3635 = vpack.c.b16 %v2714, %v2713
    %v3636 = vpack.c.b16 %v2716, %v2715
    %v3637 = vpack.c.b16 %v2718, %v2717
    %v3638 = vpack.c.b16 %v2720, %v2719
    %v3639 = vpack.c.b16 %v2722, %v2721
    %v3640 = vpack.c.b16 %v2724, %v2723
    %v3641 = vpack.c.b16 %v2726, %v2725
    %v3642 = vpack.c.b16 %v2728, %v2727
    %v3643 = vpack.c.b16 %v2730, %v2729
    %v3644 = vpack.c.b16 %v2732, %v2731
    %v3645 = vpack.c.b16 %v2734, %v2733
    %v3646 = vpack.c.b16 %v2736, %v2735
    %v3647 = vpack.c.b16 %v2738, %v2737
    %v3648 = vpack.c.b16 %v2740, %v2739
    %v3649 = vpack.c.b16 %v2742, %v2741
    %v3650 = vpack.c.b16 %v2744, %v2743
    %v3651 = vpack.c.b16 %v2746, %v2745
    %v3652 = vpack.c.b16 %v2748, %v2747
    %v3653 = vpack.c.b16 %v2750, %v2749
    %v3654 = vpack.c.b16 %v2752, %v2751
    %v3655 = vpack.c.b16 %v2754, %v2753
    %v3656 = vpack.c.b16 %v2756, %v2755
    %v3657 = vpack.c.b16 %v2758, %v2757
    %v3658 = vpack.c.b16 %v2760, %v2759
    %v3659 = vpack.c.b16 %v2762, %v2761
    %v3660 = vpack.c.b16 %v2764, %v2763
    %v3661 = vpack.c.b16 %v2766, %v2765
    %v3662 = vpack.c.b16 %v2768, %v2767
    %v3663 = vpack.c.b16 %v2770, %v2769
    %v3664 = vpack.c.b16 %v2772, %v2771
    %v3665 = vpack.c.b16 %v2774, %v2773
    %v3666 = vpack.c.b16 %v2776, %v2775
    %v3667 = vpack.c.b16 %v2778, %v2777
    %v3668 = vpack.c.b16 %v2780, %v2779
    %v3669 = vpack.c.b16 %v2782, %v2781
    %v3670 = vpack.c.b16 %v2784, %v2783
    %v3671 = vpack.c.b16 %v2786, %v2785
    %v3672 = vpack.c.b16 %v2788, %v2787
    %v3673 = vpack.c.b16 %v2790, %v2789
    %v3674 = vpack.c.b16 %v2792, %v2791
    %v3675 = vpack.c.b16 %v2794, %v2793
    %v3676 = vpack.c.b16 %v2796, %v2795
    %v3677 = vpack.c.b16 %v2798, %v2797
    %v3678 = vpack.c.b16 %v2800, %v2799
    %v3679 = vpack.c.b16 %v2802, %v2801
    %v3680 = vpack.c.b16 %v2804, %v2803
    %v3681 = vpack.c.b16 %v2806, %v2805
    %v3682 = vpack.c.b16 %v2808, %v2807
    %v3683 = vpack.c.b16 %v2810, %v2809
    %v3684 = vpack.c.b16 %v2812, %v2811
    %v3685 = vpack.c.b16 %v2814, %v2813
    %v3686 = vpack.c.b16 %v2816, %v2815
    %v3687 = vpack.c.b16 %v2818, %v2817
    %v3688 = vpack.c.b16 %v2820, %v2819
    %v3689 = vpack.c.b16 %v2822, %v2821
    %v3690 = vpack.c.b16 %v2824, %v2823
    %v3691 = vpack.c.b16 %v2826, %v2825
    %v3692 = vpack.c.b16 %v2828, %v2827
    %v3693 = vpack.c.b16 %v2830, %v2829
    %v3694 = vpack.c.b16 %v2832, %v2831
    %v3695 = vpack.c.b16 %v2834, %v2833
    %v3696 = vpack.c.b16 %v2836, %v2835
    %v3697 = vpack.c.b16 %v2838, %v2837
    %v3698 = vpack.c.b16 %v2840, %v2839
    %v3699 = vpack.c.b16 %v2842, %v2841
    %v3700 = vpack.c.b16 %v2844, %v2843
    %v3701 = vpack.c.b16 %v2846, %v2845
    %v3702 = vpack.c.b16 %v2848, %v2847
    %v3703 = vpack.c.b16 %v2850, %v2849
    %v3704 = vpack.c.b16 %v2852, %v2851
    %v3705 = vpack.c.b16 %v2854, %v2853
    %v3706 = vpack.c.b16 %v2856, %v2855
    %v3707 = vpack.c.b16 %v2858, %v2857
    %v3708 = vpack.c.b16 %v2860, %v2859
    %v3709 = vpack.c.b16 %v2862, %v2861
    %v3710 = vpack.c.b16 %v2864, %v2863
    %v3711 = vpack.c.b16 %v2866, %v2865
    %v3712 = vpack.c.b16 %v2868, %v2867
    %v3713 = vpack.c.b16 %v2870, %v2869
    %v3714 = vpack.c.b16 %v2872, %v2871
    %v3715 = vpack.c.b16 %v2874, %v2873
    %v3716 = vpack.c.b16 %v2876, %v2875
    %v3717 = vpack.c.b16 %v2878, %v2877
    %v3718 = vpack.c.b16 %v2880, %v2879
    %v3719 = vpack.c.b16 %v2882, %v2881
    %v3720 = vpack.c.b16 %v2884, %v2883
    %v3721 = vpack.c.b16 %v2886, %v2885
    %v3722 = vpack.c.b16 %v2888, %v2887
    %v3723 = vpack.c.b16 %v2890, %v2889
    %v3724 = vpack.c.b16 %v2892, %v2891
    %v3725 = vpack.c.b16 %v2894, %v2893
    %v3726 = vpack.c.b16 %v2896, %v2895
    %v3727 = vpack.c.b16 %v2898, %v2897
    %v3728 = vpack.c.b16 %v2900, %v2899
    %v3729 = vpack.c.b16 %v2902, %v2901
    %v3730 = vpack.c.b16 %v2904, %v2903
    %v3731 = vpack.c.b16 %v2906, %v2905
    %v3732 = vpack.c.b16 %v2908, %v2907
    %v3733 = vpack.c.b16 %v2910, %v2909
    %v3734 = vpack.c.b16 %v2912, %v2911
    %v3735 = vpack.c.b16 %v2914, %v2913
    %v3736 = vpack.c.b16 %v2916, %v2915
    %v3737 = vpack.c.b16 %v2918, %v2917
    %v3738 = vpack.c.b16 %v2920, %v2919
    %v3739 = vpack.c.b16 %v2922, %v2921
    %v3740 = vpack.c.b16 %v2924, %v2923
    %v3741 = vpack.c.b16 %v2926, %v2925
    %v3742 = vpack.c.b16 %v2928, %v2927
    %v3743 = vpack.c.b16 %v2930, %v2929
    %v3744 = vpack.c.b16 %v2932, %v2931
    %v3745 = vpack.c.b16 %v2934, %v2933
    %v3746 = vpack.c.b16 %v2936, %v2935
    %v3747 = vpack.c.b16 %v2938, %v2937
    %v3748 = vpack.c.b16 %v2940, %v2939
    %v3749 = vpack.c.b16 %v2942, %v2941
    %v3750 = vpack.c.b16 %v2944, %v2943
    %v3751 = vpack.c.b16 %v2946, %v2945
    %v3752 = vpack.c.b16 %v2948, %v2947
    %v3753 = vpack.c.b16 %v2950, %v2949
    %v3754 = vpack.c.b16 %v2952, %v2951
    %v3755 = vpack.c.b16 %v2954, %v2953
    %v3756 = vpack.c.b16 %v2956, %v2955
    %v3757 = vpack.c.b16 %v2958, %v2957
    %v3758 = vpack.c.b16 %v2960, %v2959
    %v3759 = vpack.c.b16 %v2962, %v2961
    %v3760 = vpack.c.b16 %v2964, %v2963
    %v3761 = vpack.c.b16 %v2966, %v2965
    %v3762 = vpack.c.b16 %v2968, %v2967
    %v3763 = vpack.c.b16 %v2970, %v2969
    %v3764 = vpack.c.b16 %v2972, %v2971
    %v3765 = vpack.c.b16 %v2974, %v2973
    %v3766 = vpack.c.b16 %v2976, %v2975
    %v3767 = vpack.c.b16 %v2978, %v2977
    %v3768 = vpack.c.b16 %v2980, %v2979
    %v3769 = vpack.c.b16 %v2982, %v2981
    %v3770 = vpack.c.b16 %v2984, %v2983
    %v3771 = vpack.c.b16 %v2986, %v2985
    %v3772 = vpack.c.b16 %v2988, %v2987
    %v3773 = vpack.c.b16 %v2990, %v2989
    %v3774 = vpack.c.b16 %v2992, %v2991
    %v3775 = vpack.c.b16 %v2994, %v2993
    %v3776 = vpack.c.b16 %v2996, %v2995
    %v3777 = vpack.c.b16 %v2998, %v2997
    %v3778 = vpack.c.b16 %v3000, %v2999
    %v3779 = vpack.c.b16 %v3002, %v3001
    %v3780 = vpack.c.b16 %v3004, %v3003
    %v3781 = vpack.c.b16 %v3006, %v3005
    %v3782 = vpack.c.b16 %v3008, %v3007
    %v3783 = vpack.c.b16 %v3010, %v3009
    %v3784 = vpack.c.b16 %v3012, %v3011
    %v3785 = vpack.c.b16 %v3014, %v3013
    %v3786 = vpack.c.b16 %v3016, %v3015
    %v3787 = vpack.c.b16 %v3018, %v3017
    %v3788 = vpack.c.b16 %v3020, %v3019
    %v3789 = vpack.c.b16 %v3022, %v3021
    %v3790 = vpack.c.b16 %v3024, %v3023
    %v3791 = vpack.c.b16 %v3026, %v3025
    %v3792 = vpack.c.b16 %v3028, %v3027
    %v3793 = vpack.c.b16 %v3030, %v3029
    %v3794 = vpack.c.b16 %v3032, %v3031
    %v3795 = vpack.c.b16 %v3034, %v3033
    %v3796 = vpack.c.b16 %v3036, %v3035
    %v3797 = vpack.c.b16 %v3038, %v3037
    %v3798 = vpack.c.b16 %v3040, %v3039
    %v3799 = vpack.c.b16 %v3042, %v3041
    %v3800 = vpack.c.b16 %v3044, %v3043
    %v3801 = vpack.c.b16 %v3046, %v3045
    %v3802 = vpack.c.b16 %v3048, %v3047
    %v3803 = vpack.c.b16 %v3050, %v3049
    %v3804 = vpack.c.b16 %v3052, %v3051
    %v3805 = vpack.c.b16 %v3054, %v3053
    %v3806 = vpack.c.b16 %v3056, %v3055
    %v3807 = vpack.c.b16 %v3058, %v3057
    %v3808 = vpack.c.b16 %v3060, %v3059
    %v3809 = vpack.c.b16 %v3062, %v3061
    %v3810 = vpack.c.b16 %v3064, %v3063
    %v3811 = vpack.c.b16 %v3066, %v3065
    %v3812 = vpack.c.b16 %v3068, %v3067
    %v3813 = vpack.c.b16 %v3070, %v3069
    %v3814 = vpack.c.b16 %v3072, %v3071
    %v3815 = vpack.c.b16 %v3074, %v3073
    %v3816 = vpack.c.b16 %v3076, %v3075
    %v3817 = vpack.c.b16 %v3078, %v3077
    %v3818 = vpack.c.b16 %v3080, %v3079
    %v3819 = vpack.c.b16 %v3082, %v3081
    %v3820 = vpack.c.b16 %v3084, %v3083
    %v3821 = vpack.c.b16 %v3086, %v3085
    %v3822 = vpack.c.b16 %v3088, %v3087
    %v3823 = vpack.c.b16 %v3090, %v3089
    %v3824 = vpack.c.b16 %v3092, %v3091
    %v3825 = vpack.c.b16 %v3094, %v3093
    %v3826 = vpack.c.b16 %v3096, %v3095
    %v3827 = vpack.c.b16 %v3098, %v3097
    %v3828 = vpack.c.b16 %v3100, %v3099
    %v3829 = vpack.c.b16 %v3102, %v3101
    %v3830 = vpack.c.b16 %v3104, %v3103
    %v3831 = vpack.c.b16 %v3106, %v3105
    %v3832 = vpack.c.b16 %v3108, %v3107
    %v3833 = vpack.c.b16 %v3110, %v3109
    %v3834 = vpack.c.b16 %v3112, %v3111
    %v3835 = vpack.c.b16 %v3114, %v3113
    %v3836 = vpack.c.b16 %v3116, %v3115
    %v3837 = vpack.c.b16 %v3118, %v3117
    %v3838 = vpack.c.b16 %v3120, %v3119
    %v3839 = vpack.c.b16 %v3122, %v3121
    %v3840 = vpack.c.b16 %v3124, %v3123
    %v3841 = vpack.c.b16 %v3126, %v3125
    %v3842 = vpack.c.b16 %v3128, %v3127
    %v3843 = vpack.c.b16 %v3130, %v3129
    %v3844 = vpack.c.b16 %v3132, %v3131
    %v3845 = vpack.c.b16 %v3134, %v3133
    %v3846 = vpack.c.b16 %v3136, %v3135
    %v3847 = vpack.c.b16 %v3138, %v3137
    %v3848 = vpack.c.b16 %v3140, %v3139
    %v3849 = vpack.c.b16 %v3142, %v3141
    %v3850 = vpack.c.b16 %v3144, %v3143
    %v3851 = vpack.c.b16 %v3146, %v3145
    %v3852 = vpack.c.b16 %v3148, %v3147
    %v3853 = vpack.c.b16 %v3150, %v3149
    %v3854 = vpack.c.b16 %v3152, %v3151
    %v3855 = vpack.c.b16 %v3154, %v3153
    %v3856 = vpack.c.b16 %v3156, %v3155
    %v3857 = vpack.c.b16 %v3158, %v3157
    %v3858 = vpack.c.b16 %v3160, %v3159
    %v3859 = vpack.c.b16 %v3162, %v3161
    %v3860 = vpack.c.b16 %v3164, %v3163
    %v3861 = vpack.c.b16 %v3166, %v3165
    %v3862 = vpack.c.b16 %v3168, %v3167
    %v3863 = vpack.c.b16 %v3170, %v3169
    %v3864 = vpack.c.b16 %v3172, %v3171
    %v3865 = vpack.c.b16 %v3174, %v3173
    %v3866 = vpack.c.b16 %v3176, %v3175
    %v3867 = vpack.c.b16 %v3178, %v3177
    %v3868 = vpack.c.b16 %v3180, %v3179
    %v3869 = vpack.c.b16 %v3182, %v3181
    %v3870 = vpack.c.b16 %v3184, %v3183
    %v3871 = vpack.c.b16 %v3186, %v3185
    %v3872 = vpack.c.b16 %v3188, %v3187
    %v3873 = vpack.c.b16 %v3190, %v3189
    %v3874 = vpack.c.b16 %v3192, %v3191
    %v3875 = vpack.c.b16 %v3194, %v3193
    %v3876 = vpack.c.b16 %v3196, %v3195
    %v3877 = vpack.c.b16 %v3198, %v3197
    %v3878 = vpack.c.b16 %v3200, %v3199
    %v3879 = vpack.c.b16 %v3202, %v3201
    %v3880 = vpack.c.b16 %v3204, %v3203
    %v3881 = vpack.c.b16 %v3206, %v3205
    %v3882 = vpack.c.b16 %v3208, %v3207
    %v3883 = vpack.c.b16 %v3210, %v3209
    %v3884 = vpack.c.b16 %v3212, %v3211
    %v3885 = vpack.c.b16 %v3214, %v3213
    %v3886 = vpack.c.b16 %v3216, %v3215
    %v3887 = vpack.c.b16 %v3218, %v3217
    %v3888 = vpack.c.b16 %v3220, %v3219
    %v3889 = vpack.c.b16 %v3222, %v3221
    %v3890 = vpack.c.b16 %v3224, %v3223
    %v3891 = vpack.c.b16 %v3226, %v3225
    %v3892 = vpack.c.b16 %v3228, %v3227
    %v3893 = vpack.c.b16 %v3230, %v3229
    %v3894 = vpack.c.b16 %v3232, %v3231
    %v3895 = vpack.c.b16 %v3234, %v3233
    %v3896 = vpack.c.b16 %v3236, %v3235
    %v3897 = vpack.c.b16 %v3238, %v3237
    %v3898 = vpack.c.b16 %v3240, %v3239
    %v3899 = vpack.c.b16 %v3242, %v3241
    %v3900 = vpack.c.b16 %v3244, %v3243
    %v3901 = vpack.c.b16 %v3246, %v3245
    %v3902 = vpack.c.b16 %v3248, %v3247
    %v3903 = vpack.c.b16 %v3250, %v3249
    %v3904 = vpack.c.b16 %v3252, %v3251
    %v3905 = vpack.c.b16 %v3254, %v3253
    %v3906 = vpack.c.b16 %v3256, %v3255
    %v3907 = vpack.c.b16 %v3258, %v3257
    %v3908 = vpack.c.b16 %v3260, %v3259
    %v3909 = vpack.c.b16 %v3262, %v3261
    %v3910 = vpack.c.b16 %v3264, %v3263
    %v3911 = vpack.c.b16 %v3266, %v3265
    %v3912 = vpack.c.b16 %v3268, %v3267
    %v3913 = vpack.c.b16 %v3270, %v3269
    %v3914 = vpack.c.b16 %v3272, %v3271
    %v3915 = vpack.c.b16 %v3274, %v3273
    %v3916 = vpack.c.b16 %v3276, %v3275
    %v3917 = vpack.c.b16 %v3278, %v3277
    %v3918 = vpack.c.b16 %v3280, %v3279
    %v3919 = vpack.c.b16 %v3282, %v3281
    %v3920 = vpack.c.b16 %v3284, %v3283
    %v3921 = vpack.c.b16 %v3286, %v3285
    %v3922 = vpack.c.b16 %v3288, %v3287
    %v3923 = vpack.c.b16 %v3290, %v3289
    %v3924 = vpack.c.b16 %v3292, %v3291
    %v3925 = vpack.c.b16 %v3294, %v3293
    %v3926 = vpack.c.b16 %v3296, %v3295
    %v3927 = vpack.c.b16 %v3298, %v3297
    %v3928 = vpack.c.b16 %v3300, %v3299
    %v3929 = vpack.c.b16 %v3302, %v3301
    %v3930 = vpack.c.b16 %v3304, %v3303
    %v3931 = vpack.c.b16 %v3306, %v3305
    %v3932 = vpack.c.b16 %v3308, %v3307
    %v3933 = vpack.c.b16 %v3310, %v3309
    %v3934 = vpack.c.b16 %v3312, %v3311
    %v3935 = vpack.c.b16 %v3314, %v3313
    %v3936 = vpack.c.b16 %v3316, %v3315
    %v3937 = vpack.c.b16 %v3318, %v3317
    %v3938 = vpack.c.b16 %v3320, %v3319
    %v3939 = vpack.c.b16 %v3322, %v3321
    %v3940 = vpack.c.b16 %v3324, %v3323
    %v3941 = vpack.c.b16 %v3326, %v3325
    %v3942 = vpack.c.b16 %v3328, %v3327
    %v3943 = vpack.c.b16 %v3330, %v3329
    %v3944 = vpack.c.b16 %v3332, %v3331
    %v3945 = vpack.c.b16 %v3334, %v3333
    %v3946 = vpack.c.b16 %v3336, %v3335
    %v3947 = vpack.c.b16 %v3338, %v3337
    %v3948 = vpack.c.b16 %v3340, %v3339
    %v3949 = vpack.c.b16 %v3342, %v3341
    %v3950 = vpack.c.b16 %v3344, %v3343
    %v3951 = vpack.c.b16 %v3346, %v3345
    %v3952 = vpack.c.b16 %v3348, %v3347
    %v3953 = vpack.c.b16 %v3350, %v3349
    %v3954 = vpack.c.b16 %v3352, %v3351
    %v3955 = vpack.c.b16 %v3354, %v3353
    %v3956 = vpack.c.b16 %v3356, %v3355
    %v3957 = vpack.c.b16 %v3358, %v3357
    %v3958 = vpack.c.b16 %v3360, %v3359
    %v3959 = vpack.c.b16 %v3362, %v3361
    %v3960 = vpack.c.b16 %v3364, %v3363
    %v3961 = vpack.c.b16 %v3366, %v3365
    %v3962 = vpack.c.b16 %v3368, %v3367
    %v3963 = vpack.c.b16 %v3370, %v3369
    %v3964 = vpack.c.b16 %v3372, %v3371
    %v3965 = vpack.c.b16 %v3374, %v3373
    %v3966 = vpack.c.b16 %v3376, %v3375
    %v3967 = vpack.c.b16 %v3378, %v3377
    %v3968 = vpack.c.b16 %v3380, %v3379
    %v3969 = vpack.c.b16 %v3382, %v3381
    %v3970 = vpack.c.b16 %v3384, %v3383
    %v3971 = vpack.c.b16 %v3386, %v3385
    %v3972 = vpack.c.b16 %v3388, %v3387
    %v3973 = vpack.c.b16 %v3390, %v3389
    %v3974 = vpack.c.b16 %v3392, %v3391
    %v3975 = vpack.c.b16 %v3394, %v3393
    %v3976 = vpack.c.b16 %v3396, %v3395
    %v3977 = vpack.c.b16 %v3398, %v3397
    %v3978 = vpack.c.b16 %v3400, %v3399
    %v3979 = vpack.c.b16 %v3402, %v3401
    %v3980 = vpack.c.b16 %v3404, %v3403
    %v3981 = vpack.c.b16 %v3406, %v3405
    %v3982 = vpack.c.b16 %v3408, %v3407
    %v3983 = vpack.c.b16 %v3410, %v3409
    %v3984 = vpack.c.b16 %v3412, %v3411
    %v3985 = vpack.c.b16 %v3414, %v3413
    %v3986 = vpack.c.b16 %v3416, %v3415
    %v3987 = vpack.c.b16 %v3418, %v3417
    %v3988 = vpack.c.b16 %v3420, %v3419
    %v3989 = vpack.c.b16 %v3422, %v3421
    %v3990 = vpack.c.b16 %v3424, %v3423
    %v3991 = vpack.c.b16 %v3426, %v3425
    %v3992 = vpack.c.b16 %v3428, %v3427
    %v3993 = vpack.c.b16 %v3430, %v3429
    %v3994 = vpack.c.b16 %v3432, %v3431
    %v3995 = vpack.c.b16 %v3434, %v3433
    %v3996 = vpack.c.b16 %v3436, %v3435
    %v3997 = vpack.c.b16 %v3438, %v3437
    %v3998 = vpack.c.b16 %v3440, %v3439
    %v3999 = vpack.c.b16 %v3442, %v3441
    %v4000 = vpack.c.b16 %v3444, %v3443
    %v4001 = vpack.c.b16 %v3446, %v3445
    %v4002 = vpack.c.b16 %v3448, %v3447
    %v4003 = vpack.c.b16 %v3450, %v3449
    %v4004 = vpack.c.b16 %v3452, %v3451
    %v4005 = vpack.c.b16 %v3454, %v3453
    %v4006 = vpack.c.b16 %v3456, %v3455
    %v4007 = vpack.c.b16 %v3458, %v3457
    %v4008 = vpack.c.b16 %v3460, %v3459
    %v4009 = vpack.c.b16 %v3462, %v3461
    %v4010 = vpack.c.b16 %v3464, %v3463
    %v4011 = vpack.c.b16 %v3466, %v3465
    %v4012 = vpack.c.b16 %v3468, %v3467
    %v4013 = vpack.c.b16 %v3470, %v3469
    %v4014 = vpack.c.b16 %v3472, %v3471
    %v4015 = vpack.c.b16 %v3474, %v3473
    %v4016 = vpack.c.b16 %v3476, %v3475
    %v4017 = vpack.c.b16 %v3478, %v3477
    %v4018 = vpack.c.b16 %v3480, %v3479
    %v4019 = vpack.c.b16 %v3482, %v3481
    %v4020 = vpack.c.b16 %v3484, %v3483
    %v4021 = vpack.c.b16 %v3486, %v3485
    %v4022 = vpack.c.b16 %v3488, %v3487
    %v4023 = vpack.c.b16 %v3490, %v3489
    %v4024 = vpack.c.b16 %v3492, %v3491
    %v4025 = vpack.c.b16 %v3494, %v3493
    %v4026 = vpack.c.b16 %v3496, %v3495
    %v4027 = vpack.c.b16 %v3498, %v3497
    %v4028 = vpack.c.b16 %v3500, %v3499
    %v4029 = vpack.c.b16 %v3502, %v3501
    %v4030 = vpack.c.b16 %v3504, %v3503
    %v4031 = vpack.c.b16 %v3506, %v3505
    %v4032 = vpack.c.b16 %v3508, %v3507
    %v4033 = vpack.c.b16 %v3510, %v3509
    %v4034 = vpack.c.b16 %v3512, %v3511
    %v4035 = vpack.c.b16 %v3514, %v3513
    %v4036 = vpack.c.b16 %v3516, %v3515
    %v4037 = vpack.c.b16 %v3518, %v3517
    %v4038 = vpack.c.b16 %v3520, %v3519
    %v4039 = vpack.c.b16 %v3522, %v3521
    %v4040 = vpack.c.b16 %v3524, %v3523
    %v4041 = vpack.c.b16 %v3526, %v3525
    %v4042 = vpack.c.b16 %v3528, %v3527
    %v4043 = vpack.c.b16 %v3530, %v3529
    %v4044 = vpack.c.b16 %v3532, %v3531
    %4557 = vmatprep.subr.bf16.mxu0 0
    %4558 = vmatpush1.bf16.msra.mxu0 %v3540
    %4559 = vmatprep.subr.bf16.mxu0 0
    %4560 = vmatpush1.bf16.msra.mxu0 %v3539
    %4561 = vmatprep.subr.bf16.mxu0 0
    %4562 = vmatpush1.bf16.msra.mxu0 %v3538
    %4563 = vmatprep.subr.bf16.mxu0 0
    %4564 = vmatpush1.bf16.msra.mxu0 %v3537
    %4565 = vmatprep.subr.bf16.mxu0 0
    %4566 = vmatpush1.bf16.msra.mxu0 %v3536
    %4567 = vmatprep.subr.bf16.mxu0 0
    %4568 = vmatpush1.bf16.msra.mxu0 %v3535
    %4569 = vmatprep.subr.bf16.mxu0 0
    %4570 = vmatpush1.bf16.msra.mxu0 %v3534
    %4571 = vmatprep.subr.bf16.mxu0 0
    %4572 = vmatpush1.bf16.msra.mxu0 %v3533
    %4573 = vmatprep.subr.bf16.mxu0 0
    %4574 = vmatpush2.bf16.msra.mxu0 %v3548
    %4575 = vmatprep.subr.bf16.mxu0 0
    %4576 = vmatpush2.bf16.msra.mxu0 %v3547
    %4577 = vmatprep.subr.bf16.mxu0 0
    %4578 = vmatpush2.bf16.msra.mxu0 %v3546
    %4579 = vmatprep.subr.bf16.mxu0 0
    %4580 = vmatpush2.bf16.msra.mxu0 %v3545
    %4581 = vmatprep.subr.bf16.mxu0 0
    %4582 = vmatpush2.bf16.msra.mxu0 %v3544
    %4583 = vmatprep.subr.bf16.mxu0 0
    %4584 = vmatpush2.bf16.msra.mxu0 %v3543
    %4585 = vmatprep.subr.bf16.mxu0 0
    %4586 = vmatpush2.bf16.msra.mxu0 %v3542
    %4587 = vmatprep.subr.bf16.mxu0 0
    %4588 = vmatpush2.bf16.msra.mxu0 %v3541
    %4589 = vmatprep.mubr.bf16.mxu0 %v391
    %4590 = vmatmul.mubr.bf16.gmra.mxu0 %v390
    %v4591 = vpop.f32.mrf.mxu0
    %v4592 = vadd.f32 %v1483, %v4591
    %v4593 = vpop.f32.mrf.mxu0
    %v4594 = vpop.f32.mrf.mxu0
    %v4595 = vpop.f32.mrf.mxu0
    %4596 = vdwg.mxu0
    %4597 = vmatprep.subr.bf16.mxu0 0
    %4598 = vmatpush1.bf16.msra.mxu0 %v3556
    %4599 = vmatprep.subr.bf16.mxu0 0
    %4600 = vmatpush1.bf16.msra.mxu0 %v3555
    %4601 = vmatprep.subr.bf16.mxu0 0
    %4602 = vmatpush1.bf16.msra.mxu0 %v3554
    %4603 = vmatprep.subr.bf16.mxu0 0
    %4604 = vmatpush1.bf16.msra.mxu0 %v3553
    %4605 = vmatprep.subr.bf16.mxu0 0
    %4606 = vmatpush1.bf16.msra.mxu0 %v3552
    %4607 = vmatprep.subr.bf16.mxu0 0
    %4608 = vmatpush1.bf16.msra.mxu0 %v3551
    %4609 = vmatprep.subr.bf16.mxu0 0
    %4610 = vmatpush1.bf16.msra.mxu0 %v3550
    %4611 = vmatprep.subr.bf16.mxu0 0
    %4612 = vmatpush1.bf16.msra.mxu0 %v3549
    %4613 = vmatprep.subr.bf16.mxu0 0
    %4614 = vmatpush2.bf16.msra.mxu0 %v3564
    %4615 = vmatprep.subr.bf16.mxu0 0
    %4616 = vmatpush2.bf16.msra.mxu0 %v3563
    %4617 = vmatprep.subr.bf16.mxu0 0
    %4618 = vmatpush2.bf16.msra.mxu0 %v3562
    %4619 = vmatprep.subr.bf16.mxu0 0
    %4620 = vmatpush2.bf16.msra.mxu0 %v3561
    %4621 = vmatprep.subr.bf16.mxu0 0
    %4622 = vmatpush2.bf16.msra.mxu0 %v3560
    %4623 = vmatprep.subr.bf16.mxu0 0
    %4624 = vmatpush2.bf16.msra.mxu0 %v3559
    %4625 = vmatprep.subr.bf16.mxu0 0
    %4626 = vmatpush2.bf16.msra.mxu0 %v3558
    %4627 = vmatprep.subr.bf16.mxu0 0
    %4628 = vmatpush2.bf16.msra.mxu0 %v3557
    %4629 = vmatprep.mubr.bf16.mxu0 %v393
    %4630 = vmatmul.mubr.bf16.gmra.mxu0 %v392
    %v4631 = vpop.f32.mrf.mxu0
    %v4632 = vadd.f32 %v4592, %v4631
    %v4633 = vpop.f32.mrf.mxu0
    %v4634 = vpop.f32.mrf.mxu0
    %v4635 = vpop.f32.mrf.mxu0
    %4636 = vdwg.mxu0
    %4637 = vmatprep.subr.bf16.mxu0 0
    %4638 = vmatpush1.bf16.msra.mxu0 %v3572
    %4639 = vmatprep.subr.bf16.mxu0 0
    %4640 = vmatpush1.bf16.msra.mxu0 %v3571
    %4641 = vmatprep.subr.bf16.mxu0 0
    %4642 = vmatpush1.bf16.msra.mxu0 %v3570
    %4643 = vmatprep.subr.bf16.mxu0 0
    %4644 = vmatpush1.bf16.msra.mxu0 %v3569
    %4645 = vmatprep.subr.bf16.mxu0 0
    %4646 = vmatpush1.bf16.msra.mxu0 %v3568
    %4647 = vmatprep.subr.bf16.mxu0 0
    %4648 = vmatpush1.bf16.msra.mxu0 %v3567
    %4649 = vmatprep.subr.bf16.mxu0 0
    %4650 = vmatpush1.bf16.msra.mxu0 %v3566
    %4651 = vmatprep.subr.bf16.mxu0 0
    %4652 = vmatpush1.bf16.msra.mxu0 %v3565
    %4653 = vmatprep.subr.bf16.mxu0 0
    %4654 = vmatpush2.bf16.msra.mxu0 %v3580
    %4655 = vmatprep.subr.bf16.mxu0 0
    %4656 = vmatpush2.bf16.msra.mxu0 %v3579
    %4657 = vmatprep.subr.bf16.mxu0 0
    %4658 = vmatpush2.bf16.msra.mxu0 %v3578
    %4659 = vmatprep.subr.bf16.mxu0 0
    %4660 = vmatpush2.bf16.msra.mxu0 %v3577
    %4661 = vmatprep.subr.bf16.mxu0 0
    %4662 = vmatpush2.bf16.msra.mxu0 %v3576
    %4663 = vmatprep.subr.bf16.mxu0 0
    %4664 = vmatpush2.bf16.msra.mxu0 %v3575
    %4665 = vmatprep.subr.bf16.mxu0 0
    %4666 = vmatpush2.bf16.msra.mxu0 %v3574
    %4667 = vmatprep.subr.bf16.mxu0 0
    %4668 = vmatpush2.bf16.msra.mxu0 %v3573
    %4669 = vmatprep.mubr.bf16.mxu0 %v395
    %4670 = vmatmul.mubr.bf16.gmra.mxu0 %v394
    %v4671 = vpop.f32.mrf.mxu0
    %v4672 = vadd.f32 %v4632, %v4671
    %v4673 = vpop.f32.mrf.mxu0
    %v4674 = vpop.f32.mrf.mxu0
    %v4675 = vpop.f32.mrf.mxu0
    %4676 = vdwg.mxu0
    %4677 = vmatprep.subr.bf16.mxu0 0
    %4678 = vmatpush1.bf16.msra.mxu0 %v3588
    %4679 = vmatprep.subr.bf16.mxu0 0
    %4680 = vmatpush1.bf16.msra.mxu0 %v3587
    %4681 = vmatprep.subr.bf16.mxu0 0
    %4682 = vmatpush1.bf16.msra.mxu0 %v3586
    %4683 = vmatprep.subr.bf16.mxu0 0
    %4684 = vmatpush1.bf16.msra.mxu0 %v3585
    %4685 = vmatprep.subr.bf16.mxu0 0
    %4686 = vmatpush1.bf16.msra.mxu0 %v3584
    %4687 = vmatprep.subr.bf16.mxu0 0
    %4688 = vmatpush1.bf16.msra.mxu0 %v3583
    %4689 = vmatprep.subr.bf16.mxu0 0
    %4690 = vmatpush1.bf16.msra.mxu0 %v3582
    %4691 = vmatprep.subr.bf16.mxu0 0
    %4692 = vmatpush1.bf16.msra.mxu0 %v3581
    %4693 = vmatprep.subr.bf16.mxu0 0
    %4694 = vmatpush2.bf16.msra.mxu0 %v3596
    %4695 = vmatprep.subr.bf16.mxu0 0
    %4696 = vmatpush2.bf16.msra.mxu0 %v3595
    %4697 = vmatprep.subr.bf16.mxu0 0
    %4698 = vmatpush2.bf16.msra.mxu0 %v3594
    %4699 = vmatprep.subr.bf16.mxu0 0
    %4700 = vmatpush2.bf16.msra.mxu0 %v3593
    %4701 = vmatprep.subr.bf16.mxu0 0
    %4702 = vmatpush2.bf16.msra.mxu0 %v3592
    %4703 = vmatprep.subr.bf16.mxu0 0
    %4704 = vmatpush2.bf16.msra.mxu0 %v3591
    %4705 = vmatprep.subr.bf16.mxu0 0
    %4706 = vmatpush2.bf16.msra.mxu0 %v3590
    %4707 = vmatprep.subr.bf16.mxu0 0
    %4708 = vmatpush2.bf16.msra.mxu0 %v3589
    %4709 = vmatprep.mubr.bf16.mxu0 %v397
    %4710 = vmatmul.mubr.bf16.gmra.mxu0 %v396
    %v4711 = vpop.f32.mrf.mxu0
    %v4712 = vadd.f32 %v4672, %v4711
    %v4713 = vpop.f32.mrf.mxu0
    %v4714 = vpop.f32.mrf.mxu0
    %v4715 = vpop.f32.mrf.mxu0
    %4716 = vdwg.mxu0
    %4717 = vmatprep.subr.bf16.mxu0 0
    %4718 = vmatpush1.bf16.msra.mxu0 %v3604
    %4719 = vmatprep.subr.bf16.mxu0 0
    %4720 = vmatpush1.bf16.msra.mxu0 %v3603
    %4721 = vmatprep.subr.bf16.mxu0 0
    %4722 = vmatpush1.bf16.msra.mxu0 %v3602
    %4723 = vmatprep.subr.bf16.mxu0 0
    %4724 = vmatpush1.bf16.msra.mxu0 %v3601
    %4725 = vmatprep.subr.bf16.mxu0 0
    %4726 = vmatpush1.bf16.msra.mxu0 %v3600
    %4727 = vmatprep.subr.bf16.mxu0 0
    %4728 = vmatpush1.bf16.msra.mxu0 %v3599
    %4729 = vmatprep.subr.bf16.mxu0 0
    %4730 = vmatpush1.bf16.msra.mxu0 %v3598
    %4731 = vmatprep.subr.bf16.mxu0 0
    %4732 = vmatpush1.bf16.msra.mxu0 %v3597
    %4733 = vmatprep.subr.bf16.mxu0 0
    %4734 = vmatpush2.bf16.msra.mxu0 %v3612
    %4735 = vmatprep.subr.bf16.mxu0 0
    %4736 = vmatpush2.bf16.msra.mxu0 %v3611
    %4737 = vmatprep.subr.bf16.mxu0 0
    %4738 = vmatpush2.bf16.msra.mxu0 %v3610
    %4739 = vmatprep.subr.bf16.mxu0 0
    %4740 = vmatpush2.bf16.msra.mxu0 %v3609
    %4741 = vmatprep.subr.bf16.mxu0 0
    %4742 = vmatpush2.bf16.msra.mxu0 %v3608
    %4743 = vmatprep.subr.bf16.mxu0 0
    %4744 = vmatpush2.bf16.msra.mxu0 %v3607
    %4745 = vmatprep.subr.bf16.mxu0 0
    %4746 = vmatpush2.bf16.msra.mxu0 %v3606
    %4747 = vmatprep.subr.bf16.mxu0 0
    %4748 = vmatpush2.bf16.msra.mxu0 %v3605
    %4749 = vmatprep.mubr.bf16.mxu0 %v399
    %4750 = vmatmul.mubr.bf16.gmra.mxu0 %v398
    %v4751 = vpop.f32.mrf.mxu0
    %v4752 = vadd.f32 %v4712, %v4751
    %v4753 = vpop.f32.mrf.mxu0
    %v4754 = vpop.f32.mrf.mxu0
    %v4755 = vpop.f32.mrf.mxu0
    %4756 = vdwg.mxu0
    %4757 = vmatprep.subr.bf16.mxu0 0
    %4758 = vmatpush1.bf16.msra.mxu0 %v3620
    %4759 = vmatprep.subr.bf16.mxu0 0
    %4760 = vmatpush1.bf16.msra.mxu0 %v3619
    %4761 = vmatprep.subr.bf16.mxu0 0
    %4762 = vmatpush1.bf16.msra.mxu0 %v3618
    %4763 = vmatprep.subr.bf16.mxu0 0
    %4764 = vmatpush1.bf16.msra.mxu0 %v3617
    %4765 = vmatprep.subr.bf16.mxu0 0
    %4766 = vmatpush1.bf16.msra.mxu0 %v3616
    %4767 = vmatprep.subr.bf16.mxu0 0
    %4768 = vmatpush1.bf16.msra.mxu0 %v3615
    %4769 = vmatprep.subr.bf16.mxu0 0
    %4770 = vmatpush1.bf16.msra.mxu0 %v3614
    %4771 = vmatprep.subr.bf16.mxu0 0
    %4772 = vmatpush1.bf16.msra.mxu0 %v3613
    %4773 = vmatprep.subr.bf16.mxu0 0
    %4774 = vmatpush2.bf16.msra.mxu0 %v3628
    %4775 = vmatprep.subr.bf16.mxu0 0
    %4776 = vmatpush2.bf16.msra.mxu0 %v3627
    %4777 = vmatprep.subr.bf16.mxu0 0
    %4778 = vmatpush2.bf16.msra.mxu0 %v3626
    %4779 = vmatprep.subr.bf16.mxu0 0
    %4780 = vmatpush2.bf16.msra.mxu0 %v3625
    %4781 = vmatprep.subr.bf16.mxu0 0
    %4782 = vmatpush2.bf16.msra.mxu0 %v3624
    %4783 = vmatprep.subr.bf16.mxu0 0
    %4784 = vmatpush2.bf16.msra.mxu0 %v3623
    %4785 = vmatprep.subr.bf16.mxu0 0
    %4786 = vmatpush2.bf16.msra.mxu0 %v3622
    %4787 = vmatprep.subr.bf16.mxu0 0
    %4788 = vmatpush2.bf16.msra.mxu0 %v3621
    %4789 = vmatprep.mubr.bf16.mxu0 %v401
    %4790 = vmatmul.mubr.bf16.gmra.mxu0 %v400
    %v4791 = vpop.f32.mrf.mxu0
    %v4792 = vadd.f32 %v4752, %v4791
    %v4793 = vpop.f32.mrf.mxu0
    %v4794 = vpop.f32.mrf.mxu0
    %v4795 = vpop.f32.mrf.mxu0
    %4796 = vdwg.mxu0
    %4797 = vmatprep.subr.bf16.mxu0 0
    %4798 = vmatpush1.bf16.msra.mxu0 %v3636
    %4799 = vmatprep.subr.bf16.mxu0 0
    %4800 = vmatpush1.bf16.msra.mxu0 %v3635
    %4801 = vmatprep.subr.bf16.mxu0 0
    %4802 = vmatpush1.bf16.msra.mxu0 %v3634
    %4803 = vmatprep.subr.bf16.mxu0 0
    %4804 = vmatpush1.bf16.msra.mxu0 %v3633
    %4805 = vmatprep.subr.bf16.mxu0 0
    %4806 = vmatpush1.bf16.msra.mxu0 %v3632
    %4807 = vmatprep.subr.bf16.mxu0 0
    %4808 = vmatpush1.bf16.msra.mxu0 %v3631
    %4809 = vmatprep.subr.bf16.mxu0 0
    %4810 = vmatpush1.bf16.msra.mxu0 %v3630
    %4811 = vmatprep.subr.bf16.mxu0 0
    %4812 = vmatpush1.bf16.msra.mxu0 %v3629
    %4813 = vmatprep.subr.bf16.mxu0 0
    %4814 = vmatpush2.bf16.msra.mxu0 %v3644
    %4815 = vmatprep.subr.bf16.mxu0 0
    %4816 = vmatpush2.bf16.msra.mxu0 %v3643
    %4817 = vmatprep.subr.bf16.mxu0 0
    %4818 = vmatpush2.bf16.msra.mxu0 %v3642
    %4819 = vmatprep.subr.bf16.mxu0 0
    %4820 = vmatpush2.bf16.msra.mxu0 %v3641
    %4821 = vmatprep.subr.bf16.mxu0 0
    %4822 = vmatpush2.bf16.msra.mxu0 %v3640
    %4823 = vmatprep.subr.bf16.mxu0 0
    %4824 = vmatpush2.bf16.msra.mxu0 %v3639
    %4825 = vmatprep.subr.bf16.mxu0 0
    %4826 = vmatpush2.bf16.msra.mxu0 %v3638
    %4827 = vmatprep.subr.bf16.mxu0 0
    %4828 = vmatpush2.bf16.msra.mxu0 %v3637
    %4829 = vmatprep.mubr.bf16.mxu0 %v403
    %4830 = vmatmul.mubr.bf16.gmra.mxu0 %v402
    %v4831 = vpop.f32.mrf.mxu0
    %v4832 = vadd.f32 %v4792, %v4831
    %v4833 = vpop.f32.mrf.mxu0
    %v4834 = vpop.f32.mrf.mxu0
    %v4835 = vpop.f32.mrf.mxu0
    %4836 = vdwg.mxu0
    %4837 = vmatprep.subr.bf16.mxu0 0
    %4838 = vmatpush1.bf16.msra.mxu0 %v3652
    %4839 = vmatprep.subr.bf16.mxu0 0
    %4840 = vmatpush1.bf16.msra.mxu0 %v3651
    %4841 = vmatprep.subr.bf16.mxu0 0
    %4842 = vmatpush1.bf16.msra.mxu0 %v3650
    %4843 = vmatprep.subr.bf16.mxu0 0
    %4844 = vmatpush1.bf16.msra.mxu0 %v3649
    %4845 = vmatprep.subr.bf16.mxu0 0
    %4846 = vmatpush1.bf16.msra.mxu0 %v3648
    %4847 = vmatprep.subr.bf16.mxu0 0
    %4848 = vmatpush1.bf16.msra.mxu0 %v3647
    %4849 = vmatprep.subr.bf16.mxu0 0
    %4850 = vmatpush1.bf16.msra.mxu0 %v3646
    %4851 = vmatprep.subr.bf16.mxu0 0
    %4852 = vmatpush1.bf16.msra.mxu0 %v3645
    %4853 = vmatprep.subr.bf16.mxu0 0
    %4854 = vmatpush2.bf16.msra.mxu0 %v3660
    %4855 = vmatprep.subr.bf16.mxu0 0
    %4856 = vmatpush2.bf16.msra.mxu0 %v3659
    %4857 = vmatprep.subr.bf16.mxu0 0
    %4858 = vmatpush2.bf16.msra.mxu0 %v3658
    %4859 = vmatprep.subr.bf16.mxu0 0
    %4860 = vmatpush2.bf16.msra.mxu0 %v3657
    %4861 = vmatprep.subr.bf16.mxu0 0
    %4862 = vmatpush2.bf16.msra.mxu0 %v3656
    %4863 = vmatprep.subr.bf16.mxu0 0
    %4864 = vmatpush2.bf16.msra.mxu0 %v3655
    %4865 = vmatprep.subr.bf16.mxu0 0
    %4866 = vmatpush2.bf16.msra.mxu0 %v3654
    %4867 = vmatprep.subr.bf16.mxu0 0
    %4868 = vmatpush2.bf16.msra.mxu0 %v3653
    %4869 = vmatprep.mubr.bf16.mxu0 %v405
    %4870 = vmatmul.mubr.bf16.gmra.mxu0 %v404
    %v4871 = vpop.f32.mrf.mxu0
    %v4872 = vadd.f32 %v4832, %v4871
    %v4873 = vpop.f32.mrf.mxu0
    %v4874 = vpop.f32.mrf.mxu0
    %v4875 = vpop.f32.mrf.mxu0
    %4876 = vdwg.mxu0
    %4877 = vmatprep.subr.bf16.mxu0 0
    %4878 = vmatpush1.bf16.msra.mxu0 %v3668
    %4879 = vmatprep.subr.bf16.mxu0 0
    %4880 = vmatpush1.bf16.msra.mxu0 %v3667
    %4881 = vmatprep.subr.bf16.mxu0 0
    %4882 = vmatpush1.bf16.msra.mxu0 %v3666
    %4883 = vmatprep.subr.bf16.mxu0 0
    %4884 = vmatpush1.bf16.msra.mxu0 %v3665
    %4885 = vmatprep.subr.bf16.mxu0 0
    %4886 = vmatpush1.bf16.msra.mxu0 %v3664
    %4887 = vmatprep.subr.bf16.mxu0 0
    %4888 = vmatpush1.bf16.msra.mxu0 %v3663
    %4889 = vmatprep.subr.bf16.mxu0 0
    %4890 = vmatpush1.bf16.msra.mxu0 %v3662
    %4891 = vmatprep.subr.bf16.mxu0 0
    %4892 = vmatpush1.bf16.msra.mxu0 %v3661
    %4893 = vmatprep.subr.bf16.mxu0 0
    %4894 = vmatpush2.bf16.msra.mxu0 %v3676
    %4895 = vmatprep.subr.bf16.mxu0 0
    %4896 = vmatpush2.bf16.msra.mxu0 %v3675
    %4897 = vmatprep.subr.bf16.mxu0 0
    %4898 = vmatpush2.bf16.msra.mxu0 %v3674
    %4899 = vmatprep.subr.bf16.mxu0 0
    %4900 = vmatpush2.bf16.msra.mxu0 %v3673
    %4901 = vmatprep.subr.bf16.mxu0 0
    %4902 = vmatpush2.bf16.msra.mxu0 %v3672
    %4903 = vmatprep.subr.bf16.mxu0 0
    %4904 = vmatpush2.bf16.msra.mxu0 %v3671
    %4905 = vmatprep.subr.bf16.mxu0 0
    %4906 = vmatpush2.bf16.msra.mxu0 %v3670
    %4907 = vmatprep.subr.bf16.mxu0 0
    %4908 = vmatpush2.bf16.msra.mxu0 %v3669
    %4909 = vmatprep.mubr.bf16.mxu0 %v407
    %4910 = vmatmul.mubr.bf16.gmra.mxu0 %v406
    %v4911 = vpop.f32.mrf.mxu0
    %v4912 = vadd.f32 %v4872, %v4911
    %v4913 = vpop.f32.mrf.mxu0
    %v4914 = vpop.f32.mrf.mxu0
    %v4915 = vpop.f32.mrf.mxu0
    %4916 = vdwg.mxu0
    %4917 = vmatprep.subr.bf16.mxu0 0
    %4918 = vmatpush1.bf16.msra.mxu0 %v3684
    %4919 = vmatprep.subr.bf16.mxu0 0
    %4920 = vmatpush1.bf16.msra.mxu0 %v3683
    %4921 = vmatprep.subr.bf16.mxu0 0
    %4922 = vmatpush1.bf16.msra.mxu0 %v3682
    %4923 = vmatprep.subr.bf16.mxu0 0
    %4924 = vmatpush1.bf16.msra.mxu0 %v3681
    %4925 = vmatprep.subr.bf16.mxu0 0
    %4926 = vmatpush1.bf16.msra.mxu0 %v3680
    %4927 = vmatprep.subr.bf16.mxu0 0
    %4928 = vmatpush1.bf16.msra.mxu0 %v3679
    %4929 = vmatprep.subr.bf16.mxu0 0
    %4930 = vmatpush1.bf16.msra.mxu0 %v3678
    %4931 = vmatprep.subr.bf16.mxu0 0
    %4932 = vmatpush1.bf16.msra.mxu0 %v3677
    %4933 = vmatprep.subr.bf16.mxu0 0
    %4934 = vmatpush2.bf16.msra.mxu0 %v3692
    %4935 = vmatprep.subr.bf16.mxu0 0
    %4936 = vmatpush2.bf16.msra.mxu0 %v3691
    %4937 = vmatprep.subr.bf16.mxu0 0
    %4938 = vmatpush2.bf16.msra.mxu0 %v3690
    %4939 = vmatprep.subr.bf16.mxu0 0
    %4940 = vmatpush2.bf16.msra.mxu0 %v3689
    %4941 = vmatprep.subr.bf16.mxu0 0
    %4942 = vmatpush2.bf16.msra.mxu0 %v3688
    %4943 = vmatprep.subr.bf16.mxu0 0
    %4944 = vmatpush2.bf16.msra.mxu0 %v3687
    %4945 = vmatprep.subr.bf16.mxu0 0
    %4946 = vmatpush2.bf16.msra.mxu0 %v3686
    %4947 = vmatprep.subr.bf16.mxu0 0
    %4948 = vmatpush2.bf16.msra.mxu0 %v3685
    %4949 = vmatprep.mubr.bf16.mxu0 %v409
    %4950 = vmatmul.mubr.bf16.gmra.mxu0 %v408
    %v4951 = vpop.f32.mrf.mxu0
    %v4952 = vadd.f32 %v4912, %v4951
    %v4953 = vpop.f32.mrf.mxu0
    %v4954 = vpop.f32.mrf.mxu0
    %v4955 = vpop.f32.mrf.mxu0
    %4956 = vdwg.mxu0
    %4957 = vmatprep.subr.bf16.mxu0 0
    %4958 = vmatpush1.bf16.msra.mxu0 %v3700
    %4959 = vmatprep.subr.bf16.mxu0 0
    %4960 = vmatpush1.bf16.msra.mxu0 %v3699
    %4961 = vmatprep.subr.bf16.mxu0 0
    %4962 = vmatpush1.bf16.msra.mxu0 %v3698
    %4963 = vmatprep.subr.bf16.mxu0 0
    %4964 = vmatpush1.bf16.msra.mxu0 %v3697
    %4965 = vmatprep.subr.bf16.mxu0 0
    %4966 = vmatpush1.bf16.msra.mxu0 %v3696
    %4967 = vmatprep.subr.bf16.mxu0 0
    %4968 = vmatpush1.bf16.msra.mxu0 %v3695
    %4969 = vmatprep.subr.bf16.mxu0 0
    %4970 = vmatpush1.bf16.msra.mxu0 %v3694
    %4971 = vmatprep.subr.bf16.mxu0 0
    %4972 = vmatpush1.bf16.msra.mxu0 %v3693
    %4973 = vmatprep.subr.bf16.mxu0 0
    %4974 = vmatpush2.bf16.msra.mxu0 %v3708
    %4975 = vmatprep.subr.bf16.mxu0 0
    %4976 = vmatpush2.bf16.msra.mxu0 %v3707
    %4977 = vmatprep.subr.bf16.mxu0 0
    %4978 = vmatpush2.bf16.msra.mxu0 %v3706
    %4979 = vmatprep.subr.bf16.mxu0 0
    %4980 = vmatpush2.bf16.msra.mxu0 %v3705
    %4981 = vmatprep.subr.bf16.mxu0 0
    %4982 = vmatpush2.bf16.msra.mxu0 %v3704
    %4983 = vmatprep.subr.bf16.mxu0 0
    %4984 = vmatpush2.bf16.msra.mxu0 %v3703
    %4985 = vmatprep.subr.bf16.mxu0 0
    %4986 = vmatpush2.bf16.msra.mxu0 %v3702
    %4987 = vmatprep.subr.bf16.mxu0 0
    %4988 = vmatpush2.bf16.msra.mxu0 %v3701
    %4989 = vmatprep.mubr.bf16.mxu0 %v411
    %4990 = vmatmul.mubr.bf16.gmra.mxu0 %v410
    %v4991 = vpop.f32.mrf.mxu0
    %v4992 = vadd.f32 %v4952, %v4991
    %v4993 = vpop.f32.mrf.mxu0
    %v4994 = vpop.f32.mrf.mxu0
    %v4995 = vpop.f32.mrf.mxu0
    %4996 = vdwg.mxu0
    %4997 = vmatprep.subr.bf16.mxu0 0
    %4998 = vmatpush1.bf16.msra.mxu0 %v3716
    %4999 = vmatprep.subr.bf16.mxu0 0
    %5000 = vmatpush1.bf16.msra.mxu0 %v3715
    %5001 = vmatprep.subr.bf16.mxu0 0
    %5002 = vmatpush1.bf16.msra.mxu0 %v3714
    %5003 = vmatprep.subr.bf16.mxu0 0
    %5004 = vmatpush1.bf16.msra.mxu0 %v3713
    %5005 = vmatprep.subr.bf16.mxu0 0
    %5006 = vmatpush1.bf16.msra.mxu0 %v3712
    %5007 = vmatprep.subr.bf16.mxu0 0
    %5008 = vmatpush1.bf16.msra.mxu0 %v3711
    %5009 = vmatprep.subr.bf16.mxu0 0
    %5010 = vmatpush1.bf16.msra.mxu0 %v3710
    %5011 = vmatprep.subr.bf16.mxu0 0
    %5012 = vmatpush1.bf16.msra.mxu0 %v3709
    %5013 = vmatprep.subr.bf16.mxu0 0
    %5014 = vmatpush2.bf16.msra.mxu0 %v3724
    %5015 = vmatprep.subr.bf16.mxu0 0
    %5016 = vmatpush2.bf16.msra.mxu0 %v3723
    %5017 = vmatprep.subr.bf16.mxu0 0
    %5018 = vmatpush2.bf16.msra.mxu0 %v3722
    %5019 = vmatprep.subr.bf16.mxu0 0
    %5020 = vmatpush2.bf16.msra.mxu0 %v3721
    %5021 = vmatprep.subr.bf16.mxu0 0
    %5022 = vmatpush2.bf16.msra.mxu0 %v3720
    %5023 = vmatprep.subr.bf16.mxu0 0
    %5024 = vmatpush2.bf16.msra.mxu0 %v3719
    %5025 = vmatprep.subr.bf16.mxu0 0
    %5026 = vmatpush2.bf16.msra.mxu0 %v3718
    %5027 = vmatprep.subr.bf16.mxu0 0
    %5028 = vmatpush2.bf16.msra.mxu0 %v3717
    %5029 = vmatprep.mubr.bf16.mxu0 %v413
    %5030 = vmatmul.mubr.bf16.gmra.mxu0 %v412
    %v5031 = vpop.f32.mrf.mxu0
    %v5032 = vadd.f32 %v4992, %v5031
    %v5033 = vpop.f32.mrf.mxu0
    %v5034 = vpop.f32.mrf.mxu0
    %v5035 = vpop.f32.mrf.mxu0
    %5036 = vdwg.mxu0
    %5037 = vmatprep.subr.bf16.mxu0 0
    %5038 = vmatpush1.bf16.msra.mxu0 %v3732
    %5039 = vmatprep.subr.bf16.mxu0 0
    %5040 = vmatpush1.bf16.msra.mxu0 %v3731
    %5041 = vmatprep.subr.bf16.mxu0 0
    %5042 = vmatpush1.bf16.msra.mxu0 %v3730
    %5043 = vmatprep.subr.bf16.mxu0 0
    %5044 = vmatpush1.bf16.msra.mxu0 %v3729
    %5045 = vmatprep.subr.bf16.mxu0 0
    %5046 = vmatpush1.bf16.msra.mxu0 %v3728
    %5047 = vmatprep.subr.bf16.mxu0 0
    %5048 = vmatpush1.bf16.msra.mxu0 %v3727
    %5049 = vmatprep.subr.bf16.mxu0 0
    %5050 = vmatpush1.bf16.msra.mxu0 %v3726
    %5051 = vmatprep.subr.bf16.mxu0 0
    %5052 = vmatpush1.bf16.msra.mxu0 %v3725
    %5053 = vmatprep.subr.bf16.mxu0 0
    %5054 = vmatpush2.bf16.msra.mxu0 %v3740
    %5055 = vmatprep.subr.bf16.mxu0 0
    %5056 = vmatpush2.bf16.msra.mxu0 %v3739
    %5057 = vmatprep.subr.bf16.mxu0 0
    %5058 = vmatpush2.bf16.msra.mxu0 %v3738
    %5059 = vmatprep.subr.bf16.mxu0 0
    %5060 = vmatpush2.bf16.msra.mxu0 %v3737
    %5061 = vmatprep.subr.bf16.mxu0 0
    %5062 = vmatpush2.bf16.msra.mxu0 %v3736
    %5063 = vmatprep.subr.bf16.mxu0 0
    %5064 = vmatpush2.bf16.msra.mxu0 %v3735
    %5065 = vmatprep.subr.bf16.mxu0 0
    %5066 = vmatpush2.bf16.msra.mxu0 %v3734
    %5067 = vmatprep.subr.bf16.mxu0 0
    %5068 = vmatpush2.bf16.msra.mxu0 %v3733
    %5069 = vmatprep.mubr.bf16.mxu0 %v415
    %5070 = vmatmul.mubr.bf16.gmra.mxu0 %v414
    %v5071 = vpop.f32.mrf.mxu0
    %v5072 = vadd.f32 %v5032, %v5071
    %v5073 = vpop.f32.mrf.mxu0
    %v5074 = vpop.f32.mrf.mxu0
    %v5075 = vpop.f32.mrf.mxu0
    %5076 = vdwg.mxu0
    %5077 = vmatprep.subr.bf16.mxu0 0
    %5078 = vmatpush1.bf16.msra.mxu0 %v3748
    %5079 = vmatprep.subr.bf16.mxu0 0
    %5080 = vmatpush1.bf16.msra.mxu0 %v3747
    %5081 = vmatprep.subr.bf16.mxu0 0
    %5082 = vmatpush1.bf16.msra.mxu0 %v3746
    %5083 = vmatprep.subr.bf16.mxu0 0
    %5084 = vmatpush1.bf16.msra.mxu0 %v3745
    %5085 = vmatprep.subr.bf16.mxu0 0
    %5086 = vmatpush1.bf16.msra.mxu0 %v3744
    %5087 = vmatprep.subr.bf16.mxu0 0
    %5088 = vmatpush1.bf16.msra.mxu0 %v3743
    %5089 = vmatprep.subr.bf16.mxu0 0
    %5090 = vmatpush1.bf16.msra.mxu0 %v3742
    %5091 = vmatprep.subr.bf16.mxu0 0
    %5092 = vmatpush1.bf16.msra.mxu0 %v3741
    %5093 = vmatprep.subr.bf16.mxu0 0
    %5094 = vmatpush2.bf16.msra.mxu0 %v3756
    %5095 = vmatprep.subr.bf16.mxu0 0
    %5096 = vmatpush2.bf16.msra.mxu0 %v3755
    %5097 = vmatprep.subr.bf16.mxu0 0
    %5098 = vmatpush2.bf16.msra.mxu0 %v3754
    %5099 = vmatprep.subr.bf16.mxu0 0
    %5100 = vmatpush2.bf16.msra.mxu0 %v3753
    %5101 = vmatprep.subr.bf16.mxu0 0
    %5102 = vmatpush2.bf16.msra.mxu0 %v3752
    %5103 = vmatprep.subr.bf16.mxu0 0
    %5104 = vmatpush2.bf16.msra.mxu0 %v3751
    %5105 = vmatprep.subr.bf16.mxu0 0
    %5106 = vmatpush2.bf16.msra.mxu0 %v3750
    %5107 = vmatprep.subr.bf16.mxu0 0
    %5108 = vmatpush2.bf16.msra.mxu0 %v3749
    %5109 = vmatprep.mubr.bf16.mxu0 %v417
    %5110 = vmatmul.mubr.bf16.gmra.mxu0 %v416
    %v5111 = vpop.f32.mrf.mxu0
    %v5112 = vadd.f32 %v5072, %v5111
    %v5113 = vpop.f32.mrf.mxu0
    %v5114 = vpop.f32.mrf.mxu0
    %v5115 = vpop.f32.mrf.mxu0
    %5116 = vdwg.mxu0
    %5117 = vmatprep.subr.bf16.mxu0 0
    %5118 = vmatpush1.bf16.msra.mxu0 %v3764
    %5119 = vmatprep.subr.bf16.mxu0 0
    %5120 = vmatpush1.bf16.msra.mxu0 %v3763
    %5121 = vmatprep.subr.bf16.mxu0 0
    %5122 = vmatpush1.bf16.msra.mxu0 %v3762
    %5123 = vmatprep.subr.bf16.mxu0 0
    %5124 = vmatpush1.bf16.msra.mxu0 %v3761
    %5125 = vmatprep.subr.bf16.mxu0 0
    %5126 = vmatpush1.bf16.msra.mxu0 %v3760
    %5127 = vmatprep.subr.bf16.mxu0 0
    %5128 = vmatpush1.bf16.msra.mxu0 %v3759
    %5129 = vmatprep.subr.bf16.mxu0 0
    %5130 = vmatpush1.bf16.msra.mxu0 %v3758
    %5131 = vmatprep.subr.bf16.mxu0 0
    %5132 = vmatpush1.bf16.msra.mxu0 %v3757
    %5133 = vmatprep.subr.bf16.mxu0 0
    %5134 = vmatpush2.bf16.msra.mxu0 %v3772
    %5135 = vmatprep.subr.bf16.mxu0 0
    %5136 = vmatpush2.bf16.msra.mxu0 %v3771
    %5137 = vmatprep.subr.bf16.mxu0 0
    %5138 = vmatpush2.bf16.msra.mxu0 %v3770
    %5139 = vmatprep.subr.bf16.mxu0 0
    %5140 = vmatpush2.bf16.msra.mxu0 %v3769
    %5141 = vmatprep.subr.bf16.mxu0 0
    %5142 = vmatpush2.bf16.msra.mxu0 %v3768
    %5143 = vmatprep.subr.bf16.mxu0 0
    %5144 = vmatpush2.bf16.msra.mxu0 %v3767
    %5145 = vmatprep.subr.bf16.mxu0 0
    %5146 = vmatpush2.bf16.msra.mxu0 %v3766
    %5147 = vmatprep.subr.bf16.mxu0 0
    %5148 = vmatpush2.bf16.msra.mxu0 %v3765
    %5149 = vmatprep.mubr.bf16.mxu0 %v419
    %5150 = vmatmul.mubr.bf16.gmra.mxu0 %v418
    %v5151 = vpop.f32.mrf.mxu0
    %v5152 = vadd.f32 %v5112, %v5151
    %v5153 = vpop.f32.mrf.mxu0
    %v5154 = vpop.f32.mrf.mxu0
    %v5155 = vpop.f32.mrf.mxu0
    %5156 = vdwg.mxu0
    %5157 = vmatprep.subr.bf16.mxu0 0
    %5158 = vmatpush1.bf16.msra.mxu0 %v3780
    %5159 = vmatprep.subr.bf16.mxu0 0
    %5160 = vmatpush1.bf16.msra.mxu0 %v3779
    %5161 = vmatprep.subr.bf16.mxu0 0
    %5162 = vmatpush1.bf16.msra.mxu0 %v3778
    %5163 = vmatprep.subr.bf16.mxu0 0
    %5164 = vmatpush1.bf16.msra.mxu0 %v3777
    %5165 = vmatprep.subr.bf16.mxu0 0
    %5166 = vmatpush1.bf16.msra.mxu0 %v3776
    %5167 = vmatprep.subr.bf16.mxu0 0
    %5168 = vmatpush1.bf16.msra.mxu0 %v3775
    %5169 = vmatprep.subr.bf16.mxu0 0
    %5170 = vmatpush1.bf16.msra.mxu0 %v3774
    %5171 = vmatprep.subr.bf16.mxu0 0
    %5172 = vmatpush1.bf16.msra.mxu0 %v3773
    %5173 = vmatprep.subr.bf16.mxu0 0
    %5174 = vmatpush2.bf16.msra.mxu0 %v3788
    %5175 = vmatprep.subr.bf16.mxu0 0
    %5176 = vmatpush2.bf16.msra.mxu0 %v3787
    %5177 = vmatprep.subr.bf16.mxu0 0
    %5178 = vmatpush2.bf16.msra.mxu0 %v3786
    %5179 = vmatprep.subr.bf16.mxu0 0
    %5180 = vmatpush2.bf16.msra.mxu0 %v3785
    %5181 = vmatprep.subr.bf16.mxu0 0
    %5182 = vmatpush2.bf16.msra.mxu0 %v3784
    %5183 = vmatprep.subr.bf16.mxu0 0
    %5184 = vmatpush2.bf16.msra.mxu0 %v3783
    %5185 = vmatprep.subr.bf16.mxu0 0
    %5186 = vmatpush2.bf16.msra.mxu0 %v3782
    %5187 = vmatprep.subr.bf16.mxu0 0
    %5188 = vmatpush2.bf16.msra.mxu0 %v3781
    %5189 = vmatprep.mubr.bf16.mxu0 %v421
    %5190 = vmatmul.mubr.bf16.gmra.mxu0 %v420
    %v5191 = vpop.f32.mrf.mxu0
    %v5192 = vadd.f32 %v5152, %v5191
    %v5193 = vpop.f32.mrf.mxu0
    %v5194 = vpop.f32.mrf.mxu0
    %v5195 = vpop.f32.mrf.mxu0
    %5196 = vdwg.mxu0
    %5197 = vmatprep.subr.bf16.mxu0 0
    %5198 = vmatpush1.bf16.msra.mxu0 %v3796
    %5199 = vmatprep.subr.bf16.mxu0 0
    %5200 = vmatpush1.bf16.msra.mxu0 %v3795
    %5201 = vmatprep.subr.bf16.mxu0 0
    %5202 = vmatpush1.bf16.msra.mxu0 %v3794
    %5203 = vmatprep.subr.bf16.mxu0 0
    %5204 = vmatpush1.bf16.msra.mxu0 %v3793
    %5205 = vmatprep.subr.bf16.mxu0 0
    %5206 = vmatpush1.bf16.msra.mxu0 %v3792
    %5207 = vmatprep.subr.bf16.mxu0 0
    %5208 = vmatpush1.bf16.msra.mxu0 %v3791
    %5209 = vmatprep.subr.bf16.mxu0 0
    %5210 = vmatpush1.bf16.msra.mxu0 %v3790
    %5211 = vmatprep.subr.bf16.mxu0 0
    %5212 = vmatpush1.bf16.msra.mxu0 %v3789
    %5213 = vmatprep.subr.bf16.mxu0 0
    %5214 = vmatpush2.bf16.msra.mxu0 %v3804
    %5215 = vmatprep.subr.bf16.mxu0 0
    %5216 = vmatpush2.bf16.msra.mxu0 %v3803
    %5217 = vmatprep.subr.bf16.mxu0 0
    %5218 = vmatpush2.bf16.msra.mxu0 %v3802
    %5219 = vmatprep.subr.bf16.mxu0 0
    %5220 = vmatpush2.bf16.msra.mxu0 %v3801
    %5221 = vmatprep.subr.bf16.mxu0 0
    %5222 = vmatpush2.bf16.msra.mxu0 %v3800
    %5223 = vmatprep.subr.bf16.mxu0 0
    %5224 = vmatpush2.bf16.msra.mxu0 %v3799
    %5225 = vmatprep.subr.bf16.mxu0 0
    %5226 = vmatpush2.bf16.msra.mxu0 %v3798
    %5227 = vmatprep.subr.bf16.mxu0 0
    %5228 = vmatpush2.bf16.msra.mxu0 %v3797
    %5229 = vmatprep.mubr.bf16.mxu0 %v423
    %5230 = vmatmul.mubr.bf16.gmra.mxu0 %v422
    %v5231 = vpop.f32.mrf.mxu0
    %v5232 = vadd.f32 %v5192, %v5231
    %v5233 = vpop.f32.mrf.mxu0
    %v5234 = vpop.f32.mrf.mxu0
    %v5235 = vpop.f32.mrf.mxu0
    %5236 = vdwg.mxu0
    %5237 = vmatprep.subr.bf16.mxu0 0
    %5238 = vmatpush1.bf16.msra.mxu0 %v3812
    %5239 = vmatprep.subr.bf16.mxu0 0
    %5240 = vmatpush1.bf16.msra.mxu0 %v3811
    %5241 = vmatprep.subr.bf16.mxu0 0
    %5242 = vmatpush1.bf16.msra.mxu0 %v3810
    %5243 = vmatprep.subr.bf16.mxu0 0
    %5244 = vmatpush1.bf16.msra.mxu0 %v3809
    %5245 = vmatprep.subr.bf16.mxu0 0
    %5246 = vmatpush1.bf16.msra.mxu0 %v3808
    %5247 = vmatprep.subr.bf16.mxu0 0
    %5248 = vmatpush1.bf16.msra.mxu0 %v3807
    %5249 = vmatprep.subr.bf16.mxu0 0
    %5250 = vmatpush1.bf16.msra.mxu0 %v3806
    %5251 = vmatprep.subr.bf16.mxu0 0
    %5252 = vmatpush1.bf16.msra.mxu0 %v3805
    %5253 = vmatprep.subr.bf16.mxu0 0
    %5254 = vmatpush2.bf16.msra.mxu0 %v3820
    %5255 = vmatprep.subr.bf16.mxu0 0
    %5256 = vmatpush2.bf16.msra.mxu0 %v3819
    %5257 = vmatprep.subr.bf16.mxu0 0
    %5258 = vmatpush2.bf16.msra.mxu0 %v3818
    %5259 = vmatprep.subr.bf16.mxu0 0
    %5260 = vmatpush2.bf16.msra.mxu0 %v3817
    %5261 = vmatprep.subr.bf16.mxu0 0
    %5262 = vmatpush2.bf16.msra.mxu0 %v3816
    %5263 = vmatprep.subr.bf16.mxu0 0
    %5264 = vmatpush2.bf16.msra.mxu0 %v3815
    %5265 = vmatprep.subr.bf16.mxu0 0
    %5266 = vmatpush2.bf16.msra.mxu0 %v3814
    %5267 = vmatprep.subr.bf16.mxu0 0
    %5268 = vmatpush2.bf16.msra.mxu0 %v3813
    %5269 = vmatprep.mubr.bf16.mxu0 %v425
    %5270 = vmatmul.mubr.bf16.gmra.mxu0 %v424
    %v5271 = vpop.f32.mrf.mxu0
    %v5272 = vadd.f32 %v5232, %v5271
    %v5273 = vpop.f32.mrf.mxu0
    %v5274 = vpop.f32.mrf.mxu0
    %v5275 = vpop.f32.mrf.mxu0
    %5276 = vdwg.mxu0
    %5277 = vmatprep.subr.bf16.mxu0 0
    %5278 = vmatpush1.bf16.msra.mxu0 %v3828
    %5279 = vmatprep.subr.bf16.mxu0 0
    %5280 = vmatpush1.bf16.msra.mxu0 %v3827
    %5281 = vmatprep.subr.bf16.mxu0 0
    %5282 = vmatpush1.bf16.msra.mxu0 %v3826
    %5283 = vmatprep.subr.bf16.mxu0 0
    %5284 = vmatpush1.bf16.msra.mxu0 %v3825
    %5285 = vmatprep.subr.bf16.mxu0 0
    %5286 = vmatpush1.bf16.msra.mxu0 %v3824
    %5287 = vmatprep.subr.bf16.mxu0 0
    %5288 = vmatpush1.bf16.msra.mxu0 %v3823
    %5289 = vmatprep.subr.bf16.mxu0 0
    %5290 = vmatpush1.bf16.msra.mxu0 %v3822
    %5291 = vmatprep.subr.bf16.mxu0 0
    %5292 = vmatpush1.bf16.msra.mxu0 %v3821
    %5293 = vmatprep.subr.bf16.mxu0 0
    %5294 = vmatpush2.bf16.msra.mxu0 %v3836
    %5295 = vmatprep.subr.bf16.mxu0 0
    %5296 = vmatpush2.bf16.msra.mxu0 %v3835
    %5297 = vmatprep.subr.bf16.mxu0 0
    %5298 = vmatpush2.bf16.msra.mxu0 %v3834
    %5299 = vmatprep.subr.bf16.mxu0 0
    %5300 = vmatpush2.bf16.msra.mxu0 %v3833
    %5301 = vmatprep.subr.bf16.mxu0 0
    %5302 = vmatpush2.bf16.msra.mxu0 %v3832
    %5303 = vmatprep.subr.bf16.mxu0 0
    %5304 = vmatpush2.bf16.msra.mxu0 %v3831
    %5305 = vmatprep.subr.bf16.mxu0 0
    %5306 = vmatpush2.bf16.msra.mxu0 %v3830
    %5307 = vmatprep.subr.bf16.mxu0 0
    %5308 = vmatpush2.bf16.msra.mxu0 %v3829
    %5309 = vmatprep.mubr.bf16.mxu0 %v427
    %5310 = vmatmul.mubr.bf16.gmra.mxu0 %v426
    %v5311 = vpop.f32.mrf.mxu0
    %v5312 = vadd.f32 %v5272, %v5311
    %v5313 = vpop.f32.mrf.mxu0
    %v5314 = vpop.f32.mrf.mxu0
    %v5315 = vpop.f32.mrf.mxu0
    %5316 = vdwg.mxu0
    %5317 = vmatprep.subr.bf16.mxu0 0
    %5318 = vmatpush1.bf16.msra.mxu0 %v3844
    %5319 = vmatprep.subr.bf16.mxu0 0
    %5320 = vmatpush1.bf16.msra.mxu0 %v3843
    %5321 = vmatprep.subr.bf16.mxu0 0
    %5322 = vmatpush1.bf16.msra.mxu0 %v3842
    %5323 = vmatprep.subr.bf16.mxu0 0
    %5324 = vmatpush1.bf16.msra.mxu0 %v3841
    %5325 = vmatprep.subr.bf16.mxu0 0
    %5326 = vmatpush1.bf16.msra.mxu0 %v3840
    %5327 = vmatprep.subr.bf16.mxu0 0
    %5328 = vmatpush1.bf16.msra.mxu0 %v3839
    %5329 = vmatprep.subr.bf16.mxu0 0
    %5330 = vmatpush1.bf16.msra.mxu0 %v3838
    %5331 = vmatprep.subr.bf16.mxu0 0
    %5332 = vmatpush1.bf16.msra.mxu0 %v3837
    %5333 = vmatprep.subr.bf16.mxu0 0
    %5334 = vmatpush2.bf16.msra.mxu0 %v3852
    %5335 = vmatprep.subr.bf16.mxu0 0
    %5336 = vmatpush2.bf16.msra.mxu0 %v3851
    %5337 = vmatprep.subr.bf16.mxu0 0
    %5338 = vmatpush2.bf16.msra.mxu0 %v3850
    %5339 = vmatprep.subr.bf16.mxu0 0
    %5340 = vmatpush2.bf16.msra.mxu0 %v3849
    %5341 = vmatprep.subr.bf16.mxu0 0
    %5342 = vmatpush2.bf16.msra.mxu0 %v3848
    %5343 = vmatprep.subr.bf16.mxu0 0
    %5344 = vmatpush2.bf16.msra.mxu0 %v3847
    %5345 = vmatprep.subr.bf16.mxu0 0
    %5346 = vmatpush2.bf16.msra.mxu0 %v3846
    %5347 = vmatprep.subr.bf16.mxu0 0
    %5348 = vmatpush2.bf16.msra.mxu0 %v3845
    %5349 = vmatprep.mubr.bf16.mxu0 %v429
    %5350 = vmatmul.mubr.bf16.gmra.mxu0 %v428
    %v5351 = vpop.f32.mrf.mxu0
    %v5352 = vadd.f32 %v5312, %v5351
    %v5353 = vpop.f32.mrf.mxu0
    %v5354 = vpop.f32.mrf.mxu0
    %v5355 = vpop.f32.mrf.mxu0
    %5356 = vdwg.mxu0
    %5357 = vmatprep.subr.bf16.mxu0 0
    %5358 = vmatpush1.bf16.msra.mxu0 %v3860
    %5359 = vmatprep.subr.bf16.mxu0 0
    %5360 = vmatpush1.bf16.msra.mxu0 %v3859
    %5361 = vmatprep.subr.bf16.mxu0 0
    %5362 = vmatpush1.bf16.msra.mxu0 %v3858
    %5363 = vmatprep.subr.bf16.mxu0 0
    %5364 = vmatpush1.bf16.msra.mxu0 %v3857
    %5365 = vmatprep.subr.bf16.mxu0 0
    %5366 = vmatpush1.bf16.msra.mxu0 %v3856
    %5367 = vmatprep.subr.bf16.mxu0 0
    %5368 = vmatpush1.bf16.msra.mxu0 %v3855
    %5369 = vmatprep.subr.bf16.mxu0 0
    %5370 = vmatpush1.bf16.msra.mxu0 %v3854
    %5371 = vmatprep.subr.bf16.mxu0 0
    %5372 = vmatpush1.bf16.msra.mxu0 %v3853
    %5373 = vmatprep.subr.bf16.mxu0 0
    %5374 = vmatpush2.bf16.msra.mxu0 %v3868
    %5375 = vmatprep.subr.bf16.mxu0 0
    %5376 = vmatpush2.bf16.msra.mxu0 %v3867
    %5377 = vmatprep.subr.bf16.mxu0 0
    %5378 = vmatpush2.bf16.msra.mxu0 %v3866
    %5379 = vmatprep.subr.bf16.mxu0 0
    %5380 = vmatpush2.bf16.msra.mxu0 %v3865
    %5381 = vmatprep.subr.bf16.mxu0 0
    %5382 = vmatpush2.bf16.msra.mxu0 %v3864
    %5383 = vmatprep.subr.bf16.mxu0 0
    %5384 = vmatpush2.bf16.msra.mxu0 %v3863
    %5385 = vmatprep.subr.bf16.mxu0 0
    %5386 = vmatpush2.bf16.msra.mxu0 %v3862
    %5387 = vmatprep.subr.bf16.mxu0 0
    %5388 = vmatpush2.bf16.msra.mxu0 %v3861
    %5389 = vmatprep.mubr.bf16.mxu0 %v431
    %5390 = vmatmul.mubr.bf16.gmra.mxu0 %v430
    %v5391 = vpop.f32.mrf.mxu0
    %v5392 = vadd.f32 %v5352, %v5391
    %v5393 = vpop.f32.mrf.mxu0
    %v5394 = vpop.f32.mrf.mxu0
    %v5395 = vpop.f32.mrf.mxu0
    %5396 = vdwg.mxu0
    %5397 = vmatprep.subr.bf16.mxu0 0
    %5398 = vmatpush1.bf16.msra.mxu0 %v3876
    %5399 = vmatprep.subr.bf16.mxu0 0
    %5400 = vmatpush1.bf16.msra.mxu0 %v3875
    %5401 = vmatprep.subr.bf16.mxu0 0
    %5402 = vmatpush1.bf16.msra.mxu0 %v3874
    %5403 = vmatprep.subr.bf16.mxu0 0
    %5404 = vmatpush1.bf16.msra.mxu0 %v3873
    %5405 = vmatprep.subr.bf16.mxu0 0
    %5406 = vmatpush1.bf16.msra.mxu0 %v3872
    %5407 = vmatprep.subr.bf16.mxu0 0
    %5408 = vmatpush1.bf16.msra.mxu0 %v3871
    %5409 = vmatprep.subr.bf16.mxu0 0
    %5410 = vmatpush1.bf16.msra.mxu0 %v3870
    %5411 = vmatprep.subr.bf16.mxu0 0
    %5412 = vmatpush1.bf16.msra.mxu0 %v3869
    %5413 = vmatprep.subr.bf16.mxu0 0
    %5414 = vmatpush2.bf16.msra.mxu0 %v3884
    %5415 = vmatprep.subr.bf16.mxu0 0
    %5416 = vmatpush2.bf16.msra.mxu0 %v3883
    %5417 = vmatprep.subr.bf16.mxu0 0
    %5418 = vmatpush2.bf16.msra.mxu0 %v3882
    %5419 = vmatprep.subr.bf16.mxu0 0
    %5420 = vmatpush2.bf16.msra.mxu0 %v3881
    %5421 = vmatprep.subr.bf16.mxu0 0
    %5422 = vmatpush2.bf16.msra.mxu0 %v3880
    %5423 = vmatprep.subr.bf16.mxu0 0
    %5424 = vmatpush2.bf16.msra.mxu0 %v3879
    %5425 = vmatprep.subr.bf16.mxu0 0
    %5426 = vmatpush2.bf16.msra.mxu0 %v3878
    %5427 = vmatprep.subr.bf16.mxu0 0
    %5428 = vmatpush2.bf16.msra.mxu0 %v3877
    %5429 = vmatprep.mubr.bf16.mxu0 %v433
    %5430 = vmatmul.mubr.bf16.gmra.mxu0 %v432
    %v5431 = vpop.f32.mrf.mxu0
    %v5432 = vadd.f32 %v5392, %v5431
    %v5433 = vpop.f32.mrf.mxu0
    %v5434 = vpop.f32.mrf.mxu0
    %v5435 = vpop.f32.mrf.mxu0
    %5436 = vdwg.mxu0
    %5437 = vmatprep.subr.bf16.mxu0 0
    %5438 = vmatpush1.bf16.msra.mxu0 %v3892
    %5439 = vmatprep.subr.bf16.mxu0 0
    %5440 = vmatpush1.bf16.msra.mxu0 %v3891
    %5441 = vmatprep.subr.bf16.mxu0 0
    %5442 = vmatpush1.bf16.msra.mxu0 %v3890
    %5443 = vmatprep.subr.bf16.mxu0 0
    %5444 = vmatpush1.bf16.msra.mxu0 %v3889
    %5445 = vmatprep.subr.bf16.mxu0 0
    %5446 = vmatpush1.bf16.msra.mxu0 %v3888
    %5447 = vmatprep.subr.bf16.mxu0 0
    %5448 = vmatpush1.bf16.msra.mxu0 %v3887
    %5449 = vmatprep.subr.bf16.mxu0 0
    %5450 = vmatpush1.bf16.msra.mxu0 %v3886
    %5451 = vmatprep.subr.bf16.mxu0 0
    %5452 = vmatpush1.bf16.msra.mxu0 %v3885
    %5453 = vmatprep.subr.bf16.mxu0 0
    %5454 = vmatpush2.bf16.msra.mxu0 %v3900
    %5455 = vmatprep.subr.bf16.mxu0 0
    %5456 = vmatpush2.bf16.msra.mxu0 %v3899
    %5457 = vmatprep.subr.bf16.mxu0 0
    %5458 = vmatpush2.bf16.msra.mxu0 %v3898
    %5459 = vmatprep.subr.bf16.mxu0 0
    %5460 = vmatpush2.bf16.msra.mxu0 %v3897
    %5461 = vmatprep.subr.bf16.mxu0 0
    %5462 = vmatpush2.bf16.msra.mxu0 %v3896
    %5463 = vmatprep.subr.bf16.mxu0 0
    %5464 = vmatpush2.bf16.msra.mxu0 %v3895
    %5465 = vmatprep.subr.bf16.mxu0 0
    %5466 = vmatpush2.bf16.msra.mxu0 %v3894
    %5467 = vmatprep.subr.bf16.mxu0 0
    %5468 = vmatpush2.bf16.msra.mxu0 %v3893
    %5469 = vmatprep.mubr.bf16.mxu0 %v435
    %5470 = vmatmul.mubr.bf16.gmra.mxu0 %v434
    %v5471 = vpop.f32.mrf.mxu0
    %v5472 = vadd.f32 %v5432, %v5471
    %v5473 = vpop.f32.mrf.mxu0
    %v5474 = vpop.f32.mrf.mxu0
    %v5475 = vpop.f32.mrf.mxu0
    %5476 = vdwg.mxu0
    %5477 = vmatprep.subr.bf16.mxu0 0
    %5478 = vmatpush1.bf16.msra.mxu0 %v3908
    %5479 = vmatprep.subr.bf16.mxu0 0
    %5480 = vmatpush1.bf16.msra.mxu0 %v3907
    %5481 = vmatprep.subr.bf16.mxu0 0
    %5482 = vmatpush1.bf16.msra.mxu0 %v3906
    %5483 = vmatprep.subr.bf16.mxu0 0
    %5484 = vmatpush1.bf16.msra.mxu0 %v3905
    %5485 = vmatprep.subr.bf16.mxu0 0
    %5486 = vmatpush1.bf16.msra.mxu0 %v3904
    %5487 = vmatprep.subr.bf16.mxu0 0
    %5488 = vmatpush1.bf16.msra.mxu0 %v3903
    %5489 = vmatprep.subr.bf16.mxu0 0
    %5490 = vmatpush1.bf16.msra.mxu0 %v3902
    %5491 = vmatprep.subr.bf16.mxu0 0
    %5492 = vmatpush1.bf16.msra.mxu0 %v3901
    %5493 = vmatprep.subr.bf16.mxu0 0
    %5494 = vmatpush2.bf16.msra.mxu0 %v3916
    %5495 = vmatprep.subr.bf16.mxu0 0
    %5496 = vmatpush2.bf16.msra.mxu0 %v3915
    %5497 = vmatprep.subr.bf16.mxu0 0
    %5498 = vmatpush2.bf16.msra.mxu0 %v3914
    %5499 = vmatprep.subr.bf16.mxu0 0
    %5500 = vmatpush2.bf16.msra.mxu0 %v3913
    %5501 = vmatprep.subr.bf16.mxu0 0
    %5502 = vmatpush2.bf16.msra.mxu0 %v3912
    %5503 = vmatprep.subr.bf16.mxu0 0
    %5504 = vmatpush2.bf16.msra.mxu0 %v3911
    %5505 = vmatprep.subr.bf16.mxu0 0
    %5506 = vmatpush2.bf16.msra.mxu0 %v3910
    %5507 = vmatprep.subr.bf16.mxu0 0
    %5508 = vmatpush2.bf16.msra.mxu0 %v3909
    %5509 = vmatprep.mubr.bf16.mxu0 %v437
    %5510 = vmatmul.mubr.bf16.gmra.mxu0 %v436
    %v5511 = vpop.f32.mrf.mxu0
    %v5512 = vadd.f32 %v5472, %v5511
    %v5513 = vpop.f32.mrf.mxu0
    %v5514 = vpop.f32.mrf.mxu0
    %v5515 = vpop.f32.mrf.mxu0
    %5516 = vdwg.mxu0
    %5517 = vmatprep.subr.bf16.mxu0 0
    %5518 = vmatpush1.bf16.msra.mxu0 %v3924
    %5519 = vmatprep.subr.bf16.mxu0 0
    %5520 = vmatpush1.bf16.msra.mxu0 %v3923
    %5521 = vmatprep.subr.bf16.mxu0 0
    %5522 = vmatpush1.bf16.msra.mxu0 %v3922
    %5523 = vmatprep.subr.bf16.mxu0 0
    %5524 = vmatpush1.bf16.msra.mxu0 %v3921
    %5525 = vmatprep.subr.bf16.mxu0 0
    %5526 = vmatpush1.bf16.msra.mxu0 %v3920
    %5527 = vmatprep.subr.bf16.mxu0 0
    %5528 = vmatpush1.bf16.msra.mxu0 %v3919
    %5529 = vmatprep.subr.bf16.mxu0 0
    %5530 = vmatpush1.bf16.msra.mxu0 %v3918
    %5531 = vmatprep.subr.bf16.mxu0 0
    %5532 = vmatpush1.bf16.msra.mxu0 %v3917
    %5533 = vmatprep.subr.bf16.mxu0 0
    %5534 = vmatpush2.bf16.msra.mxu0 %v3932
    %5535 = vmatprep.subr.bf16.mxu0 0
    %5536 = vmatpush2.bf16.msra.mxu0 %v3931
    %5537 = vmatprep.subr.bf16.mxu0 0
    %5538 = vmatpush2.bf16.msra.mxu0 %v3930
    %5539 = vmatprep.subr.bf16.mxu0 0
    %5540 = vmatpush2.bf16.msra.mxu0 %v3929
    %5541 = vmatprep.subr.bf16.mxu0 0
    %5542 = vmatpush2.bf16.msra.mxu0 %v3928
    %5543 = vmatprep.subr.bf16.mxu0 0
    %5544 = vmatpush2.bf16.msra.mxu0 %v3927
    %5545 = vmatprep.subr.bf16.mxu0 0
    %5546 = vmatpush2.bf16.msra.mxu0 %v3926
    %5547 = vmatprep.subr.bf16.mxu0 0
    %5548 = vmatpush2.bf16.msra.mxu0 %v3925
    %5549 = vmatprep.mubr.bf16.mxu0 %v439
    %5550 = vmatmul.mubr.bf16.gmra.mxu0 %v438
    %v5551 = vpop.f32.mrf.mxu0
    %v5552 = vadd.f32 %v5512, %v5551
    %v5553 = vpop.f32.mrf.mxu0
    %v5554 = vpop.f32.mrf.mxu0
    %v5555 = vpop.f32.mrf.mxu0
    %5556 = vdwg.mxu0
    %5557 = vmatprep.subr.bf16.mxu0 0
    %5558 = vmatpush1.bf16.msra.mxu0 %v3940
    %5559 = vmatprep.subr.bf16.mxu0 0
    %5560 = vmatpush1.bf16.msra.mxu0 %v3939
    %5561 = vmatprep.subr.bf16.mxu0 0
    %5562 = vmatpush1.bf16.msra.mxu0 %v3938
    %5563 = vmatprep.subr.bf16.mxu0 0
    %5564 = vmatpush1.bf16.msra.mxu0 %v3937
    %5565 = vmatprep.subr.bf16.mxu0 0
    %5566 = vmatpush1.bf16.msra.mxu0 %v3936
    %5567 = vmatprep.subr.bf16.mxu0 0
    %5568 = vmatpush1.bf16.msra.mxu0 %v3935
    %5569 = vmatprep.subr.bf16.mxu0 0
    %5570 = vmatpush1.bf16.msra.mxu0 %v3934
    %5571 = vmatprep.subr.bf16.mxu0 0
    %5572 = vmatpush1.bf16.msra.mxu0 %v3933
    %5573 = vmatprep.subr.bf16.mxu0 0
    %5574 = vmatpush2.bf16.msra.mxu0 %v3948
    %5575 = vmatprep.subr.bf16.mxu0 0
    %5576 = vmatpush2.bf16.msra.mxu0 %v3947
    %5577 = vmatprep.subr.bf16.mxu0 0
    %5578 = vmatpush2.bf16.msra.mxu0 %v3946
    %5579 = vmatprep.subr.bf16.mxu0 0
    %5580 = vmatpush2.bf16.msra.mxu0 %v3945
    %5581 = vmatprep.subr.bf16.mxu0 0
    %5582 = vmatpush2.bf16.msra.mxu0 %v3944
    %5583 = vmatprep.subr.bf16.mxu0 0
    %5584 = vmatpush2.bf16.msra.mxu0 %v3943
    %5585 = vmatprep.subr.bf16.mxu0 0
    %5586 = vmatpush2.bf16.msra.mxu0 %v3942
    %5587 = vmatprep.subr.bf16.mxu0 0
    %5588 = vmatpush2.bf16.msra.mxu0 %v3941
    %5589 = vmatprep.mubr.bf16.mxu0 %v441
    %5590 = vmatmul.mubr.bf16.gmra.mxu0 %v440
    %v5591 = vpop.f32.mrf.mxu0
    %v5592 = vadd.f32 %v5552, %v5591
    %v5593 = vpop.f32.mrf.mxu0
    %v5594 = vpop.f32.mrf.mxu0
    %v5595 = vpop.f32.mrf.mxu0
    %5596 = vdwg.mxu0
    %5597 = vmatprep.subr.bf16.mxu0 0
    %5598 = vmatpush1.bf16.msra.mxu0 %v3956
    %5599 = vmatprep.subr.bf16.mxu0 0
    %5600 = vmatpush1.bf16.msra.mxu0 %v3955
    %5601 = vmatprep.subr.bf16.mxu0 0
    %5602 = vmatpush1.bf16.msra.mxu0 %v3954
    %5603 = vmatprep.subr.bf16.mxu0 0
    %5604 = vmatpush1.bf16.msra.mxu0 %v3953
    %5605 = vmatprep.subr.bf16.mxu0 0
    %5606 = vmatpush1.bf16.msra.mxu0 %v3952
    %5607 = vmatprep.subr.bf16.mxu0 0
    %5608 = vmatpush1.bf16.msra.mxu0 %v3951
    %5609 = vmatprep.subr.bf16.mxu0 0
    %5610 = vmatpush1.bf16.msra.mxu0 %v3950
    %5611 = vmatprep.subr.bf16.mxu0 0
    %5612 = vmatpush1.bf16.msra.mxu0 %v3949
    %5613 = vmatprep.subr.bf16.mxu0 0
    %5614 = vmatpush2.bf16.msra.mxu0 %v3964
    %5615 = vmatprep.subr.bf16.mxu0 0
    %5616 = vmatpush2.bf16.msra.mxu0 %v3963
    %5617 = vmatprep.subr.bf16.mxu0 0
    %5618 = vmatpush2.bf16.msra.mxu0 %v3962
    %5619 = vmatprep.subr.bf16.mxu0 0
    %5620 = vmatpush2.bf16.msra.mxu0 %v3961
    %5621 = vmatprep.subr.bf16.mxu0 0
    %5622 = vmatpush2.bf16.msra.mxu0 %v3960
    %5623 = vmatprep.subr.bf16.mxu0 0
    %5624 = vmatpush2.bf16.msra.mxu0 %v3959
    %5625 = vmatprep.subr.bf16.mxu0 0
    %5626 = vmatpush2.bf16.msra.mxu0 %v3958
    %5627 = vmatprep.subr.bf16.mxu0 0
    %5628 = vmatpush2.bf16.msra.mxu0 %v3957
    %5629 = vmatprep.mubr.bf16.mxu0 %v443
    %5630 = vmatmul.mubr.bf16.gmra.mxu0 %v442
    %v5631 = vpop.f32.mrf.mxu0
    %v5632 = vadd.f32 %v5592, %v5631
    %v5633 = vpop.f32.mrf.mxu0
    %v5634 = vpop.f32.mrf.mxu0
    %v5635 = vpop.f32.mrf.mxu0
    %5636 = vdwg.mxu0
    %5637 = vmatprep.subr.bf16.mxu0 0
    %5638 = vmatpush1.bf16.msra.mxu0 %v3972
    %5639 = vmatprep.subr.bf16.mxu0 0
    %5640 = vmatpush1.bf16.msra.mxu0 %v3971
    %5641 = vmatprep.subr.bf16.mxu0 0
    %5642 = vmatpush1.bf16.msra.mxu0 %v3970
    %5643 = vmatprep.subr.bf16.mxu0 0
    %5644 = vmatpush1.bf16.msra.mxu0 %v3969
    %5645 = vmatprep.subr.bf16.mxu0 0
    %5646 = vmatpush1.bf16.msra.mxu0 %v3968
    %5647 = vmatprep.subr.bf16.mxu0 0
    %5648 = vmatpush1.bf16.msra.mxu0 %v3967
    %5649 = vmatprep.subr.bf16.mxu0 0
    %5650 = vmatpush1.bf16.msra.mxu0 %v3966
    %5651 = vmatprep.subr.bf16.mxu0 0
    %5652 = vmatpush1.bf16.msra.mxu0 %v3965
    %5653 = vmatprep.subr.bf16.mxu0 0
    %5654 = vmatpush2.bf16.msra.mxu0 %v3980
    %5655 = vmatprep.subr.bf16.mxu0 0
    %5656 = vmatpush2.bf16.msra.mxu0 %v3979
    %5657 = vmatprep.subr.bf16.mxu0 0
    %5658 = vmatpush2.bf16.msra.mxu0 %v3978
    %5659 = vmatprep.subr.bf16.mxu0 0
    %5660 = vmatpush2.bf16.msra.mxu0 %v3977
    %5661 = vmatprep.subr.bf16.mxu0 0
    %5662 = vmatpush2.bf16.msra.mxu0 %v3976
    %5663 = vmatprep.subr.bf16.mxu0 0
    %5664 = vmatpush2.bf16.msra.mxu0 %v3975
    %5665 = vmatprep.subr.bf16.mxu0 0
    %5666 = vmatpush2.bf16.msra.mxu0 %v3974
    %5667 = vmatprep.subr.bf16.mxu0 0
    %5668 = vmatpush2.bf16.msra.mxu0 %v3973
    %5669 = vmatprep.mubr.bf16.mxu0 %v445
    %5670 = vmatmul.mubr.bf16.gmra.mxu0 %v444
    %v5671 = vpop.f32.mrf.mxu0
    %v5672 = vadd.f32 %v5632, %v5671
    %v5673 = vpop.f32.mrf.mxu0
    %v5674 = vpop.f32.mrf.mxu0
    %v5675 = vpop.f32.mrf.mxu0
    %5676 = vdwg.mxu0
    %5677 = vmatprep.subr.bf16.mxu0 0
    %5678 = vmatpush1.bf16.msra.mxu0 %v3988
    %5679 = vmatprep.subr.bf16.mxu0 0
    %5680 = vmatpush1.bf16.msra.mxu0 %v3987
    %5681 = vmatprep.subr.bf16.mxu0 0
    %5682 = vmatpush1.bf16.msra.mxu0 %v3986
    %5683 = vmatprep.subr.bf16.mxu0 0
    %5684 = vmatpush1.bf16.msra.mxu0 %v3985
    %5685 = vmatprep.subr.bf16.mxu0 0
    %5686 = vmatpush1.bf16.msra.mxu0 %v3984
    %5687 = vmatprep.subr.bf16.mxu0 0
    %5688 = vmatpush1.bf16.msra.mxu0 %v3983
    %5689 = vmatprep.subr.bf16.mxu0 0
    %5690 = vmatpush1.bf16.msra.mxu0 %v3982
    %5691 = vmatprep.subr.bf16.mxu0 0
    %5692 = vmatpush1.bf16.msra.mxu0 %v3981
    %5693 = vmatprep.subr.bf16.mxu0 0
    %5694 = vmatpush2.bf16.msra.mxu0 %v3996
    %5695 = vmatprep.subr.bf16.mxu0 0
    %5696 = vmatpush2.bf16.msra.mxu0 %v3995
    %5697 = vmatprep.subr.bf16.mxu0 0
    %5698 = vmatpush2.bf16.msra.mxu0 %v3994
    %5699 = vmatprep.subr.bf16.mxu0 0
    %5700 = vmatpush2.bf16.msra.mxu0 %v3993
    %5701 = vmatprep.subr.bf16.mxu0 0
    %5702 = vmatpush2.bf16.msra.mxu0 %v3992
    %5703 = vmatprep.subr.bf16.mxu0 0
    %5704 = vmatpush2.bf16.msra.mxu0 %v3991
    %5705 = vmatprep.subr.bf16.mxu0 0
    %5706 = vmatpush2.bf16.msra.mxu0 %v3990
    %5707 = vmatprep.subr.bf16.mxu0 0
    %5708 = vmatpush2.bf16.msra.mxu0 %v3989
    %5709 = vmatprep.mubr.bf16.mxu0 %v447
    %5710 = vmatmul.mubr.bf16.gmra.mxu0 %v446
    %v5711 = vpop.f32.mrf.mxu0
    %v5712 = vadd.f32 %v5672, %v5711
    %v5713 = vpop.f32.mrf.mxu0
    %v5714 = vpop.f32.mrf.mxu0
    %v5715 = vpop.f32.mrf.mxu0
    %5716 = vdwg.mxu0
    %5717 = vmatprep.subr.bf16.mxu0 0
    %5718 = vmatpush1.bf16.msra.mxu0 %v4004
    %5719 = vmatprep.subr.bf16.mxu0 0
    %5720 = vmatpush1.bf16.msra.mxu0 %v4003
    %5721 = vmatprep.subr.bf16.mxu0 0
    %5722 = vmatpush1.bf16.msra.mxu0 %v4002
    %5723 = vmatprep.subr.bf16.mxu0 0
    %5724 = vmatpush1.bf16.msra.mxu0 %v4001
    %5725 = vmatprep.subr.bf16.mxu0 0
    %5726 = vmatpush1.bf16.msra.mxu0 %v4000
    %5727 = vmatprep.subr.bf16.mxu0 0
    %5728 = vmatpush1.bf16.msra.mxu0 %v3999
    %5729 = vmatprep.subr.bf16.mxu0 0
    %5730 = vmatpush1.bf16.msra.mxu0 %v3998
    %5731 = vmatprep.subr.bf16.mxu0 0
    %5732 = vmatpush1.bf16.msra.mxu0 %v3997
    %5733 = vmatprep.subr.bf16.mxu0 0
    %5734 = vmatpush2.bf16.msra.mxu0 %v4012
    %5735 = vmatprep.subr.bf16.mxu0 0
    %5736 = vmatpush2.bf16.msra.mxu0 %v4011
    %5737 = vmatprep.subr.bf16.mxu0 0
    %5738 = vmatpush2.bf16.msra.mxu0 %v4010
    %5739 = vmatprep.subr.bf16.mxu0 0
    %5740 = vmatpush2.bf16.msra.mxu0 %v4009
    %5741 = vmatprep.subr.bf16.mxu0 0
    %5742 = vmatpush2.bf16.msra.mxu0 %v4008
    %5743 = vmatprep.subr.bf16.mxu0 0
    %5744 = vmatpush2.bf16.msra.mxu0 %v4007
    %5745 = vmatprep.subr.bf16.mxu0 0
    %5746 = vmatpush2.bf16.msra.mxu0 %v4006
    %5747 = vmatprep.subr.bf16.mxu0 0
    %5748 = vmatpush2.bf16.msra.mxu0 %v4005
    %5749 = vmatprep.mubr.bf16.mxu0 %v449
    %5750 = vmatmul.mubr.bf16.gmra.mxu0 %v448
    %v5751 = vpop.f32.mrf.mxu0
    %v5752 = vadd.f32 %v5712, %v5751
    %v5753 = vpop.f32.mrf.mxu0
    %v5754 = vpop.f32.mrf.mxu0
    %v5755 = vpop.f32.mrf.mxu0
    %5756 = vdwg.mxu0
    %5757 = vmatprep.subr.bf16.mxu0 0
    %5758 = vmatpush1.bf16.msra.mxu0 %v4020
    %5759 = vmatprep.subr.bf16.mxu0 0
    %5760 = vmatpush1.bf16.msra.mxu0 %v4019
    %5761 = vmatprep.subr.bf16.mxu0 0
    %5762 = vmatpush1.bf16.msra.mxu0 %v4018
    %5763 = vmatprep.subr.bf16.mxu0 0
    %5764 = vmatpush1.bf16.msra.mxu0 %v4017
    %5765 = vmatprep.subr.bf16.mxu0 0
    %5766 = vmatpush1.bf16.msra.mxu0 %v4016
    %5767 = vmatprep.subr.bf16.mxu0 0
    %5768 = vmatpush1.bf16.msra.mxu0 %v4015
    %5769 = vmatprep.subr.bf16.mxu0 0
    %5770 = vmatpush1.bf16.msra.mxu0 %v4014
    %5771 = vmatprep.subr.bf16.mxu0 0
    %5772 = vmatpush1.bf16.msra.mxu0 %v4013
    %5773 = vmatprep.subr.bf16.mxu0 0
    %5774 = vmatpush2.bf16.msra.mxu0 %v4028
    %5775 = vmatprep.subr.bf16.mxu0 0
    %5776 = vmatpush2.bf16.msra.mxu0 %v4027
    %5777 = vmatprep.subr.bf16.mxu0 0
    %5778 = vmatpush2.bf16.msra.mxu0 %v4026
    %5779 = vmatprep.subr.bf16.mxu0 0
    %5780 = vmatpush2.bf16.msra.mxu0 %v4025
    %5781 = vmatprep.subr.bf16.mxu0 0
    %5782 = vmatpush2.bf16.msra.mxu0 %v4024
    %5783 = vmatprep.subr.bf16.mxu0 0
    %5784 = vmatpush2.bf16.msra.mxu0 %v4023
    %5785 = vmatprep.subr.bf16.mxu0 0
    %5786 = vmatpush2.bf16.msra.mxu0 %v4022
    %5787 = vmatprep.subr.bf16.mxu0 0
    %5788 = vmatpush2.bf16.msra.mxu0 %v4021
    %5789 = vmatprep.mubr.bf16.mxu0 %v451
    %5790 = vmatmul.mubr.bf16.gmra.mxu0 %v450
    %v5791 = vpop.f32.mrf.mxu0
    %v5792 = vadd.f32 %v5752, %v5791
    %v5793 = vpop.f32.mrf.mxu0
    %v5794 = vpop.f32.mrf.mxu0
    %v5795 = vpop.f32.mrf.mxu0
    %5796 = vdwg.mxu0
    %5797 = vmatprep.subr.bf16.mxu0 0
    %5798 = vmatpush1.bf16.msra.mxu0 %v4036
    %5799 = vmatprep.subr.bf16.mxu0 0
    %5800 = vmatpush1.bf16.msra.mxu0 %v4035
    %5801 = vmatprep.subr.bf16.mxu0 0
    %5802 = vmatpush1.bf16.msra.mxu0 %v4034
    %5803 = vmatprep.subr.bf16.mxu0 0
    %5804 = vmatpush1.bf16.msra.mxu0 %v4033
    %5805 = vmatprep.subr.bf16.mxu0 0
    %5806 = vmatpush1.bf16.msra.mxu0 %v4032
    %5807 = vmatprep.subr.bf16.mxu0 0
    %5808 = vmatpush1.bf16.msra.mxu0 %v4031
    %5809 = vmatprep.subr.bf16.mxu0 0
    %5810 = vmatpush1.bf16.msra.mxu0 %v4030
    %5811 = vmatprep.subr.bf16.mxu0 0
    %5812 = vmatpush1.bf16.msra.mxu0 %v4029
    %5813 = vmatprep.subr.bf16.mxu0 0
    %5814 = vmatpush2.bf16.msra.mxu0 %v4044
    %5815 = vmatprep.subr.bf16.mxu0 0
    %5816 = vmatpush2.bf16.msra.mxu0 %v4043
    %5817 = vmatprep.subr.bf16.mxu0 0
    %5818 = vmatpush2.bf16.msra.mxu0 %v4042
    %5819 = vmatprep.subr.bf16.mxu0 0
    %5820 = vmatpush2.bf16.msra.mxu0 %v4041
    %5821 = vmatprep.subr.bf16.mxu0 0
    %5822 = vmatpush2.bf16.msra.mxu0 %v4040
    %5823 = vmatprep.subr.bf16.mxu0 0
    %5824 = vmatpush2.bf16.msra.mxu0 %v4039
    %5825 = vmatprep.subr.bf16.mxu0 0
    %5826 = vmatpush2.bf16.msra.mxu0 %v4038
    %5827 = vmatprep.subr.bf16.mxu0 0
    %5828 = vmatpush2.bf16.msra.mxu0 %v4037
    %5829 = vmatprep.mubr.bf16.mxu0 %v453
    %5830 = vmatmul.mubr.bf16.gmra.mxu0 %v452
    %v5831 = vpop.f32.mrf.mxu0
    %v5832 = vadd.f32 %v5792, %v5831
    %v5833 = vpop.f32.mrf.mxu0
    %v5834 = vpop.f32.mrf.mxu0
    %v5835 = vpop.f32.mrf.mxu0
    %5836 = vdwg.mxu0
    %v5837 = vmax.f32 %v5832, 0.0
    %v5838 = vpack.c.bf16 %v5837, %v5837
    %v5839 = vld [vmem:[%s3] sm:$0xf]
    %v5840 = vld [vmem:[%s3 + $0x4] sm:$0xf]
    %v5841 = vld [vmem:[%s3 + $0x8] sm:$0xf]
    %v5842 = vld [vmem:[%s3 + $0xc] sm:$0xf]
    %v5843 = vld [vmem:[%s3 + $0x10] sm:$0xf]
    %v5844 = vld [vmem:[%s3 + $0x14] sm:$0xf]
    %v5845 = vld [vmem:[%s3 + $0x18] sm:$0xf]
    %v5846 = vld [vmem:[%s3 + $0x1c] sm:$0xf]
    %v5847 = vld [vmem:[%s4] sm:$0x1]
    %v5849 = vlaneseq
    %v5850 = vshrl.u32 %v5849, 7
    %v5851 = vsub.s32 0, %v5850
    %v5852 = vrot.slane %v5847, %v5851
    %v5862 = vunpack.c.l.b16 %v5839
    %v5863 = vunpack.c.l.b16 %v5840
    %v5864 = vunpack.c.l.b16 %v5841
    %v5865 = vunpack.c.l.b16 %v5842
    %v5866 = vunpack.c.l.b16 %v5843
    %v5867 = vunpack.c.l.b16 %v5844
    %v5868 = vunpack.c.l.b16 %v5845
    %v5869 = vunpack.c.l.b16 %v5846
    %v5870 = vpack.c.b16 %v5863, %v5862
    %v5871 = vpack.c.b16 %v5865, %v5864
    %v5872 = vpack.c.b16 %v5867, %v5866
    %v5873 = vpack.c.b16 %v5869, %v5868
    %vm5878 = vcmask 523264
    %v5880 = vsel %vm5878, %v5838, 0
    %5882 = vmatprep.subr.bf16.mxu0 0
    %5883 = vmatpush1.bf16.msra.mxu0 0
    %5884 = vmatprep.subr.bf16.mxu0 0
    %5885 = vmatpush1.bf16.msra.mxu0 0
    %5886 = vmatprep.subr.bf16.mxu0 0
    %5887 = vmatpush1.bf16.msra.mxu0 0
    %5888 = vmatprep.subr.bf16.mxu0 0
    %5889 = vmatpush1.bf16.msra.mxu0 0
    %5890 = vmatprep.subr.bf16.mxu0 0
    %5891 = vmatpush1.bf16.msra.mxu0 %v5873
    %5892 = vmatprep.subr.bf16.mxu0 0
    %5893 = vmatpush1.bf16.msra.mxu0 %v5872
    %5894 = vmatprep.subr.bf16.mxu0 0
    %5895 = vmatpush1.bf16.msra.mxu0 %v5871
    %5896 = vmatprep.subr.bf16.mxu0 0
    %5897 = vmatpush1.bf16.msra.mxu0 %v5870
    %5898 = vmatprep.subr.bf16.mxu0 0
    %5899 = vmatpush2.bf16.msra.mxu0 0
    %5900 = vmatprep.subr.bf16.mxu0 0
    %5901 = vmatpush2.bf16.msra.mxu0 0
    %5902 = vmatprep.subr.bf16.mxu0 0
    %5903 = vmatpush2.bf16.msra.mxu0 0
    %5904 = vmatprep.subr.bf16.mxu0 0
    %5905 = vmatpush2.bf16.msra.mxu0 0
    %5906 = vmatprep.subr.bf16.mxu0 0
    %5907 = vmatpush2.bf16.msra.mxu0 0
    %5908 = vmatprep.subr.bf16.mxu0 0
    %5909 = vmatpush2.bf16.msra.mxu0 0
    %5910 = vmatprep.subr.bf16.mxu0 0
    %5911 = vmatpush2.bf16.msra.mxu0 0
    %5912 = vmatprep.subr.bf16.mxu0 0
    %5913 = vmatpush2.bf16.msra.mxu0 0
    %5914 = vmatprep.mubr.bf16.mxu0 0
    %5915 = vmatmul.mubr.bf16.gmra.mxu0 %v5880
    %v5916 = vpop.f32.mrf.mxu0
    %v5917 = vadd.f32 %v5852, %v5916
    %v5918 = vpop.f32.mrf.mxu0
    %v5919 = vpop.f32.mrf.mxu0
    %v5920 = vpop.f32.mrf.mxu0
    %5921 = vdwg.mxu0
    %vm5922 = vcmask 9216
    %v5923 = vsel %vm5922, %v5917, -inf
    %5924 = vmax.xlane.f32.xlu0 %v5923
    %v5925 = vpop.xlane.xlu0 %5924
    %v5926 = vsub.f32 %v5917, %v5925
    %v5927 = vmul.f32 %v5926, 1.442695
    %v5928 = vpow.pop %v5927
    %v5929 = vsel %vm5922, %v5928, 0.0
    %5930 = vadd.xlane.f32.xlu0 %v5929
    %v5931 = vpop.xlane.xlu0 %5930
    %v5932 = vlog2.pop %v5931
    %v5933 = vmul.f32 %v5932, 0.6931472
    %v5934 = vsub.f32 %v5926, %v5933
    %5935 = vst.msk [vmem:[#allocation2] sm:$0x3] %vm5922, %v5934
    // Predicated region
    $region22: #{sgcn_gat_forward.3} parent=1 // pred_check
      _
    $region23: #{sgcn_gat_forward.3} parent=1 // pred_check_branch
      %5937 = sbr.rel (0) target = $region25
    $region24: #{sgcn_gat_forward.3} parent=1 // pred_region
      %s5939 = ssub.s32 32, 32
      %5940 = vsyncadd [#allocation3], %s5939
      %s5942 = sshll.u32 [#allocation2], 4
      %s5943 = int_to_ptr.vmem [resolvable:$true] %s5942
      %5945 = dma.vmem_to_hbm [thread:$0]  %s5943, 32, %s5, [#allocation3]
    $region25: #{sgcn_gat_forward.3} parent=1 // pred_fallthru
      _
    // Predicated region
    $region26: #{sgcn_gat_forward.3} parent=1 // pred_check
      _
    $region27: #{sgcn_gat_forward.3} parent=1 // pred_check_branch
      %5947 = sbr.rel (0) target = $region29
    $region28: #{sgcn_gat_forward.3} parent=1 // pred_region
      %5948 = dma.done [#allocation3], 32
    $region29: #{sgcn_gat_forward.3} parent=1 // pred_fallthru
      _
    %5949 = vsyncpa [#allocation3], 1

</llo_original>
